<compile_context>
chip_gen: v5e
topology: v5e:2x2
jax: 0.10.0
libtpu: 0.0.40
codegen_flags: <defaults>
</compile_context>

<pallas_src>
import functools

import jax
import jax.numpy as jnp
from jax.experimental import pallas as pl
from jax.experimental.pallas import tpu as pltpu


def _linear_kernel(x_ref, w_ref, o_ref, *, apply_relu):
    """One output tile of out = x @ W.T (W in PyTorch [out, in] layout), fused ReLU."""
    # x_ref: (tm, K), w_ref: (tn, K)  ->  contract K (dim 1) against K (dim 1).
    acc = jax.lax.dot_general(
        x_ref[...],
        w_ref[...],
        dimension_numbers=(((1,), (1,)), ((), ())),
        preferred_element_type=jnp.float32,
    )
    if apply_relu:
        acc = jnp.maximum(acc, 0.0)
    o_ref[...] = acc.astype(o_ref.dtype)


def pallas_linear(x, w, *, apply_relu=False, tn=512):
    """out = x @ w.T (+ optional fused ReLU). w is PyTorch-layout [out, in]."""
    M, K = x.shape
    N, K2 = w.shape
    assert K == K2, (x.shape, w.shape)
    assert N % tn == 0, (N, tn)

    itemsize = jnp.dtype(x.dtype).itemsize
    cost = pl.CostEstimate(
        flops=2 * M * N * K,
        transcendentals=0,
        bytes_accessed=(M * K + N * K + M * N) * itemsize,
    )

    return pl.pallas_call(
        functools.partial(_linear_kernel, apply_relu=apply_relu),
        out_shape=jax.ShapeDtypeStruct((M, N), x.dtype),
        grid_spec=pltpu.PrefetchScalarGridSpec(
            num_scalar_prefetch=0,
            grid=(1, N // tn),  # (M // tm, N // tn) with tm = M, tk = K (collapsed)
            in_specs=[
                pl.BlockSpec((M, K), lambda i, j: (i, 0)),    # activations: 8x4096 f32 = 128 KiB
                pl.BlockSpec((tn, K), lambda i, j: (j, 0)),   # weight slab: 512x4096 f32 = 8 MiB
            ],
            out_specs=pl.BlockSpec((M, tn), lambda i, j: (i, j)),
        ),
        compiler_params=pltpu.CompilerParams(
            dimension_semantics=("parallel", "parallel"),
            # ~16.3 MiB actually needed (double-buffered); 32 MiB clears v5e's 16 MiB
            # default scoped limit and stays well inside v7x's 64 MiB physical VMEM.
            vmem_limit_bytes=32 * 1024 * 1024,
        ),
        cost_estimate=cost,
    )(x, w)


@jax.jit
def my_module_forward(x, w1, w2):
    """fc2(relu(fc1(x))) with bias-free nn.Linear layers.

    Weights are passed in PyTorch [out, in] layout; the transpose is folded into
    the kernel's contraction, so no extra HBM traffic is generated.
    """
    h = pallas_linear(x, w1, apply_relu=True)    # out2 = relu(fc1(x))
    out = pallas_linear(h, w2, apply_relu=False)  # out3 = fc2(out2)
    return out


if __name__ == "__main__":
    DIM = 4096   # fixed by the module definition (nn.Linear(4096, 4096))
    BATCH = 8    # small batch

    key = jax.random.PRNGKey(0)
    kx, k1, k2 = jax.random.split(key, 3)

    # Deterministic, PyTorch-default-style init: U(-1/sqrt(fan_in), 1/sqrt(fan_in)).
    bound = 1.0 / jnp.sqrt(jnp.float32(DIM))
    x = jax.random.normal(kx, (BATCH, DIM), dtype=jnp.float32)
    w1 = jax.random.uniform(k1, (DIM, DIM), jnp.float32, -bound, bound)  # fc1.weight [out, in]
    w2 = jax.random.uniform(k2, (DIM, DIM), jnp.float32, -bound, bound)  # fc2.weight [out, in]

    out = my_module_forward(x, w1, w2)
    out = jax.block_until_ready(out)

    # Sanity check against a pure-JAX reference of the same forward pass.
    ref = jnp.maximum(x @ w1.T, 0.0) @ w2.T
    assert out.shape == (BATCH, DIM)
    assert jnp.allclose(out, ref, atol=1e-2, rtol=1e-3), float(
        jnp.max(jnp.abs(out - ref))
    )

    print("KERNEL_OK")
</pallas_src>

<mosaic_0001>
module attributes {stable_mosaic.version = 11 : i64} {
  func.func @_linear_kernel(%arg0: i32, %arg1: i32, %arg2: memref<8x4096xf32, #tpu.memory_space<vmem>>, %arg3: memref<512x4096xf32, #tpu.memory_space<vmem>>, %arg4: memref<8x512xf32, #tpu.memory_space<vmem>>) attributes {dimension_semantics = [#tpu.dimension_semantics<parallel>, #tpu.dimension_semantics<parallel>], iteration_bounds = array<i64: 1, 8>, scalar_prefetch = 0 : i64, scratch_operands = 0 : i64, tpu.core_type = #tpu.core_type<tc>, window_params = [{transform_indices = @transform_0, window_bounds = array<i64: 8, 4096>}, {transform_indices = @transform_1, window_bounds = array<i64: 512, 4096>}, {transform_indices = @transform_2, window_bounds = array<i64: 8, 512>}]} {
    %c0 = arith.constant 0 : index
    %c0_0 = arith.constant 0 : index
    %0 = vector.load %arg2[%c0, %c0_0] : memref<8x4096xf32, #tpu.memory_space<vmem>>, vector<8x4096xf32>
    %c0_1 = arith.constant 0 : index
    %c0_2 = arith.constant 0 : index
    %1 = vector.load %arg3[%c0_1, %c0_2] : memref<512x4096xf32, #tpu.memory_space<vmem>>, vector<512x4096xf32>
    %cst = arith.constant dense<0.000000e+00> : vector<8x512xf32>
    %2 = tpu.matmul %0, %1, %cst {dimension_numbers = #tpu.dot_dimension_numbers<[1], [1], [0], [0], [0, 0, 1, 0], [], []>} : vector<8x4096xf32>, vector<512x4096xf32>, vector<8x512xf32> -> vector<8x512xf32>
    %c0_3 = arith.constant 0 : index
    %c0_4 = arith.constant 0 : index
    %3 = vector.load %arg4[%c0_3, %c0_4] : memref<8x512xf32, #tpu.memory_space<vmem>>, vector<8x512xf32>
    tpu.vector_store %arg4[%c0_3, %c0_4], %2 {strides = array<i32>} : memref<8x512xf32, #tpu.memory_space<vmem>>, vector<8x512xf32>,
    return
  }
  func.func @transform_0(%arg0: i32, %arg1: i32) -> (i32, i32) {
    %c0_i32 = arith.constant 0 : i32
    %c0_i32_0 = arith.constant 0 : i32
    return %arg0, %c0_i32 : i32, i32
  }
  func.func @transform_1(%arg0: i32, %arg1: i32) -> (i32, i32) {
    %c0_i32 = arith.constant 0 : i32
    %c0_i32_0 = arith.constant 0 : i32
    return %arg1, %c0_i32 : i32, i32
  }
  func.func @transform_2(%arg0: i32, %arg1: i32) -> (i32, i32) {
    %c0_i32 = arith.constant 0 : i32
    return %arg0, %arg1 : i32, i32
  }
}

module attributes {stable_mosaic.version = 11 : i64} {
  func.func @_linear_kernel(%arg0: i32, %arg1: i32, %arg2: memref<8x4096xf32, #tpu.memory_space<vmem>>, %arg3: memref<512x4096xf32, #tpu.memory_space<vmem>>, %arg4: memref<8x512xf32, #tpu.memory_space<vmem>>) attributes {dimension_semantics = [#tpu.dimension_semantics<parallel>, #tpu.dimension_semantics<parallel>], iteration_bounds = array<i64: 1, 8>, scalar_prefetch = 0 : i64, scratch_operands = 0 : i64, tpu.core_type = #tpu.core_type<tc>, window_params = [{transform_indices = @transform_0, window_bounds = array<i64: 8, 4096>}, {transform_indices = @transform_1, window_bounds = array<i64: 512, 4096>}, {transform_indices = @transform_2, window_bounds = array<i64: 8, 512>}]} {
    %c0 = arith.constant 0 : index
    %c0_0 = arith.constant 0 : index
    %0 = vector.load %arg2[%c0, %c0_0] : memref<8x4096xf32, #tpu.memory_space<vmem>>, vector<8x4096xf32>
    %c0_1 = arith.constant 0 : index
    %c0_2 = arith.constant 0 : index
    %1 = vector.load %arg3[%c0_1, %c0_2] : memref<512x4096xf32, #tpu.memory_space<vmem>>, vector<512x4096xf32>
    %cst = arith.constant dense<0.000000e+00> : vector<8x512xf32>
    %2 = tpu.matmul %0, %1, %cst {dimension_numbers = #tpu.dot_dimension_numbers<[1], [1], [0], [0], [0, 0, 1, 0], [], []>} : vector<8x4096xf32>, vector<512x4096xf32>, vector<8x512xf32> -> vector<8x512xf32>
    %cst_3 = arith.constant 0.000000e+00 : f32
    %3 = vector.broadcast %cst_3 : f32 to vector<8x512xf32>
    %4 = arith.maximumf %2, %3 : vector<8x512xf32>
    %c0_4 = arith.constant 0 : index
    %c0_5 = arith.constant 0 : index
    %5 = vector.load %arg4[%c0_4, %c0_5] : memref<8x512xf32, #tpu.memory_space<vmem>>, vector<8x512xf32>
    tpu.vector_store %arg4[%c0_4, %c0_5], %4 {strides = array<i32>} : memref<8x512xf32, #tpu.memory_space<vmem>>, vector<8x512xf32>,
    return
  }
  func.func @transform_0(%arg0: i32, %arg1: i32) -> (i32, i32) {
    %c0_i32 = arith.constant 0 : i32
    %c0_i32_0 = arith.constant 0 : i32
    return %arg0, %c0_i32 : i32, i32
  }
  func.func @transform_1(%arg0: i32, %arg1: i32) -> (i32, i32) {
    %c0_i32 = arith.constant 0 : i32
    %c0_i32_0 = arith.constant 0 : i32
    return %arg1, %c0_i32 : i32, i32
  }
  func.func @transform_2(%arg0: i32, %arg1: i32) -> (i32, i32) {
    %c0_i32 = arith.constant 0 : i32
    return %arg0, %arg1 : i32, i32
  }
}

</mosaic_0001>

<llo_original>
// kernel: my_module_forward.2
$region0: #{my_module_forward.2}
  #allocation0 [shape = 'u32[]', space=smem, size = 0x4, offset = 0x4, fixed_abs, tag = 'smem constant byte address 0x4 - core index']
  #allocation1 [shape = 'u32[72,128]{1,0:T(1,128)}', space=vmem, size = 0x9000, scoped, tag = 'internal scratch']
  %s0 = inlined_call_operand.hbm [shape: f32[8,4096], index: 0, kind: input, shape index: {}]
  %s1 = inlined_call_operand.hbm [shape: f32[4096,4096], index: 1, kind: input, shape index: {}]
  %s2 = inlined_call_operand.vmem [shape: f32[8,4096], index: 2, kind: output, shape index: {}]
  %s3 = sld [smem:[#allocation0]]
  $region49: #{my_module_forward.2} parent=0
    _
  %s5 = ssub.s32 1, %s3
  %s6 = scalar_select 0, %s5, %s3
  $region1: #{my_module_forward.2} parent=0
    #allocation2 [shape = 'u8[131072]{0}', space=vmem, size = 0x20000, scoped, tag = 'input window, operand 0, single buffered']
    #allocation3 [shape = 's32[2]{0}', space=sflag, size = 0x8, scoped, tag = 'scoped memory for my_module_forward.2']
    #allocation4 [shape = 'u8[16777216]{0}', space=vmem, size = 0x1000000, scoped, tag = 'input window, operand 1']
    #allocation5 [shape = 's32[2]{0}', space=sflag, size = 0x8, scoped, tag = 'scoped memory for my_module_forward.2']
    %7 = vsyncpa [#allocation3], 0
    %8 = vsyncpa [#allocation5], 0
    %s9 = scalar_lea.sflag [#allocation5], 1
    %10 = vsyncpa %s9, 0
    loop: start=0, step=1, limit=10
    $region2: #{my_module_forward.2} parent=1 // loop_pre_header
      _
    $region3: #{my_module_forward.2} parent=1 // loop_header
      %s12 = sphi 0, %s16
      %p13 = scmp.ge.s32.totalorder %s12, 10
      %s19 = sphi 0, %s31
      %s20 = sphi 0, %s27
      %s21 = sphi 0, %s19
      %s22 = sphi 0, %s20
      %s23 = sphi 0, %s21
      %s24 = sphi 0, %s22
      %s34 = sphi 0, %s36
      %s37 = sphi 0, %s34
      %s38 = sphi 0, %s37
      %s54 = sphi 0, %s38
      %s60 = sphi 0, %s62
      %s63 = sphi 0, %s60
      %s64 = sphi 0, %s63
      %s80 = sphi 0, %s64
      %s88 = sphi 0, %s90
      %s91 = sphi 0, %s88
      %s92 = sphi 0, %s91
      %s108 = sphi 0, %s92
    $region4: #{my_module_forward.2} parent=1 // loop_header_branch
      %15 = sbr.rel (%p13) target = $region8
    $region5: #{my_module_forward.2} parent=1 // loop_body
      %s17 = ssub.s32 %s12, 1
      %s18 = ssub.s32 %s12, 2
      %s25 = sadd.s32 1, %s20
      %p26 = scmp.ge.s32.totalorder %s25, 8
      %s27 = scalar_select %p26, 0, %s25
      %s28 = sadd.s32 1, %s19
      %s29 = scalar_select %p26, %s28, %s19
      %p30 = scmp.ge.s32.totalorder %s29, 1
      %s31 = scalar_select %p30, 0, %s29
      %s32 = ssub.s32 %s19, %s31
      %p33 = scmp.eq.s32.totalorder %s32, 0
      %s35 = sadd.s32 %s34, 1
      %s36 = scalar_select %p33, %s34, %s35
      %p39 = pneg %p33
      %p40 = scmp.eq.s32.totalorder %s12, 7
      %p41 = por %p39, %p40
      %p42 = scmp.ne.s32.totalorder %s34, %s37
      %p43 = scmp.eq.s32.totalorder %s12, 0
      %p44 = por %p42, %p43
      %p45 = scmp.ne.s32.totalorder %s34, %s37
      %p46 = scmp.eq.s32.totalorder %s17, 7
      %p47 = por %p45, %p46
      %p48 = scmp.ne.s32.totalorder %s37, %s38
      %p49 = scmp.eq.s32.totalorder %s17, 0
      %p50 = por %p48, %p49
      %p51 = scmp.ne.s32.totalorder %s37, %s38
      %p52 = scmp.eq.s32.totalorder %s18, 7
      %p53 = por %p51, %p52
      %p55 = scmp.ne.s32.totalorder %s38, %s54
      %p56 = scmp.eq.s32.totalorder %s18, 0
      %p57 = por %p55, %p56
      %s58 = ssub.s32 %s20, %s27
      %p59 = scmp.eq.s32.totalorder %s58, 0
      %s61 = sadd.s32 %s60, 1
      %s62 = scalar_select %p59, %s60, %s61
      %p65 = pneg %p59
      %p66 = scmp.eq.s32.totalorder %s12, 7
      %p67 = por %p65, %p66
      %p68 = scmp.ne.s32.totalorder %s60, %s63
      %p69 = scmp.eq.s32.totalorder %s12, 0
      %p70 = por %p68, %p69
      %p71 = scmp.ne.s32.totalorder %s60, %s63
      %p72 = scmp.eq.s32.totalorder %s17, 7
      %p73 = por %p71, %p72
      %p74 = scmp.ne.s32.totalorder %s63, %s64
      %p75 = scmp.eq.s32.totalorder %s17, 0
      %p76 = por %p74, %p75
      %p77 = scmp.ne.s32.totalorder %s63, %s64
      %p78 = scmp.eq.s32.totalorder %s18, 7
      %p79 = por %p77, %p78
      %p81 = scmp.ne.s32.totalorder %s64, %s80
      %p82 = scmp.eq.s32.totalorder %s18, 0
      %p83 = por %p81, %p82
      %s84 = ssub.s32 %s19, %s31
      %s85 = ssub.s32 %s20, %s27
      %s86 = sor.u32 %s84, %s85
      %p87 = scmp.eq.s32.totalorder %s86, 0
      %s89 = sadd.s32 %s88, 1
      %s90 = scalar_select %p87, %s88, %s89
      %p93 = pneg %p87
      %p94 = scmp.eq.s32.totalorder %s12, 7
      %p95 = por %p93, %p94
      %p96 = scmp.ne.s32.totalorder %s88, %s91
      %p97 = scmp.eq.s32.totalorder %s12, 0
      %p98 = por %p96, %p97
      %p99 = scmp.ne.s32.totalorder %s88, %s91
      %p100 = scmp.eq.s32.totalorder %s17, 7
      %p101 = por %p99, %p100
      %p102 = scmp.ne.s32.totalorder %s91, %s92
      %p103 = scmp.eq.s32.totalorder %s17, 0
      %p104 = por %p102, %p103
      %p105 = scmp.ne.s32.totalorder %s91, %s92
      %p106 = scmp.eq.s32.totalorder %s18, 7
      %p107 = por %p105, %p106
      %p109 = scmp.ne.s32.totalorder %s92, %s108
      %p110 = scmp.eq.s32.totalorder %s18, 0
      %p111 = por %p109, %p110
      %p112 = scmp.le.s32.totalorder 1, %s12
      %p113 = scmp.lt.s32.totalorder %s12, 9
      %p114 = pnand %p112, %p113
      %p115 = pneg %p114
      // Predicated region
      $region9: #{my_module_forward.2} parent=5 // pred_check
        _
      $region10: #{my_module_forward.2} parent=5 // pred_check_branch
        %117 = sbr.rel (%p114) target = $region12
      $region11: #{my_module_forward.2} parent=5 // pred_region
        %s118 = ssub.s32 %s12, 1
        // Predicated region
        $region13: #{my_module_forward.2} parent=11 // pred_check
          %p119 = pneg %p50
        $region14: #{my_module_forward.2} parent=11 // pred_check_branch
          %121 = sbr.rel (%p119) target = $region16
        $region15: #{my_module_forward.2} parent=11 // pred_region
          %123 = vsyncadd [#allocation3], 0
          %s124 = smul.addr %s21, 32
          %s125 = smul.addr %s124, 8
          %s126 = scalar_lea.hbm %s0, %s125
          %s128 = sshll.u32 %s126, 4
          %s129 = int_to_ptr.hbm [resolvable:$true] %s128
          %s130 = sshll.u32 [#allocation2], 4
          %s131 = int_to_ptr.vmem [resolvable:$true] %s130
          %133 = dma.hbm_to_vmem [thread:$0]  %s129, 4096, %s131, [#allocation3]
        $region16: #{my_module_forward.2} parent=11 // pred_fallthru
          _
      $region12: #{my_module_forward.2} parent=5 // pred_fallthru
        _
      %p134 = scmp.lt.s32.totalorder %s12, 8
      // Predicated region
      $region17: #{my_module_forward.2} parent=5 // pred_check
        %p135 = pneg %p134
      $region18: #{my_module_forward.2} parent=5 // pred_check_branch
        %137 = sbr.rel (%p135) target = $region20
      $region19: #{my_module_forward.2} parent=5 // pred_region
        // Predicated region
        $region21: #{my_module_forward.2} parent=19 // pred_check
          %p138 = pneg %p70
        $region22: #{my_module_forward.2} parent=19 // pred_check_branch
          %140 = sbr.rel (%p138) target = $region24
        $region23: #{my_module_forward.2} parent=19 // pred_region
          %s141 = sand.u32 %s60, 1
          %s142 = scalar_lea.sflag [#allocation5], %s141
          %s143 = sand.u32 %s60, 1
          %s144 = smul.addr %s143, 16384
          %s145 = scalar_lea.vmem [#allocation4], %s144
          %s146 = smul.u32 64, %s20
          %148 = vsyncadd %s142, 0
          %s149 = smul.addr %s146, 32
          %s150 = smul.addr %s149, 8
          %s151 = scalar_lea.hbm %s1, %s150
          %s152 = sshll.u32 %s151, 4
          %s153 = int_to_ptr.hbm [resolvable:$true] %s152
          %s154 = sshll.u32 %s145, 4
          %s155 = int_to_ptr.vmem [resolvable:$true] %s154
          %160 = dma.hbm_to_vmem [thread:$0]  %s153, 262144, %s155, %s142, 4096, 4096, 256
        $region24: #{my_module_forward.2} parent=19 // pred_fallthru
          _
      $region20: #{my_module_forward.2} parent=5 // pred_fallthru
        _
      %p161 = scmp.le.s32.totalorder 1, %s12
      %p162 = scmp.lt.s32.totalorder %s12, 9
      %p163 = pnand %p161, %p162
      %p164 = pneg %p163
      // Predicated region
      $region25: #{my_module_forward.2} parent=5 // pred_check
        _
      $region26: #{my_module_forward.2} parent=5 // pred_check_branch
        %166 = sbr.rel (%p163) target = $region28
      $region27: #{my_module_forward.2} parent=5 // pred_region
        %s167 = ssub.s32 %s12, 1
        // Predicated region
        $region29: #{my_module_forward.2} parent=27 // pred_check
          %p168 = pneg %p50
        $region30: #{my_module_forward.2} parent=27 // pred_check_branch
          %170 = sbr.rel (%p168) target = $region32
        $region31: #{my_module_forward.2} parent=27 // pred_region
          %172 = dma.done [#allocation3], 4096
        $region32: #{my_module_forward.2} parent=27 // pred_fallthru
          _
        %s173 = sand.u32 %s63, 1
        %s174 = scalar_lea.sflag [#allocation5], %s173
        %s175 = sand.u32 %s63, 1
        %s176 = smul.addr %s175, 16384
        %s177 = scalar_lea.vmem [#allocation4], %s176
        // Predicated region
        $region33: #{my_module_forward.2} parent=27 // pred_check
          %p178 = pneg %p76
        $region34: #{my_module_forward.2} parent=27 // pred_check_branch
          %180 = sbr.rel (%p178) target = $region36
        $region35: #{my_module_forward.2} parent=27 // pred_region
          %182 = dma.done %s174, 262144
        $region36: #{my_module_forward.2} parent=27 // pred_fallthru
          _
        %p183 = pneg %p50
        %p184 = pneg %p47
        %s185 = sand.u32 %s63, 1
        %s186 = scalar_lea.sflag [#allocation5], %s185
        %s187 = sand.u32 %s63, 1
        %s188 = smul.addr %s187, 16384
        %s189 = scalar_lea.vmem [#allocation4], %s188
        %p190 = pneg %p76
        %p191 = pneg %p73
        %p192 = pneg %p104
        %p193 = pneg %p101
        %s194 = smul.u32 4, %s22
        %p195 = scmp.lt.s32.totalorder %s21, 0
        %s196 = scalar_select %p195, %s21, 0
        %p197 = scmp.lt.s32.totalorder %s194, 31
        %s198 = scalar_select %p197, %s194, 31
        %s199 = smul.addr %s196, 32
        %s200 = sadd.s32 %s198, %s199
        %s201 = smul.addr %s200, 8
        %s202 = scalar_lea.vmem %s2, %s201
        %s203 = smul.u32 64, %s22
        %s204 = smul.u32 4, %s22
        %p205 = scmp.lt.s32.totalorder %s21, 0
        %s206 = scalar_select %p205, %s21, 0
        %p207 = scmp.lt.s32.totalorder %s204, 31
        %s208 = scalar_select %p207, %s204, 31
        %s209 = smul.addr %s206, 32
        %s210 = sadd.s32 %s208, %s209
        %s211 = smul.addr %s210, 8
        %s212 = scalar_lea.vmem %s2, %s211
        %s213 = smul.u32 4, %s22
        %v214 = vld [vmem:[#allocation2] sm:$0xff]
        %v215 = vld [vmem:[#allocation2 + $0x8] sm:$0xff]
        %v216 = vld [vmem:[#allocation2 + $0x10] sm:$0xff]
        %v217 = vld [vmem:[#allocation2 + $0x18] sm:$0xff]
        %v218 = vld [vmem:[#allocation2 + $0x20] sm:$0xff]
        %v219 = vld [vmem:[#allocation2 + $0x28] sm:$0xff]
        %v220 = vld [vmem:[#allocation2 + $0x30] sm:$0xff]
        %v221 = vld [vmem:[#allocation2 + $0x38] sm:$0xff]
        %v222 = vld [vmem:[#allocation2 + $0x40] sm:$0xff]
        %v223 = vld [vmem:[#allocation2 + $0x48] sm:$0xff]
        %v224 = vld [vmem:[#allocation2 + $0x50] sm:$0xff]
        %v225 = vld [vmem:[#allocation2 + $0x58] sm:$0xff]
        %v226 = vld [vmem:[#allocation2 + $0x60] sm:$0xff]
        %v227 = vld [vmem:[#allocation2 + $0x68] sm:$0xff]
        %v228 = vld [vmem:[#allocation2 + $0x70] sm:$0xff]
        %v229 = vld [vmem:[#allocation2 + $0x78] sm:$0xff]
        %v230 = vld [vmem:[#allocation2 + $0x80] sm:$0xff]
        %v231 = vld [vmem:[#allocation2 + $0x88] sm:$0xff]
        %v232 = vld [vmem:[#allocation2 + $0x90] sm:$0xff]
        %v233 = vld [vmem:[#allocation2 + $0x98] sm:$0xff]
        %v234 = vld [vmem:[#allocation2 + $0xa0] sm:$0xff]
        %v235 = vld [vmem:[#allocation2 + $0xa8] sm:$0xff]
        %v236 = vld [vmem:[#allocation2 + $0xb0] sm:$0xff]
        %v237 = vld [vmem:[#allocation2 + $0xb8] sm:$0xff]
        %v238 = vld [vmem:[#allocation2 + $0xc0] sm:$0xff]
        %v239 = vld [vmem:[#allocation2 + $0xc8] sm:$0xff]
        %v240 = vld [vmem:[#allocation2 + $0xd0] sm:$0xff]
        %v241 = vld [vmem:[#allocation2 + $0xd8] sm:$0xff]
        %v242 = vld [vmem:[#allocation2 + $0xe0] sm:$0xff]
        %v243 = vld [vmem:[#allocation2 + $0xe8] sm:$0xff]
        %v244 = vld [vmem:[#allocation2 + $0xf0] sm:$0xff]
        %v245 = vld [vmem:[#allocation2 + $0xf8] sm:$0xff]
        %v246 = vld [vmem:[%s177] sm:$0xff]
        %v247 = vld [vmem:[%s177 + $0x8] sm:$0xff]
        %v248 = vld [vmem:[%s177 + $0x10] sm:$0xff]
        %v249 = vld [vmem:[%s177 + $0x18] sm:$0xff]
        %v250 = vld [vmem:[%s177 + $0x20] sm:$0xff]
        %v251 = vld [vmem:[%s177 + $0x28] sm:$0xff]
        %v252 = vld [vmem:[%s177 + $0x30] sm:$0xff]
        %v253 = vld [vmem:[%s177 + $0x38] sm:$0xff]
        %v254 = vld [vmem:[%s177 + $0x40] sm:$0xff]
        %v255 = vld [vmem:[%s177 + $0x48] sm:$0xff]
        %v256 = vld [vmem:[%s177 + $0x50] sm:$0xff]
        %v257 = vld [vmem:[%s177 + $0x58] sm:$0xff]
        %v258 = vld [vmem:[%s177 + $0x60] sm:$0xff]
        %v259 = vld [vmem:[%s177 + $0x68] sm:$0xff]
        %v260 = vld [vmem:[%s177 + $0x70] sm:$0xff]
        %v261 = vld [vmem:[%s177 + $0x78] sm:$0xff]
        %v262 = vld [vmem:[%s177 + $0x80] sm:$0xff]
        %v263 = vld [vmem:[%s177 + $0x88] sm:$0xff]
        %v264 = vld [vmem:[%s177 + $0x90] sm:$0xff]
        %v265 = vld [vmem:[%s177 + $0x98] sm:$0xff]
        %v266 = vld [vmem:[%s177 + $0xa0] sm:$0xff]
        %v267 = vld [vmem:[%s177 + $0xa8] sm:$0xff]
        %v268 = vld [vmem:[%s177 + $0xb0] sm:$0xff]
        %v269 = vld [vmem:[%s177 + $0xb8] sm:$0xff]
        %v270 = vld [vmem:[%s177 + $0xc0] sm:$0xff]
        %v271 = vld [vmem:[%s177 + $0xc8] sm:$0xff]
        %v272 = vld [vmem:[%s177 + $0xd0] sm:$0xff]
        %v273 = vld [vmem:[%s177 + $0xd8] sm:$0xff]
        %v274 = vld [vmem:[%s177 + $0xe0] sm:$0xff]
        %v275 = vld [vmem:[%s177 + $0xe8] sm:$0xff]
        %v276 = vld [vmem:[%s177 + $0xf0] sm:$0xff]
        %v277 = vld [vmem:[%s177 + $0xf8] sm:$0xff]
        %v278 = vld [vmem:[%s177 + $0x100] sm:$0xff]
        %v279 = vld [vmem:[%s177 + $0x108] sm:$0xff]
        %v280 = vld [vmem:[%s177 + $0x110] sm:$0xff]
        %v281 = vld [vmem:[%s177 + $0x118] sm:$0xff]
        %v282 = vld [vmem:[%s177 + $0x120] sm:$0xff]
        %v283 = vld [vmem:[%s177 + $0x128] sm:$0xff]
        %v284 = vld [vmem:[%s177 + $0x130] sm:$0xff]
        %v285 = vld [vmem:[%s177 + $0x138] sm:$0xff]
        %v286 = vld [vmem:[%s177 + $0x140] sm:$0xff]
        %v287 = vld [vmem:[%s177 + $0x148] sm:$0xff]
        %v288 = vld [vmem:[%s177 + $0x150] sm:$0xff]
        %v289 = vld [vmem:[%s177 + $0x158] sm:$0xff]
        %v290 = vld [vmem:[%s177 + $0x160] sm:$0xff]
        %v291 = vld [vmem:[%s177 + $0x168] sm:$0xff]
        %v292 = vld [vmem:[%s177 + $0x170] sm:$0xff]
        %v293 = vld [vmem:[%s177 + $0x178] sm:$0xff]
        %v294 = vld [vmem:[%s177 + $0x180] sm:$0xff]
        %v295 = vld [vmem:[%s177 + $0x188] sm:$0xff]
        %v296 = vld [vmem:[%s177 + $0x190] sm:$0xff]
        %v297 = vld [vmem:[%s177 + $0x198] sm:$0xff]
        %v298 = vld [vmem:[%s177 + $0x1a0] sm:$0xff]
        %v299 = vld [vmem:[%s177 + $0x1a8] sm:$0xff]
        %v300 = vld [vmem:[%s177 + $0x1b0] sm:$0xff]
        %v301 = vld [vmem:[%s177 + $0x1b8] sm:$0xff]
        %v302 = vld [vmem:[%s177 + $0x1c0] sm:$0xff]
        %v303 = vld [vmem:[%s177 + $0x1c8] sm:$0xff]
        %v304 = vld [vmem:[%s177 + $0x1d0] sm:$0xff]
        %v305 = vld [vmem:[%s177 + $0x1d8] sm:$0xff]
        %v306 = vld [vmem:[%s177 + $0x1e0] sm:$0xff]
        %v307 = vld [vmem:[%s177 + $0x1e8] sm:$0xff]
        %v308 = vld [vmem:[%s177 + $0x1f0] sm:$0xff]
        %v309 = vld [vmem:[%s177 + $0x1f8] sm:$0xff]
        %v310 = vld [vmem:[%s177 + $0x200] sm:$0xff]
        %v311 = vld [vmem:[%s177 + $0x208] sm:$0xff]
        %v312 = vld [vmem:[%s177 + $0x210] sm:$0xff]
        %v313 = vld [vmem:[%s177 + $0x218] sm:$0xff]
        %v314 = vld [vmem:[%s177 + $0x220] sm:$0xff]
        %v315 = vld [vmem:[%s177 + $0x228] sm:$0xff]
        %v316 = vld [vmem:[%s177 + $0x230] sm:$0xff]
        %v317 = vld [vmem:[%s177 + $0x238] sm:$0xff]
        %v318 = vld [vmem:[%s177 + $0x240] sm:$0xff]
        %v319 = vld [vmem:[%s177 + $0x248] sm:$0xff]
        %v320 = vld [vmem:[%s177 + $0x250] sm:$0xff]
        %v321 = vld [vmem:[%s177 + $0x258] sm:$0xff]
        %v322 = vld [vmem:[%s177 + $0x260] sm:$0xff]
        %v323 = vld [vmem:[%s177 + $0x268] sm:$0xff]
        %v324 = vld [vmem:[%s177 + $0x270] sm:$0xff]
        %v325 = vld [vmem:[%s177 + $0x278] sm:$0xff]
        %v326 = vld [vmem:[%s177 + $0x280] sm:$0xff]
        %v327 = vld [vmem:[%s177 + $0x288] sm:$0xff]
        %v328 = vld [vmem:[%s177 + $0x290] sm:$0xff]
        %v329 = vld [vmem:[%s177 + $0x298] sm:$0xff]
        %v330 = vld [vmem:[%s177 + $0x2a0] sm:$0xff]
        %v331 = vld [vmem:[%s177 + $0x2a8] sm:$0xff]
        %v332 = vld [vmem:[%s177 + $0x2b0] sm:$0xff]
        %v333 = vld [vmem:[%s177 + $0x2b8] sm:$0xff]
        %v334 = vld [vmem:[%s177 + $0x2c0] sm:$0xff]
        %v335 = vld [vmem:[%s177 + $0x2c8] sm:$0xff]
        %v336 = vld [vmem:[%s177 + $0x2d0] sm:$0xff]
        %v337 = vld [vmem:[%s177 + $0x2d8] sm:$0xff]
        %v338 = vld [vmem:[%s177 + $0x2e0] sm:$0xff]
        %v339 = vld [vmem:[%s177 + $0x2e8] sm:$0xff]
        %v340 = vld [vmem:[%s177 + $0x2f0] sm:$0xff]
        %v341 = vld [vmem:[%s177 + $0x2f8] sm:$0xff]
        %v342 = vld [vmem:[%s177 + $0x300] sm:$0xff]
        %v343 = vld [vmem:[%s177 + $0x308] sm:$0xff]
        %v344 = vld [vmem:[%s177 + $0x310] sm:$0xff]
        %v345 = vld [vmem:[%s177 + $0x318] sm:$0xff]
        %v346 = vld [vmem:[%s177 + $0x320] sm:$0xff]
        %v347 = vld [vmem:[%s177 + $0x328] sm:$0xff]
        %v348 = vld [vmem:[%s177 + $0x330] sm:$0xff]
        %v349 = vld [vmem:[%s177 + $0x338] sm:$0xff]
        %v350 = vld [vmem:[%s177 + $0x340] sm:$0xff]
        %v351 = vld [vmem:[%s177 + $0x348] sm:$0xff]
        %v352 = vld [vmem:[%s177 + $0x350] sm:$0xff]
        %v353 = vld [vmem:[%s177 + $0x358] sm:$0xff]
        %v354 = vld [vmem:[%s177 + $0x360] sm:$0xff]
        %v355 = vld [vmem:[%s177 + $0x368] sm:$0xff]
        %v356 = vld [vmem:[%s177 + $0x370] sm:$0xff]
        %v357 = vld [vmem:[%s177 + $0x378] sm:$0xff]
        %v358 = vld [vmem:[%s177 + $0x380] sm:$0xff]
        %v359 = vld [vmem:[%s177 + $0x388] sm:$0xff]
        %v360 = vld [vmem:[%s177 + $0x390] sm:$0xff]
        %v361 = vld [vmem:[%s177 + $0x398] sm:$0xff]
        %v362 = vld [vmem:[%s177 + $0x3a0] sm:$0xff]
        %v363 = vld [vmem:[%s177 + $0x3a8] sm:$0xff]
        %v364 = vld [vmem:[%s177 + $0x3b0] sm:$0xff]
        %v365 = vld [vmem:[%s177 + $0x3b8] sm:$0xff]
        %v366 = vld [vmem:[%s177 + $0x3c0] sm:$0xff]
        %v367 = vld [vmem:[%s177 + $0x3c8] sm:$0xff]
        %v368 = vld [vmem:[%s177 + $0x3d0] sm:$0xff]
        %v369 = vld [vmem:[%s177 + $0x3d8] sm:$0xff]
        %v370 = vld [vmem:[%s177 + $0x3e0] sm:$0xff]
        %v371 = vld [vmem:[%s177 + $0x3e8] sm:$0xff]
        %v372 = vld [vmem:[%s177 + $0x3f0] sm:$0xff]
        %v373 = vld [vmem:[%s177 + $0x3f8] sm:$0xff]
        %v374 = vld [vmem:[%s177 + $0x400] sm:$0xff]
        %v375 = vld [vmem:[%s177 + $0x408] sm:$0xff]
        %v376 = vld [vmem:[%s177 + $0x410] sm:$0xff]
        %v377 = vld [vmem:[%s177 + $0x418] sm:$0xff]
        %v378 = vld [vmem:[%s177 + $0x420] sm:$0xff]
        %v379 = vld [vmem:[%s177 + $0x428] sm:$0xff]
        %v380 = vld [vmem:[%s177 + $0x430] sm:$0xff]
        %v381 = vld [vmem:[%s177 + $0x438] sm:$0xff]
        %v382 = vld [vmem:[%s177 + $0x440] sm:$0xff]
        %v383 = vld [vmem:[%s177 + $0x448] sm:$0xff]
        %v384 = vld [vmem:[%s177 + $0x450] sm:$0xff]
        %v385 = vld [vmem:[%s177 + $0x458] sm:$0xff]
        %v386 = vld [vmem:[%s177 + $0x460] sm:$0xff]
        %v387 = vld [vmem:[%s177 + $0x468] sm:$0xff]
        %v388 = vld [vmem:[%s177 + $0x470] sm:$0xff]
        %v389 = vld [vmem:[%s177 + $0x478] sm:$0xff]
        %v390 = vld [vmem:[%s177 + $0x480] sm:$0xff]
        %v391 = vld [vmem:[%s177 + $0x488] sm:$0xff]
        %v392 = vld [vmem:[%s177 + $0x490] sm:$0xff]
        %v393 = vld [vmem:[%s177 + $0x498] sm:$0xff]
        %v394 = vld [vmem:[%s177 + $0x4a0] sm:$0xff]
        %v395 = vld [vmem:[%s177 + $0x4a8] sm:$0xff]
        %v396 = vld [vmem:[%s177 + $0x4b0] sm:$0xff]
        %v397 = vld [vmem:[%s177 + $0x4b8] sm:$0xff]
        %v398 = vld [vmem:[%s177 + $0x4c0] sm:$0xff]
        %v399 = vld [vmem:[%s177 + $0x4c8] sm:$0xff]
        %v400 = vld [vmem:[%s177 + $0x4d0] sm:$0xff]
        %v401 = vld [vmem:[%s177 + $0x4d8] sm:$0xff]
        %v402 = vld [vmem:[%s177 + $0x4e0] sm:$0xff]
        %v403 = vld [vmem:[%s177 + $0x4e8] sm:$0xff]
        %v404 = vld [vmem:[%s177 + $0x4f0] sm:$0xff]
        %v405 = vld [vmem:[%s177 + $0x4f8] sm:$0xff]
        %v406 = vld [vmem:[%s177 + $0x500] sm:$0xff]
        %v407 = vld [vmem:[%s177 + $0x508] sm:$0xff]
        %v408 = vld [vmem:[%s177 + $0x510] sm:$0xff]
        %v409 = vld [vmem:[%s177 + $0x518] sm:$0xff]
        %v410 = vld [vmem:[%s177 + $0x520] sm:$0xff]
        %v411 = vld [vmem:[%s177 + $0x528] sm:$0xff]
        %v412 = vld [vmem:[%s177 + $0x530] sm:$0xff]
        %v413 = vld [vmem:[%s177 + $0x538] sm:$0xff]
        %v414 = vld [vmem:[%s177 + $0x540] sm:$0xff]
        %v415 = vld [vmem:[%s177 + $0x548] sm:$0xff]
        %v416 = vld [vmem:[%s177 + $0x550] sm:$0xff]
        %v417 = vld [vmem:[%s177 + $0x558] sm:$0xff]
        %v418 = vld [vmem:[%s177 + $0x560] sm:$0xff]
        %v419 = vld [vmem:[%s177 + $0x568] sm:$0xff]
        %v420 = vld [vmem:[%s177 + $0x570] sm:$0xff]
        %v421 = vld [vmem:[%s177 + $0x578] sm:$0xff]
        %v422 = vld [vmem:[%s177 + $0x580] sm:$0xff]
        %v423 = vld [vmem:[%s177 + $0x588] sm:$0xff]
        %v424 = vld [vmem:[%s177 + $0x590] sm:$0xff]
        %v425 = vld [vmem:[%s177 + $0x598] sm:$0xff]
        %v426 = vld [vmem:[%s177 + $0x5a0] sm:$0xff]
        %v427 = vld [vmem:[%s177 + $0x5a8] sm:$0xff]
        %v428 = vld [vmem:[%s177 + $0x5b0] sm:$0xff]
        %v429 = vld [vmem:[%s177 + $0x5b8] sm:$0xff]
        %v430 = vld [vmem:[%s177 + $0x5c0] sm:$0xff]
        %v431 = vld [vmem:[%s177 + $0x5c8] sm:$0xff]
        %v432 = vld [vmem:[%s177 + $0x5d0] sm:$0xff]
        %v433 = vld [vmem:[%s177 + $0x5d8] sm:$0xff]
        %v434 = vld [vmem:[%s177 + $0x5e0] sm:$0xff]
        %v435 = vld [vmem:[%s177 + $0x5e8] sm:$0xff]
        %v436 = vld [vmem:[%s177 + $0x5f0] sm:$0xff]
        %v437 = vld [vmem:[%s177 + $0x5f8] sm:$0xff]
        %v438 = vld [vmem:[%s177 + $0x600] sm:$0xff]
        %v439 = vld [vmem:[%s177 + $0x608] sm:$0xff]
        %v440 = vld [vmem:[%s177 + $0x610] sm:$0xff]
        %v441 = vld [vmem:[%s177 + $0x618] sm:$0xff]
        %v442 = vld [vmem:[%s177 + $0x620] sm:$0xff]
        %v443 = vld [vmem:[%s177 + $0x628] sm:$0xff]
        %v444 = vld [vmem:[%s177 + $0x630] sm:$0xff]
        %v445 = vld [vmem:[%s177 + $0x638] sm:$0xff]
        %v446 = vld [vmem:[%s177 + $0x640] sm:$0xff]
        %v447 = vld [vmem:[%s177 + $0x648] sm:$0xff]
        %v448 = vld [vmem:[%s177 + $0x650] sm:$0xff]
        %v449 = vld [vmem:[%s177 + $0x658] sm:$0xff]
        %v450 = vld [vmem:[%s177 + $0x660] sm:$0xff]
        %v451 = vld [vmem:[%s177 + $0x668] sm:$0xff]
        %v452 = vld [vmem:[%s177 + $0x670] sm:$0xff]
        %v453 = vld [vmem:[%s177 + $0x678] sm:$0xff]
        %v454 = vld [vmem:[%s177 + $0x680] sm:$0xff]
        %v455 = vld [vmem:[%s177 + $0x688] sm:$0xff]
        %v456 = vld [vmem:[%s177 + $0x690] sm:$0xff]
        %v457 = vld [vmem:[%s177 + $0x698] sm:$0xff]
        %v458 = vld [vmem:[%s177 + $0x6a0] sm:$0xff]
        %v459 = vld [vmem:[%s177 + $0x6a8] sm:$0xff]
        %v460 = vld [vmem:[%s177 + $0x6b0] sm:$0xff]
        %v461 = vld [vmem:[%s177 + $0x6b8] sm:$0xff]
        %v462 = vld [vmem:[%s177 + $0x6c0] sm:$0xff]
        %v463 = vld [vmem:[%s177 + $0x6c8] sm:$0xff]
        %v464 = vld [vmem:[%s177 + $0x6d0] sm:$0xff]
        %v465 = vld [vmem:[%s177 + $0x6d8] sm:$0xff]
        %v466 = vld [vmem:[%s177 + $0x6e0] sm:$0xff]
        %v467 = vld [vmem:[%s177 + $0x6e8] sm:$0xff]
        %v468 = vld [vmem:[%s177 + $0x6f0] sm:$0xff]
        %v469 = vld [vmem:[%s177 + $0x6f8] sm:$0xff]
        %v470 = vld [vmem:[%s177 + $0x700] sm:$0xff]
        %v471 = vld [vmem:[%s177 + $0x708] sm:$0xff]
        %v472 = vld [vmem:[%s177 + $0x710] sm:$0xff]
        %v473 = vld [vmem:[%s177 + $0x718] sm:$0xff]
        %v474 = vld [vmem:[%s177 + $0x720] sm:$0xff]
        %v475 = vld [vmem:[%s177 + $0x728] sm:$0xff]
        %v476 = vld [vmem:[%s177 + $0x730] sm:$0xff]
        %v477 = vld [vmem:[%s177 + $0x738] sm:$0xff]
        %v478 = vld [vmem:[%s177 + $0x740] sm:$0xff]
        %v479 = vld [vmem:[%s177 + $0x748] sm:$0xff]
        %v480 = vld [vmem:[%s177 + $0x750] sm:$0xff]
        %v481 = vld [vmem:[%s177 + $0x758] sm:$0xff]
        %v482 = vld [vmem:[%s177 + $0x760] sm:$0xff]
        %v483 = vld [vmem:[%s177 + $0x768] sm:$0xff]
        %v484 = vld [vmem:[%s177 + $0x770] sm:$0xff]
        %v485 = vld [vmem:[%s177 + $0x778] sm:$0xff]
        %v486 = vld [vmem:[%s177 + $0x780] sm:$0xff]
        %v487 = vld [vmem:[%s177 + $0x788] sm:$0xff]
        %v488 = vld [vmem:[%s177 + $0x790] sm:$0xff]
        %v489 = vld [vmem:[%s177 + $0x798] sm:$0xff]
        %v490 = vld [vmem:[%s177 + $0x7a0] sm:$0xff]
        %v491 = vld [vmem:[%s177 + $0x7a8] sm:$0xff]
        %v492 = vld [vmem:[%s177 + $0x7b0] sm:$0xff]
        %v493 = vld [vmem:[%s177 + $0x7b8] sm:$0xff]
        %v494 = vld [vmem:[%s177 + $0x7c0] sm:$0xff]
        %v495 = vld [vmem:[%s177 + $0x7c8] sm:$0xff]
        %v496 = vld [vmem:[%s177 + $0x7d0] sm:$0xff]
        %v497 = vld [vmem:[%s177 + $0x7d8] sm:$0xff]
        %v498 = vld [vmem:[%s177 + $0x7e0] sm:$0xff]
        %v499 = vld [vmem:[%s177 + $0x7e8] sm:$0xff]
        %v500 = vld [vmem:[%s177 + $0x7f0] sm:$0xff]
        %v501 = vld [vmem:[%s177 + $0x7f8] sm:$0xff]
        %v502 = vld [vmem:[%s177 + $0x800] sm:$0xff]
        %v503 = vld [vmem:[%s177 + $0x808] sm:$0xff]
        %v504 = vld [vmem:[%s177 + $0x810] sm:$0xff]
        %v505 = vld [vmem:[%s177 + $0x818] sm:$0xff]
        %v506 = vld [vmem:[%s177 + $0x820] sm:$0xff]
        %v507 = vld [vmem:[%s177 + $0x828] sm:$0xff]
        %v508 = vld [vmem:[%s177 + $0x830] sm:$0xff]
        %v509 = vld [vmem:[%s177 + $0x838] sm:$0xff]
        %v510 = vld [vmem:[%s177 + $0x840] sm:$0xff]
        %v511 = vld [vmem:[%s177 + $0x848] sm:$0xff]
        %v512 = vld [vmem:[%s177 + $0x850] sm:$0xff]
        %v513 = vld [vmem:[%s177 + $0x858] sm:$0xff]
        %v514 = vld [vmem:[%s177 + $0x860] sm:$0xff]
        %v515 = vld [vmem:[%s177 + $0x868] sm:$0xff]
        %v516 = vld [vmem:[%s177 + $0x870] sm:$0xff]
        %v517 = vld [vmem:[%s177 + $0x878] sm:$0xff]
        %v518 = vld [vmem:[%s177 + $0x880] sm:$0xff]
        %v519 = vld [vmem:[%s177 + $0x888] sm:$0xff]
        %v520 = vld [vmem:[%s177 + $0x890] sm:$0xff]
        %v521 = vld [vmem:[%s177 + $0x898] sm:$0xff]
        %v522 = vld [vmem:[%s177 + $0x8a0] sm:$0xff]
        %v523 = vld [vmem:[%s177 + $0x8a8] sm:$0xff]
        %v524 = vld [vmem:[%s177 + $0x8b0] sm:$0xff]
        %v525 = vld [vmem:[%s177 + $0x8b8] sm:$0xff]
        %v526 = vld [vmem:[%s177 + $0x8c0] sm:$0xff]
        %v527 = vld [vmem:[%s177 + $0x8c8] sm:$0xff]
        %v528 = vld [vmem:[%s177 + $0x8d0] sm:$0xff]
        %v529 = vld [vmem:[%s177 + $0x8d8] sm:$0xff]
        %v530 = vld [vmem:[%s177 + $0x8e0] sm:$0xff]
        %v531 = vld [vmem:[%s177 + $0x8e8] sm:$0xff]
        %v532 = vld [vmem:[%s177 + $0x8f0] sm:$0xff]
        %v533 = vld [vmem:[%s177 + $0x8f8] sm:$0xff]
        %v534 = vld [vmem:[%s177 + $0x900] sm:$0xff]
        %v535 = vld [vmem:[%s177 + $0x908] sm:$0xff]
        %v536 = vld [vmem:[%s177 + $0x910] sm:$0xff]
        %v537 = vld [vmem:[%s177 + $0x918] sm:$0xff]
        %v538 = vld [vmem:[%s177 + $0x920] sm:$0xff]
        %v539 = vld [vmem:[%s177 + $0x928] sm:$0xff]
        %v540 = vld [vmem:[%s177 + $0x930] sm:$0xff]
        %v541 = vld [vmem:[%s177 + $0x938] sm:$0xff]
        %v542 = vld [vmem:[%s177 + $0x940] sm:$0xff]
        %v543 = vld [vmem:[%s177 + $0x948] sm:$0xff]
        %v544 = vld [vmem:[%s177 + $0x950] sm:$0xff]
        %v545 = vld [vmem:[%s177 + $0x958] sm:$0xff]
        %v546 = vld [vmem:[%s177 + $0x960] sm:$0xff]
        %v547 = vld [vmem:[%s177 + $0x968] sm:$0xff]
        %v548 = vld [vmem:[%s177 + $0x970] sm:$0xff]
        %v549 = vld [vmem:[%s177 + $0x978] sm:$0xff]
        %v550 = vld [vmem:[%s177 + $0x980] sm:$0xff]
        %v551 = vld [vmem:[%s177 + $0x988] sm:$0xff]
        %v552 = vld [vmem:[%s177 + $0x990] sm:$0xff]
        %v553 = vld [vmem:[%s177 + $0x998] sm:$0xff]
        %v554 = vld [vmem:[%s177 + $0x9a0] sm:$0xff]
        %v555 = vld [vmem:[%s177 + $0x9a8] sm:$0xff]
        %v556 = vld [vmem:[%s177 + $0x9b0] sm:$0xff]
        %v557 = vld [vmem:[%s177 + $0x9b8] sm:$0xff]
        %v558 = vld [vmem:[%s177 + $0x9c0] sm:$0xff]
        %v559 = vld [vmem:[%s177 + $0x9c8] sm:$0xff]
        %v560 = vld [vmem:[%s177 + $0x9d0] sm:$0xff]
        %v561 = vld [vmem:[%s177 + $0x9d8] sm:$0xff]
        %v562 = vld [vmem:[%s177 + $0x9e0] sm:$0xff]
        %v563 = vld [vmem:[%s177 + $0x9e8] sm:$0xff]
        %v564 = vld [vmem:[%s177 + $0x9f0] sm:$0xff]
        %v565 = vld [vmem:[%s177 + $0x9f8] sm:$0xff]
        %v566 = vld [vmem:[%s177 + $0xa00] sm:$0xff]
        %v567 = vld [vmem:[%s177 + $0xa08] sm:$0xff]
        %v568 = vld [vmem:[%s177 + $0xa10] sm:$0xff]
        %v569 = vld [vmem:[%s177 + $0xa18] sm:$0xff]
        %v570 = vld [vmem:[%s177 + $0xa20] sm:$0xff]
        %v571 = vld [vmem:[%s177 + $0xa28] sm:$0xff]
        %v572 = vld [vmem:[%s177 + $0xa30] sm:$0xff]
        %v573 = vld [vmem:[%s177 + $0xa38] sm:$0xff]
        %v574 = vld [vmem:[%s177 + $0xa40] sm:$0xff]
        %v575 = vld [vmem:[%s177 + $0xa48] sm:$0xff]
        %v576 = vld [vmem:[%s177 + $0xa50] sm:$0xff]
        %v577 = vld [vmem:[%s177 + $0xa58] sm:$0xff]
        %v578 = vld [vmem:[%s177 + $0xa60] sm:$0xff]
        %v579 = vld [vmem:[%s177 + $0xa68] sm:$0xff]
        %v580 = vld [vmem:[%s177 + $0xa70] sm:$0xff]
        %v581 = vld [vmem:[%s177 + $0xa78] sm:$0xff]
        %v582 = vld [vmem:[%s177 + $0xa80] sm:$0xff]
        %v583 = vld [vmem:[%s177 + $0xa88] sm:$0xff]
        %v584 = vld [vmem:[%s177 + $0xa90] sm:$0xff]
        %v585 = vld [vmem:[%s177 + $0xa98] sm:$0xff]
        %v586 = vld [vmem:[%s177 + $0xaa0] sm:$0xff]
        %v587 = vld [vmem:[%s177 + $0xaa8] sm:$0xff]
        %v588 = vld [vmem:[%s177 + $0xab0] sm:$0xff]
        %v589 = vld [vmem:[%s177 + $0xab8] sm:$0xff]
        %v590 = vld [vmem:[%s177 + $0xac0] sm:$0xff]
        %v591 = vld [vmem:[%s177 + $0xac8] sm:$0xff]
        %v592 = vld [vmem:[%s177 + $0xad0] sm:$0xff]
        %v593 = vld [vmem:[%s177 + $0xad8] sm:$0xff]
        %v594 = vld [vmem:[%s177 + $0xae0] sm:$0xff]
        %v595 = vld [vmem:[%s177 + $0xae8] sm:$0xff]
        %v596 = vld [vmem:[%s177 + $0xaf0] sm:$0xff]
        %v597 = vld [vmem:[%s177 + $0xaf8] sm:$0xff]
        %v598 = vld [vmem:[%s177 + $0xb00] sm:$0xff]
        %v599 = vld [vmem:[%s177 + $0xb08] sm:$0xff]
        %v600 = vld [vmem:[%s177 + $0xb10] sm:$0xff]
        %v601 = vld [vmem:[%s177 + $0xb18] sm:$0xff]
        %v602 = vld [vmem:[%s177 + $0xb20] sm:$0xff]
        %v603 = vld [vmem:[%s177 + $0xb28] sm:$0xff]
        %v604 = vld [vmem:[%s177 + $0xb30] sm:$0xff]
        %v605 = vld [vmem:[%s177 + $0xb38] sm:$0xff]
        %v606 = vld [vmem:[%s177 + $0xb40] sm:$0xff]
        %v607 = vld [vmem:[%s177 + $0xb48] sm:$0xff]
        %v608 = vld [vmem:[%s177 + $0xb50] sm:$0xff]
        %v609 = vld [vmem:[%s177 + $0xb58] sm:$0xff]
        %v610 = vld [vmem:[%s177 + $0xb60] sm:$0xff]
        %v611 = vld [vmem:[%s177 + $0xb68] sm:$0xff]
        %v612 = vld [vmem:[%s177 + $0xb70] sm:$0xff]
        %v613 = vld [vmem:[%s177 + $0xb78] sm:$0xff]
        %v614 = vld [vmem:[%s177 + $0xb80] sm:$0xff]
        %v615 = vld [vmem:[%s177 + $0xb88] sm:$0xff]
        %v616 = vld [vmem:[%s177 + $0xb90] sm:$0xff]
        %v617 = vld [vmem:[%s177 + $0xb98] sm:$0xff]
        %v618 = vld [vmem:[%s177 + $0xba0] sm:$0xff]
        %v619 = vld [vmem:[%s177 + $0xba8] sm:$0xff]
        %v620 = vld [vmem:[%s177 + $0xbb0] sm:$0xff]
        %v621 = vld [vmem:[%s177 + $0xbb8] sm:$0xff]
        %v622 = vld [vmem:[%s177 + $0xbc0] sm:$0xff]
        %v623 = vld [vmem:[%s177 + $0xbc8] sm:$0xff]
        %v624 = vld [vmem:[%s177 + $0xbd0] sm:$0xff]
        %v625 = vld [vmem:[%s177 + $0xbd8] sm:$0xff]
        %v626 = vld [vmem:[%s177 + $0xbe0] sm:$0xff]
        %v627 = vld [vmem:[%s177 + $0xbe8] sm:$0xff]
        %v628 = vld [vmem:[%s177 + $0xbf0] sm:$0xff]
        %v629 = vld [vmem:[%s177 + $0xbf8] sm:$0xff]
        %v630 = vld [vmem:[%s177 + $0xc00] sm:$0xff]
        %v631 = vld [vmem:[%s177 + $0xc08] sm:$0xff]
        %v632 = vld [vmem:[%s177 + $0xc10] sm:$0xff]
        %v633 = vld [vmem:[%s177 + $0xc18] sm:$0xff]
        %v634 = vld [vmem:[%s177 + $0xc20] sm:$0xff]
        %v635 = vld [vmem:[%s177 + $0xc28] sm:$0xff]
        %v636 = vld [vmem:[%s177 + $0xc30] sm:$0xff]
        %v637 = vld [vmem:[%s177 + $0xc38] sm:$0xff]
        %v638 = vld [vmem:[%s177 + $0xc40] sm:$0xff]
        %v639 = vld [vmem:[%s177 + $0xc48] sm:$0xff]
        %v640 = vld [vmem:[%s177 + $0xc50] sm:$0xff]
        %v641 = vld [vmem:[%s177 + $0xc58] sm:$0xff]
        %v642 = vld [vmem:[%s177 + $0xc60] sm:$0xff]
        %v643 = vld [vmem:[%s177 + $0xc68] sm:$0xff]
        %v644 = vld [vmem:[%s177 + $0xc70] sm:$0xff]
        %v645 = vld [vmem:[%s177 + $0xc78] sm:$0xff]
        %v646 = vld [vmem:[%s177 + $0xc80] sm:$0xff]
        %v647 = vld [vmem:[%s177 + $0xc88] sm:$0xff]
        %v648 = vld [vmem:[%s177 + $0xc90] sm:$0xff]
        %v649 = vld [vmem:[%s177 + $0xc98] sm:$0xff]
        %v650 = vld [vmem:[%s177 + $0xca0] sm:$0xff]
        %v651 = vld [vmem:[%s177 + $0xca8] sm:$0xff]
        %v652 = vld [vmem:[%s177 + $0xcb0] sm:$0xff]
        %v653 = vld [vmem:[%s177 + $0xcb8] sm:$0xff]
        %v654 = vld [vmem:[%s177 + $0xcc0] sm:$0xff]
        %v655 = vld [vmem:[%s177 + $0xcc8] sm:$0xff]
        %v656 = vld [vmem:[%s177 + $0xcd0] sm:$0xff]
        %v657 = vld [vmem:[%s177 + $0xcd8] sm:$0xff]
        %v658 = vld [vmem:[%s177 + $0xce0] sm:$0xff]
        %v659 = vld [vmem:[%s177 + $0xce8] sm:$0xff]
        %v660 = vld [vmem:[%s177 + $0xcf0] sm:$0xff]
        %v661 = vld [vmem:[%s177 + $0xcf8] sm:$0xff]
        %v662 = vld [vmem:[%s177 + $0xd00] sm:$0xff]
        %v663 = vld [vmem:[%s177 + $0xd08] sm:$0xff]
        %v664 = vld [vmem:[%s177 + $0xd10] sm:$0xff]
        %v665 = vld [vmem:[%s177 + $0xd18] sm:$0xff]
        %v666 = vld [vmem:[%s177 + $0xd20] sm:$0xff]
        %v667 = vld [vmem:[%s177 + $0xd28] sm:$0xff]
        %v668 = vld [vmem:[%s177 + $0xd30] sm:$0xff]
        %v669 = vld [vmem:[%s177 + $0xd38] sm:$0xff]
        %v670 = vld [vmem:[%s177 + $0xd40] sm:$0xff]
        %v671 = vld [vmem:[%s177 + $0xd48] sm:$0xff]
        %v672 = vld [vmem:[%s177 + $0xd50] sm:$0xff]
        %v673 = vld [vmem:[%s177 + $0xd58] sm:$0xff]
        %v674 = vld [vmem:[%s177 + $0xd60] sm:$0xff]
        %v675 = vld [vmem:[%s177 + $0xd68] sm:$0xff]
        %v676 = vld [vmem:[%s177 + $0xd70] sm:$0xff]
        %v677 = vld [vmem:[%s177 + $0xd78] sm:$0xff]
        %v678 = vld [vmem:[%s177 + $0xd80] sm:$0xff]
        %v679 = vld [vmem:[%s177 + $0xd88] sm:$0xff]
        %v680 = vld [vmem:[%s177 + $0xd90] sm:$0xff]
        %v681 = vld [vmem:[%s177 + $0xd98] sm:$0xff]
        %v682 = vld [vmem:[%s177 + $0xda0] sm:$0xff]
        %v683 = vld [vmem:[%s177 + $0xda8] sm:$0xff]
        %v684 = vld [vmem:[%s177 + $0xdb0] sm:$0xff]
        %v685 = vld [vmem:[%s177 + $0xdb8] sm:$0xff]
        %v686 = vld [vmem:[%s177 + $0xdc0] sm:$0xff]
        %v687 = vld [vmem:[%s177 + $0xdc8] sm:$0xff]
        %v688 = vld [vmem:[%s177 + $0xdd0] sm:$0xff]
        %v689 = vld [vmem:[%s177 + $0xdd8] sm:$0xff]
        %v690 = vld [vmem:[%s177 + $0xde0] sm:$0xff]
        %v691 = vld [vmem:[%s177 + $0xde8] sm:$0xff]
        %v692 = vld [vmem:[%s177 + $0xdf0] sm:$0xff]
        %v693 = vld [vmem:[%s177 + $0xdf8] sm:$0xff]
        %v694 = vld [vmem:[%s177 + $0xe00] sm:$0xff]
        %v695 = vld [vmem:[%s177 + $0xe08] sm:$0xff]
        %v696 = vld [vmem:[%s177 + $0xe10] sm:$0xff]
        %v697 = vld [vmem:[%s177 + $0xe18] sm:$0xff]
        %v698 = vld [vmem:[%s177 + $0xe20] sm:$0xff]
        %v699 = vld [vmem:[%s177 + $0xe28] sm:$0xff]
        %v700 = vld [vmem:[%s177 + $0xe30] sm:$0xff]
        %v701 = vld [vmem:[%s177 + $0xe38] sm:$0xff]
        %v702 = vld [vmem:[%s177 + $0xe40] sm:$0xff]
        %v703 = vld [vmem:[%s177 + $0xe48] sm:$0xff]
        %v704 = vld [vmem:[%s177 + $0xe50] sm:$0xff]
        %v705 = vld [vmem:[%s177 + $0xe58] sm:$0xff]
        %v706 = vld [vmem:[%s177 + $0xe60] sm:$0xff]
        %v707 = vld [vmem:[%s177 + $0xe68] sm:$0xff]
        %v708 = vld [vmem:[%s177 + $0xe70] sm:$0xff]
        %v709 = vld [vmem:[%s177 + $0xe78] sm:$0xff]
        %v710 = vld [vmem:[%s177 + $0xe80] sm:$0xff]
        %v711 = vld [vmem:[%s177 + $0xe88] sm:$0xff]
        %v712 = vld [vmem:[%s177 + $0xe90] sm:$0xff]
        %v713 = vld [vmem:[%s177 + $0xe98] sm:$0xff]
        %v714 = vld [vmem:[%s177 + $0xea0] sm:$0xff]
        %v715 = vld [vmem:[%s177 + $0xea8] sm:$0xff]
        %v716 = vld [vmem:[%s177 + $0xeb0] sm:$0xff]
        %v717 = vld [vmem:[%s177 + $0xeb8] sm:$0xff]
        %v718 = vld [vmem:[%s177 + $0xec0] sm:$0xff]
        %v719 = vld [vmem:[%s177 + $0xec8] sm:$0xff]
        %v720 = vld [vmem:[%s177 + $0xed0] sm:$0xff]
        %v721 = vld [vmem:[%s177 + $0xed8] sm:$0xff]
        %v722 = vld [vmem:[%s177 + $0xee0] sm:$0xff]
        %v723 = vld [vmem:[%s177 + $0xee8] sm:$0xff]
        %v724 = vld [vmem:[%s177 + $0xef0] sm:$0xff]
        %v725 = vld [vmem:[%s177 + $0xef8] sm:$0xff]
        %v726 = vld [vmem:[%s177 + $0xf00] sm:$0xff]
        %v727 = vld [vmem:[%s177 + $0xf08] sm:$0xff]
        %v728 = vld [vmem:[%s177 + $0xf10] sm:$0xff]
        %v729 = vld [vmem:[%s177 + $0xf18] sm:$0xff]
        %v730 = vld [vmem:[%s177 + $0xf20] sm:$0xff]
        %v731 = vld [vmem:[%s177 + $0xf28] sm:$0xff]
        %v732 = vld [vmem:[%s177 + $0xf30] sm:$0xff]
        %v733 = vld [vmem:[%s177 + $0xf38] sm:$0xff]
        %v734 = vld [vmem:[%s177 + $0xf40] sm:$0xff]
        %v735 = vld [vmem:[%s177 + $0xf48] sm:$0xff]
        %v736 = vld [vmem:[%s177 + $0xf50] sm:$0xff]
        %v737 = vld [vmem:[%s177 + $0xf58] sm:$0xff]
        %v738 = vld [vmem:[%s177 + $0xf60] sm:$0xff]
        %v739 = vld [vmem:[%s177 + $0xf68] sm:$0xff]
        %v740 = vld [vmem:[%s177 + $0xf70] sm:$0xff]
        %v741 = vld [vmem:[%s177 + $0xf78] sm:$0xff]
        %v742 = vld [vmem:[%s177 + $0xf80] sm:$0xff]
        %v743 = vld [vmem:[%s177 + $0xf88] sm:$0xff]
        %v744 = vld [vmem:[%s177 + $0xf90] sm:$0xff]
        %v745 = vld [vmem:[%s177 + $0xf98] sm:$0xff]
        %v746 = vld [vmem:[%s177 + $0xfa0] sm:$0xff]
        %v747 = vld [vmem:[%s177 + $0xfa8] sm:$0xff]
        %v748 = vld [vmem:[%s177 + $0xfb0] sm:$0xff]
        %v749 = vld [vmem:[%s177 + $0xfb8] sm:$0xff]
        %v750 = vld [vmem:[%s177 + $0xfc0] sm:$0xff]
        %v751 = vld [vmem:[%s177 + $0xfc8] sm:$0xff]
        %v752 = vld [vmem:[%s177 + $0xfd0] sm:$0xff]
        %v753 = vld [vmem:[%s177 + $0xfd8] sm:$0xff]
        %v754 = vld [vmem:[%s177 + $0xfe0] sm:$0xff]
        %v755 = vld [vmem:[%s177 + $0xfe8] sm:$0xff]
        %v756 = vld [vmem:[%s177 + $0xff0] sm:$0xff]
        %v757 = vld [vmem:[%s177 + $0xff8] sm:$0xff]
        %v758 = vld [vmem:[%s177 + $0x1000] sm:$0xff]
        %v759 = vld [vmem:[%s177 + $0x1008] sm:$0xff]
        %v760 = vld [vmem:[%s177 + $0x1010] sm:$0xff]
        %v761 = vld [vmem:[%s177 + $0x1018] sm:$0xff]
        %v762 = vld [vmem:[%s177 + $0x1020] sm:$0xff]
        %v763 = vld [vmem:[%s177 + $0x1028] sm:$0xff]
        %v764 = vld [vmem:[%s177 + $0x1030] sm:$0xff]
        %v765 = vld [vmem:[%s177 + $0x1038] sm:$0xff]
        %v766 = vld [vmem:[%s177 + $0x1040] sm:$0xff]
        %v767 = vld [vmem:[%s177 + $0x1048] sm:$0xff]
        %v768 = vld [vmem:[%s177 + $0x1050] sm:$0xff]
        %v769 = vld [vmem:[%s177 + $0x1058] sm:$0xff]
        %v770 = vld [vmem:[%s177 + $0x1060] sm:$0xff]
        %v771 = vld [vmem:[%s177 + $0x1068] sm:$0xff]
        %v772 = vld [vmem:[%s177 + $0x1070] sm:$0xff]
        %v773 = vld [vmem:[%s177 + $0x1078] sm:$0xff]
        %v774 = vld [vmem:[%s177 + $0x1080] sm:$0xff]
        %v775 = vld [vmem:[%s177 + $0x1088] sm:$0xff]
        %v776 = vld [vmem:[%s177 + $0x1090] sm:$0xff]
        %v777 = vld [vmem:[%s177 + $0x1098] sm:$0xff]
        %v778 = vld [vmem:[%s177 + $0x10a0] sm:$0xff]
        %v779 = vld [vmem:[%s177 + $0x10a8] sm:$0xff]
        %v780 = vld [vmem:[%s177 + $0x10b0] sm:$0xff]
        %v781 = vld [vmem:[%s177 + $0x10b8] sm:$0xff]
        %v782 = vld [vmem:[%s177 + $0x10c0] sm:$0xff]
        %v783 = vld [vmem:[%s177 + $0x10c8] sm:$0xff]
        %v784 = vld [vmem:[%s177 + $0x10d0] sm:$0xff]
        %v785 = vld [vmem:[%s177 + $0x10d8] sm:$0xff]
        %v786 = vld [vmem:[%s177 + $0x10e0] sm:$0xff]
        %v787 = vld [vmem:[%s177 + $0x10e8] sm:$0xff]
        %v788 = vld [vmem:[%s177 + $0x10f0] sm:$0xff]
        %v789 = vld [vmem:[%s177 + $0x10f8] sm:$0xff]
        %v790 = vld [vmem:[%s177 + $0x1100] sm:$0xff]
        %v791 = vld [vmem:[%s177 + $0x1108] sm:$0xff]
        %v792 = vld [vmem:[%s177 + $0x1110] sm:$0xff]
        %v793 = vld [vmem:[%s177 + $0x1118] sm:$0xff]
        %v794 = vld [vmem:[%s177 + $0x1120] sm:$0xff]
        %v795 = vld [vmem:[%s177 + $0x1128] sm:$0xff]
        %v796 = vld [vmem:[%s177 + $0x1130] sm:$0xff]
        %v797 = vld [vmem:[%s177 + $0x1138] sm:$0xff]
        %v798 = vld [vmem:[%s177 + $0x1140] sm:$0xff]
        %v799 = vld [vmem:[%s177 + $0x1148] sm:$0xff]
        %v800 = vld [vmem:[%s177 + $0x1150] sm:$0xff]
        %v801 = vld [vmem:[%s177 + $0x1158] sm:$0xff]
        %v802 = vld [vmem:[%s177 + $0x1160] sm:$0xff]
        %v803 = vld [vmem:[%s177 + $0x1168] sm:$0xff]
        %v804 = vld [vmem:[%s177 + $0x1170] sm:$0xff]
        %v805 = vld [vmem:[%s177 + $0x1178] sm:$0xff]
        %v806 = vld [vmem:[%s177 + $0x1180] sm:$0xff]
        %v807 = vld [vmem:[%s177 + $0x1188] sm:$0xff]
        %v808 = vld [vmem:[%s177 + $0x1190] sm:$0xff]
        %v809 = vld [vmem:[%s177 + $0x1198] sm:$0xff]
        %v810 = vld [vmem:[%s177 + $0x11a0] sm:$0xff]
        %v811 = vld [vmem:[%s177 + $0x11a8] sm:$0xff]
        %v812 = vld [vmem:[%s177 + $0x11b0] sm:$0xff]
        %v813 = vld [vmem:[%s177 + $0x11b8] sm:$0xff]
        %v814 = vld [vmem:[%s177 + $0x11c0] sm:$0xff]
        %v815 = vld [vmem:[%s177 + $0x11c8] sm:$0xff]
        %v816 = vld [vmem:[%s177 + $0x11d0] sm:$0xff]
        %v817 = vld [vmem:[%s177 + $0x11d8] sm:$0xff]
        %v818 = vld [vmem:[%s177 + $0x11e0] sm:$0xff]
        %v819 = vld [vmem:[%s177 + $0x11e8] sm:$0xff]
        %v820 = vld [vmem:[%s177 + $0x11f0] sm:$0xff]
        %v821 = vld [vmem:[%s177 + $0x11f8] sm:$0xff]
        %v822 = vld [vmem:[%s177 + $0x1200] sm:$0xff]
        %v823 = vld [vmem:[%s177 + $0x1208] sm:$0xff]
        %v824 = vld [vmem:[%s177 + $0x1210] sm:$0xff]
        %v825 = vld [vmem:[%s177 + $0x1218] sm:$0xff]
        %v826 = vld [vmem:[%s177 + $0x1220] sm:$0xff]
        %v827 = vld [vmem:[%s177 + $0x1228] sm:$0xff]
        %v828 = vld [vmem:[%s177 + $0x1230] sm:$0xff]
        %v829 = vld [vmem:[%s177 + $0x1238] sm:$0xff]
        %v830 = vld [vmem:[%s177 + $0x1240] sm:$0xff]
        %v831 = vld [vmem:[%s177 + $0x1248] sm:$0xff]
        %v832 = vld [vmem:[%s177 + $0x1250] sm:$0xff]
        %v833 = vld [vmem:[%s177 + $0x1258] sm:$0xff]
        %v834 = vld [vmem:[%s177 + $0x1260] sm:$0xff]
        %v835 = vld [vmem:[%s177 + $0x1268] sm:$0xff]
        %v836 = vld [vmem:[%s177 + $0x1270] sm:$0xff]
        %v837 = vld [vmem:[%s177 + $0x1278] sm:$0xff]
        %v838 = vld [vmem:[%s177 + $0x1280] sm:$0xff]
        %v839 = vld [vmem:[%s177 + $0x1288] sm:$0xff]
        %v840 = vld [vmem:[%s177 + $0x1290] sm:$0xff]
        %v841 = vld [vmem:[%s177 + $0x1298] sm:$0xff]
        %v842 = vld [vmem:[%s177 + $0x12a0] sm:$0xff]
        %v843 = vld [vmem:[%s177 + $0x12a8] sm:$0xff]
        %v844 = vld [vmem:[%s177 + $0x12b0] sm:$0xff]
        %v845 = vld [vmem:[%s177 + $0x12b8] sm:$0xff]
        %v846 = vld [vmem:[%s177 + $0x12c0] sm:$0xff]
        %v847 = vld [vmem:[%s177 + $0x12c8] sm:$0xff]
        %v848 = vld [vmem:[%s177 + $0x12d0] sm:$0xff]
        %v849 = vld [vmem:[%s177 + $0x12d8] sm:$0xff]
        %v850 = vld [vmem:[%s177 + $0x12e0] sm:$0xff]
        %v851 = vld [vmem:[%s177 + $0x12e8] sm:$0xff]
        %v852 = vld [vmem:[%s177 + $0x12f0] sm:$0xff]
        %v853 = vld [vmem:[%s177 + $0x12f8] sm:$0xff]
        %v854 = vld [vmem:[%s177 + $0x1300] sm:$0xff]
        %v855 = vld [vmem:[%s177 + $0x1308] sm:$0xff]
        %v856 = vld [vmem:[%s177 + $0x1310] sm:$0xff]
        %v857 = vld [vmem:[%s177 + $0x1318] sm:$0xff]
        %v858 = vld [vmem:[%s177 + $0x1320] sm:$0xff]
        %v859 = vld [vmem:[%s177 + $0x1328] sm:$0xff]
        %v860 = vld [vmem:[%s177 + $0x1330] sm:$0xff]
        %v861 = vld [vmem:[%s177 + $0x1338] sm:$0xff]
        %v862 = vld [vmem:[%s177 + $0x1340] sm:$0xff]
        %v863 = vld [vmem:[%s177 + $0x1348] sm:$0xff]
        %v864 = vld [vmem:[%s177 + $0x1350] sm:$0xff]
        %v865 = vld [vmem:[%s177 + $0x1358] sm:$0xff]
        %v866 = vld [vmem:[%s177 + $0x1360] sm:$0xff]
        %v867 = vld [vmem:[%s177 + $0x1368] sm:$0xff]
        %v868 = vld [vmem:[%s177 + $0x1370] sm:$0xff]
        %v869 = vld [vmem:[%s177 + $0x1378] sm:$0xff]
        %v870 = vld [vmem:[%s177 + $0x1380] sm:$0xff]
        %v871 = vld [vmem:[%s177 + $0x1388] sm:$0xff]
        %v872 = vld [vmem:[%s177 + $0x1390] sm:$0xff]
        %v873 = vld [vmem:[%s177 + $0x1398] sm:$0xff]
        %v874 = vld [vmem:[%s177 + $0x13a0] sm:$0xff]
        %v875 = vld [vmem:[%s177 + $0x13a8] sm:$0xff]
        %v876 = vld [vmem:[%s177 + $0x13b0] sm:$0xff]
        %v877 = vld [vmem:[%s177 + $0x13b8] sm:$0xff]
        %v878 = vld [vmem:[%s177 + $0x13c0] sm:$0xff]
        %v879 = vld [vmem:[%s177 + $0x13c8] sm:$0xff]
        %v880 = vld [vmem:[%s177 + $0x13d0] sm:$0xff]
        %v881 = vld [vmem:[%s177 + $0x13d8] sm:$0xff]
        %v882 = vld [vmem:[%s177 + $0x13e0] sm:$0xff]
        %v883 = vld [vmem:[%s177 + $0x13e8] sm:$0xff]
        %v884 = vld [vmem:[%s177 + $0x13f0] sm:$0xff]
        %v885 = vld [vmem:[%s177 + $0x13f8] sm:$0xff]
        %v886 = vld [vmem:[%s177 + $0x1400] sm:$0xff]
        %v887 = vld [vmem:[%s177 + $0x1408] sm:$0xff]
        %v888 = vld [vmem:[%s177 + $0x1410] sm:$0xff]
        %v889 = vld [vmem:[%s177 + $0x1418] sm:$0xff]
        %v890 = vld [vmem:[%s177 + $0x1420] sm:$0xff]
        %v891 = vld [vmem:[%s177 + $0x1428] sm:$0xff]
        %v892 = vld [vmem:[%s177 + $0x1430] sm:$0xff]
        %v893 = vld [vmem:[%s177 + $0x1438] sm:$0xff]
        %v894 = vld [vmem:[%s177 + $0x1440] sm:$0xff]
        %v895 = vld [vmem:[%s177 + $0x1448] sm:$0xff]
        %v896 = vld [vmem:[%s177 + $0x1450] sm:$0xff]
        %v897 = vld [vmem:[%s177 + $0x1458] sm:$0xff]
        %v898 = vld [vmem:[%s177 + $0x1460] sm:$0xff]
        %v899 = vld [vmem:[%s177 + $0x1468] sm:$0xff]
        %v900 = vld [vmem:[%s177 + $0x1470] sm:$0xff]
        %v901 = vld [vmem:[%s177 + $0x1478] sm:$0xff]
        %v902 = vld [vmem:[%s177 + $0x1480] sm:$0xff]
        %v903 = vld [vmem:[%s177 + $0x1488] sm:$0xff]
        %v904 = vld [vmem:[%s177 + $0x1490] sm:$0xff]
        %v905 = vld [vmem:[%s177 + $0x1498] sm:$0xff]
        %v906 = vld [vmem:[%s177 + $0x14a0] sm:$0xff]
        %v907 = vld [vmem:[%s177 + $0x14a8] sm:$0xff]
        %v908 = vld [vmem:[%s177 + $0x14b0] sm:$0xff]
        %v909 = vld [vmem:[%s177 + $0x14b8] sm:$0xff]
        %v910 = vld [vmem:[%s177 + $0x14c0] sm:$0xff]
        %v911 = vld [vmem:[%s177 + $0x14c8] sm:$0xff]
        %v912 = vld [vmem:[%s177 + $0x14d0] sm:$0xff]
        %v913 = vld [vmem:[%s177 + $0x14d8] sm:$0xff]
        %v914 = vld [vmem:[%s177 + $0x14e0] sm:$0xff]
        %v915 = vld [vmem:[%s177 + $0x14e8] sm:$0xff]
        %v916 = vld [vmem:[%s177 + $0x14f0] sm:$0xff]
        %v917 = vld [vmem:[%s177 + $0x14f8] sm:$0xff]
        %v918 = vld [vmem:[%s177 + $0x1500] sm:$0xff]
        %v919 = vld [vmem:[%s177 + $0x1508] sm:$0xff]
        %v920 = vld [vmem:[%s177 + $0x1510] sm:$0xff]
        %v921 = vld [vmem:[%s177 + $0x1518] sm:$0xff]
        %v922 = vld [vmem:[%s177 + $0x1520] sm:$0xff]
        %v923 = vld [vmem:[%s177 + $0x1528] sm:$0xff]
        %v924 = vld [vmem:[%s177 + $0x1530] sm:$0xff]
        %v925 = vld [vmem:[%s177 + $0x1538] sm:$0xff]
        %v926 = vld [vmem:[%s177 + $0x1540] sm:$0xff]
        %v927 = vld [vmem:[%s177 + $0x1548] sm:$0xff]
        %v928 = vld [vmem:[%s177 + $0x1550] sm:$0xff]
        %v929 = vld [vmem:[%s177 + $0x1558] sm:$0xff]
        %v930 = vld [vmem:[%s177 + $0x1560] sm:$0xff]
        %v931 = vld [vmem:[%s177 + $0x1568] sm:$0xff]
        %v932 = vld [vmem:[%s177 + $0x1570] sm:$0xff]
        %v933 = vld [vmem:[%s177 + $0x1578] sm:$0xff]
        %v934 = vld [vmem:[%s177 + $0x1580] sm:$0xff]
        %v935 = vld [vmem:[%s177 + $0x1588] sm:$0xff]
        %v936 = vld [vmem:[%s177 + $0x1590] sm:$0xff]
        %v937 = vld [vmem:[%s177 + $0x1598] sm:$0xff]
        %v938 = vld [vmem:[%s177 + $0x15a0] sm:$0xff]
        %v939 = vld [vmem:[%s177 + $0x15a8] sm:$0xff]
        %v940 = vld [vmem:[%s177 + $0x15b0] sm:$0xff]
        %v941 = vld [vmem:[%s177 + $0x15b8] sm:$0xff]
        %v942 = vld [vmem:[%s177 + $0x15c0] sm:$0xff]
        %v943 = vld [vmem:[%s177 + $0x15c8] sm:$0xff]
        %v944 = vld [vmem:[%s177 + $0x15d0] sm:$0xff]
        %v945 = vld [vmem:[%s177 + $0x15d8] sm:$0xff]
        %v946 = vld [vmem:[%s177 + $0x15e0] sm:$0xff]
        %v947 = vld [vmem:[%s177 + $0x15e8] sm:$0xff]
        %v948 = vld [vmem:[%s177 + $0x15f0] sm:$0xff]
        %v949 = vld [vmem:[%s177 + $0x15f8] sm:$0xff]
        %v950 = vld [vmem:[%s177 + $0x1600] sm:$0xff]
        %v951 = vld [vmem:[%s177 + $0x1608] sm:$0xff]
        %v952 = vld [vmem:[%s177 + $0x1610] sm:$0xff]
        %v953 = vld [vmem:[%s177 + $0x1618] sm:$0xff]
        %v954 = vld [vmem:[%s177 + $0x1620] sm:$0xff]
        %v955 = vld [vmem:[%s177 + $0x1628] sm:$0xff]
        %v956 = vld [vmem:[%s177 + $0x1630] sm:$0xff]
        %v957 = vld [vmem:[%s177 + $0x1638] sm:$0xff]
        %v958 = vld [vmem:[%s177 + $0x1640] sm:$0xff]
        %v959 = vld [vmem:[%s177 + $0x1648] sm:$0xff]
        %v960 = vld [vmem:[%s177 + $0x1650] sm:$0xff]
        %v961 = vld [vmem:[%s177 + $0x1658] sm:$0xff]
        %v962 = vld [vmem:[%s177 + $0x1660] sm:$0xff]
        %v963 = vld [vmem:[%s177 + $0x1668] sm:$0xff]
        %v964 = vld [vmem:[%s177 + $0x1670] sm:$0xff]
        %v965 = vld [vmem:[%s177 + $0x1678] sm:$0xff]
        %v966 = vld [vmem:[%s177 + $0x1680] sm:$0xff]
        %v967 = vld [vmem:[%s177 + $0x1688] sm:$0xff]
        %v968 = vld [vmem:[%s177 + $0x1690] sm:$0xff]
        %v969 = vld [vmem:[%s177 + $0x1698] sm:$0xff]
        %v970 = vld [vmem:[%s177 + $0x16a0] sm:$0xff]
        %v971 = vld [vmem:[%s177 + $0x16a8] sm:$0xff]
        %v972 = vld [vmem:[%s177 + $0x16b0] sm:$0xff]
        %v973 = vld [vmem:[%s177 + $0x16b8] sm:$0xff]
        %v974 = vld [vmem:[%s177 + $0x16c0] sm:$0xff]
        %v975 = vld [vmem:[%s177 + $0x16c8] sm:$0xff]
        %v976 = vld [vmem:[%s177 + $0x16d0] sm:$0xff]
        %v977 = vld [vmem:[%s177 + $0x16d8] sm:$0xff]
        %v978 = vld [vmem:[%s177 + $0x16e0] sm:$0xff]
        %v979 = vld [vmem:[%s177 + $0x16e8] sm:$0xff]
        %v980 = vld [vmem:[%s177 + $0x16f0] sm:$0xff]
        %v981 = vld [vmem:[%s177 + $0x16f8] sm:$0xff]
        %v982 = vld [vmem:[%s177 + $0x1700] sm:$0xff]
        %v983 = vld [vmem:[%s177 + $0x1708] sm:$0xff]
        %v984 = vld [vmem:[%s177 + $0x1710] sm:$0xff]
        %v985 = vld [vmem:[%s177 + $0x1718] sm:$0xff]
        %v986 = vld [vmem:[%s177 + $0x1720] sm:$0xff]
        %v987 = vld [vmem:[%s177 + $0x1728] sm:$0xff]
        %v988 = vld [vmem:[%s177 + $0x1730] sm:$0xff]
        %v989 = vld [vmem:[%s177 + $0x1738] sm:$0xff]
        %v990 = vld [vmem:[%s177 + $0x1740] sm:$0xff]
        %v991 = vld [vmem:[%s177 + $0x1748] sm:$0xff]
        %v992 = vld [vmem:[%s177 + $0x1750] sm:$0xff]
        %v993 = vld [vmem:[%s177 + $0x1758] sm:$0xff]
        %v994 = vld [vmem:[%s177 + $0x1760] sm:$0xff]
        %v995 = vld [vmem:[%s177 + $0x1768] sm:$0xff]
        %v996 = vld [vmem:[%s177 + $0x1770] sm:$0xff]
        %v997 = vld [vmem:[%s177 + $0x1778] sm:$0xff]
        %v998 = vld [vmem:[%s177 + $0x1780] sm:$0xff]
        %v999 = vld [vmem:[%s177 + $0x1788] sm:$0xff]
        %v1000 = vld [vmem:[%s177 + $0x1790] sm:$0xff]
        %v1001 = vld [vmem:[%s177 + $0x1798] sm:$0xff]
        %v1002 = vld [vmem:[%s177 + $0x17a0] sm:$0xff]
        %v1003 = vld [vmem:[%s177 + $0x17a8] sm:$0xff]
        %v1004 = vld [vmem:[%s177 + $0x17b0] sm:$0xff]
        %v1005 = vld [vmem:[%s177 + $0x17b8] sm:$0xff]
        %v1006 = vld [vmem:[%s177 + $0x17c0] sm:$0xff]
        %v1007 = vld [vmem:[%s177 + $0x17c8] sm:$0xff]
        %v1008 = vld [vmem:[%s177 + $0x17d0] sm:$0xff]
        %v1009 = vld [vmem:[%s177 + $0x17d8] sm:$0xff]
        %v1010 = vld [vmem:[%s177 + $0x17e0] sm:$0xff]
        %v1011 = vld [vmem:[%s177 + $0x17e8] sm:$0xff]
        %v1012 = vld [vmem:[%s177 + $0x17f0] sm:$0xff]
        %v1013 = vld [vmem:[%s177 + $0x17f8] sm:$0xff]
        %v1014 = vld [vmem:[%s177 + $0x1800] sm:$0xff]
        %v1015 = vld [vmem:[%s177 + $0x1808] sm:$0xff]
        %v1016 = vld [vmem:[%s177 + $0x1810] sm:$0xff]
        %v1017 = vld [vmem:[%s177 + $0x1818] sm:$0xff]
        %v1018 = vld [vmem:[%s177 + $0x1820] sm:$0xff]
        %v1019 = vld [vmem:[%s177 + $0x1828] sm:$0xff]
        %v1020 = vld [vmem:[%s177 + $0x1830] sm:$0xff]
        %v1021 = vld [vmem:[%s177 + $0x1838] sm:$0xff]
        %v1022 = vld [vmem:[%s177 + $0x1840] sm:$0xff]
        %v1023 = vld [vmem:[%s177 + $0x1848] sm:$0xff]
        %v1024 = vld [vmem:[%s177 + $0x1850] sm:$0xff]
        %v1025 = vld [vmem:[%s177 + $0x1858] sm:$0xff]
        %v1026 = vld [vmem:[%s177 + $0x1860] sm:$0xff]
        %v1027 = vld [vmem:[%s177 + $0x1868] sm:$0xff]
        %v1028 = vld [vmem:[%s177 + $0x1870] sm:$0xff]
        %v1029 = vld [vmem:[%s177 + $0x1878] sm:$0xff]
        %v1030 = vld [vmem:[%s177 + $0x1880] sm:$0xff]
        %v1031 = vld [vmem:[%s177 + $0x1888] sm:$0xff]
        %v1032 = vld [vmem:[%s177 + $0x1890] sm:$0xff]
        %v1033 = vld [vmem:[%s177 + $0x1898] sm:$0xff]
        %v1034 = vld [vmem:[%s177 + $0x18a0] sm:$0xff]
        %v1035 = vld [vmem:[%s177 + $0x18a8] sm:$0xff]
        %v1036 = vld [vmem:[%s177 + $0x18b0] sm:$0xff]
        %v1037 = vld [vmem:[%s177 + $0x18b8] sm:$0xff]
        %v1038 = vld [vmem:[%s177 + $0x18c0] sm:$0xff]
        %v1039 = vld [vmem:[%s177 + $0x18c8] sm:$0xff]
        %v1040 = vld [vmem:[%s177 + $0x18d0] sm:$0xff]
        %v1041 = vld [vmem:[%s177 + $0x18d8] sm:$0xff]
        %v1042 = vld [vmem:[%s177 + $0x18e0] sm:$0xff]
        %v1043 = vld [vmem:[%s177 + $0x18e8] sm:$0xff]
        %v1044 = vld [vmem:[%s177 + $0x18f0] sm:$0xff]
        %v1045 = vld [vmem:[%s177 + $0x18f8] sm:$0xff]
        %v1046 = vld [vmem:[%s177 + $0x1900] sm:$0xff]
        %v1047 = vld [vmem:[%s177 + $0x1908] sm:$0xff]
        %v1048 = vld [vmem:[%s177 + $0x1910] sm:$0xff]
        %v1049 = vld [vmem:[%s177 + $0x1918] sm:$0xff]
        %v1050 = vld [vmem:[%s177 + $0x1920] sm:$0xff]
        %v1051 = vld [vmem:[%s177 + $0x1928] sm:$0xff]
        %v1052 = vld [vmem:[%s177 + $0x1930] sm:$0xff]
        %v1053 = vld [vmem:[%s177 + $0x1938] sm:$0xff]
        %v1054 = vld [vmem:[%s177 + $0x1940] sm:$0xff]
        %v1055 = vld [vmem:[%s177 + $0x1948] sm:$0xff]
        %v1056 = vld [vmem:[%s177 + $0x1950] sm:$0xff]
        %v1057 = vld [vmem:[%s177 + $0x1958] sm:$0xff]
        %v1058 = vld [vmem:[%s177 + $0x1960] sm:$0xff]
        %v1059 = vld [vmem:[%s177 + $0x1968] sm:$0xff]
        %v1060 = vld [vmem:[%s177 + $0x1970] sm:$0xff]
        %v1061 = vld [vmem:[%s177 + $0x1978] sm:$0xff]
        %v1062 = vld [vmem:[%s177 + $0x1980] sm:$0xff]
        %v1063 = vld [vmem:[%s177 + $0x1988] sm:$0xff]
        %v1064 = vld [vmem:[%s177 + $0x1990] sm:$0xff]
        %v1065 = vld [vmem:[%s177 + $0x1998] sm:$0xff]
        %v1066 = vld [vmem:[%s177 + $0x19a0] sm:$0xff]
        %v1067 = vld [vmem:[%s177 + $0x19a8] sm:$0xff]
        %v1068 = vld [vmem:[%s177 + $0x19b0] sm:$0xff]
        %v1069 = vld [vmem:[%s177 + $0x19b8] sm:$0xff]
        %v1070 = vld [vmem:[%s177 + $0x19c0] sm:$0xff]
        %v1071 = vld [vmem:[%s177 + $0x19c8] sm:$0xff]
        %v1072 = vld [vmem:[%s177 + $0x19d0] sm:$0xff]
        %v1073 = vld [vmem:[%s177 + $0x19d8] sm:$0xff]
        %v1074 = vld [vmem:[%s177 + $0x19e0] sm:$0xff]
        %v1075 = vld [vmem:[%s177 + $0x19e8] sm:$0xff]
        %v1076 = vld [vmem:[%s177 + $0x19f0] sm:$0xff]
        %v1077 = vld [vmem:[%s177 + $0x19f8] sm:$0xff]
        %v1078 = vld [vmem:[%s177 + $0x1a00] sm:$0xff]
        %v1079 = vld [vmem:[%s177 + $0x1a08] sm:$0xff]
        %v1080 = vld [vmem:[%s177 + $0x1a10] sm:$0xff]
        %v1081 = vld [vmem:[%s177 + $0x1a18] sm:$0xff]
        %v1082 = vld [vmem:[%s177 + $0x1a20] sm:$0xff]
        %v1083 = vld [vmem:[%s177 + $0x1a28] sm:$0xff]
        %v1084 = vld [vmem:[%s177 + $0x1a30] sm:$0xff]
        %v1085 = vld [vmem:[%s177 + $0x1a38] sm:$0xff]
        %v1086 = vld [vmem:[%s177 + $0x1a40] sm:$0xff]
        %v1087 = vld [vmem:[%s177 + $0x1a48] sm:$0xff]
        %v1088 = vld [vmem:[%s177 + $0x1a50] sm:$0xff]
        %v1089 = vld [vmem:[%s177 + $0x1a58] sm:$0xff]
        %v1090 = vld [vmem:[%s177 + $0x1a60] sm:$0xff]
        %v1091 = vld [vmem:[%s177 + $0x1a68] sm:$0xff]
        %v1092 = vld [vmem:[%s177 + $0x1a70] sm:$0xff]
        %v1093 = vld [vmem:[%s177 + $0x1a78] sm:$0xff]
        %v1094 = vld [vmem:[%s177 + $0x1a80] sm:$0xff]
        %v1095 = vld [vmem:[%s177 + $0x1a88] sm:$0xff]
        %v1096 = vld [vmem:[%s177 + $0x1a90] sm:$0xff]
        %v1097 = vld [vmem:[%s177 + $0x1a98] sm:$0xff]
        %v1098 = vld [vmem:[%s177 + $0x1aa0] sm:$0xff]
        %v1099 = vld [vmem:[%s177 + $0x1aa8] sm:$0xff]
        %v1100 = vld [vmem:[%s177 + $0x1ab0] sm:$0xff]
        %v1101 = vld [vmem:[%s177 + $0x1ab8] sm:$0xff]
        %v1102 = vld [vmem:[%s177 + $0x1ac0] sm:$0xff]
        %v1103 = vld [vmem:[%s177 + $0x1ac8] sm:$0xff]
        %v1104 = vld [vmem:[%s177 + $0x1ad0] sm:$0xff]
        %v1105 = vld [vmem:[%s177 + $0x1ad8] sm:$0xff]
        %v1106 = vld [vmem:[%s177 + $0x1ae0] sm:$0xff]
        %v1107 = vld [vmem:[%s177 + $0x1ae8] sm:$0xff]
        %v1108 = vld [vmem:[%s177 + $0x1af0] sm:$0xff]
        %v1109 = vld [vmem:[%s177 + $0x1af8] sm:$0xff]
        %v1110 = vld [vmem:[%s177 + $0x1b00] sm:$0xff]
        %v1111 = vld [vmem:[%s177 + $0x1b08] sm:$0xff]
        %v1112 = vld [vmem:[%s177 + $0x1b10] sm:$0xff]
        %v1113 = vld [vmem:[%s177 + $0x1b18] sm:$0xff]
        %v1114 = vld [vmem:[%s177 + $0x1b20] sm:$0xff]
        %v1115 = vld [vmem:[%s177 + $0x1b28] sm:$0xff]
        %v1116 = vld [vmem:[%s177 + $0x1b30] sm:$0xff]
        %v1117 = vld [vmem:[%s177 + $0x1b38] sm:$0xff]
        %v1118 = vld [vmem:[%s177 + $0x1b40] sm:$0xff]
        %v1119 = vld [vmem:[%s177 + $0x1b48] sm:$0xff]
        %v1120 = vld [vmem:[%s177 + $0x1b50] sm:$0xff]
        %v1121 = vld [vmem:[%s177 + $0x1b58] sm:$0xff]
        %v1122 = vld [vmem:[%s177 + $0x1b60] sm:$0xff]
        %v1123 = vld [vmem:[%s177 + $0x1b68] sm:$0xff]
        %v1124 = vld [vmem:[%s177 + $0x1b70] sm:$0xff]
        %v1125 = vld [vmem:[%s177 + $0x1b78] sm:$0xff]
        %v1126 = vld [vmem:[%s177 + $0x1b80] sm:$0xff]
        %v1127 = vld [vmem:[%s177 + $0x1b88] sm:$0xff]
        %v1128 = vld [vmem:[%s177 + $0x1b90] sm:$0xff]
        %v1129 = vld [vmem:[%s177 + $0x1b98] sm:$0xff]
        %v1130 = vld [vmem:[%s177 + $0x1ba0] sm:$0xff]
        %v1131 = vld [vmem:[%s177 + $0x1ba8] sm:$0xff]
        %v1132 = vld [vmem:[%s177 + $0x1bb0] sm:$0xff]
        %v1133 = vld [vmem:[%s177 + $0x1bb8] sm:$0xff]
        %v1134 = vld [vmem:[%s177 + $0x1bc0] sm:$0xff]
        %v1135 = vld [vmem:[%s177 + $0x1bc8] sm:$0xff]
        %v1136 = vld [vmem:[%s177 + $0x1bd0] sm:$0xff]
        %v1137 = vld [vmem:[%s177 + $0x1bd8] sm:$0xff]
        %v1138 = vld [vmem:[%s177 + $0x1be0] sm:$0xff]
        %v1139 = vld [vmem:[%s177 + $0x1be8] sm:$0xff]
        %v1140 = vld [vmem:[%s177 + $0x1bf0] sm:$0xff]
        %v1141 = vld [vmem:[%s177 + $0x1bf8] sm:$0xff]
        %v1142 = vld [vmem:[%s177 + $0x1c00] sm:$0xff]
        %v1143 = vld [vmem:[%s177 + $0x1c08] sm:$0xff]
        %v1144 = vld [vmem:[%s177 + $0x1c10] sm:$0xff]
        %v1145 = vld [vmem:[%s177 + $0x1c18] sm:$0xff]
        %v1146 = vld [vmem:[%s177 + $0x1c20] sm:$0xff]
        %v1147 = vld [vmem:[%s177 + $0x1c28] sm:$0xff]
        %v1148 = vld [vmem:[%s177 + $0x1c30] sm:$0xff]
        %v1149 = vld [vmem:[%s177 + $0x1c38] sm:$0xff]
        %v1150 = vld [vmem:[%s177 + $0x1c40] sm:$0xff]
        %v1151 = vld [vmem:[%s177 + $0x1c48] sm:$0xff]
        %v1152 = vld [vmem:[%s177 + $0x1c50] sm:$0xff]
        %v1153 = vld [vmem:[%s177 + $0x1c58] sm:$0xff]
        %v1154 = vld [vmem:[%s177 + $0x1c60] sm:$0xff]
        %v1155 = vld [vmem:[%s177 + $0x1c68] sm:$0xff]
        %v1156 = vld [vmem:[%s177 + $0x1c70] sm:$0xff]
        %v1157 = vld [vmem:[%s177 + $0x1c78] sm:$0xff]
        %v1158 = vld [vmem:[%s177 + $0x1c80] sm:$0xff]
        %v1159 = vld [vmem:[%s177 + $0x1c88] sm:$0xff]
        %v1160 = vld [vmem:[%s177 + $0x1c90] sm:$0xff]
        %v1161 = vld [vmem:[%s177 + $0x1c98] sm:$0xff]
        %v1162 = vld [vmem:[%s177 + $0x1ca0] sm:$0xff]
        %v1163 = vld [vmem:[%s177 + $0x1ca8] sm:$0xff]
        %v1164 = vld [vmem:[%s177 + $0x1cb0] sm:$0xff]
        %v1165 = vld [vmem:[%s177 + $0x1cb8] sm:$0xff]
        %v1166 = vld [vmem:[%s177 + $0x1cc0] sm:$0xff]
        %v1167 = vld [vmem:[%s177 + $0x1cc8] sm:$0xff]
        %v1168 = vld [vmem:[%s177 + $0x1cd0] sm:$0xff]
        %v1169 = vld [vmem:[%s177 + $0x1cd8] sm:$0xff]
        %v1170 = vld [vmem:[%s177 + $0x1ce0] sm:$0xff]
        %v1171 = vld [vmem:[%s177 + $0x1ce8] sm:$0xff]
        %v1172 = vld [vmem:[%s177 + $0x1cf0] sm:$0xff]
        %v1173 = vld [vmem:[%s177 + $0x1cf8] sm:$0xff]
        %v1174 = vld [vmem:[%s177 + $0x1d00] sm:$0xff]
        %v1175 = vld [vmem:[%s177 + $0x1d08] sm:$0xff]
        %v1176 = vld [vmem:[%s177 + $0x1d10] sm:$0xff]
        %v1177 = vld [vmem:[%s177 + $0x1d18] sm:$0xff]
        %v1178 = vld [vmem:[%s177 + $0x1d20] sm:$0xff]
        %v1179 = vld [vmem:[%s177 + $0x1d28] sm:$0xff]
        %v1180 = vld [vmem:[%s177 + $0x1d30] sm:$0xff]
        %v1181 = vld [vmem:[%s177 + $0x1d38] sm:$0xff]
        %v1182 = vld [vmem:[%s177 + $0x1d40] sm:$0xff]
        %v1183 = vld [vmem:[%s177 + $0x1d48] sm:$0xff]
        %v1184 = vld [vmem:[%s177 + $0x1d50] sm:$0xff]
        %v1185 = vld [vmem:[%s177 + $0x1d58] sm:$0xff]
        %v1186 = vld [vmem:[%s177 + $0x1d60] sm:$0xff]
        %v1187 = vld [vmem:[%s177 + $0x1d68] sm:$0xff]
        %v1188 = vld [vmem:[%s177 + $0x1d70] sm:$0xff]
        %v1189 = vld [vmem:[%s177 + $0x1d78] sm:$0xff]
        %v1190 = vld [vmem:[%s177 + $0x1d80] sm:$0xff]
        %v1191 = vld [vmem:[%s177 + $0x1d88] sm:$0xff]
        %v1192 = vld [vmem:[%s177 + $0x1d90] sm:$0xff]
        %v1193 = vld [vmem:[%s177 + $0x1d98] sm:$0xff]
        %v1194 = vld [vmem:[%s177 + $0x1da0] sm:$0xff]
        %v1195 = vld [vmem:[%s177 + $0x1da8] sm:$0xff]
        %v1196 = vld [vmem:[%s177 + $0x1db0] sm:$0xff]
        %v1197 = vld [vmem:[%s177 + $0x1db8] sm:$0xff]
        %v1198 = vld [vmem:[%s177 + $0x1dc0] sm:$0xff]
        %v1199 = vld [vmem:[%s177 + $0x1dc8] sm:$0xff]
        %v1200 = vld [vmem:[%s177 + $0x1dd0] sm:$0xff]
        %v1201 = vld [vmem:[%s177 + $0x1dd8] sm:$0xff]
        %v1202 = vld [vmem:[%s177 + $0x1de0] sm:$0xff]
        %v1203 = vld [vmem:[%s177 + $0x1de8] sm:$0xff]
        %v1204 = vld [vmem:[%s177 + $0x1df0] sm:$0xff]
        %v1205 = vld [vmem:[%s177 + $0x1df8] sm:$0xff]
        %v1206 = vld [vmem:[%s177 + $0x1e00] sm:$0xff]
        %v1207 = vld [vmem:[%s177 + $0x1e08] sm:$0xff]
        %v1208 = vld [vmem:[%s177 + $0x1e10] sm:$0xff]
        %v1209 = vld [vmem:[%s177 + $0x1e18] sm:$0xff]
        %v1210 = vld [vmem:[%s177 + $0x1e20] sm:$0xff]
        %v1211 = vld [vmem:[%s177 + $0x1e28] sm:$0xff]
        %v1212 = vld [vmem:[%s177 + $0x1e30] sm:$0xff]
        %v1213 = vld [vmem:[%s177 + $0x1e38] sm:$0xff]
        %v1214 = vld [vmem:[%s177 + $0x1e40] sm:$0xff]
        %v1215 = vld [vmem:[%s177 + $0x1e48] sm:$0xff]
        %v1216 = vld [vmem:[%s177 + $0x1e50] sm:$0xff]
        %v1217 = vld [vmem:[%s177 + $0x1e58] sm:$0xff]
        %v1218 = vld [vmem:[%s177 + $0x1e60] sm:$0xff]
        %v1219 = vld [vmem:[%s177 + $0x1e68] sm:$0xff]
        %v1220 = vld [vmem:[%s177 + $0x1e70] sm:$0xff]
        %v1221 = vld [vmem:[%s177 + $0x1e78] sm:$0xff]
        %v1222 = vld [vmem:[%s177 + $0x1e80] sm:$0xff]
        %v1223 = vld [vmem:[%s177 + $0x1e88] sm:$0xff]
        %v1224 = vld [vmem:[%s177 + $0x1e90] sm:$0xff]
        %v1225 = vld [vmem:[%s177 + $0x1e98] sm:$0xff]
        %v1226 = vld [vmem:[%s177 + $0x1ea0] sm:$0xff]
        %v1227 = vld [vmem:[%s177 + $0x1ea8] sm:$0xff]
        %v1228 = vld [vmem:[%s177 + $0x1eb0] sm:$0xff]
        %v1229 = vld [vmem:[%s177 + $0x1eb8] sm:$0xff]
        %v1230 = vld [vmem:[%s177 + $0x1ec0] sm:$0xff]
        %v1231 = vld [vmem:[%s177 + $0x1ec8] sm:$0xff]
        %v1232 = vld [vmem:[%s177 + $0x1ed0] sm:$0xff]
        %v1233 = vld [vmem:[%s177 + $0x1ed8] sm:$0xff]
        %v1234 = vld [vmem:[%s177 + $0x1ee0] sm:$0xff]
        %v1235 = vld [vmem:[%s177 + $0x1ee8] sm:$0xff]
        %v1236 = vld [vmem:[%s177 + $0x1ef0] sm:$0xff]
        %v1237 = vld [vmem:[%s177 + $0x1ef8] sm:$0xff]
        %v1238 = vld [vmem:[%s177 + $0x1f00] sm:$0xff]
        %v1239 = vld [vmem:[%s177 + $0x1f08] sm:$0xff]
        %v1240 = vld [vmem:[%s177 + $0x1f10] sm:$0xff]
        %v1241 = vld [vmem:[%s177 + $0x1f18] sm:$0xff]
        %v1242 = vld [vmem:[%s177 + $0x1f20] sm:$0xff]
        %v1243 = vld [vmem:[%s177 + $0x1f28] sm:$0xff]
        %v1244 = vld [vmem:[%s177 + $0x1f30] sm:$0xff]
        %v1245 = vld [vmem:[%s177 + $0x1f38] sm:$0xff]
        %v1246 = vld [vmem:[%s177 + $0x1f40] sm:$0xff]
        %v1247 = vld [vmem:[%s177 + $0x1f48] sm:$0xff]
        %v1248 = vld [vmem:[%s177 + $0x1f50] sm:$0xff]
        %v1249 = vld [vmem:[%s177 + $0x1f58] sm:$0xff]
        %v1250 = vld [vmem:[%s177 + $0x1f60] sm:$0xff]
        %v1251 = vld [vmem:[%s177 + $0x1f68] sm:$0xff]
        %v1252 = vld [vmem:[%s177 + $0x1f70] sm:$0xff]
        %v1253 = vld [vmem:[%s177 + $0x1f78] sm:$0xff]
        %v1254 = vld [vmem:[%s177 + $0x1f80] sm:$0xff]
        %v1255 = vld [vmem:[%s177 + $0x1f88] sm:$0xff]
        %v1256 = vld [vmem:[%s177 + $0x1f90] sm:$0xff]
        %v1257 = vld [vmem:[%s177 + $0x1f98] sm:$0xff]
        %v1258 = vld [vmem:[%s177 + $0x1fa0] sm:$0xff]
        %v1259 = vld [vmem:[%s177 + $0x1fa8] sm:$0xff]
        %v1260 = vld [vmem:[%s177 + $0x1fb0] sm:$0xff]
        %v1261 = vld [vmem:[%s177 + $0x1fb8] sm:$0xff]
        %v1262 = vld [vmem:[%s177 + $0x1fc0] sm:$0xff]
        %v1263 = vld [vmem:[%s177 + $0x1fc8] sm:$0xff]
        %v1264 = vld [vmem:[%s177 + $0x1fd0] sm:$0xff]
        %v1265 = vld [vmem:[%s177 + $0x1fd8] sm:$0xff]
        %v1266 = vld [vmem:[%s177 + $0x1fe0] sm:$0xff]
        %v1267 = vld [vmem:[%s177 + $0x1fe8] sm:$0xff]
        %v1268 = vld [vmem:[%s177 + $0x1ff0] sm:$0xff]
        %v1269 = vld [vmem:[%s177 + $0x1ff8] sm:$0xff]
        %v1270 = vld [vmem:[%s177 + $0x2000] sm:$0xff]
        %v1271 = vld [vmem:[%s177 + $0x2008] sm:$0xff]
        %v1272 = vld [vmem:[%s177 + $0x2010] sm:$0xff]
        %v1273 = vld [vmem:[%s177 + $0x2018] sm:$0xff]
        %v1274 = vld [vmem:[%s177 + $0x2020] sm:$0xff]
        %v1275 = vld [vmem:[%s177 + $0x2028] sm:$0xff]
        %v1276 = vld [vmem:[%s177 + $0x2030] sm:$0xff]
        %v1277 = vld [vmem:[%s177 + $0x2038] sm:$0xff]
        %v1278 = vld [vmem:[%s177 + $0x2040] sm:$0xff]
        %v1279 = vld [vmem:[%s177 + $0x2048] sm:$0xff]
        %v1280 = vld [vmem:[%s177 + $0x2050] sm:$0xff]
        %v1281 = vld [vmem:[%s177 + $0x2058] sm:$0xff]
        %v1282 = vld [vmem:[%s177 + $0x2060] sm:$0xff]
        %v1283 = vld [vmem:[%s177 + $0x2068] sm:$0xff]
        %v1284 = vld [vmem:[%s177 + $0x2070] sm:$0xff]
        %v1285 = vld [vmem:[%s177 + $0x2078] sm:$0xff]
        %v1286 = vld [vmem:[%s177 + $0x2080] sm:$0xff]
        %v1287 = vld [vmem:[%s177 + $0x2088] sm:$0xff]
        %v1288 = vld [vmem:[%s177 + $0x2090] sm:$0xff]
        %v1289 = vld [vmem:[%s177 + $0x2098] sm:$0xff]
        %v1290 = vld [vmem:[%s177 + $0x20a0] sm:$0xff]
        %v1291 = vld [vmem:[%s177 + $0x20a8] sm:$0xff]
        %v1292 = vld [vmem:[%s177 + $0x20b0] sm:$0xff]
        %v1293 = vld [vmem:[%s177 + $0x20b8] sm:$0xff]
        %v1294 = vld [vmem:[%s177 + $0x20c0] sm:$0xff]
        %v1295 = vld [vmem:[%s177 + $0x20c8] sm:$0xff]
        %v1296 = vld [vmem:[%s177 + $0x20d0] sm:$0xff]
        %v1297 = vld [vmem:[%s177 + $0x20d8] sm:$0xff]
        %v1298 = vld [vmem:[%s177 + $0x20e0] sm:$0xff]
        %v1299 = vld [vmem:[%s177 + $0x20e8] sm:$0xff]
        %v1300 = vld [vmem:[%s177 + $0x20f0] sm:$0xff]
        %v1301 = vld [vmem:[%s177 + $0x20f8] sm:$0xff]
        %v1302 = vld [vmem:[%s177 + $0x2100] sm:$0xff]
        %v1303 = vld [vmem:[%s177 + $0x2108] sm:$0xff]
        %v1304 = vld [vmem:[%s177 + $0x2110] sm:$0xff]
        %v1305 = vld [vmem:[%s177 + $0x2118] sm:$0xff]
        %v1306 = vld [vmem:[%s177 + $0x2120] sm:$0xff]
        %v1307 = vld [vmem:[%s177 + $0x2128] sm:$0xff]
        %v1308 = vld [vmem:[%s177 + $0x2130] sm:$0xff]
        %v1309 = vld [vmem:[%s177 + $0x2138] sm:$0xff]
        %v1310 = vld [vmem:[%s177 + $0x2140] sm:$0xff]
        %v1311 = vld [vmem:[%s177 + $0x2148] sm:$0xff]
        %v1312 = vld [vmem:[%s177 + $0x2150] sm:$0xff]
        %v1313 = vld [vmem:[%s177 + $0x2158] sm:$0xff]
        %v1314 = vld [vmem:[%s177 + $0x2160] sm:$0xff]
        %v1315 = vld [vmem:[%s177 + $0x2168] sm:$0xff]
        %v1316 = vld [vmem:[%s177 + $0x2170] sm:$0xff]
        %v1317 = vld [vmem:[%s177 + $0x2178] sm:$0xff]
        %v1318 = vld [vmem:[%s177 + $0x2180] sm:$0xff]
        %v1319 = vld [vmem:[%s177 + $0x2188] sm:$0xff]
        %v1320 = vld [vmem:[%s177 + $0x2190] sm:$0xff]
        %v1321 = vld [vmem:[%s177 + $0x2198] sm:$0xff]
        %v1322 = vld [vmem:[%s177 + $0x21a0] sm:$0xff]
        %v1323 = vld [vmem:[%s177 + $0x21a8] sm:$0xff]
        %v1324 = vld [vmem:[%s177 + $0x21b0] sm:$0xff]
        %v1325 = vld [vmem:[%s177 + $0x21b8] sm:$0xff]
        %v1326 = vld [vmem:[%s177 + $0x21c0] sm:$0xff]
        %v1327 = vld [vmem:[%s177 + $0x21c8] sm:$0xff]
        %v1328 = vld [vmem:[%s177 + $0x21d0] sm:$0xff]
        %v1329 = vld [vmem:[%s177 + $0x21d8] sm:$0xff]
        %v1330 = vld [vmem:[%s177 + $0x21e0] sm:$0xff]
        %v1331 = vld [vmem:[%s177 + $0x21e8] sm:$0xff]
        %v1332 = vld [vmem:[%s177 + $0x21f0] sm:$0xff]
        %v1333 = vld [vmem:[%s177 + $0x21f8] sm:$0xff]
        %v1334 = vld [vmem:[%s177 + $0x2200] sm:$0xff]
        %v1335 = vld [vmem:[%s177 + $0x2208] sm:$0xff]
        %v1336 = vld [vmem:[%s177 + $0x2210] sm:$0xff]
        %v1337 = vld [vmem:[%s177 + $0x2218] sm:$0xff]
        %v1338 = vld [vmem:[%s177 + $0x2220] sm:$0xff]
        %v1339 = vld [vmem:[%s177 + $0x2228] sm:$0xff]
        %v1340 = vld [vmem:[%s177 + $0x2230] sm:$0xff]
        %v1341 = vld [vmem:[%s177 + $0x2238] sm:$0xff]
        %v1342 = vld [vmem:[%s177 + $0x2240] sm:$0xff]
        %v1343 = vld [vmem:[%s177 + $0x2248] sm:$0xff]
        %v1344 = vld [vmem:[%s177 + $0x2250] sm:$0xff]
        %v1345 = vld [vmem:[%s177 + $0x2258] sm:$0xff]
        %v1346 = vld [vmem:[%s177 + $0x2260] sm:$0xff]
        %v1347 = vld [vmem:[%s177 + $0x2268] sm:$0xff]
        %v1348 = vld [vmem:[%s177 + $0x2270] sm:$0xff]
        %v1349 = vld [vmem:[%s177 + $0x2278] sm:$0xff]
        %v1350 = vld [vmem:[%s177 + $0x2280] sm:$0xff]
        %v1351 = vld [vmem:[%s177 + $0x2288] sm:$0xff]
        %v1352 = vld [vmem:[%s177 + $0x2290] sm:$0xff]
        %v1353 = vld [vmem:[%s177 + $0x2298] sm:$0xff]
        %v1354 = vld [vmem:[%s177 + $0x22a0] sm:$0xff]
        %v1355 = vld [vmem:[%s177 + $0x22a8] sm:$0xff]
        %v1356 = vld [vmem:[%s177 + $0x22b0] sm:$0xff]
        %v1357 = vld [vmem:[%s177 + $0x22b8] sm:$0xff]
        %v1358 = vld [vmem:[%s177 + $0x22c0] sm:$0xff]
        %v1359 = vld [vmem:[%s177 + $0x22c8] sm:$0xff]
        %v1360 = vld [vmem:[%s177 + $0x22d0] sm:$0xff]
        %v1361 = vld [vmem:[%s177 + $0x22d8] sm:$0xff]
        %v1362 = vld [vmem:[%s177 + $0x22e0] sm:$0xff]
        %v1363 = vld [vmem:[%s177 + $0x22e8] sm:$0xff]
        %v1364 = vld [vmem:[%s177 + $0x22f0] sm:$0xff]
        %v1365 = vld [vmem:[%s177 + $0x22f8] sm:$0xff]
        %v1366 = vld [vmem:[%s177 + $0x2300] sm:$0xff]
        %v1367 = vld [vmem:[%s177 + $0x2308] sm:$0xff]
        %v1368 = vld [vmem:[%s177 + $0x2310] sm:$0xff]
        %v1369 = vld [vmem:[%s177 + $0x2318] sm:$0xff]
        %v1370 = vld [vmem:[%s177 + $0x2320] sm:$0xff]
        %v1371 = vld [vmem:[%s177 + $0x2328] sm:$0xff]
        %v1372 = vld [vmem:[%s177 + $0x2330] sm:$0xff]
        %v1373 = vld [vmem:[%s177 + $0x2338] sm:$0xff]
        %v1374 = vld [vmem:[%s177 + $0x2340] sm:$0xff]
        %v1375 = vld [vmem:[%s177 + $0x2348] sm:$0xff]
        %v1376 = vld [vmem:[%s177 + $0x2350] sm:$0xff]
        %v1377 = vld [vmem:[%s177 + $0x2358] sm:$0xff]
        %v1378 = vld [vmem:[%s177 + $0x2360] sm:$0xff]
        %v1379 = vld [vmem:[%s177 + $0x2368] sm:$0xff]
        %v1380 = vld [vmem:[%s177 + $0x2370] sm:$0xff]
        %v1381 = vld [vmem:[%s177 + $0x2378] sm:$0xff]
        %v1382 = vld [vmem:[%s177 + $0x2380] sm:$0xff]
        %v1383 = vld [vmem:[%s177 + $0x2388] sm:$0xff]
        %v1384 = vld [vmem:[%s177 + $0x2390] sm:$0xff]
        %v1385 = vld [vmem:[%s177 + $0x2398] sm:$0xff]
        %v1386 = vld [vmem:[%s177 + $0x23a0] sm:$0xff]
        %v1387 = vld [vmem:[%s177 + $0x23a8] sm:$0xff]
        %v1388 = vld [vmem:[%s177 + $0x23b0] sm:$0xff]
        %v1389 = vld [vmem:[%s177 + $0x23b8] sm:$0xff]
        %v1390 = vld [vmem:[%s177 + $0x23c0] sm:$0xff]
        %v1391 = vld [vmem:[%s177 + $0x23c8] sm:$0xff]
        %v1392 = vld [vmem:[%s177 + $0x23d0] sm:$0xff]
        %v1393 = vld [vmem:[%s177 + $0x23d8] sm:$0xff]
        %v1394 = vld [vmem:[%s177 + $0x23e0] sm:$0xff]
        %v1395 = vld [vmem:[%s177 + $0x23e8] sm:$0xff]
        %v1396 = vld [vmem:[%s177 + $0x23f0] sm:$0xff]
        %v1397 = vld [vmem:[%s177 + $0x23f8] sm:$0xff]
        %v1398 = vld [vmem:[%s177 + $0x2400] sm:$0xff]
        %v1399 = vld [vmem:[%s177 + $0x2408] sm:$0xff]
        %v1400 = vld [vmem:[%s177 + $0x2410] sm:$0xff]
        %v1401 = vld [vmem:[%s177 + $0x2418] sm:$0xff]
        %v1402 = vld [vmem:[%s177 + $0x2420] sm:$0xff]
        %v1403 = vld [vmem:[%s177 + $0x2428] sm:$0xff]
        %v1404 = vld [vmem:[%s177 + $0x2430] sm:$0xff]
        %v1405 = vld [vmem:[%s177 + $0x2438] sm:$0xff]
        %v1406 = vld [vmem:[%s177 + $0x2440] sm:$0xff]
        %v1407 = vld [vmem:[%s177 + $0x2448] sm:$0xff]
        %v1408 = vld [vmem:[%s177 + $0x2450] sm:$0xff]
        %v1409 = vld [vmem:[%s177 + $0x2458] sm:$0xff]
        %v1410 = vld [vmem:[%s177 + $0x2460] sm:$0xff]
        %v1411 = vld [vmem:[%s177 + $0x2468] sm:$0xff]
        %v1412 = vld [vmem:[%s177 + $0x2470] sm:$0xff]
        %v1413 = vld [vmem:[%s177 + $0x2478] sm:$0xff]
        %v1414 = vld [vmem:[%s177 + $0x2480] sm:$0xff]
        %v1415 = vld [vmem:[%s177 + $0x2488] sm:$0xff]
        %v1416 = vld [vmem:[%s177 + $0x2490] sm:$0xff]
        %v1417 = vld [vmem:[%s177 + $0x2498] sm:$0xff]
        %v1418 = vld [vmem:[%s177 + $0x24a0] sm:$0xff]
        %v1419 = vld [vmem:[%s177 + $0x24a8] sm:$0xff]
        %v1420 = vld [vmem:[%s177 + $0x24b0] sm:$0xff]
        %v1421 = vld [vmem:[%s177 + $0x24b8] sm:$0xff]
        %v1422 = vld [vmem:[%s177 + $0x24c0] sm:$0xff]
        %v1423 = vld [vmem:[%s177 + $0x24c8] sm:$0xff]
        %v1424 = vld [vmem:[%s177 + $0x24d0] sm:$0xff]
        %v1425 = vld [vmem:[%s177 + $0x24d8] sm:$0xff]
        %v1426 = vld [vmem:[%s177 + $0x24e0] sm:$0xff]
        %v1427 = vld [vmem:[%s177 + $0x24e8] sm:$0xff]
        %v1428 = vld [vmem:[%s177 + $0x24f0] sm:$0xff]
        %v1429 = vld [vmem:[%s177 + $0x24f8] sm:$0xff]
        %v1430 = vld [vmem:[%s177 + $0x2500] sm:$0xff]
        %v1431 = vld [vmem:[%s177 + $0x2508] sm:$0xff]
        %v1432 = vld [vmem:[%s177 + $0x2510] sm:$0xff]
        %v1433 = vld [vmem:[%s177 + $0x2518] sm:$0xff]
        %v1434 = vld [vmem:[%s177 + $0x2520] sm:$0xff]
        %v1435 = vld [vmem:[%s177 + $0x2528] sm:$0xff]
        %v1436 = vld [vmem:[%s177 + $0x2530] sm:$0xff]
        %v1437 = vld [vmem:[%s177 + $0x2538] sm:$0xff]
        %v1438 = vld [vmem:[%s177 + $0x2540] sm:$0xff]
        %v1439 = vld [vmem:[%s177 + $0x2548] sm:$0xff]
        %v1440 = vld [vmem:[%s177 + $0x2550] sm:$0xff]
        %v1441 = vld [vmem:[%s177 + $0x2558] sm:$0xff]
        %v1442 = vld [vmem:[%s177 + $0x2560] sm:$0xff]
        %v1443 = vld [vmem:[%s177 + $0x2568] sm:$0xff]
        %v1444 = vld [vmem:[%s177 + $0x2570] sm:$0xff]
        %v1445 = vld [vmem:[%s177 + $0x2578] sm:$0xff]
        %v1446 = vld [vmem:[%s177 + $0x2580] sm:$0xff]
        %v1447 = vld [vmem:[%s177 + $0x2588] sm:$0xff]
        %v1448 = vld [vmem:[%s177 + $0x2590] sm:$0xff]
        %v1449 = vld [vmem:[%s177 + $0x2598] sm:$0xff]
        %v1450 = vld [vmem:[%s177 + $0x25a0] sm:$0xff]
        %v1451 = vld [vmem:[%s177 + $0x25a8] sm:$0xff]
        %v1452 = vld [vmem:[%s177 + $0x25b0] sm:$0xff]
        %v1453 = vld [vmem:[%s177 + $0x25b8] sm:$0xff]
        %v1454 = vld [vmem:[%s177 + $0x25c0] sm:$0xff]
        %v1455 = vld [vmem:[%s177 + $0x25c8] sm:$0xff]
        %v1456 = vld [vmem:[%s177 + $0x25d0] sm:$0xff]
        %v1457 = vld [vmem:[%s177 + $0x25d8] sm:$0xff]
        %v1458 = vld [vmem:[%s177 + $0x25e0] sm:$0xff]
        %v1459 = vld [vmem:[%s177 + $0x25e8] sm:$0xff]
        %v1460 = vld [vmem:[%s177 + $0x25f0] sm:$0xff]
        %v1461 = vld [vmem:[%s177 + $0x25f8] sm:$0xff]
        %v1462 = vld [vmem:[%s177 + $0x2600] sm:$0xff]
        %v1463 = vld [vmem:[%s177 + $0x2608] sm:$0xff]
        %v1464 = vld [vmem:[%s177 + $0x2610] sm:$0xff]
        %v1465 = vld [vmem:[%s177 + $0x2618] sm:$0xff]
        %v1466 = vld [vmem:[%s177 + $0x2620] sm:$0xff]
        %v1467 = vld [vmem:[%s177 + $0x2628] sm:$0xff]
        %v1468 = vld [vmem:[%s177 + $0x2630] sm:$0xff]
        %v1469 = vld [vmem:[%s177 + $0x2638] sm:$0xff]
        %v1470 = vld [vmem:[%s177 + $0x2640] sm:$0xff]
        %v1471 = vld [vmem:[%s177 + $0x2648] sm:$0xff]
        %v1472 = vld [vmem:[%s177 + $0x2650] sm:$0xff]
        %v1473 = vld [vmem:[%s177 + $0x2658] sm:$0xff]
        %v1474 = vld [vmem:[%s177 + $0x2660] sm:$0xff]
        %v1475 = vld [vmem:[%s177 + $0x2668] sm:$0xff]
        %v1476 = vld [vmem:[%s177 + $0x2670] sm:$0xff]
        %v1477 = vld [vmem:[%s177 + $0x2678] sm:$0xff]
        %v1478 = vld [vmem:[%s177 + $0x2680] sm:$0xff]
        %v1479 = vld [vmem:[%s177 + $0x2688] sm:$0xff]
        %v1480 = vld [vmem:[%s177 + $0x2690] sm:$0xff]
        %v1481 = vld [vmem:[%s177 + $0x2698] sm:$0xff]
        %v1482 = vld [vmem:[%s177 + $0x26a0] sm:$0xff]
        %v1483 = vld [vmem:[%s177 + $0x26a8] sm:$0xff]
        %v1484 = vld [vmem:[%s177 + $0x26b0] sm:$0xff]
        %v1485 = vld [vmem:[%s177 + $0x26b8] sm:$0xff]
        %v1486 = vld [vmem:[%s177 + $0x26c0] sm:$0xff]
        %v1487 = vld [vmem:[%s177 + $0x26c8] sm:$0xff]
        %v1488 = vld [vmem:[%s177 + $0x26d0] sm:$0xff]
        %v1489 = vld [vmem:[%s177 + $0x26d8] sm:$0xff]
        %v1490 = vld [vmem:[%s177 + $0x26e0] sm:$0xff]
        %v1491 = vld [vmem:[%s177 + $0x26e8] sm:$0xff]
        %v1492 = vld [vmem:[%s177 + $0x26f0] sm:$0xff]
        %v1493 = vld [vmem:[%s177 + $0x26f8] sm:$0xff]
        %v1494 = vld [vmem:[%s177 + $0x2700] sm:$0xff]
        %v1495 = vld [vmem:[%s177 + $0x2708] sm:$0xff]
        %v1496 = vld [vmem:[%s177 + $0x2710] sm:$0xff]
        %v1497 = vld [vmem:[%s177 + $0x2718] sm:$0xff]
        %v1498 = vld [vmem:[%s177 + $0x2720] sm:$0xff]
        %v1499 = vld [vmem:[%s177 + $0x2728] sm:$0xff]
        %v1500 = vld [vmem:[%s177 + $0x2730] sm:$0xff]
        %v1501 = vld [vmem:[%s177 + $0x2738] sm:$0xff]
        %v1502 = vld [vmem:[%s177 + $0x2740] sm:$0xff]
        %v1503 = vld [vmem:[%s177 + $0x2748] sm:$0xff]
        %v1504 = vld [vmem:[%s177 + $0x2750] sm:$0xff]
        %v1505 = vld [vmem:[%s177 + $0x2758] sm:$0xff]
        %v1506 = vld [vmem:[%s177 + $0x2760] sm:$0xff]
        %v1507 = vld [vmem:[%s177 + $0x2768] sm:$0xff]
        %v1508 = vld [vmem:[%s177 + $0x2770] sm:$0xff]
        %v1509 = vld [vmem:[%s177 + $0x2778] sm:$0xff]
        %v1510 = vld [vmem:[%s177 + $0x2780] sm:$0xff]
        %v1511 = vld [vmem:[%s177 + $0x2788] sm:$0xff]
        %v1512 = vld [vmem:[%s177 + $0x2790] sm:$0xff]
        %v1513 = vld [vmem:[%s177 + $0x2798] sm:$0xff]
        %v1514 = vld [vmem:[%s177 + $0x27a0] sm:$0xff]
        %v1515 = vld [vmem:[%s177 + $0x27a8] sm:$0xff]
        %v1516 = vld [vmem:[%s177 + $0x27b0] sm:$0xff]
        %v1517 = vld [vmem:[%s177 + $0x27b8] sm:$0xff]
        %v1518 = vld [vmem:[%s177 + $0x27c0] sm:$0xff]
        %v1519 = vld [vmem:[%s177 + $0x27c8] sm:$0xff]
        %v1520 = vld [vmem:[%s177 + $0x27d0] sm:$0xff]
        %v1521 = vld [vmem:[%s177 + $0x27d8] sm:$0xff]
        %v1522 = vld [vmem:[%s177 + $0x27e0] sm:$0xff]
        %v1523 = vld [vmem:[%s177 + $0x27e8] sm:$0xff]
        %v1524 = vld [vmem:[%s177 + $0x27f0] sm:$0xff]
        %v1525 = vld [vmem:[%s177 + $0x27f8] sm:$0xff]
        %v1526 = vld [vmem:[%s177 + $0x2800] sm:$0xff]
        %v1527 = vld [vmem:[%s177 + $0x2808] sm:$0xff]
        %v1528 = vld [vmem:[%s177 + $0x2810] sm:$0xff]
        %v1529 = vld [vmem:[%s177 + $0x2818] sm:$0xff]
        %v1530 = vld [vmem:[%s177 + $0x2820] sm:$0xff]
        %v1531 = vld [vmem:[%s177 + $0x2828] sm:$0xff]
        %v1532 = vld [vmem:[%s177 + $0x2830] sm:$0xff]
        %v1533 = vld [vmem:[%s177 + $0x2838] sm:$0xff]
        %v1534 = vld [vmem:[%s177 + $0x2840] sm:$0xff]
        %v1535 = vld [vmem:[%s177 + $0x2848] sm:$0xff]
        %v1536 = vld [vmem:[%s177 + $0x2850] sm:$0xff]
        %v1537 = vld [vmem:[%s177 + $0x2858] sm:$0xff]
        %v1538 = vld [vmem:[%s177 + $0x2860] sm:$0xff]
        %v1539 = vld [vmem:[%s177 + $0x2868] sm:$0xff]
        %v1540 = vld [vmem:[%s177 + $0x2870] sm:$0xff]
        %v1541 = vld [vmem:[%s177 + $0x2878] sm:$0xff]
        %v1542 = vld [vmem:[%s177 + $0x2880] sm:$0xff]
        %v1543 = vld [vmem:[%s177 + $0x2888] sm:$0xff]
        %v1544 = vld [vmem:[%s177 + $0x2890] sm:$0xff]
        %v1545 = vld [vmem:[%s177 + $0x2898] sm:$0xff]
        %v1546 = vld [vmem:[%s177 + $0x28a0] sm:$0xff]
        %v1547 = vld [vmem:[%s177 + $0x28a8] sm:$0xff]
        %v1548 = vld [vmem:[%s177 + $0x28b0] sm:$0xff]
        %v1549 = vld [vmem:[%s177 + $0x28b8] sm:$0xff]
        %v1550 = vld [vmem:[%s177 + $0x28c0] sm:$0xff]
        %v1551 = vld [vmem:[%s177 + $0x28c8] sm:$0xff]
        %v1552 = vld [vmem:[%s177 + $0x28d0] sm:$0xff]
        %v1553 = vld [vmem:[%s177 + $0x28d8] sm:$0xff]
        %v1554 = vld [vmem:[%s177 + $0x28e0] sm:$0xff]
        %v1555 = vld [vmem:[%s177 + $0x28e8] sm:$0xff]
        %v1556 = vld [vmem:[%s177 + $0x28f0] sm:$0xff]
        %v1557 = vld [vmem:[%s177 + $0x28f8] sm:$0xff]
        %v1558 = vld [vmem:[%s177 + $0x2900] sm:$0xff]
        %v1559 = vld [vmem:[%s177 + $0x2908] sm:$0xff]
        %v1560 = vld [vmem:[%s177 + $0x2910] sm:$0xff]
        %v1561 = vld [vmem:[%s177 + $0x2918] sm:$0xff]
        %v1562 = vld [vmem:[%s177 + $0x2920] sm:$0xff]
        %v1563 = vld [vmem:[%s177 + $0x2928] sm:$0xff]
        %v1564 = vld [vmem:[%s177 + $0x2930] sm:$0xff]
        %v1565 = vld [vmem:[%s177 + $0x2938] sm:$0xff]
        %v1566 = vld [vmem:[%s177 + $0x2940] sm:$0xff]
        %v1567 = vld [vmem:[%s177 + $0x2948] sm:$0xff]
        %v1568 = vld [vmem:[%s177 + $0x2950] sm:$0xff]
        %v1569 = vld [vmem:[%s177 + $0x2958] sm:$0xff]
        %v1570 = vld [vmem:[%s177 + $0x2960] sm:$0xff]
        %v1571 = vld [vmem:[%s177 + $0x2968] sm:$0xff]
        %v1572 = vld [vmem:[%s177 + $0x2970] sm:$0xff]
        %v1573 = vld [vmem:[%s177 + $0x2978] sm:$0xff]
        %v1574 = vld [vmem:[%s177 + $0x2980] sm:$0xff]
        %v1575 = vld [vmem:[%s177 + $0x2988] sm:$0xff]
        %v1576 = vld [vmem:[%s177 + $0x2990] sm:$0xff]
        %v1577 = vld [vmem:[%s177 + $0x2998] sm:$0xff]
        %v1578 = vld [vmem:[%s177 + $0x29a0] sm:$0xff]
        %v1579 = vld [vmem:[%s177 + $0x29a8] sm:$0xff]
        %v1580 = vld [vmem:[%s177 + $0x29b0] sm:$0xff]
        %v1581 = vld [vmem:[%s177 + $0x29b8] sm:$0xff]
        %v1582 = vld [vmem:[%s177 + $0x29c0] sm:$0xff]
        %v1583 = vld [vmem:[%s177 + $0x29c8] sm:$0xff]
        %v1584 = vld [vmem:[%s177 + $0x29d0] sm:$0xff]
        %v1585 = vld [vmem:[%s177 + $0x29d8] sm:$0xff]
        %v1586 = vld [vmem:[%s177 + $0x29e0] sm:$0xff]
        %v1587 = vld [vmem:[%s177 + $0x29e8] sm:$0xff]
        %v1588 = vld [vmem:[%s177 + $0x29f0] sm:$0xff]
        %v1589 = vld [vmem:[%s177 + $0x29f8] sm:$0xff]
        %v1590 = vld [vmem:[%s177 + $0x2a00] sm:$0xff]
        %v1591 = vld [vmem:[%s177 + $0x2a08] sm:$0xff]
        %v1592 = vld [vmem:[%s177 + $0x2a10] sm:$0xff]
        %v1593 = vld [vmem:[%s177 + $0x2a18] sm:$0xff]
        %v1594 = vld [vmem:[%s177 + $0x2a20] sm:$0xff]
        %v1595 = vld [vmem:[%s177 + $0x2a28] sm:$0xff]
        %v1596 = vld [vmem:[%s177 + $0x2a30] sm:$0xff]
        %v1597 = vld [vmem:[%s177 + $0x2a38] sm:$0xff]
        %v1598 = vld [vmem:[%s177 + $0x2a40] sm:$0xff]
        %v1599 = vld [vmem:[%s177 + $0x2a48] sm:$0xff]
        %v1600 = vld [vmem:[%s177 + $0x2a50] sm:$0xff]
        %v1601 = vld [vmem:[%s177 + $0x2a58] sm:$0xff]
        %v1602 = vld [vmem:[%s177 + $0x2a60] sm:$0xff]
        %v1603 = vld [vmem:[%s177 + $0x2a68] sm:$0xff]
        %v1604 = vld [vmem:[%s177 + $0x2a70] sm:$0xff]
        %v1605 = vld [vmem:[%s177 + $0x2a78] sm:$0xff]
        %v1606 = vld [vmem:[%s177 + $0x2a80] sm:$0xff]
        %v1607 = vld [vmem:[%s177 + $0x2a88] sm:$0xff]
        %v1608 = vld [vmem:[%s177 + $0x2a90] sm:$0xff]
        %v1609 = vld [vmem:[%s177 + $0x2a98] sm:$0xff]
        %v1610 = vld [vmem:[%s177 + $0x2aa0] sm:$0xff]
        %v1611 = vld [vmem:[%s177 + $0x2aa8] sm:$0xff]
        %v1612 = vld [vmem:[%s177 + $0x2ab0] sm:$0xff]
        %v1613 = vld [vmem:[%s177 + $0x2ab8] sm:$0xff]
        %v1614 = vld [vmem:[%s177 + $0x2ac0] sm:$0xff]
        %v1615 = vld [vmem:[%s177 + $0x2ac8] sm:$0xff]
        %v1616 = vld [vmem:[%s177 + $0x2ad0] sm:$0xff]
        %v1617 = vld [vmem:[%s177 + $0x2ad8] sm:$0xff]
        %v1618 = vld [vmem:[%s177 + $0x2ae0] sm:$0xff]
        %v1619 = vld [vmem:[%s177 + $0x2ae8] sm:$0xff]
        %v1620 = vld [vmem:[%s177 + $0x2af0] sm:$0xff]
        %v1621 = vld [vmem:[%s177 + $0x2af8] sm:$0xff]
        %v1622 = vld [vmem:[%s177 + $0x2b00] sm:$0xff]
        %v1623 = vld [vmem:[%s177 + $0x2b08] sm:$0xff]
        %v1624 = vld [vmem:[%s177 + $0x2b10] sm:$0xff]
        %v1625 = vld [vmem:[%s177 + $0x2b18] sm:$0xff]
        %v1626 = vld [vmem:[%s177 + $0x2b20] sm:$0xff]
        %v1627 = vld [vmem:[%s177 + $0x2b28] sm:$0xff]
        %v1628 = vld [vmem:[%s177 + $0x2b30] sm:$0xff]
        %v1629 = vld [vmem:[%s177 + $0x2b38] sm:$0xff]
        %v1630 = vld [vmem:[%s177 + $0x2b40] sm:$0xff]
        %v1631 = vld [vmem:[%s177 + $0x2b48] sm:$0xff]
        %v1632 = vld [vmem:[%s177 + $0x2b50] sm:$0xff]
        %v1633 = vld [vmem:[%s177 + $0x2b58] sm:$0xff]
        %v1634 = vld [vmem:[%s177 + $0x2b60] sm:$0xff]
        %v1635 = vld [vmem:[%s177 + $0x2b68] sm:$0xff]
        %v1636 = vld [vmem:[%s177 + $0x2b70] sm:$0xff]
        %v1637 = vld [vmem:[%s177 + $0x2b78] sm:$0xff]
        %v1638 = vld [vmem:[%s177 + $0x2b80] sm:$0xff]
        %v1639 = vld [vmem:[%s177 + $0x2b88] sm:$0xff]
        %v1640 = vld [vmem:[%s177 + $0x2b90] sm:$0xff]
        %v1641 = vld [vmem:[%s177 + $0x2b98] sm:$0xff]
        %v1642 = vld [vmem:[%s177 + $0x2ba0] sm:$0xff]
        %v1643 = vld [vmem:[%s177 + $0x2ba8] sm:$0xff]
        %v1644 = vld [vmem:[%s177 + $0x2bb0] sm:$0xff]
        %v1645 = vld [vmem:[%s177 + $0x2bb8] sm:$0xff]
        %v1646 = vld [vmem:[%s177 + $0x2bc0] sm:$0xff]
        %v1647 = vld [vmem:[%s177 + $0x2bc8] sm:$0xff]
        %v1648 = vld [vmem:[%s177 + $0x2bd0] sm:$0xff]
        %v1649 = vld [vmem:[%s177 + $0x2bd8] sm:$0xff]
        %v1650 = vld [vmem:[%s177 + $0x2be0] sm:$0xff]
        %v1651 = vld [vmem:[%s177 + $0x2be8] sm:$0xff]
        %v1652 = vld [vmem:[%s177 + $0x2bf0] sm:$0xff]
        %v1653 = vld [vmem:[%s177 + $0x2bf8] sm:$0xff]
        %v1654 = vld [vmem:[%s177 + $0x2c00] sm:$0xff]
        %v1655 = vld [vmem:[%s177 + $0x2c08] sm:$0xff]
        %v1656 = vld [vmem:[%s177 + $0x2c10] sm:$0xff]
        %v1657 = vld [vmem:[%s177 + $0x2c18] sm:$0xff]
        %v1658 = vld [vmem:[%s177 + $0x2c20] sm:$0xff]
        %v1659 = vld [vmem:[%s177 + $0x2c28] sm:$0xff]
        %v1660 = vld [vmem:[%s177 + $0x2c30] sm:$0xff]
        %v1661 = vld [vmem:[%s177 + $0x2c38] sm:$0xff]
        %v1662 = vld [vmem:[%s177 + $0x2c40] sm:$0xff]
        %v1663 = vld [vmem:[%s177 + $0x2c48] sm:$0xff]
        %v1664 = vld [vmem:[%s177 + $0x2c50] sm:$0xff]
        %v1665 = vld [vmem:[%s177 + $0x2c58] sm:$0xff]
        %v1666 = vld [vmem:[%s177 + $0x2c60] sm:$0xff]
        %v1667 = vld [vmem:[%s177 + $0x2c68] sm:$0xff]
        %v1668 = vld [vmem:[%s177 + $0x2c70] sm:$0xff]
        %v1669 = vld [vmem:[%s177 + $0x2c78] sm:$0xff]
        %v1670 = vld [vmem:[%s177 + $0x2c80] sm:$0xff]
        %v1671 = vld [vmem:[%s177 + $0x2c88] sm:$0xff]
        %v1672 = vld [vmem:[%s177 + $0x2c90] sm:$0xff]
        %v1673 = vld [vmem:[%s177 + $0x2c98] sm:$0xff]
        %v1674 = vld [vmem:[%s177 + $0x2ca0] sm:$0xff]
        %v1675 = vld [vmem:[%s177 + $0x2ca8] sm:$0xff]
        %v1676 = vld [vmem:[%s177 + $0x2cb0] sm:$0xff]
        %v1677 = vld [vmem:[%s177 + $0x2cb8] sm:$0xff]
        %v1678 = vld [vmem:[%s177 + $0x2cc0] sm:$0xff]
        %v1679 = vld [vmem:[%s177 + $0x2cc8] sm:$0xff]
        %v1680 = vld [vmem:[%s177 + $0x2cd0] sm:$0xff]
        %v1681 = vld [vmem:[%s177 + $0x2cd8] sm:$0xff]
        %v1682 = vld [vmem:[%s177 + $0x2ce0] sm:$0xff]
        %v1683 = vld [vmem:[%s177 + $0x2ce8] sm:$0xff]
        %v1684 = vld [vmem:[%s177 + $0x2cf0] sm:$0xff]
        %v1685 = vld [vmem:[%s177 + $0x2cf8] sm:$0xff]
        %v1686 = vld [vmem:[%s177 + $0x2d00] sm:$0xff]
        %v1687 = vld [vmem:[%s177 + $0x2d08] sm:$0xff]
        %v1688 = vld [vmem:[%s177 + $0x2d10] sm:$0xff]
        %v1689 = vld [vmem:[%s177 + $0x2d18] sm:$0xff]
        %v1690 = vld [vmem:[%s177 + $0x2d20] sm:$0xff]
        %v1691 = vld [vmem:[%s177 + $0x2d28] sm:$0xff]
        %v1692 = vld [vmem:[%s177 + $0x2d30] sm:$0xff]
        %v1693 = vld [vmem:[%s177 + $0x2d38] sm:$0xff]
        %v1694 = vld [vmem:[%s177 + $0x2d40] sm:$0xff]
        %v1695 = vld [vmem:[%s177 + $0x2d48] sm:$0xff]
        %v1696 = vld [vmem:[%s177 + $0x2d50] sm:$0xff]
        %v1697 = vld [vmem:[%s177 + $0x2d58] sm:$0xff]
        %v1698 = vld [vmem:[%s177 + $0x2d60] sm:$0xff]
        %v1699 = vld [vmem:[%s177 + $0x2d68] sm:$0xff]
        %v1700 = vld [vmem:[%s177 + $0x2d70] sm:$0xff]
        %v1701 = vld [vmem:[%s177 + $0x2d78] sm:$0xff]
        %v1702 = vld [vmem:[%s177 + $0x2d80] sm:$0xff]
        %v1703 = vld [vmem:[%s177 + $0x2d88] sm:$0xff]
        %v1704 = vld [vmem:[%s177 + $0x2d90] sm:$0xff]
        %v1705 = vld [vmem:[%s177 + $0x2d98] sm:$0xff]
        %v1706 = vld [vmem:[%s177 + $0x2da0] sm:$0xff]
        %v1707 = vld [vmem:[%s177 + $0x2da8] sm:$0xff]
        %v1708 = vld [vmem:[%s177 + $0x2db0] sm:$0xff]
        %v1709 = vld [vmem:[%s177 + $0x2db8] sm:$0xff]
        %v1710 = vld [vmem:[%s177 + $0x2dc0] sm:$0xff]
        %v1711 = vld [vmem:[%s177 + $0x2dc8] sm:$0xff]
        %v1712 = vld [vmem:[%s177 + $0x2dd0] sm:$0xff]
        %v1713 = vld [vmem:[%s177 + $0x2dd8] sm:$0xff]
        %v1714 = vld [vmem:[%s177 + $0x2de0] sm:$0xff]
        %v1715 = vld [vmem:[%s177 + $0x2de8] sm:$0xff]
        %v1716 = vld [vmem:[%s177 + $0x2df0] sm:$0xff]
        %v1717 = vld [vmem:[%s177 + $0x2df8] sm:$0xff]
        %v1718 = vld [vmem:[%s177 + $0x2e00] sm:$0xff]
        %v1719 = vld [vmem:[%s177 + $0x2e08] sm:$0xff]
        %v1720 = vld [vmem:[%s177 + $0x2e10] sm:$0xff]
        %v1721 = vld [vmem:[%s177 + $0x2e18] sm:$0xff]
        %v1722 = vld [vmem:[%s177 + $0x2e20] sm:$0xff]
        %v1723 = vld [vmem:[%s177 + $0x2e28] sm:$0xff]
        %v1724 = vld [vmem:[%s177 + $0x2e30] sm:$0xff]
        %v1725 = vld [vmem:[%s177 + $0x2e38] sm:$0xff]
        %v1726 = vld [vmem:[%s177 + $0x2e40] sm:$0xff]
        %v1727 = vld [vmem:[%s177 + $0x2e48] sm:$0xff]
        %v1728 = vld [vmem:[%s177 + $0x2e50] sm:$0xff]
        %v1729 = vld [vmem:[%s177 + $0x2e58] sm:$0xff]
        %v1730 = vld [vmem:[%s177 + $0x2e60] sm:$0xff]
        %v1731 = vld [vmem:[%s177 + $0x2e68] sm:$0xff]
        %v1732 = vld [vmem:[%s177 + $0x2e70] sm:$0xff]
        %v1733 = vld [vmem:[%s177 + $0x2e78] sm:$0xff]
        %v1734 = vld [vmem:[%s177 + $0x2e80] sm:$0xff]
        %v1735 = vld [vmem:[%s177 + $0x2e88] sm:$0xff]
        %v1736 = vld [vmem:[%s177 + $0x2e90] sm:$0xff]
        %v1737 = vld [vmem:[%s177 + $0x2e98] sm:$0xff]
        %v1738 = vld [vmem:[%s177 + $0x2ea0] sm:$0xff]
        %v1739 = vld [vmem:[%s177 + $0x2ea8] sm:$0xff]
        %v1740 = vld [vmem:[%s177 + $0x2eb0] sm:$0xff]
        %v1741 = vld [vmem:[%s177 + $0x2eb8] sm:$0xff]
        %v1742 = vld [vmem:[%s177 + $0x2ec0] sm:$0xff]
        %v1743 = vld [vmem:[%s177 + $0x2ec8] sm:$0xff]
        %v1744 = vld [vmem:[%s177 + $0x2ed0] sm:$0xff]
        %v1745 = vld [vmem:[%s177 + $0x2ed8] sm:$0xff]
        %v1746 = vld [vmem:[%s177 + $0x2ee0] sm:$0xff]
        %v1747 = vld [vmem:[%s177 + $0x2ee8] sm:$0xff]
        %v1748 = vld [vmem:[%s177 + $0x2ef0] sm:$0xff]
        %v1749 = vld [vmem:[%s177 + $0x2ef8] sm:$0xff]
        %v1750 = vld [vmem:[%s177 + $0x2f00] sm:$0xff]
        %v1751 = vld [vmem:[%s177 + $0x2f08] sm:$0xff]
        %v1752 = vld [vmem:[%s177 + $0x2f10] sm:$0xff]
        %v1753 = vld [vmem:[%s177 + $0x2f18] sm:$0xff]
        %v1754 = vld [vmem:[%s177 + $0x2f20] sm:$0xff]
        %v1755 = vld [vmem:[%s177 + $0x2f28] sm:$0xff]
        %v1756 = vld [vmem:[%s177 + $0x2f30] sm:$0xff]
        %v1757 = vld [vmem:[%s177 + $0x2f38] sm:$0xff]
        %v1758 = vld [vmem:[%s177 + $0x2f40] sm:$0xff]
        %v1759 = vld [vmem:[%s177 + $0x2f48] sm:$0xff]
        %v1760 = vld [vmem:[%s177 + $0x2f50] sm:$0xff]
        %v1761 = vld [vmem:[%s177 + $0x2f58] sm:$0xff]
        %v1762 = vld [vmem:[%s177 + $0x2f60] sm:$0xff]
        %v1763 = vld [vmem:[%s177 + $0x2f68] sm:$0xff]
        %v1764 = vld [vmem:[%s177 + $0x2f70] sm:$0xff]
        %v1765 = vld [vmem:[%s177 + $0x2f78] sm:$0xff]
        %v1766 = vld [vmem:[%s177 + $0x2f80] sm:$0xff]
        %v1767 = vld [vmem:[%s177 + $0x2f88] sm:$0xff]
        %v1768 = vld [vmem:[%s177 + $0x2f90] sm:$0xff]
        %v1769 = vld [vmem:[%s177 + $0x2f98] sm:$0xff]
        %v1770 = vld [vmem:[%s177 + $0x2fa0] sm:$0xff]
        %v1771 = vld [vmem:[%s177 + $0x2fa8] sm:$0xff]
        %v1772 = vld [vmem:[%s177 + $0x2fb0] sm:$0xff]
        %v1773 = vld [vmem:[%s177 + $0x2fb8] sm:$0xff]
        %v1774 = vld [vmem:[%s177 + $0x2fc0] sm:$0xff]
        %v1775 = vld [vmem:[%s177 + $0x2fc8] sm:$0xff]
        %v1776 = vld [vmem:[%s177 + $0x2fd0] sm:$0xff]
        %v1777 = vld [vmem:[%s177 + $0x2fd8] sm:$0xff]
        %v1778 = vld [vmem:[%s177 + $0x2fe0] sm:$0xff]
        %v1779 = vld [vmem:[%s177 + $0x2fe8] sm:$0xff]
        %v1780 = vld [vmem:[%s177 + $0x2ff0] sm:$0xff]
        %v1781 = vld [vmem:[%s177 + $0x2ff8] sm:$0xff]
        %v1782 = vld [vmem:[%s177 + $0x3000] sm:$0xff]
        %v1783 = vld [vmem:[%s177 + $0x3008] sm:$0xff]
        %v1784 = vld [vmem:[%s177 + $0x3010] sm:$0xff]
        %v1785 = vld [vmem:[%s177 + $0x3018] sm:$0xff]
        %v1786 = vld [vmem:[%s177 + $0x3020] sm:$0xff]
        %v1787 = vld [vmem:[%s177 + $0x3028] sm:$0xff]
        %v1788 = vld [vmem:[%s177 + $0x3030] sm:$0xff]
        %v1789 = vld [vmem:[%s177 + $0x3038] sm:$0xff]
        %v1790 = vld [vmem:[%s177 + $0x3040] sm:$0xff]
        %v1791 = vld [vmem:[%s177 + $0x3048] sm:$0xff]
        %v1792 = vld [vmem:[%s177 + $0x3050] sm:$0xff]
        %v1793 = vld [vmem:[%s177 + $0x3058] sm:$0xff]
        %v1794 = vld [vmem:[%s177 + $0x3060] sm:$0xff]
        %v1795 = vld [vmem:[%s177 + $0x3068] sm:$0xff]
        %v1796 = vld [vmem:[%s177 + $0x3070] sm:$0xff]
        %v1797 = vld [vmem:[%s177 + $0x3078] sm:$0xff]
        %v1798 = vld [vmem:[%s177 + $0x3080] sm:$0xff]
        %v1799 = vld [vmem:[%s177 + $0x3088] sm:$0xff]
        %v1800 = vld [vmem:[%s177 + $0x3090] sm:$0xff]
        %v1801 = vld [vmem:[%s177 + $0x3098] sm:$0xff]
        %v1802 = vld [vmem:[%s177 + $0x30a0] sm:$0xff]
        %v1803 = vld [vmem:[%s177 + $0x30a8] sm:$0xff]
        %v1804 = vld [vmem:[%s177 + $0x30b0] sm:$0xff]
        %v1805 = vld [vmem:[%s177 + $0x30b8] sm:$0xff]
        %v1806 = vld [vmem:[%s177 + $0x30c0] sm:$0xff]
        %v1807 = vld [vmem:[%s177 + $0x30c8] sm:$0xff]
        %v1808 = vld [vmem:[%s177 + $0x30d0] sm:$0xff]
        %v1809 = vld [vmem:[%s177 + $0x30d8] sm:$0xff]
        %v1810 = vld [vmem:[%s177 + $0x30e0] sm:$0xff]
        %v1811 = vld [vmem:[%s177 + $0x30e8] sm:$0xff]
        %v1812 = vld [vmem:[%s177 + $0x30f0] sm:$0xff]
        %v1813 = vld [vmem:[%s177 + $0x30f8] sm:$0xff]
        %v1814 = vld [vmem:[%s177 + $0x3100] sm:$0xff]
        %v1815 = vld [vmem:[%s177 + $0x3108] sm:$0xff]
        %v1816 = vld [vmem:[%s177 + $0x3110] sm:$0xff]
        %v1817 = vld [vmem:[%s177 + $0x3118] sm:$0xff]
        %v1818 = vld [vmem:[%s177 + $0x3120] sm:$0xff]
        %v1819 = vld [vmem:[%s177 + $0x3128] sm:$0xff]
        %v1820 = vld [vmem:[%s177 + $0x3130] sm:$0xff]
        %v1821 = vld [vmem:[%s177 + $0x3138] sm:$0xff]
        %v1822 = vld [vmem:[%s177 + $0x3140] sm:$0xff]
        %v1823 = vld [vmem:[%s177 + $0x3148] sm:$0xff]
        %v1824 = vld [vmem:[%s177 + $0x3150] sm:$0xff]
        %v1825 = vld [vmem:[%s177 + $0x3158] sm:$0xff]
        %v1826 = vld [vmem:[%s177 + $0x3160] sm:$0xff]
        %v1827 = vld [vmem:[%s177 + $0x3168] sm:$0xff]
        %v1828 = vld [vmem:[%s177 + $0x3170] sm:$0xff]
        %v1829 = vld [vmem:[%s177 + $0x3178] sm:$0xff]
        %v1830 = vld [vmem:[%s177 + $0x3180] sm:$0xff]
        %v1831 = vld [vmem:[%s177 + $0x3188] sm:$0xff]
        %v1832 = vld [vmem:[%s177 + $0x3190] sm:$0xff]
        %v1833 = vld [vmem:[%s177 + $0x3198] sm:$0xff]
        %v1834 = vld [vmem:[%s177 + $0x31a0] sm:$0xff]
        %v1835 = vld [vmem:[%s177 + $0x31a8] sm:$0xff]
        %v1836 = vld [vmem:[%s177 + $0x31b0] sm:$0xff]
        %v1837 = vld [vmem:[%s177 + $0x31b8] sm:$0xff]
        %v1838 = vld [vmem:[%s177 + $0x31c0] sm:$0xff]
        %v1839 = vld [vmem:[%s177 + $0x31c8] sm:$0xff]
        %v1840 = vld [vmem:[%s177 + $0x31d0] sm:$0xff]
        %v1841 = vld [vmem:[%s177 + $0x31d8] sm:$0xff]
        %v1842 = vld [vmem:[%s177 + $0x31e0] sm:$0xff]
        %v1843 = vld [vmem:[%s177 + $0x31e8] sm:$0xff]
        %v1844 = vld [vmem:[%s177 + $0x31f0] sm:$0xff]
        %v1845 = vld [vmem:[%s177 + $0x31f8] sm:$0xff]
        %v1846 = vld [vmem:[%s177 + $0x3200] sm:$0xff]
        %v1847 = vld [vmem:[%s177 + $0x3208] sm:$0xff]
        %v1848 = vld [vmem:[%s177 + $0x3210] sm:$0xff]
        %v1849 = vld [vmem:[%s177 + $0x3218] sm:$0xff]
        %v1850 = vld [vmem:[%s177 + $0x3220] sm:$0xff]
        %v1851 = vld [vmem:[%s177 + $0x3228] sm:$0xff]
        %v1852 = vld [vmem:[%s177 + $0x3230] sm:$0xff]
        %v1853 = vld [vmem:[%s177 + $0x3238] sm:$0xff]
        %v1854 = vld [vmem:[%s177 + $0x3240] sm:$0xff]
        %v1855 = vld [vmem:[%s177 + $0x3248] sm:$0xff]
        %v1856 = vld [vmem:[%s177 + $0x3250] sm:$0xff]
        %v1857 = vld [vmem:[%s177 + $0x3258] sm:$0xff]
        %v1858 = vld [vmem:[%s177 + $0x3260] sm:$0xff]
        %v1859 = vld [vmem:[%s177 + $0x3268] sm:$0xff]
        %v1860 = vld [vmem:[%s177 + $0x3270] sm:$0xff]
        %v1861 = vld [vmem:[%s177 + $0x3278] sm:$0xff]
        %v1862 = vld [vmem:[%s177 + $0x3280] sm:$0xff]
        %v1863 = vld [vmem:[%s177 + $0x3288] sm:$0xff]
        %v1864 = vld [vmem:[%s177 + $0x3290] sm:$0xff]
        %v1865 = vld [vmem:[%s177 + $0x3298] sm:$0xff]
        %v1866 = vld [vmem:[%s177 + $0x32a0] sm:$0xff]
        %v1867 = vld [vmem:[%s177 + $0x32a8] sm:$0xff]
        %v1868 = vld [vmem:[%s177 + $0x32b0] sm:$0xff]
        %v1869 = vld [vmem:[%s177 + $0x32b8] sm:$0xff]
        %v1870 = vld [vmem:[%s177 + $0x32c0] sm:$0xff]
        %v1871 = vld [vmem:[%s177 + $0x32c8] sm:$0xff]
        %v1872 = vld [vmem:[%s177 + $0x32d0] sm:$0xff]
        %v1873 = vld [vmem:[%s177 + $0x32d8] sm:$0xff]
        %v1874 = vld [vmem:[%s177 + $0x32e0] sm:$0xff]
        %v1875 = vld [vmem:[%s177 + $0x32e8] sm:$0xff]
        %v1876 = vld [vmem:[%s177 + $0x32f0] sm:$0xff]
        %v1877 = vld [vmem:[%s177 + $0x32f8] sm:$0xff]
        %v1878 = vld [vmem:[%s177 + $0x3300] sm:$0xff]
        %v1879 = vld [vmem:[%s177 + $0x3308] sm:$0xff]
        %v1880 = vld [vmem:[%s177 + $0x3310] sm:$0xff]
        %v1881 = vld [vmem:[%s177 + $0x3318] sm:$0xff]
        %v1882 = vld [vmem:[%s177 + $0x3320] sm:$0xff]
        %v1883 = vld [vmem:[%s177 + $0x3328] sm:$0xff]
        %v1884 = vld [vmem:[%s177 + $0x3330] sm:$0xff]
        %v1885 = vld [vmem:[%s177 + $0x3338] sm:$0xff]
        %v1886 = vld [vmem:[%s177 + $0x3340] sm:$0xff]
        %v1887 = vld [vmem:[%s177 + $0x3348] sm:$0xff]
        %v1888 = vld [vmem:[%s177 + $0x3350] sm:$0xff]
        %v1889 = vld [vmem:[%s177 + $0x3358] sm:$0xff]
        %v1890 = vld [vmem:[%s177 + $0x3360] sm:$0xff]
        %v1891 = vld [vmem:[%s177 + $0x3368] sm:$0xff]
        %v1892 = vld [vmem:[%s177 + $0x3370] sm:$0xff]
        %v1893 = vld [vmem:[%s177 + $0x3378] sm:$0xff]
        %v1894 = vld [vmem:[%s177 + $0x3380] sm:$0xff]
        %v1895 = vld [vmem:[%s177 + $0x3388] sm:$0xff]
        %v1896 = vld [vmem:[%s177 + $0x3390] sm:$0xff]
        %v1897 = vld [vmem:[%s177 + $0x3398] sm:$0xff]
        %v1898 = vld [vmem:[%s177 + $0x33a0] sm:$0xff]
        %v1899 = vld [vmem:[%s177 + $0x33a8] sm:$0xff]
        %v1900 = vld [vmem:[%s177 + $0x33b0] sm:$0xff]
        %v1901 = vld [vmem:[%s177 + $0x33b8] sm:$0xff]
        %v1902 = vld [vmem:[%s177 + $0x33c0] sm:$0xff]
        %v1903 = vld [vmem:[%s177 + $0x33c8] sm:$0xff]
        %v1904 = vld [vmem:[%s177 + $0x33d0] sm:$0xff]
        %v1905 = vld [vmem:[%s177 + $0x33d8] sm:$0xff]
        %v1906 = vld [vmem:[%s177 + $0x33e0] sm:$0xff]
        %v1907 = vld [vmem:[%s177 + $0x33e8] sm:$0xff]
        %v1908 = vld [vmem:[%s177 + $0x33f0] sm:$0xff]
        %v1909 = vld [vmem:[%s177 + $0x33f8] sm:$0xff]
        %v1910 = vld [vmem:[%s177 + $0x3400] sm:$0xff]
        %v1911 = vld [vmem:[%s177 + $0x3408] sm:$0xff]
        %v1912 = vld [vmem:[%s177 + $0x3410] sm:$0xff]
        %v1913 = vld [vmem:[%s177 + $0x3418] sm:$0xff]
        %v1914 = vld [vmem:[%s177 + $0x3420] sm:$0xff]
        %v1915 = vld [vmem:[%s177 + $0x3428] sm:$0xff]
        %v1916 = vld [vmem:[%s177 + $0x3430] sm:$0xff]
        %v1917 = vld [vmem:[%s177 + $0x3438] sm:$0xff]
        %v1918 = vld [vmem:[%s177 + $0x3440] sm:$0xff]
        %v1919 = vld [vmem:[%s177 + $0x3448] sm:$0xff]
        %v1920 = vld [vmem:[%s177 + $0x3450] sm:$0xff]
        %v1921 = vld [vmem:[%s177 + $0x3458] sm:$0xff]
        %v1922 = vld [vmem:[%s177 + $0x3460] sm:$0xff]
        %v1923 = vld [vmem:[%s177 + $0x3468] sm:$0xff]
        %v1924 = vld [vmem:[%s177 + $0x3470] sm:$0xff]
        %v1925 = vld [vmem:[%s177 + $0x3478] sm:$0xff]
        %v1926 = vld [vmem:[%s177 + $0x3480] sm:$0xff]
        %v1927 = vld [vmem:[%s177 + $0x3488] sm:$0xff]
        %v1928 = vld [vmem:[%s177 + $0x3490] sm:$0xff]
        %v1929 = vld [vmem:[%s177 + $0x3498] sm:$0xff]
        %v1930 = vld [vmem:[%s177 + $0x34a0] sm:$0xff]
        %v1931 = vld [vmem:[%s177 + $0x34a8] sm:$0xff]
        %v1932 = vld [vmem:[%s177 + $0x34b0] sm:$0xff]
        %v1933 = vld [vmem:[%s177 + $0x34b8] sm:$0xff]
        %v1934 = vld [vmem:[%s177 + $0x34c0] sm:$0xff]
        %v1935 = vld [vmem:[%s177 + $0x34c8] sm:$0xff]
        %v1936 = vld [vmem:[%s177 + $0x34d0] sm:$0xff]
        %v1937 = vld [vmem:[%s177 + $0x34d8] sm:$0xff]
        %v1938 = vld [vmem:[%s177 + $0x34e0] sm:$0xff]
        %v1939 = vld [vmem:[%s177 + $0x34e8] sm:$0xff]
        %v1940 = vld [vmem:[%s177 + $0x34f0] sm:$0xff]
        %v1941 = vld [vmem:[%s177 + $0x34f8] sm:$0xff]
        %v1942 = vld [vmem:[%s177 + $0x3500] sm:$0xff]
        %v1943 = vld [vmem:[%s177 + $0x3508] sm:$0xff]
        %v1944 = vld [vmem:[%s177 + $0x3510] sm:$0xff]
        %v1945 = vld [vmem:[%s177 + $0x3518] sm:$0xff]
        %v1946 = vld [vmem:[%s177 + $0x3520] sm:$0xff]
        %v1947 = vld [vmem:[%s177 + $0x3528] sm:$0xff]
        %v1948 = vld [vmem:[%s177 + $0x3530] sm:$0xff]
        %v1949 = vld [vmem:[%s177 + $0x3538] sm:$0xff]
        %v1950 = vld [vmem:[%s177 + $0x3540] sm:$0xff]
        %v1951 = vld [vmem:[%s177 + $0x3548] sm:$0xff]
        %v1952 = vld [vmem:[%s177 + $0x3550] sm:$0xff]
        %v1953 = vld [vmem:[%s177 + $0x3558] sm:$0xff]
        %v1954 = vld [vmem:[%s177 + $0x3560] sm:$0xff]
        %v1955 = vld [vmem:[%s177 + $0x3568] sm:$0xff]
        %v1956 = vld [vmem:[%s177 + $0x3570] sm:$0xff]
        %v1957 = vld [vmem:[%s177 + $0x3578] sm:$0xff]
        %v1958 = vld [vmem:[%s177 + $0x3580] sm:$0xff]
        %v1959 = vld [vmem:[%s177 + $0x3588] sm:$0xff]
        %v1960 = vld [vmem:[%s177 + $0x3590] sm:$0xff]
        %v1961 = vld [vmem:[%s177 + $0x3598] sm:$0xff]
        %v1962 = vld [vmem:[%s177 + $0x35a0] sm:$0xff]
        %v1963 = vld [vmem:[%s177 + $0x35a8] sm:$0xff]
        %v1964 = vld [vmem:[%s177 + $0x35b0] sm:$0xff]
        %v1965 = vld [vmem:[%s177 + $0x35b8] sm:$0xff]
        %v1966 = vld [vmem:[%s177 + $0x35c0] sm:$0xff]
        %v1967 = vld [vmem:[%s177 + $0x35c8] sm:$0xff]
        %v1968 = vld [vmem:[%s177 + $0x35d0] sm:$0xff]
        %v1969 = vld [vmem:[%s177 + $0x35d8] sm:$0xff]
        %v1970 = vld [vmem:[%s177 + $0x35e0] sm:$0xff]
        %v1971 = vld [vmem:[%s177 + $0x35e8] sm:$0xff]
        %v1972 = vld [vmem:[%s177 + $0x35f0] sm:$0xff]
        %v1973 = vld [vmem:[%s177 + $0x35f8] sm:$0xff]
        %v1974 = vld [vmem:[%s177 + $0x3600] sm:$0xff]
        %v1975 = vld [vmem:[%s177 + $0x3608] sm:$0xff]
        %v1976 = vld [vmem:[%s177 + $0x3610] sm:$0xff]
        %v1977 = vld [vmem:[%s177 + $0x3618] sm:$0xff]
        %v1978 = vld [vmem:[%s177 + $0x3620] sm:$0xff]
        %v1979 = vld [vmem:[%s177 + $0x3628] sm:$0xff]
        %v1980 = vld [vmem:[%s177 + $0x3630] sm:$0xff]
        %v1981 = vld [vmem:[%s177 + $0x3638] sm:$0xff]
        %v1982 = vld [vmem:[%s177 + $0x3640] sm:$0xff]
        %v1983 = vld [vmem:[%s177 + $0x3648] sm:$0xff]
        %v1984 = vld [vmem:[%s177 + $0x3650] sm:$0xff]
        %v1985 = vld [vmem:[%s177 + $0x3658] sm:$0xff]
        %v1986 = vld [vmem:[%s177 + $0x3660] sm:$0xff]
        %v1987 = vld [vmem:[%s177 + $0x3668] sm:$0xff]
        %v1988 = vld [vmem:[%s177 + $0x3670] sm:$0xff]
        %v1989 = vld [vmem:[%s177 + $0x3678] sm:$0xff]
        %v1990 = vld [vmem:[%s177 + $0x3680] sm:$0xff]
        %v1991 = vld [vmem:[%s177 + $0x3688] sm:$0xff]
        %v1992 = vld [vmem:[%s177 + $0x3690] sm:$0xff]
        %v1993 = vld [vmem:[%s177 + $0x3698] sm:$0xff]
        %v1994 = vld [vmem:[%s177 + $0x36a0] sm:$0xff]
        %v1995 = vld [vmem:[%s177 + $0x36a8] sm:$0xff]
        %v1996 = vld [vmem:[%s177 + $0x36b0] sm:$0xff]
        %v1997 = vld [vmem:[%s177 + $0x36b8] sm:$0xff]
        %v1998 = vld [vmem:[%s177 + $0x36c0] sm:$0xff]
        %v1999 = vld [vmem:[%s177 + $0x36c8] sm:$0xff]
        %v2000 = vld [vmem:[%s177 + $0x36d0] sm:$0xff]
        %v2001 = vld [vmem:[%s177 + $0x36d8] sm:$0xff]
        %v2002 = vld [vmem:[%s177 + $0x36e0] sm:$0xff]
        %v2003 = vld [vmem:[%s177 + $0x36e8] sm:$0xff]
        %v2004 = vld [vmem:[%s177 + $0x36f0] sm:$0xff]
        %v2005 = vld [vmem:[%s177 + $0x36f8] sm:$0xff]
        %v2006 = vld [vmem:[%s177 + $0x3700] sm:$0xff]
        %v2007 = vld [vmem:[%s177 + $0x3708] sm:$0xff]
        %v2008 = vld [vmem:[%s177 + $0x3710] sm:$0xff]
        %v2009 = vld [vmem:[%s177 + $0x3718] sm:$0xff]
        %v2010 = vld [vmem:[%s177 + $0x3720] sm:$0xff]
        %v2011 = vld [vmem:[%s177 + $0x3728] sm:$0xff]
        %v2012 = vld [vmem:[%s177 + $0x3730] sm:$0xff]
        %v2013 = vld [vmem:[%s177 + $0x3738] sm:$0xff]
        %v2014 = vld [vmem:[%s177 + $0x3740] sm:$0xff]
        %v2015 = vld [vmem:[%s177 + $0x3748] sm:$0xff]
        %v2016 = vld [vmem:[%s177 + $0x3750] sm:$0xff]
        %v2017 = vld [vmem:[%s177 + $0x3758] sm:$0xff]
        %v2018 = vld [vmem:[%s177 + $0x3760] sm:$0xff]
        %v2019 = vld [vmem:[%s177 + $0x3768] sm:$0xff]
        %v2020 = vld [vmem:[%s177 + $0x3770] sm:$0xff]
        %v2021 = vld [vmem:[%s177 + $0x3778] sm:$0xff]
        %v2022 = vld [vmem:[%s177 + $0x3780] sm:$0xff]
        %v2023 = vld [vmem:[%s177 + $0x3788] sm:$0xff]
        %v2024 = vld [vmem:[%s177 + $0x3790] sm:$0xff]
        %v2025 = vld [vmem:[%s177 + $0x3798] sm:$0xff]
        %v2026 = vld [vmem:[%s177 + $0x37a0] sm:$0xff]
        %v2027 = vld [vmem:[%s177 + $0x37a8] sm:$0xff]
        %v2028 = vld [vmem:[%s177 + $0x37b0] sm:$0xff]
        %v2029 = vld [vmem:[%s177 + $0x37b8] sm:$0xff]
        %v2030 = vld [vmem:[%s177 + $0x37c0] sm:$0xff]
        %v2031 = vld [vmem:[%s177 + $0x37c8] sm:$0xff]
        %v2032 = vld [vmem:[%s177 + $0x37d0] sm:$0xff]
        %v2033 = vld [vmem:[%s177 + $0x37d8] sm:$0xff]
        %v2034 = vld [vmem:[%s177 + $0x37e0] sm:$0xff]
        %v2035 = vld [vmem:[%s177 + $0x37e8] sm:$0xff]
        %v2036 = vld [vmem:[%s177 + $0x37f0] sm:$0xff]
        %v2037 = vld [vmem:[%s177 + $0x37f8] sm:$0xff]
        %v2038 = vld [vmem:[%s177 + $0x3800] sm:$0xff]
        %v2039 = vld [vmem:[%s177 + $0x3808] sm:$0xff]
        %v2040 = vld [vmem:[%s177 + $0x3810] sm:$0xff]
        %v2041 = vld [vmem:[%s177 + $0x3818] sm:$0xff]
        %v2042 = vld [vmem:[%s177 + $0x3820] sm:$0xff]
        %v2043 = vld [vmem:[%s177 + $0x3828] sm:$0xff]
        %v2044 = vld [vmem:[%s177 + $0x3830] sm:$0xff]
        %v2045 = vld [vmem:[%s177 + $0x3838] sm:$0xff]
        %v2046 = vld [vmem:[%s177 + $0x3840] sm:$0xff]
        %v2047 = vld [vmem:[%s177 + $0x3848] sm:$0xff]
        %v2048 = vld [vmem:[%s177 + $0x3850] sm:$0xff]
        %v2049 = vld [vmem:[%s177 + $0x3858] sm:$0xff]
        %v2050 = vld [vmem:[%s177 + $0x3860] sm:$0xff]
        %v2051 = vld [vmem:[%s177 + $0x3868] sm:$0xff]
        %v2052 = vld [vmem:[%s177 + $0x3870] sm:$0xff]
        %v2053 = vld [vmem:[%s177 + $0x3878] sm:$0xff]
        %v2054 = vld [vmem:[%s177 + $0x3880] sm:$0xff]
        %v2055 = vld [vmem:[%s177 + $0x3888] sm:$0xff]
        %v2056 = vld [vmem:[%s177 + $0x3890] sm:$0xff]
        %v2057 = vld [vmem:[%s177 + $0x3898] sm:$0xff]
        %v2058 = vld [vmem:[%s177 + $0x38a0] sm:$0xff]
        %v2059 = vld [vmem:[%s177 + $0x38a8] sm:$0xff]
        %v2060 = vld [vmem:[%s177 + $0x38b0] sm:$0xff]
        %v2061 = vld [vmem:[%s177 + $0x38b8] sm:$0xff]
        %v2062 = vld [vmem:[%s177 + $0x38c0] sm:$0xff]
        %v2063 = vld [vmem:[%s177 + $0x38c8] sm:$0xff]
        %v2064 = vld [vmem:[%s177 + $0x38d0] sm:$0xff]
        %v2065 = vld [vmem:[%s177 + $0x38d8] sm:$0xff]
        %v2066 = vld [vmem:[%s177 + $0x38e0] sm:$0xff]
        %v2067 = vld [vmem:[%s177 + $0x38e8] sm:$0xff]
        %v2068 = vld [vmem:[%s177 + $0x38f0] sm:$0xff]
        %v2069 = vld [vmem:[%s177 + $0x38f8] sm:$0xff]
        %v2070 = vld [vmem:[%s177 + $0x3900] sm:$0xff]
        %v2071 = vld [vmem:[%s177 + $0x3908] sm:$0xff]
        %v2072 = vld [vmem:[%s177 + $0x3910] sm:$0xff]
        %v2073 = vld [vmem:[%s177 + $0x3918] sm:$0xff]
        %v2074 = vld [vmem:[%s177 + $0x3920] sm:$0xff]
        %v2075 = vld [vmem:[%s177 + $0x3928] sm:$0xff]
        %v2076 = vld [vmem:[%s177 + $0x3930] sm:$0xff]
        %v2077 = vld [vmem:[%s177 + $0x3938] sm:$0xff]
        %v2078 = vld [vmem:[%s177 + $0x3940] sm:$0xff]
        %v2079 = vld [vmem:[%s177 + $0x3948] sm:$0xff]
        %v2080 = vld [vmem:[%s177 + $0x3950] sm:$0xff]
        %v2081 = vld [vmem:[%s177 + $0x3958] sm:$0xff]
        %v2082 = vld [vmem:[%s177 + $0x3960] sm:$0xff]
        %v2083 = vld [vmem:[%s177 + $0x3968] sm:$0xff]
        %v2084 = vld [vmem:[%s177 + $0x3970] sm:$0xff]
        %v2085 = vld [vmem:[%s177 + $0x3978] sm:$0xff]
        %v2086 = vld [vmem:[%s177 + $0x3980] sm:$0xff]
        %v2087 = vld [vmem:[%s177 + $0x3988] sm:$0xff]
        %v2088 = vld [vmem:[%s177 + $0x3990] sm:$0xff]
        %v2089 = vld [vmem:[%s177 + $0x3998] sm:$0xff]
        %v2090 = vld [vmem:[%s177 + $0x39a0] sm:$0xff]
        %v2091 = vld [vmem:[%s177 + $0x39a8] sm:$0xff]
        %v2092 = vld [vmem:[%s177 + $0x39b0] sm:$0xff]
        %v2093 = vld [vmem:[%s177 + $0x39b8] sm:$0xff]
        %v2094 = vld [vmem:[%s177 + $0x39c0] sm:$0xff]
        %v2095 = vld [vmem:[%s177 + $0x39c8] sm:$0xff]
        %v2096 = vld [vmem:[%s177 + $0x39d0] sm:$0xff]
        %v2097 = vld [vmem:[%s177 + $0x39d8] sm:$0xff]
        %v2098 = vld [vmem:[%s177 + $0x39e0] sm:$0xff]
        %v2099 = vld [vmem:[%s177 + $0x39e8] sm:$0xff]
        %v2100 = vld [vmem:[%s177 + $0x39f0] sm:$0xff]
        %v2101 = vld [vmem:[%s177 + $0x39f8] sm:$0xff]
        %v2102 = vld [vmem:[%s177 + $0x3a00] sm:$0xff]
        %v2103 = vld [vmem:[%s177 + $0x3a08] sm:$0xff]
        %v2104 = vld [vmem:[%s177 + $0x3a10] sm:$0xff]
        %v2105 = vld [vmem:[%s177 + $0x3a18] sm:$0xff]
        %v2106 = vld [vmem:[%s177 + $0x3a20] sm:$0xff]
        %v2107 = vld [vmem:[%s177 + $0x3a28] sm:$0xff]
        %v2108 = vld [vmem:[%s177 + $0x3a30] sm:$0xff]
        %v2109 = vld [vmem:[%s177 + $0x3a38] sm:$0xff]
        %v2110 = vld [vmem:[%s177 + $0x3a40] sm:$0xff]
        %v2111 = vld [vmem:[%s177 + $0x3a48] sm:$0xff]
        %v2112 = vld [vmem:[%s177 + $0x3a50] sm:$0xff]
        %v2113 = vld [vmem:[%s177 + $0x3a58] sm:$0xff]
        %v2114 = vld [vmem:[%s177 + $0x3a60] sm:$0xff]
        %v2115 = vld [vmem:[%s177 + $0x3a68] sm:$0xff]
        %v2116 = vld [vmem:[%s177 + $0x3a70] sm:$0xff]
        %v2117 = vld [vmem:[%s177 + $0x3a78] sm:$0xff]
        %v2118 = vld [vmem:[%s177 + $0x3a80] sm:$0xff]
        %v2119 = vld [vmem:[%s177 + $0x3a88] sm:$0xff]
        %v2120 = vld [vmem:[%s177 + $0x3a90] sm:$0xff]
        %v2121 = vld [vmem:[%s177 + $0x3a98] sm:$0xff]
        %v2122 = vld [vmem:[%s177 + $0x3aa0] sm:$0xff]
        %v2123 = vld [vmem:[%s177 + $0x3aa8] sm:$0xff]
        %v2124 = vld [vmem:[%s177 + $0x3ab0] sm:$0xff]
        %v2125 = vld [vmem:[%s177 + $0x3ab8] sm:$0xff]
        %v2126 = vld [vmem:[%s177 + $0x3ac0] sm:$0xff]
        %v2127 = vld [vmem:[%s177 + $0x3ac8] sm:$0xff]
        %v2128 = vld [vmem:[%s177 + $0x3ad0] sm:$0xff]
        %v2129 = vld [vmem:[%s177 + $0x3ad8] sm:$0xff]
        %v2130 = vld [vmem:[%s177 + $0x3ae0] sm:$0xff]
        %v2131 = vld [vmem:[%s177 + $0x3ae8] sm:$0xff]
        %v2132 = vld [vmem:[%s177 + $0x3af0] sm:$0xff]
        %v2133 = vld [vmem:[%s177 + $0x3af8] sm:$0xff]
        %v2134 = vld [vmem:[%s177 + $0x3b00] sm:$0xff]
        %v2135 = vld [vmem:[%s177 + $0x3b08] sm:$0xff]
        %v2136 = vld [vmem:[%s177 + $0x3b10] sm:$0xff]
        %v2137 = vld [vmem:[%s177 + $0x3b18] sm:$0xff]
        %v2138 = vld [vmem:[%s177 + $0x3b20] sm:$0xff]
        %v2139 = vld [vmem:[%s177 + $0x3b28] sm:$0xff]
        %v2140 = vld [vmem:[%s177 + $0x3b30] sm:$0xff]
        %v2141 = vld [vmem:[%s177 + $0x3b38] sm:$0xff]
        %v2142 = vld [vmem:[%s177 + $0x3b40] sm:$0xff]
        %v2143 = vld [vmem:[%s177 + $0x3b48] sm:$0xff]
        %v2144 = vld [vmem:[%s177 + $0x3b50] sm:$0xff]
        %v2145 = vld [vmem:[%s177 + $0x3b58] sm:$0xff]
        %v2146 = vld [vmem:[%s177 + $0x3b60] sm:$0xff]
        %v2147 = vld [vmem:[%s177 + $0x3b68] sm:$0xff]
        %v2148 = vld [vmem:[%s177 + $0x3b70] sm:$0xff]
        %v2149 = vld [vmem:[%s177 + $0x3b78] sm:$0xff]
        %v2150 = vld [vmem:[%s177 + $0x3b80] sm:$0xff]
        %v2151 = vld [vmem:[%s177 + $0x3b88] sm:$0xff]
        %v2152 = vld [vmem:[%s177 + $0x3b90] sm:$0xff]
        %v2153 = vld [vmem:[%s177 + $0x3b98] sm:$0xff]
        %v2154 = vld [vmem:[%s177 + $0x3ba0] sm:$0xff]
        %v2155 = vld [vmem:[%s177 + $0x3ba8] sm:$0xff]
        %v2156 = vld [vmem:[%s177 + $0x3bb0] sm:$0xff]
        %v2157 = vld [vmem:[%s177 + $0x3bb8] sm:$0xff]
        %v2158 = vld [vmem:[%s177 + $0x3bc0] sm:$0xff]
        %v2159 = vld [vmem:[%s177 + $0x3bc8] sm:$0xff]
        %v2160 = vld [vmem:[%s177 + $0x3bd0] sm:$0xff]
        %v2161 = vld [vmem:[%s177 + $0x3bd8] sm:$0xff]
        %v2162 = vld [vmem:[%s177 + $0x3be0] sm:$0xff]
        %v2163 = vld [vmem:[%s177 + $0x3be8] sm:$0xff]
        %v2164 = vld [vmem:[%s177 + $0x3bf0] sm:$0xff]
        %v2165 = vld [vmem:[%s177 + $0x3bf8] sm:$0xff]
        %v2166 = vld [vmem:[%s177 + $0x3c00] sm:$0xff]
        %v2167 = vld [vmem:[%s177 + $0x3c08] sm:$0xff]
        %v2168 = vld [vmem:[%s177 + $0x3c10] sm:$0xff]
        %v2169 = vld [vmem:[%s177 + $0x3c18] sm:$0xff]
        %v2170 = vld [vmem:[%s177 + $0x3c20] sm:$0xff]
        %v2171 = vld [vmem:[%s177 + $0x3c28] sm:$0xff]
        %v2172 = vld [vmem:[%s177 + $0x3c30] sm:$0xff]
        %v2173 = vld [vmem:[%s177 + $0x3c38] sm:$0xff]
        %v2174 = vld [vmem:[%s177 + $0x3c40] sm:$0xff]
        %v2175 = vld [vmem:[%s177 + $0x3c48] sm:$0xff]
        %v2176 = vld [vmem:[%s177 + $0x3c50] sm:$0xff]
        %v2177 = vld [vmem:[%s177 + $0x3c58] sm:$0xff]
        %v2178 = vld [vmem:[%s177 + $0x3c60] sm:$0xff]
        %v2179 = vld [vmem:[%s177 + $0x3c68] sm:$0xff]
        %v2180 = vld [vmem:[%s177 + $0x3c70] sm:$0xff]
        %v2181 = vld [vmem:[%s177 + $0x3c78] sm:$0xff]
        %v2182 = vld [vmem:[%s177 + $0x3c80] sm:$0xff]
        %v2183 = vld [vmem:[%s177 + $0x3c88] sm:$0xff]
        %v2184 = vld [vmem:[%s177 + $0x3c90] sm:$0xff]
        %v2185 = vld [vmem:[%s177 + $0x3c98] sm:$0xff]
        %v2186 = vld [vmem:[%s177 + $0x3ca0] sm:$0xff]
        %v2187 = vld [vmem:[%s177 + $0x3ca8] sm:$0xff]
        %v2188 = vld [vmem:[%s177 + $0x3cb0] sm:$0xff]
        %v2189 = vld [vmem:[%s177 + $0x3cb8] sm:$0xff]
        %v2190 = vld [vmem:[%s177 + $0x3cc0] sm:$0xff]
        %v2191 = vld [vmem:[%s177 + $0x3cc8] sm:$0xff]
        %v2192 = vld [vmem:[%s177 + $0x3cd0] sm:$0xff]
        %v2193 = vld [vmem:[%s177 + $0x3cd8] sm:$0xff]
        %v2194 = vld [vmem:[%s177 + $0x3ce0] sm:$0xff]
        %v2195 = vld [vmem:[%s177 + $0x3ce8] sm:$0xff]
        %v2196 = vld [vmem:[%s177 + $0x3cf0] sm:$0xff]
        %v2197 = vld [vmem:[%s177 + $0x3cf8] sm:$0xff]
        %v2198 = vld [vmem:[%s177 + $0x3d00] sm:$0xff]
        %v2199 = vld [vmem:[%s177 + $0x3d08] sm:$0xff]
        %v2200 = vld [vmem:[%s177 + $0x3d10] sm:$0xff]
        %v2201 = vld [vmem:[%s177 + $0x3d18] sm:$0xff]
        %v2202 = vld [vmem:[%s177 + $0x3d20] sm:$0xff]
        %v2203 = vld [vmem:[%s177 + $0x3d28] sm:$0xff]
        %v2204 = vld [vmem:[%s177 + $0x3d30] sm:$0xff]
        %v2205 = vld [vmem:[%s177 + $0x3d38] sm:$0xff]
        %v2206 = vld [vmem:[%s177 + $0x3d40] sm:$0xff]
        %v2207 = vld [vmem:[%s177 + $0x3d48] sm:$0xff]
        %v2208 = vld [vmem:[%s177 + $0x3d50] sm:$0xff]
        %v2209 = vld [vmem:[%s177 + $0x3d58] sm:$0xff]
        %v2210 = vld [vmem:[%s177 + $0x3d60] sm:$0xff]
        %v2211 = vld [vmem:[%s177 + $0x3d68] sm:$0xff]
        %v2212 = vld [vmem:[%s177 + $0x3d70] sm:$0xff]
        %v2213 = vld [vmem:[%s177 + $0x3d78] sm:$0xff]
        %v2214 = vld [vmem:[%s177 + $0x3d80] sm:$0xff]
        %v2215 = vld [vmem:[%s177 + $0x3d88] sm:$0xff]
        %v2216 = vld [vmem:[%s177 + $0x3d90] sm:$0xff]
        %v2217 = vld [vmem:[%s177 + $0x3d98] sm:$0xff]
        %v2218 = vld [vmem:[%s177 + $0x3da0] sm:$0xff]
        %v2219 = vld [vmem:[%s177 + $0x3da8] sm:$0xff]
        %v2220 = vld [vmem:[%s177 + $0x3db0] sm:$0xff]
        %v2221 = vld [vmem:[%s177 + $0x3db8] sm:$0xff]
        %v2222 = vld [vmem:[%s177 + $0x3dc0] sm:$0xff]
        %v2223 = vld [vmem:[%s177 + $0x3dc8] sm:$0xff]
        %v2224 = vld [vmem:[%s177 + $0x3dd0] sm:$0xff]
        %v2225 = vld [vmem:[%s177 + $0x3dd8] sm:$0xff]
        %v2226 = vld [vmem:[%s177 + $0x3de0] sm:$0xff]
        %v2227 = vld [vmem:[%s177 + $0x3de8] sm:$0xff]
        %v2228 = vld [vmem:[%s177 + $0x3df0] sm:$0xff]
        %v2229 = vld [vmem:[%s177 + $0x3df8] sm:$0xff]
        %v2230 = vld [vmem:[%s177 + $0x3e00] sm:$0xff]
        %v2231 = vld [vmem:[%s177 + $0x3e08] sm:$0xff]
        %v2232 = vld [vmem:[%s177 + $0x3e10] sm:$0xff]
        %v2233 = vld [vmem:[%s177 + $0x3e18] sm:$0xff]
        %v2234 = vld [vmem:[%s177 + $0x3e20] sm:$0xff]
        %v2235 = vld [vmem:[%s177 + $0x3e28] sm:$0xff]
        %v2236 = vld [vmem:[%s177 + $0x3e30] sm:$0xff]
        %v2237 = vld [vmem:[%s177 + $0x3e38] sm:$0xff]
        %v2238 = vld [vmem:[%s177 + $0x3e40] sm:$0xff]
        %v2239 = vld [vmem:[%s177 + $0x3e48] sm:$0xff]
        %v2240 = vld [vmem:[%s177 + $0x3e50] sm:$0xff]
        %v2241 = vld [vmem:[%s177 + $0x3e58] sm:$0xff]
        %v2242 = vld [vmem:[%s177 + $0x3e60] sm:$0xff]
        %v2243 = vld [vmem:[%s177 + $0x3e68] sm:$0xff]
        %v2244 = vld [vmem:[%s177 + $0x3e70] sm:$0xff]
        %v2245 = vld [vmem:[%s177 + $0x3e78] sm:$0xff]
        %v2246 = vld [vmem:[%s177 + $0x3e80] sm:$0xff]
        %v2247 = vld [vmem:[%s177 + $0x3e88] sm:$0xff]
        %v2248 = vld [vmem:[%s177 + $0x3e90] sm:$0xff]
        %v2249 = vld [vmem:[%s177 + $0x3e98] sm:$0xff]
        %v2250 = vld [vmem:[%s177 + $0x3ea0] sm:$0xff]
        %v2251 = vld [vmem:[%s177 + $0x3ea8] sm:$0xff]
        %v2252 = vld [vmem:[%s177 + $0x3eb0] sm:$0xff]
        %v2253 = vld [vmem:[%s177 + $0x3eb8] sm:$0xff]
        %v2254 = vld [vmem:[%s177 + $0x3ec0] sm:$0xff]
        %v2255 = vld [vmem:[%s177 + $0x3ec8] sm:$0xff]
        %v2256 = vld [vmem:[%s177 + $0x3ed0] sm:$0xff]
        %v2257 = vld [vmem:[%s177 + $0x3ed8] sm:$0xff]
        %v2258 = vld [vmem:[%s177 + $0x3ee0] sm:$0xff]
        %v2259 = vld [vmem:[%s177 + $0x3ee8] sm:$0xff]
        %v2260 = vld [vmem:[%s177 + $0x3ef0] sm:$0xff]
        %v2261 = vld [vmem:[%s177 + $0x3ef8] sm:$0xff]
        %v2262 = vld [vmem:[%s177 + $0x3f00] sm:$0xff]
        %v2263 = vld [vmem:[%s177 + $0x3f08] sm:$0xff]
        %v2264 = vld [vmem:[%s177 + $0x3f10] sm:$0xff]
        %v2265 = vld [vmem:[%s177 + $0x3f18] sm:$0xff]
        %v2266 = vld [vmem:[%s177 + $0x3f20] sm:$0xff]
        %v2267 = vld [vmem:[%s177 + $0x3f28] sm:$0xff]
        %v2268 = vld [vmem:[%s177 + $0x3f30] sm:$0xff]
        %v2269 = vld [vmem:[%s177 + $0x3f38] sm:$0xff]
        %v2270 = vld [vmem:[%s177 + $0x3f40] sm:$0xff]
        %v2271 = vld [vmem:[%s177 + $0x3f48] sm:$0xff]
        %v2272 = vld [vmem:[%s177 + $0x3f50] sm:$0xff]
        %v2273 = vld [vmem:[%s177 + $0x3f58] sm:$0xff]
        %v2274 = vld [vmem:[%s177 + $0x3f60] sm:$0xff]
        %v2275 = vld [vmem:[%s177 + $0x3f68] sm:$0xff]
        %v2276 = vld [vmem:[%s177 + $0x3f70] sm:$0xff]
        %v2277 = vld [vmem:[%s177 + $0x3f78] sm:$0xff]
        %v2278 = vld [vmem:[%s177 + $0x3f80] sm:$0xff]
        %v2279 = vld [vmem:[%s177 + $0x3f88] sm:$0xff]
        %v2280 = vld [vmem:[%s177 + $0x3f90] sm:$0xff]
        %v2281 = vld [vmem:[%s177 + $0x3f98] sm:$0xff]
        %v2282 = vld [vmem:[%s177 + $0x3fa0] sm:$0xff]
        %v2283 = vld [vmem:[%s177 + $0x3fa8] sm:$0xff]
        %v2284 = vld [vmem:[%s177 + $0x3fb0] sm:$0xff]
        %v2285 = vld [vmem:[%s177 + $0x3fb8] sm:$0xff]
        %v2286 = vld [vmem:[%s177 + $0x3fc0] sm:$0xff]
        %v2287 = vld [vmem:[%s177 + $0x3fc8] sm:$0xff]
        %v2288 = vld [vmem:[%s177 + $0x3fd0] sm:$0xff]
        %v2289 = vld [vmem:[%s177 + $0x3fd8] sm:$0xff]
        %v2290 = vld [vmem:[%s177 + $0x3fe0] sm:$0xff]
        %v2291 = vld [vmem:[%s177 + $0x3fe8] sm:$0xff]
        %v2292 = vld [vmem:[%s177 + $0x3ff0] sm:$0xff]
        %v2293 = vld [vmem:[%s177 + $0x3ff8] sm:$0xff]
        %2294 = vmatpush.xpose.msra.mxu0 %v726
        %2295 = vmatpush.xpose.msra.mxu0 %v694
        %2296 = vmatpush.xpose.msra.mxu0 %v662
        %2297 = vmatpush.xpose.msra.mxu0 %v630
        %2298 = vmatpush.xpose.msra.mxu0 %v598
        %2299 = vmatpush.xpose.msra.mxu0 %v566
        %2300 = vmatpush.xpose.msra.mxu0 %v534
        %2301 = vmatpush.xpose.msra.mxu0 %v502
        %2302 = vmatpush.xpose.msra.mxu0 %v470
        %2303 = vmatpush.xpose.msra.mxu0 %v438
        %2304 = vmatpush.xpose.msra.mxu0 %v406
        %2305 = vmatpush.xpose.msra.mxu0 %v374
        %2306 = vmatpush.xpose.msra.mxu0 %v342
        %2307 = vmatpush.xpose.msra.mxu0 %v310
        %2308 = vmatpush.xpose.msra.mxu0 %v278
        %2309 = vmatpush.xpose.msra.mxu0 %v246
        %2310 = vmatmul.f32.gmra.mxu0 %v214
        %v2311 = vpop.f32.mrf.mxu0
        %v2312 = vadd.f32 0.0, %v2311
        %2313 = vdwg.mxu0
        %2314 = vmatpush.xpose.msra.mxu0 %v727
        %2315 = vmatpush.xpose.msra.mxu0 %v695
        %2316 = vmatpush.xpose.msra.mxu0 %v663
        %2317 = vmatpush.xpose.msra.mxu0 %v631
        %2318 = vmatpush.xpose.msra.mxu0 %v599
        %2319 = vmatpush.xpose.msra.mxu0 %v567
        %2320 = vmatpush.xpose.msra.mxu0 %v535
        %2321 = vmatpush.xpose.msra.mxu0 %v503
        %2322 = vmatpush.xpose.msra.mxu0 %v471
        %2323 = vmatpush.xpose.msra.mxu0 %v439
        %2324 = vmatpush.xpose.msra.mxu0 %v407
        %2325 = vmatpush.xpose.msra.mxu0 %v375
        %2326 = vmatpush.xpose.msra.mxu0 %v343
        %2327 = vmatpush.xpose.msra.mxu0 %v311
        %2328 = vmatpush.xpose.msra.mxu0 %v279
        %2329 = vmatpush.xpose.msra.mxu0 %v247
        %2330 = vmatmul.f32.gmra.mxu0 %v215
        %v2331 = vpop.f32.mrf.mxu0
        %v2332 = vadd.f32 %v2312, %v2331
        %2333 = vdwg.mxu0
        %2334 = vmatpush.xpose.msra.mxu0 %v728
        %2335 = vmatpush.xpose.msra.mxu0 %v696
        %2336 = vmatpush.xpose.msra.mxu0 %v664
        %2337 = vmatpush.xpose.msra.mxu0 %v632
        %2338 = vmatpush.xpose.msra.mxu0 %v600
        %2339 = vmatpush.xpose.msra.mxu0 %v568
        %2340 = vmatpush.xpose.msra.mxu0 %v536
        %2341 = vmatpush.xpose.msra.mxu0 %v504
        %2342 = vmatpush.xpose.msra.mxu0 %v472
        %2343 = vmatpush.xpose.msra.mxu0 %v440
        %2344 = vmatpush.xpose.msra.mxu0 %v408
        %2345 = vmatpush.xpose.msra.mxu0 %v376
        %2346 = vmatpush.xpose.msra.mxu0 %v344
        %2347 = vmatpush.xpose.msra.mxu0 %v312
        %2348 = vmatpush.xpose.msra.mxu0 %v280
        %2349 = vmatpush.xpose.msra.mxu0 %v248
        %2350 = vmatmul.f32.gmra.mxu0 %v216
        %v2351 = vpop.f32.mrf.mxu0
        %v2352 = vadd.f32 %v2332, %v2351
        %2353 = vdwg.mxu0
        %2354 = vmatpush.xpose.msra.mxu0 %v729
        %2355 = vmatpush.xpose.msra.mxu0 %v697
        %2356 = vmatpush.xpose.msra.mxu0 %v665
        %2357 = vmatpush.xpose.msra.mxu0 %v633
        %2358 = vmatpush.xpose.msra.mxu0 %v601
        %2359 = vmatpush.xpose.msra.mxu0 %v569
        %2360 = vmatpush.xpose.msra.mxu0 %v537
        %2361 = vmatpush.xpose.msra.mxu0 %v505
        %2362 = vmatpush.xpose.msra.mxu0 %v473
        %2363 = vmatpush.xpose.msra.mxu0 %v441
        %2364 = vmatpush.xpose.msra.mxu0 %v409
        %2365 = vmatpush.xpose.msra.mxu0 %v377
        %2366 = vmatpush.xpose.msra.mxu0 %v345
        %2367 = vmatpush.xpose.msra.mxu0 %v313
        %2368 = vmatpush.xpose.msra.mxu0 %v281
        %2369 = vmatpush.xpose.msra.mxu0 %v249
        %2370 = vmatmul.f32.gmra.mxu0 %v217
        %v2371 = vpop.f32.mrf.mxu0
        %v2372 = vadd.f32 %v2352, %v2371
        %2373 = vdwg.mxu0
        %2374 = vmatpush.xpose.msra.mxu0 %v730
        %2375 = vmatpush.xpose.msra.mxu0 %v698
        %2376 = vmatpush.xpose.msra.mxu0 %v666
        %2377 = vmatpush.xpose.msra.mxu0 %v634
        %2378 = vmatpush.xpose.msra.mxu0 %v602
        %2379 = vmatpush.xpose.msra.mxu0 %v570
        %2380 = vmatpush.xpose.msra.mxu0 %v538
        %2381 = vmatpush.xpose.msra.mxu0 %v506
        %2382 = vmatpush.xpose.msra.mxu0 %v474
        %2383 = vmatpush.xpose.msra.mxu0 %v442
        %2384 = vmatpush.xpose.msra.mxu0 %v410
        %2385 = vmatpush.xpose.msra.mxu0 %v378
        %2386 = vmatpush.xpose.msra.mxu0 %v346
        %2387 = vmatpush.xpose.msra.mxu0 %v314
        %2388 = vmatpush.xpose.msra.mxu0 %v282
        %2389 = vmatpush.xpose.msra.mxu0 %v250
        %2390 = vmatmul.f32.gmra.mxu0 %v218
        %v2391 = vpop.f32.mrf.mxu0
        %v2392 = vadd.f32 %v2372, %v2391
        %2393 = vdwg.mxu0
        %2394 = vmatpush.xpose.msra.mxu0 %v731
        %2395 = vmatpush.xpose.msra.mxu0 %v699
        %2396 = vmatpush.xpose.msra.mxu0 %v667
        %2397 = vmatpush.xpose.msra.mxu0 %v635
        %2398 = vmatpush.xpose.msra.mxu0 %v603
        %2399 = vmatpush.xpose.msra.mxu0 %v571
        %2400 = vmatpush.xpose.msra.mxu0 %v539
        %2401 = vmatpush.xpose.msra.mxu0 %v507
        %2402 = vmatpush.xpose.msra.mxu0 %v475
        %2403 = vmatpush.xpose.msra.mxu0 %v443
        %2404 = vmatpush.xpose.msra.mxu0 %v411
        %2405 = vmatpush.xpose.msra.mxu0 %v379
        %2406 = vmatpush.xpose.msra.mxu0 %v347
        %2407 = vmatpush.xpose.msra.mxu0 %v315
        %2408 = vmatpush.xpose.msra.mxu0 %v283
        %2409 = vmatpush.xpose.msra.mxu0 %v251
        %2410 = vmatmul.f32.gmra.mxu0 %v219
        %v2411 = vpop.f32.mrf.mxu0
        %v2412 = vadd.f32 %v2392, %v2411
        %2413 = vdwg.mxu0
        %2414 = vmatpush.xpose.msra.mxu0 %v732
        %2415 = vmatpush.xpose.msra.mxu0 %v700
        %2416 = vmatpush.xpose.msra.mxu0 %v668
        %2417 = vmatpush.xpose.msra.mxu0 %v636
        %2418 = vmatpush.xpose.msra.mxu0 %v604
        %2419 = vmatpush.xpose.msra.mxu0 %v572
        %2420 = vmatpush.xpose.msra.mxu0 %v540
        %2421 = vmatpush.xpose.msra.mxu0 %v508
        %2422 = vmatpush.xpose.msra.mxu0 %v476
        %2423 = vmatpush.xpose.msra.mxu0 %v444
        %2424 = vmatpush.xpose.msra.mxu0 %v412
        %2425 = vmatpush.xpose.msra.mxu0 %v380
        %2426 = vmatpush.xpose.msra.mxu0 %v348
        %2427 = vmatpush.xpose.msra.mxu0 %v316
        %2428 = vmatpush.xpose.msra.mxu0 %v284
        %2429 = vmatpush.xpose.msra.mxu0 %v252
        %2430 = vmatmul.f32.gmra.mxu0 %v220
        %v2431 = vpop.f32.mrf.mxu0
        %v2432 = vadd.f32 %v2412, %v2431
        %2433 = vdwg.mxu0
        %2434 = vmatpush.xpose.msra.mxu0 %v733
        %2435 = vmatpush.xpose.msra.mxu0 %v701
        %2436 = vmatpush.xpose.msra.mxu0 %v669
        %2437 = vmatpush.xpose.msra.mxu0 %v637
        %2438 = vmatpush.xpose.msra.mxu0 %v605
        %2439 = vmatpush.xpose.msra.mxu0 %v573
        %2440 = vmatpush.xpose.msra.mxu0 %v541
        %2441 = vmatpush.xpose.msra.mxu0 %v509
        %2442 = vmatpush.xpose.msra.mxu0 %v477
        %2443 = vmatpush.xpose.msra.mxu0 %v445
        %2444 = vmatpush.xpose.msra.mxu0 %v413
        %2445 = vmatpush.xpose.msra.mxu0 %v381
        %2446 = vmatpush.xpose.msra.mxu0 %v349
        %2447 = vmatpush.xpose.msra.mxu0 %v317
        %2448 = vmatpush.xpose.msra.mxu0 %v285
        %2449 = vmatpush.xpose.msra.mxu0 %v253
        %2450 = vmatmul.f32.gmra.mxu0 %v221
        %v2451 = vpop.f32.mrf.mxu0
        %v2452 = vadd.f32 %v2432, %v2451
        %2453 = vdwg.mxu0
        %2454 = vmatpush.xpose.msra.mxu0 %v734
        %2455 = vmatpush.xpose.msra.mxu0 %v702
        %2456 = vmatpush.xpose.msra.mxu0 %v670
        %2457 = vmatpush.xpose.msra.mxu0 %v638
        %2458 = vmatpush.xpose.msra.mxu0 %v606
        %2459 = vmatpush.xpose.msra.mxu0 %v574
        %2460 = vmatpush.xpose.msra.mxu0 %v542
        %2461 = vmatpush.xpose.msra.mxu0 %v510
        %2462 = vmatpush.xpose.msra.mxu0 %v478
        %2463 = vmatpush.xpose.msra.mxu0 %v446
        %2464 = vmatpush.xpose.msra.mxu0 %v414
        %2465 = vmatpush.xpose.msra.mxu0 %v382
        %2466 = vmatpush.xpose.msra.mxu0 %v350
        %2467 = vmatpush.xpose.msra.mxu0 %v318
        %2468 = vmatpush.xpose.msra.mxu0 %v286
        %2469 = vmatpush.xpose.msra.mxu0 %v254
        %2470 = vmatmul.f32.gmra.mxu0 %v222
        %v2471 = vpop.f32.mrf.mxu0
        %v2472 = vadd.f32 %v2452, %v2471
        %2473 = vdwg.mxu0
        %2474 = vmatpush.xpose.msra.mxu0 %v735
        %2475 = vmatpush.xpose.msra.mxu0 %v703
        %2476 = vmatpush.xpose.msra.mxu0 %v671
        %2477 = vmatpush.xpose.msra.mxu0 %v639
        %2478 = vmatpush.xpose.msra.mxu0 %v607
        %2479 = vmatpush.xpose.msra.mxu0 %v575
        %2480 = vmatpush.xpose.msra.mxu0 %v543
        %2481 = vmatpush.xpose.msra.mxu0 %v511
        %2482 = vmatpush.xpose.msra.mxu0 %v479
        %2483 = vmatpush.xpose.msra.mxu0 %v447
        %2484 = vmatpush.xpose.msra.mxu0 %v415
        %2485 = vmatpush.xpose.msra.mxu0 %v383
        %2486 = vmatpush.xpose.msra.mxu0 %v351
        %2487 = vmatpush.xpose.msra.mxu0 %v319
        %2488 = vmatpush.xpose.msra.mxu0 %v287
        %2489 = vmatpush.xpose.msra.mxu0 %v255
        %2490 = vmatmul.f32.gmra.mxu0 %v223
        %v2491 = vpop.f32.mrf.mxu0
        %v2492 = vadd.f32 %v2472, %v2491
        %2493 = vdwg.mxu0
        %2494 = vmatpush.xpose.msra.mxu0 %v736
        %2495 = vmatpush.xpose.msra.mxu0 %v704
        %2496 = vmatpush.xpose.msra.mxu0 %v672
        %2497 = vmatpush.xpose.msra.mxu0 %v640
        %2498 = vmatpush.xpose.msra.mxu0 %v608
        %2499 = vmatpush.xpose.msra.mxu0 %v576
        %2500 = vmatpush.xpose.msra.mxu0 %v544
        %2501 = vmatpush.xpose.msra.mxu0 %v512
        %2502 = vmatpush.xpose.msra.mxu0 %v480
        %2503 = vmatpush.xpose.msra.mxu0 %v448
        %2504 = vmatpush.xpose.msra.mxu0 %v416
        %2505 = vmatpush.xpose.msra.mxu0 %v384
        %2506 = vmatpush.xpose.msra.mxu0 %v352
        %2507 = vmatpush.xpose.msra.mxu0 %v320
        %2508 = vmatpush.xpose.msra.mxu0 %v288
        %2509 = vmatpush.xpose.msra.mxu0 %v256
        %2510 = vmatmul.f32.gmra.mxu0 %v224
        %v2511 = vpop.f32.mrf.mxu0
        %v2512 = vadd.f32 %v2492, %v2511
        %2513 = vdwg.mxu0
        %2514 = vmatpush.xpose.msra.mxu0 %v737
        %2515 = vmatpush.xpose.msra.mxu0 %v705
        %2516 = vmatpush.xpose.msra.mxu0 %v673
        %2517 = vmatpush.xpose.msra.mxu0 %v641
        %2518 = vmatpush.xpose.msra.mxu0 %v609
        %2519 = vmatpush.xpose.msra.mxu0 %v577
        %2520 = vmatpush.xpose.msra.mxu0 %v545
        %2521 = vmatpush.xpose.msra.mxu0 %v513
        %2522 = vmatpush.xpose.msra.mxu0 %v481
        %2523 = vmatpush.xpose.msra.mxu0 %v449
        %2524 = vmatpush.xpose.msra.mxu0 %v417
        %2525 = vmatpush.xpose.msra.mxu0 %v385
        %2526 = vmatpush.xpose.msra.mxu0 %v353
        %2527 = vmatpush.xpose.msra.mxu0 %v321
        %2528 = vmatpush.xpose.msra.mxu0 %v289
        %2529 = vmatpush.xpose.msra.mxu0 %v257
        %2530 = vmatmul.f32.gmra.mxu0 %v225
        %v2531 = vpop.f32.mrf.mxu0
        %v2532 = vadd.f32 %v2512, %v2531
        %2533 = vdwg.mxu0
        %2534 = vmatpush.xpose.msra.mxu0 %v738
        %2535 = vmatpush.xpose.msra.mxu0 %v706
        %2536 = vmatpush.xpose.msra.mxu0 %v674
        %2537 = vmatpush.xpose.msra.mxu0 %v642
        %2538 = vmatpush.xpose.msra.mxu0 %v610
        %2539 = vmatpush.xpose.msra.mxu0 %v578
        %2540 = vmatpush.xpose.msra.mxu0 %v546
        %2541 = vmatpush.xpose.msra.mxu0 %v514
        %2542 = vmatpush.xpose.msra.mxu0 %v482
        %2543 = vmatpush.xpose.msra.mxu0 %v450
        %2544 = vmatpush.xpose.msra.mxu0 %v418
        %2545 = vmatpush.xpose.msra.mxu0 %v386
        %2546 = vmatpush.xpose.msra.mxu0 %v354
        %2547 = vmatpush.xpose.msra.mxu0 %v322
        %2548 = vmatpush.xpose.msra.mxu0 %v290
        %2549 = vmatpush.xpose.msra.mxu0 %v258
        %2550 = vmatmul.f32.gmra.mxu0 %v226
        %v2551 = vpop.f32.mrf.mxu0
        %v2552 = vadd.f32 %v2532, %v2551
        %2553 = vdwg.mxu0
        %2554 = vmatpush.xpose.msra.mxu0 %v739
        %2555 = vmatpush.xpose.msra.mxu0 %v707
        %2556 = vmatpush.xpose.msra.mxu0 %v675
        %2557 = vmatpush.xpose.msra.mxu0 %v643
        %2558 = vmatpush.xpose.msra.mxu0 %v611
        %2559 = vmatpush.xpose.msra.mxu0 %v579
        %2560 = vmatpush.xpose.msra.mxu0 %v547
        %2561 = vmatpush.xpose.msra.mxu0 %v515
        %2562 = vmatpush.xpose.msra.mxu0 %v483
        %2563 = vmatpush.xpose.msra.mxu0 %v451
        %2564 = vmatpush.xpose.msra.mxu0 %v419
        %2565 = vmatpush.xpose.msra.mxu0 %v387
        %2566 = vmatpush.xpose.msra.mxu0 %v355
        %2567 = vmatpush.xpose.msra.mxu0 %v323
        %2568 = vmatpush.xpose.msra.mxu0 %v291
        %2569 = vmatpush.xpose.msra.mxu0 %v259
        %2570 = vmatmul.f32.gmra.mxu0 %v227
        %v2571 = vpop.f32.mrf.mxu0
        %v2572 = vadd.f32 %v2552, %v2571
        %2573 = vdwg.mxu0
        %2574 = vmatpush.xpose.msra.mxu0 %v740
        %2575 = vmatpush.xpose.msra.mxu0 %v708
        %2576 = vmatpush.xpose.msra.mxu0 %v676
        %2577 = vmatpush.xpose.msra.mxu0 %v644
        %2578 = vmatpush.xpose.msra.mxu0 %v612
        %2579 = vmatpush.xpose.msra.mxu0 %v580
        %2580 = vmatpush.xpose.msra.mxu0 %v548
        %2581 = vmatpush.xpose.msra.mxu0 %v516
        %2582 = vmatpush.xpose.msra.mxu0 %v484
        %2583 = vmatpush.xpose.msra.mxu0 %v452
        %2584 = vmatpush.xpose.msra.mxu0 %v420
        %2585 = vmatpush.xpose.msra.mxu0 %v388
        %2586 = vmatpush.xpose.msra.mxu0 %v356
        %2587 = vmatpush.xpose.msra.mxu0 %v324
        %2588 = vmatpush.xpose.msra.mxu0 %v292
        %2589 = vmatpush.xpose.msra.mxu0 %v260
        %2590 = vmatmul.f32.gmra.mxu0 %v228
        %v2591 = vpop.f32.mrf.mxu0
        %v2592 = vadd.f32 %v2572, %v2591
        %2593 = vdwg.mxu0
        %2594 = vmatpush.xpose.msra.mxu0 %v741
        %2595 = vmatpush.xpose.msra.mxu0 %v709
        %2596 = vmatpush.xpose.msra.mxu0 %v677
        %2597 = vmatpush.xpose.msra.mxu0 %v645
        %2598 = vmatpush.xpose.msra.mxu0 %v613
        %2599 = vmatpush.xpose.msra.mxu0 %v581
        %2600 = vmatpush.xpose.msra.mxu0 %v549
        %2601 = vmatpush.xpose.msra.mxu0 %v517
        %2602 = vmatpush.xpose.msra.mxu0 %v485
        %2603 = vmatpush.xpose.msra.mxu0 %v453
        %2604 = vmatpush.xpose.msra.mxu0 %v421
        %2605 = vmatpush.xpose.msra.mxu0 %v389
        %2606 = vmatpush.xpose.msra.mxu0 %v357
        %2607 = vmatpush.xpose.msra.mxu0 %v325
        %2608 = vmatpush.xpose.msra.mxu0 %v293
        %2609 = vmatpush.xpose.msra.mxu0 %v261
        %2610 = vmatmul.f32.gmra.mxu0 %v229
        %v2611 = vpop.f32.mrf.mxu0
        %v2612 = vadd.f32 %v2592, %v2611
        %2613 = vdwg.mxu0
        %2614 = vmatpush.xpose.msra.mxu0 %v742
        %2615 = vmatpush.xpose.msra.mxu0 %v710
        %2616 = vmatpush.xpose.msra.mxu0 %v678
        %2617 = vmatpush.xpose.msra.mxu0 %v646
        %2618 = vmatpush.xpose.msra.mxu0 %v614
        %2619 = vmatpush.xpose.msra.mxu0 %v582
        %2620 = vmatpush.xpose.msra.mxu0 %v550
        %2621 = vmatpush.xpose.msra.mxu0 %v518
        %2622 = vmatpush.xpose.msra.mxu0 %v486
        %2623 = vmatpush.xpose.msra.mxu0 %v454
        %2624 = vmatpush.xpose.msra.mxu0 %v422
        %2625 = vmatpush.xpose.msra.mxu0 %v390
        %2626 = vmatpush.xpose.msra.mxu0 %v358
        %2627 = vmatpush.xpose.msra.mxu0 %v326
        %2628 = vmatpush.xpose.msra.mxu0 %v294
        %2629 = vmatpush.xpose.msra.mxu0 %v262
        %2630 = vmatmul.f32.gmra.mxu0 %v230
        %v2631 = vpop.f32.mrf.mxu0
        %v2632 = vadd.f32 %v2612, %v2631
        %2633 = vdwg.mxu0
        %2634 = vmatpush.xpose.msra.mxu0 %v743
        %2635 = vmatpush.xpose.msra.mxu0 %v711
        %2636 = vmatpush.xpose.msra.mxu0 %v679
        %2637 = vmatpush.xpose.msra.mxu0 %v647
        %2638 = vmatpush.xpose.msra.mxu0 %v615
        %2639 = vmatpush.xpose.msra.mxu0 %v583
        %2640 = vmatpush.xpose.msra.mxu0 %v551
        %2641 = vmatpush.xpose.msra.mxu0 %v519
        %2642 = vmatpush.xpose.msra.mxu0 %v487
        %2643 = vmatpush.xpose.msra.mxu0 %v455
        %2644 = vmatpush.xpose.msra.mxu0 %v423
        %2645 = vmatpush.xpose.msra.mxu0 %v391
        %2646 = vmatpush.xpose.msra.mxu0 %v359
        %2647 = vmatpush.xpose.msra.mxu0 %v327
        %2648 = vmatpush.xpose.msra.mxu0 %v295
        %2649 = vmatpush.xpose.msra.mxu0 %v263
        %2650 = vmatmul.f32.gmra.mxu0 %v231
        %v2651 = vpop.f32.mrf.mxu0
        %v2652 = vadd.f32 %v2632, %v2651
        %2653 = vdwg.mxu0
        %2654 = vmatpush.xpose.msra.mxu0 %v744
        %2655 = vmatpush.xpose.msra.mxu0 %v712
        %2656 = vmatpush.xpose.msra.mxu0 %v680
        %2657 = vmatpush.xpose.msra.mxu0 %v648
        %2658 = vmatpush.xpose.msra.mxu0 %v616
        %2659 = vmatpush.xpose.msra.mxu0 %v584
        %2660 = vmatpush.xpose.msra.mxu0 %v552
        %2661 = vmatpush.xpose.msra.mxu0 %v520
        %2662 = vmatpush.xpose.msra.mxu0 %v488
        %2663 = vmatpush.xpose.msra.mxu0 %v456
        %2664 = vmatpush.xpose.msra.mxu0 %v424
        %2665 = vmatpush.xpose.msra.mxu0 %v392
        %2666 = vmatpush.xpose.msra.mxu0 %v360
        %2667 = vmatpush.xpose.msra.mxu0 %v328
        %2668 = vmatpush.xpose.msra.mxu0 %v296
        %2669 = vmatpush.xpose.msra.mxu0 %v264
        %2670 = vmatmul.f32.gmra.mxu0 %v232
        %v2671 = vpop.f32.mrf.mxu0
        %v2672 = vadd.f32 %v2652, %v2671
        %2673 = vdwg.mxu0
        %2674 = vmatpush.xpose.msra.mxu0 %v745
        %2675 = vmatpush.xpose.msra.mxu0 %v713
        %2676 = vmatpush.xpose.msra.mxu0 %v681
        %2677 = vmatpush.xpose.msra.mxu0 %v649
        %2678 = vmatpush.xpose.msra.mxu0 %v617
        %2679 = vmatpush.xpose.msra.mxu0 %v585
        %2680 = vmatpush.xpose.msra.mxu0 %v553
        %2681 = vmatpush.xpose.msra.mxu0 %v521
        %2682 = vmatpush.xpose.msra.mxu0 %v489
        %2683 = vmatpush.xpose.msra.mxu0 %v457
        %2684 = vmatpush.xpose.msra.mxu0 %v425
        %2685 = vmatpush.xpose.msra.mxu0 %v393
        %2686 = vmatpush.xpose.msra.mxu0 %v361
        %2687 = vmatpush.xpose.msra.mxu0 %v329
        %2688 = vmatpush.xpose.msra.mxu0 %v297
        %2689 = vmatpush.xpose.msra.mxu0 %v265
        %2690 = vmatmul.f32.gmra.mxu0 %v233
        %v2691 = vpop.f32.mrf.mxu0
        %v2692 = vadd.f32 %v2672, %v2691
        %2693 = vdwg.mxu0
        %2694 = vmatpush.xpose.msra.mxu0 %v746
        %2695 = vmatpush.xpose.msra.mxu0 %v714
        %2696 = vmatpush.xpose.msra.mxu0 %v682
        %2697 = vmatpush.xpose.msra.mxu0 %v650
        %2698 = vmatpush.xpose.msra.mxu0 %v618
        %2699 = vmatpush.xpose.msra.mxu0 %v586
        %2700 = vmatpush.xpose.msra.mxu0 %v554
        %2701 = vmatpush.xpose.msra.mxu0 %v522
        %2702 = vmatpush.xpose.msra.mxu0 %v490
        %2703 = vmatpush.xpose.msra.mxu0 %v458
        %2704 = vmatpush.xpose.msra.mxu0 %v426
        %2705 = vmatpush.xpose.msra.mxu0 %v394
        %2706 = vmatpush.xpose.msra.mxu0 %v362
        %2707 = vmatpush.xpose.msra.mxu0 %v330
        %2708 = vmatpush.xpose.msra.mxu0 %v298
        %2709 = vmatpush.xpose.msra.mxu0 %v266
        %2710 = vmatmul.f32.gmra.mxu0 %v234
        %v2711 = vpop.f32.mrf.mxu0
        %v2712 = vadd.f32 %v2692, %v2711
        %2713 = vdwg.mxu0
        %2714 = vmatpush.xpose.msra.mxu0 %v747
        %2715 = vmatpush.xpose.msra.mxu0 %v715
        %2716 = vmatpush.xpose.msra.mxu0 %v683
        %2717 = vmatpush.xpose.msra.mxu0 %v651
        %2718 = vmatpush.xpose.msra.mxu0 %v619
        %2719 = vmatpush.xpose.msra.mxu0 %v587
        %2720 = vmatpush.xpose.msra.mxu0 %v555
        %2721 = vmatpush.xpose.msra.mxu0 %v523
        %2722 = vmatpush.xpose.msra.mxu0 %v491
        %2723 = vmatpush.xpose.msra.mxu0 %v459
        %2724 = vmatpush.xpose.msra.mxu0 %v427
        %2725 = vmatpush.xpose.msra.mxu0 %v395
        %2726 = vmatpush.xpose.msra.mxu0 %v363
        %2727 = vmatpush.xpose.msra.mxu0 %v331
        %2728 = vmatpush.xpose.msra.mxu0 %v299
        %2729 = vmatpush.xpose.msra.mxu0 %v267
        %2730 = vmatmul.f32.gmra.mxu0 %v235
        %v2731 = vpop.f32.mrf.mxu0
        %v2732 = vadd.f32 %v2712, %v2731
        %2733 = vdwg.mxu0
        %2734 = vmatpush.xpose.msra.mxu0 %v748
        %2735 = vmatpush.xpose.msra.mxu0 %v716
        %2736 = vmatpush.xpose.msra.mxu0 %v684
        %2737 = vmatpush.xpose.msra.mxu0 %v652
        %2738 = vmatpush.xpose.msra.mxu0 %v620
        %2739 = vmatpush.xpose.msra.mxu0 %v588
        %2740 = vmatpush.xpose.msra.mxu0 %v556
        %2741 = vmatpush.xpose.msra.mxu0 %v524
        %2742 = vmatpush.xpose.msra.mxu0 %v492
        %2743 = vmatpush.xpose.msra.mxu0 %v460
        %2744 = vmatpush.xpose.msra.mxu0 %v428
        %2745 = vmatpush.xpose.msra.mxu0 %v396
        %2746 = vmatpush.xpose.msra.mxu0 %v364
        %2747 = vmatpush.xpose.msra.mxu0 %v332
        %2748 = vmatpush.xpose.msra.mxu0 %v300
        %2749 = vmatpush.xpose.msra.mxu0 %v268
        %2750 = vmatmul.f32.gmra.mxu0 %v236
        %v2751 = vpop.f32.mrf.mxu0
        %v2752 = vadd.f32 %v2732, %v2751
        %2753 = vdwg.mxu0
        %2754 = vmatpush.xpose.msra.mxu0 %v749
        %2755 = vmatpush.xpose.msra.mxu0 %v717
        %2756 = vmatpush.xpose.msra.mxu0 %v685
        %2757 = vmatpush.xpose.msra.mxu0 %v653
        %2758 = vmatpush.xpose.msra.mxu0 %v621
        %2759 = vmatpush.xpose.msra.mxu0 %v589
        %2760 = vmatpush.xpose.msra.mxu0 %v557
        %2761 = vmatpush.xpose.msra.mxu0 %v525
        %2762 = vmatpush.xpose.msra.mxu0 %v493
        %2763 = vmatpush.xpose.msra.mxu0 %v461
        %2764 = vmatpush.xpose.msra.mxu0 %v429
        %2765 = vmatpush.xpose.msra.mxu0 %v397
        %2766 = vmatpush.xpose.msra.mxu0 %v365
        %2767 = vmatpush.xpose.msra.mxu0 %v333
        %2768 = vmatpush.xpose.msra.mxu0 %v301
        %2769 = vmatpush.xpose.msra.mxu0 %v269
        %2770 = vmatmul.f32.gmra.mxu0 %v237
        %v2771 = vpop.f32.mrf.mxu0
        %v2772 = vadd.f32 %v2752, %v2771
        %2773 = vdwg.mxu0
        %2774 = vmatpush.xpose.msra.mxu0 %v750
        %2775 = vmatpush.xpose.msra.mxu0 %v718
        %2776 = vmatpush.xpose.msra.mxu0 %v686
        %2777 = vmatpush.xpose.msra.mxu0 %v654
        %2778 = vmatpush.xpose.msra.mxu0 %v622
        %2779 = vmatpush.xpose.msra.mxu0 %v590
        %2780 = vmatpush.xpose.msra.mxu0 %v558
        %2781 = vmatpush.xpose.msra.mxu0 %v526
        %2782 = vmatpush.xpose.msra.mxu0 %v494
        %2783 = vmatpush.xpose.msra.mxu0 %v462
        %2784 = vmatpush.xpose.msra.mxu0 %v430
        %2785 = vmatpush.xpose.msra.mxu0 %v398
        %2786 = vmatpush.xpose.msra.mxu0 %v366
        %2787 = vmatpush.xpose.msra.mxu0 %v334
        %2788 = vmatpush.xpose.msra.mxu0 %v302
        %2789 = vmatpush.xpose.msra.mxu0 %v270
        %2790 = vmatmul.f32.gmra.mxu0 %v238
        %v2791 = vpop.f32.mrf.mxu0
        %v2792 = vadd.f32 %v2772, %v2791
        %2793 = vdwg.mxu0
        %2794 = vmatpush.xpose.msra.mxu0 %v751
        %2795 = vmatpush.xpose.msra.mxu0 %v719
        %2796 = vmatpush.xpose.msra.mxu0 %v687
        %2797 = vmatpush.xpose.msra.mxu0 %v655
        %2798 = vmatpush.xpose.msra.mxu0 %v623
        %2799 = vmatpush.xpose.msra.mxu0 %v591
        %2800 = vmatpush.xpose.msra.mxu0 %v559
        %2801 = vmatpush.xpose.msra.mxu0 %v527
        %2802 = vmatpush.xpose.msra.mxu0 %v495
        %2803 = vmatpush.xpose.msra.mxu0 %v463
        %2804 = vmatpush.xpose.msra.mxu0 %v431
        %2805 = vmatpush.xpose.msra.mxu0 %v399
        %2806 = vmatpush.xpose.msra.mxu0 %v367
        %2807 = vmatpush.xpose.msra.mxu0 %v335
        %2808 = vmatpush.xpose.msra.mxu0 %v303
        %2809 = vmatpush.xpose.msra.mxu0 %v271
        %2810 = vmatmul.f32.gmra.mxu0 %v239
        %v2811 = vpop.f32.mrf.mxu0
        %v2812 = vadd.f32 %v2792, %v2811
        %2813 = vdwg.mxu0
        %2814 = vmatpush.xpose.msra.mxu0 %v752
        %2815 = vmatpush.xpose.msra.mxu0 %v720
        %2816 = vmatpush.xpose.msra.mxu0 %v688
        %2817 = vmatpush.xpose.msra.mxu0 %v656
        %2818 = vmatpush.xpose.msra.mxu0 %v624
        %2819 = vmatpush.xpose.msra.mxu0 %v592
        %2820 = vmatpush.xpose.msra.mxu0 %v560
        %2821 = vmatpush.xpose.msra.mxu0 %v528
        %2822 = vmatpush.xpose.msra.mxu0 %v496
        %2823 = vmatpush.xpose.msra.mxu0 %v464
        %2824 = vmatpush.xpose.msra.mxu0 %v432
        %2825 = vmatpush.xpose.msra.mxu0 %v400
        %2826 = vmatpush.xpose.msra.mxu0 %v368
        %2827 = vmatpush.xpose.msra.mxu0 %v336
        %2828 = vmatpush.xpose.msra.mxu0 %v304
        %2829 = vmatpush.xpose.msra.mxu0 %v272
        %2830 = vmatmul.f32.gmra.mxu0 %v240
        %v2831 = vpop.f32.mrf.mxu0
        %v2832 = vadd.f32 %v2812, %v2831
        %2833 = vdwg.mxu0
        %2834 = vmatpush.xpose.msra.mxu0 %v753
        %2835 = vmatpush.xpose.msra.mxu0 %v721
        %2836 = vmatpush.xpose.msra.mxu0 %v689
        %2837 = vmatpush.xpose.msra.mxu0 %v657
        %2838 = vmatpush.xpose.msra.mxu0 %v625
        %2839 = vmatpush.xpose.msra.mxu0 %v593
        %2840 = vmatpush.xpose.msra.mxu0 %v561
        %2841 = vmatpush.xpose.msra.mxu0 %v529
        %2842 = vmatpush.xpose.msra.mxu0 %v497
        %2843 = vmatpush.xpose.msra.mxu0 %v465
        %2844 = vmatpush.xpose.msra.mxu0 %v433
        %2845 = vmatpush.xpose.msra.mxu0 %v401
        %2846 = vmatpush.xpose.msra.mxu0 %v369
        %2847 = vmatpush.xpose.msra.mxu0 %v337
        %2848 = vmatpush.xpose.msra.mxu0 %v305
        %2849 = vmatpush.xpose.msra.mxu0 %v273
        %2850 = vmatmul.f32.gmra.mxu0 %v241
        %v2851 = vpop.f32.mrf.mxu0
        %v2852 = vadd.f32 %v2832, %v2851
        %2853 = vdwg.mxu0
        %2854 = vmatpush.xpose.msra.mxu0 %v754
        %2855 = vmatpush.xpose.msra.mxu0 %v722
        %2856 = vmatpush.xpose.msra.mxu0 %v690
        %2857 = vmatpush.xpose.msra.mxu0 %v658
        %2858 = vmatpush.xpose.msra.mxu0 %v626
        %2859 = vmatpush.xpose.msra.mxu0 %v594
        %2860 = vmatpush.xpose.msra.mxu0 %v562
        %2861 = vmatpush.xpose.msra.mxu0 %v530
        %2862 = vmatpush.xpose.msra.mxu0 %v498
        %2863 = vmatpush.xpose.msra.mxu0 %v466
        %2864 = vmatpush.xpose.msra.mxu0 %v434
        %2865 = vmatpush.xpose.msra.mxu0 %v402
        %2866 = vmatpush.xpose.msra.mxu0 %v370
        %2867 = vmatpush.xpose.msra.mxu0 %v338
        %2868 = vmatpush.xpose.msra.mxu0 %v306
        %2869 = vmatpush.xpose.msra.mxu0 %v274
        %2870 = vmatmul.f32.gmra.mxu0 %v242
        %v2871 = vpop.f32.mrf.mxu0
        %v2872 = vadd.f32 %v2852, %v2871
        %2873 = vdwg.mxu0
        %2874 = vmatpush.xpose.msra.mxu0 %v755
        %2875 = vmatpush.xpose.msra.mxu0 %v723
        %2876 = vmatpush.xpose.msra.mxu0 %v691
        %2877 = vmatpush.xpose.msra.mxu0 %v659
        %2878 = vmatpush.xpose.msra.mxu0 %v627
        %2879 = vmatpush.xpose.msra.mxu0 %v595
        %2880 = vmatpush.xpose.msra.mxu0 %v563
        %2881 = vmatpush.xpose.msra.mxu0 %v531
        %2882 = vmatpush.xpose.msra.mxu0 %v499
        %2883 = vmatpush.xpose.msra.mxu0 %v467
        %2884 = vmatpush.xpose.msra.mxu0 %v435
        %2885 = vmatpush.xpose.msra.mxu0 %v403
        %2886 = vmatpush.xpose.msra.mxu0 %v371
        %2887 = vmatpush.xpose.msra.mxu0 %v339
        %2888 = vmatpush.xpose.msra.mxu0 %v307
        %2889 = vmatpush.xpose.msra.mxu0 %v275
        %2890 = vmatmul.f32.gmra.mxu0 %v243
        %v2891 = vpop.f32.mrf.mxu0
        %v2892 = vadd.f32 %v2872, %v2891
        %2893 = vdwg.mxu0
        %2894 = vmatpush.xpose.msra.mxu0 %v756
        %2895 = vmatpush.xpose.msra.mxu0 %v724
        %2896 = vmatpush.xpose.msra.mxu0 %v692
        %2897 = vmatpush.xpose.msra.mxu0 %v660
        %2898 = vmatpush.xpose.msra.mxu0 %v628
        %2899 = vmatpush.xpose.msra.mxu0 %v596
        %2900 = vmatpush.xpose.msra.mxu0 %v564
        %2901 = vmatpush.xpose.msra.mxu0 %v532
        %2902 = vmatpush.xpose.msra.mxu0 %v500
        %2903 = vmatpush.xpose.msra.mxu0 %v468
        %2904 = vmatpush.xpose.msra.mxu0 %v436
        %2905 = vmatpush.xpose.msra.mxu0 %v404
        %2906 = vmatpush.xpose.msra.mxu0 %v372
        %2907 = vmatpush.xpose.msra.mxu0 %v340
        %2908 = vmatpush.xpose.msra.mxu0 %v308
        %2909 = vmatpush.xpose.msra.mxu0 %v276
        %2910 = vmatmul.f32.gmra.mxu0 %v244
        %v2911 = vpop.f32.mrf.mxu0
        %v2912 = vadd.f32 %v2892, %v2911
        %2913 = vdwg.mxu0
        %2914 = vmatpush.xpose.msra.mxu0 %v757
        %2915 = vmatpush.xpose.msra.mxu0 %v725
        %2916 = vmatpush.xpose.msra.mxu0 %v693
        %2917 = vmatpush.xpose.msra.mxu0 %v661
        %2918 = vmatpush.xpose.msra.mxu0 %v629
        %2919 = vmatpush.xpose.msra.mxu0 %v597
        %2920 = vmatpush.xpose.msra.mxu0 %v565
        %2921 = vmatpush.xpose.msra.mxu0 %v533
        %2922 = vmatpush.xpose.msra.mxu0 %v501
        %2923 = vmatpush.xpose.msra.mxu0 %v469
        %2924 = vmatpush.xpose.msra.mxu0 %v437
        %2925 = vmatpush.xpose.msra.mxu0 %v405
        %2926 = vmatpush.xpose.msra.mxu0 %v373
        %2927 = vmatpush.xpose.msra.mxu0 %v341
        %2928 = vmatpush.xpose.msra.mxu0 %v309
        %2929 = vmatpush.xpose.msra.mxu0 %v277
        %2930 = vmatmul.f32.gmra.mxu0 %v245
        %v2931 = vpop.f32.mrf.mxu0
        %v2932 = vadd.f32 %v2912, %v2931
        %2933 = vdwg.mxu0
        %2934 = vmatpush.xpose.msra.mxu0 %v1238
        %2935 = vmatpush.xpose.msra.mxu0 %v1206
        %2936 = vmatpush.xpose.msra.mxu0 %v1174
        %2937 = vmatpush.xpose.msra.mxu0 %v1142
        %2938 = vmatpush.xpose.msra.mxu0 %v1110
        %2939 = vmatpush.xpose.msra.mxu0 %v1078
        %2940 = vmatpush.xpose.msra.mxu0 %v1046
        %2941 = vmatpush.xpose.msra.mxu0 %v1014
        %2942 = vmatpush.xpose.msra.mxu0 %v982
        %2943 = vmatpush.xpose.msra.mxu0 %v950
        %2944 = vmatpush.xpose.msra.mxu0 %v918
        %2945 = vmatpush.xpose.msra.mxu0 %v886
        %2946 = vmatpush.xpose.msra.mxu0 %v854
        %2947 = vmatpush.xpose.msra.mxu0 %v822
        %2948 = vmatpush.xpose.msra.mxu0 %v790
        %2949 = vmatpush.xpose.msra.mxu0 %v758
        %2950 = vmatmul.f32.gmra.mxu0 %v214
        %v2951 = vpop.f32.mrf.mxu0
        %v2952 = vadd.f32 0.0, %v2951
        %2953 = vdwg.mxu0
        %2954 = vmatpush.xpose.msra.mxu0 %v1239
        %2955 = vmatpush.xpose.msra.mxu0 %v1207
        %2956 = vmatpush.xpose.msra.mxu0 %v1175
        %2957 = vmatpush.xpose.msra.mxu0 %v1143
        %2958 = vmatpush.xpose.msra.mxu0 %v1111
        %2959 = vmatpush.xpose.msra.mxu0 %v1079
        %2960 = vmatpush.xpose.msra.mxu0 %v1047
        %2961 = vmatpush.xpose.msra.mxu0 %v1015
        %2962 = vmatpush.xpose.msra.mxu0 %v983
        %2963 = vmatpush.xpose.msra.mxu0 %v951
        %2964 = vmatpush.xpose.msra.mxu0 %v919
        %2965 = vmatpush.xpose.msra.mxu0 %v887
        %2966 = vmatpush.xpose.msra.mxu0 %v855
        %2967 = vmatpush.xpose.msra.mxu0 %v823
        %2968 = vmatpush.xpose.msra.mxu0 %v791
        %2969 = vmatpush.xpose.msra.mxu0 %v759
        %2970 = vmatmul.f32.gmra.mxu0 %v215
        %v2971 = vpop.f32.mrf.mxu0
        %v2972 = vadd.f32 %v2952, %v2971
        %2973 = vdwg.mxu0
        %2974 = vmatpush.xpose.msra.mxu0 %v1240
        %2975 = vmatpush.xpose.msra.mxu0 %v1208
        %2976 = vmatpush.xpose.msra.mxu0 %v1176
        %2977 = vmatpush.xpose.msra.mxu0 %v1144
        %2978 = vmatpush.xpose.msra.mxu0 %v1112
        %2979 = vmatpush.xpose.msra.mxu0 %v1080
        %2980 = vmatpush.xpose.msra.mxu0 %v1048
        %2981 = vmatpush.xpose.msra.mxu0 %v1016
        %2982 = vmatpush.xpose.msra.mxu0 %v984
        %2983 = vmatpush.xpose.msra.mxu0 %v952
        %2984 = vmatpush.xpose.msra.mxu0 %v920
        %2985 = vmatpush.xpose.msra.mxu0 %v888
        %2986 = vmatpush.xpose.msra.mxu0 %v856
        %2987 = vmatpush.xpose.msra.mxu0 %v824
        %2988 = vmatpush.xpose.msra.mxu0 %v792
        %2989 = vmatpush.xpose.msra.mxu0 %v760
        %2990 = vmatmul.f32.gmra.mxu0 %v216
        %v2991 = vpop.f32.mrf.mxu0
        %v2992 = vadd.f32 %v2972, %v2991
        %2993 = vdwg.mxu0
        %2994 = vmatpush.xpose.msra.mxu0 %v1241
        %2995 = vmatpush.xpose.msra.mxu0 %v1209
        %2996 = vmatpush.xpose.msra.mxu0 %v1177
        %2997 = vmatpush.xpose.msra.mxu0 %v1145
        %2998 = vmatpush.xpose.msra.mxu0 %v1113
        %2999 = vmatpush.xpose.msra.mxu0 %v1081
        %3000 = vmatpush.xpose.msra.mxu0 %v1049
        %3001 = vmatpush.xpose.msra.mxu0 %v1017
        %3002 = vmatpush.xpose.msra.mxu0 %v985
        %3003 = vmatpush.xpose.msra.mxu0 %v953
        %3004 = vmatpush.xpose.msra.mxu0 %v921
        %3005 = vmatpush.xpose.msra.mxu0 %v889
        %3006 = vmatpush.xpose.msra.mxu0 %v857
        %3007 = vmatpush.xpose.msra.mxu0 %v825
        %3008 = vmatpush.xpose.msra.mxu0 %v793
        %3009 = vmatpush.xpose.msra.mxu0 %v761
        %3010 = vmatmul.f32.gmra.mxu0 %v217
        %v3011 = vpop.f32.mrf.mxu0
        %v3012 = vadd.f32 %v2992, %v3011
        %3013 = vdwg.mxu0
        %3014 = vmatpush.xpose.msra.mxu0 %v1242
        %3015 = vmatpush.xpose.msra.mxu0 %v1210
        %3016 = vmatpush.xpose.msra.mxu0 %v1178
        %3017 = vmatpush.xpose.msra.mxu0 %v1146
        %3018 = vmatpush.xpose.msra.mxu0 %v1114
        %3019 = vmatpush.xpose.msra.mxu0 %v1082
        %3020 = vmatpush.xpose.msra.mxu0 %v1050
        %3021 = vmatpush.xpose.msra.mxu0 %v1018
        %3022 = vmatpush.xpose.msra.mxu0 %v986
        %3023 = vmatpush.xpose.msra.mxu0 %v954
        %3024 = vmatpush.xpose.msra.mxu0 %v922
        %3025 = vmatpush.xpose.msra.mxu0 %v890
        %3026 = vmatpush.xpose.msra.mxu0 %v858
        %3027 = vmatpush.xpose.msra.mxu0 %v826
        %3028 = vmatpush.xpose.msra.mxu0 %v794
        %3029 = vmatpush.xpose.msra.mxu0 %v762
        %3030 = vmatmul.f32.gmra.mxu0 %v218
        %v3031 = vpop.f32.mrf.mxu0
        %v3032 = vadd.f32 %v3012, %v3031
        %3033 = vdwg.mxu0
        %3034 = vmatpush.xpose.msra.mxu0 %v1243
        %3035 = vmatpush.xpose.msra.mxu0 %v1211
        %3036 = vmatpush.xpose.msra.mxu0 %v1179
        %3037 = vmatpush.xpose.msra.mxu0 %v1147
        %3038 = vmatpush.xpose.msra.mxu0 %v1115
        %3039 = vmatpush.xpose.msra.mxu0 %v1083
        %3040 = vmatpush.xpose.msra.mxu0 %v1051
        %3041 = vmatpush.xpose.msra.mxu0 %v1019
        %3042 = vmatpush.xpose.msra.mxu0 %v987
        %3043 = vmatpush.xpose.msra.mxu0 %v955
        %3044 = vmatpush.xpose.msra.mxu0 %v923
        %3045 = vmatpush.xpose.msra.mxu0 %v891
        %3046 = vmatpush.xpose.msra.mxu0 %v859
        %3047 = vmatpush.xpose.msra.mxu0 %v827
        %3048 = vmatpush.xpose.msra.mxu0 %v795
        %3049 = vmatpush.xpose.msra.mxu0 %v763
        %3050 = vmatmul.f32.gmra.mxu0 %v219
        %v3051 = vpop.f32.mrf.mxu0
        %v3052 = vadd.f32 %v3032, %v3051
        %3053 = vdwg.mxu0
        %3054 = vmatpush.xpose.msra.mxu0 %v1244
        %3055 = vmatpush.xpose.msra.mxu0 %v1212
        %3056 = vmatpush.xpose.msra.mxu0 %v1180
        %3057 = vmatpush.xpose.msra.mxu0 %v1148
        %3058 = vmatpush.xpose.msra.mxu0 %v1116
        %3059 = vmatpush.xpose.msra.mxu0 %v1084
        %3060 = vmatpush.xpose.msra.mxu0 %v1052
        %3061 = vmatpush.xpose.msra.mxu0 %v1020
        %3062 = vmatpush.xpose.msra.mxu0 %v988
        %3063 = vmatpush.xpose.msra.mxu0 %v956
        %3064 = vmatpush.xpose.msra.mxu0 %v924
        %3065 = vmatpush.xpose.msra.mxu0 %v892
        %3066 = vmatpush.xpose.msra.mxu0 %v860
        %3067 = vmatpush.xpose.msra.mxu0 %v828
        %3068 = vmatpush.xpose.msra.mxu0 %v796
        %3069 = vmatpush.xpose.msra.mxu0 %v764
        %3070 = vmatmul.f32.gmra.mxu0 %v220
        %v3071 = vpop.f32.mrf.mxu0
        %v3072 = vadd.f32 %v3052, %v3071
        %3073 = vdwg.mxu0
        %3074 = vmatpush.xpose.msra.mxu0 %v1245
        %3075 = vmatpush.xpose.msra.mxu0 %v1213
        %3076 = vmatpush.xpose.msra.mxu0 %v1181
        %3077 = vmatpush.xpose.msra.mxu0 %v1149
        %3078 = vmatpush.xpose.msra.mxu0 %v1117
        %3079 = vmatpush.xpose.msra.mxu0 %v1085
        %3080 = vmatpush.xpose.msra.mxu0 %v1053
        %3081 = vmatpush.xpose.msra.mxu0 %v1021
        %3082 = vmatpush.xpose.msra.mxu0 %v989
        %3083 = vmatpush.xpose.msra.mxu0 %v957
        %3084 = vmatpush.xpose.msra.mxu0 %v925
        %3085 = vmatpush.xpose.msra.mxu0 %v893
        %3086 = vmatpush.xpose.msra.mxu0 %v861
        %3087 = vmatpush.xpose.msra.mxu0 %v829
        %3088 = vmatpush.xpose.msra.mxu0 %v797
        %3089 = vmatpush.xpose.msra.mxu0 %v765
        %3090 = vmatmul.f32.gmra.mxu0 %v221
        %v3091 = vpop.f32.mrf.mxu0
        %v3092 = vadd.f32 %v3072, %v3091
        %3093 = vdwg.mxu0
        %3094 = vmatpush.xpose.msra.mxu0 %v1246
        %3095 = vmatpush.xpose.msra.mxu0 %v1214
        %3096 = vmatpush.xpose.msra.mxu0 %v1182
        %3097 = vmatpush.xpose.msra.mxu0 %v1150
        %3098 = vmatpush.xpose.msra.mxu0 %v1118
        %3099 = vmatpush.xpose.msra.mxu0 %v1086
        %3100 = vmatpush.xpose.msra.mxu0 %v1054
        %3101 = vmatpush.xpose.msra.mxu0 %v1022
        %3102 = vmatpush.xpose.msra.mxu0 %v990
        %3103 = vmatpush.xpose.msra.mxu0 %v958
        %3104 = vmatpush.xpose.msra.mxu0 %v926
        %3105 = vmatpush.xpose.msra.mxu0 %v894
        %3106 = vmatpush.xpose.msra.mxu0 %v862
        %3107 = vmatpush.xpose.msra.mxu0 %v830
        %3108 = vmatpush.xpose.msra.mxu0 %v798
        %3109 = vmatpush.xpose.msra.mxu0 %v766
        %3110 = vmatmul.f32.gmra.mxu0 %v222
        %v3111 = vpop.f32.mrf.mxu0
        %v3112 = vadd.f32 %v3092, %v3111
        %3113 = vdwg.mxu0
        %3114 = vmatpush.xpose.msra.mxu0 %v1247
        %3115 = vmatpush.xpose.msra.mxu0 %v1215
        %3116 = vmatpush.xpose.msra.mxu0 %v1183
        %3117 = vmatpush.xpose.msra.mxu0 %v1151
        %3118 = vmatpush.xpose.msra.mxu0 %v1119
        %3119 = vmatpush.xpose.msra.mxu0 %v1087
        %3120 = vmatpush.xpose.msra.mxu0 %v1055
        %3121 = vmatpush.xpose.msra.mxu0 %v1023
        %3122 = vmatpush.xpose.msra.mxu0 %v991
        %3123 = vmatpush.xpose.msra.mxu0 %v959
        %3124 = vmatpush.xpose.msra.mxu0 %v927
        %3125 = vmatpush.xpose.msra.mxu0 %v895
        %3126 = vmatpush.xpose.msra.mxu0 %v863
        %3127 = vmatpush.xpose.msra.mxu0 %v831
        %3128 = vmatpush.xpose.msra.mxu0 %v799
        %3129 = vmatpush.xpose.msra.mxu0 %v767
        %3130 = vmatmul.f32.gmra.mxu0 %v223
        %v3131 = vpop.f32.mrf.mxu0
        %v3132 = vadd.f32 %v3112, %v3131
        %3133 = vdwg.mxu0
        %3134 = vmatpush.xpose.msra.mxu0 %v1248
        %3135 = vmatpush.xpose.msra.mxu0 %v1216
        %3136 = vmatpush.xpose.msra.mxu0 %v1184
        %3137 = vmatpush.xpose.msra.mxu0 %v1152
        %3138 = vmatpush.xpose.msra.mxu0 %v1120
        %3139 = vmatpush.xpose.msra.mxu0 %v1088
        %3140 = vmatpush.xpose.msra.mxu0 %v1056
        %3141 = vmatpush.xpose.msra.mxu0 %v1024
        %3142 = vmatpush.xpose.msra.mxu0 %v992
        %3143 = vmatpush.xpose.msra.mxu0 %v960
        %3144 = vmatpush.xpose.msra.mxu0 %v928
        %3145 = vmatpush.xpose.msra.mxu0 %v896
        %3146 = vmatpush.xpose.msra.mxu0 %v864
        %3147 = vmatpush.xpose.msra.mxu0 %v832
        %3148 = vmatpush.xpose.msra.mxu0 %v800
        %3149 = vmatpush.xpose.msra.mxu0 %v768
        %3150 = vmatmul.f32.gmra.mxu0 %v224
        %v3151 = vpop.f32.mrf.mxu0
        %v3152 = vadd.f32 %v3132, %v3151
        %3153 = vdwg.mxu0
        %3154 = vmatpush.xpose.msra.mxu0 %v1249
        %3155 = vmatpush.xpose.msra.mxu0 %v1217
        %3156 = vmatpush.xpose.msra.mxu0 %v1185
        %3157 = vmatpush.xpose.msra.mxu0 %v1153
        %3158 = vmatpush.xpose.msra.mxu0 %v1121
        %3159 = vmatpush.xpose.msra.mxu0 %v1089
        %3160 = vmatpush.xpose.msra.mxu0 %v1057
        %3161 = vmatpush.xpose.msra.mxu0 %v1025
        %3162 = vmatpush.xpose.msra.mxu0 %v993
        %3163 = vmatpush.xpose.msra.mxu0 %v961
        %3164 = vmatpush.xpose.msra.mxu0 %v929
        %3165 = vmatpush.xpose.msra.mxu0 %v897
        %3166 = vmatpush.xpose.msra.mxu0 %v865
        %3167 = vmatpush.xpose.msra.mxu0 %v833
        %3168 = vmatpush.xpose.msra.mxu0 %v801
        %3169 = vmatpush.xpose.msra.mxu0 %v769
        %3170 = vmatmul.f32.gmra.mxu0 %v225
        %v3171 = vpop.f32.mrf.mxu0
        %v3172 = vadd.f32 %v3152, %v3171
        %3173 = vdwg.mxu0
        %3174 = vmatpush.xpose.msra.mxu0 %v1250
        %3175 = vmatpush.xpose.msra.mxu0 %v1218
        %3176 = vmatpush.xpose.msra.mxu0 %v1186
        %3177 = vmatpush.xpose.msra.mxu0 %v1154
        %3178 = vmatpush.xpose.msra.mxu0 %v1122
        %3179 = vmatpush.xpose.msra.mxu0 %v1090
        %3180 = vmatpush.xpose.msra.mxu0 %v1058
        %3181 = vmatpush.xpose.msra.mxu0 %v1026
        %3182 = vmatpush.xpose.msra.mxu0 %v994
        %3183 = vmatpush.xpose.msra.mxu0 %v962
        %3184 = vmatpush.xpose.msra.mxu0 %v930
        %3185 = vmatpush.xpose.msra.mxu0 %v898
        %3186 = vmatpush.xpose.msra.mxu0 %v866
        %3187 = vmatpush.xpose.msra.mxu0 %v834
        %3188 = vmatpush.xpose.msra.mxu0 %v802
        %3189 = vmatpush.xpose.msra.mxu0 %v770
        %3190 = vmatmul.f32.gmra.mxu0 %v226
        %v3191 = vpop.f32.mrf.mxu0
        %v3192 = vadd.f32 %v3172, %v3191
        %3193 = vdwg.mxu0
        %3194 = vmatpush.xpose.msra.mxu0 %v1251
        %3195 = vmatpush.xpose.msra.mxu0 %v1219
        %3196 = vmatpush.xpose.msra.mxu0 %v1187
        %3197 = vmatpush.xpose.msra.mxu0 %v1155
        %3198 = vmatpush.xpose.msra.mxu0 %v1123
        %3199 = vmatpush.xpose.msra.mxu0 %v1091
        %3200 = vmatpush.xpose.msra.mxu0 %v1059
        %3201 = vmatpush.xpose.msra.mxu0 %v1027
        %3202 = vmatpush.xpose.msra.mxu0 %v995
        %3203 = vmatpush.xpose.msra.mxu0 %v963
        %3204 = vmatpush.xpose.msra.mxu0 %v931
        %3205 = vmatpush.xpose.msra.mxu0 %v899
        %3206 = vmatpush.xpose.msra.mxu0 %v867
        %3207 = vmatpush.xpose.msra.mxu0 %v835
        %3208 = vmatpush.xpose.msra.mxu0 %v803
        %3209 = vmatpush.xpose.msra.mxu0 %v771
        %3210 = vmatmul.f32.gmra.mxu0 %v227
        %v3211 = vpop.f32.mrf.mxu0
        %v3212 = vadd.f32 %v3192, %v3211
        %3213 = vdwg.mxu0
        %3214 = vmatpush.xpose.msra.mxu0 %v1252
        %3215 = vmatpush.xpose.msra.mxu0 %v1220
        %3216 = vmatpush.xpose.msra.mxu0 %v1188
        %3217 = vmatpush.xpose.msra.mxu0 %v1156
        %3218 = vmatpush.xpose.msra.mxu0 %v1124
        %3219 = vmatpush.xpose.msra.mxu0 %v1092
        %3220 = vmatpush.xpose.msra.mxu0 %v1060
        %3221 = vmatpush.xpose.msra.mxu0 %v1028
        %3222 = vmatpush.xpose.msra.mxu0 %v996
        %3223 = vmatpush.xpose.msra.mxu0 %v964
        %3224 = vmatpush.xpose.msra.mxu0 %v932
        %3225 = vmatpush.xpose.msra.mxu0 %v900
        %3226 = vmatpush.xpose.msra.mxu0 %v868
        %3227 = vmatpush.xpose.msra.mxu0 %v836
        %3228 = vmatpush.xpose.msra.mxu0 %v804
        %3229 = vmatpush.xpose.msra.mxu0 %v772
        %3230 = vmatmul.f32.gmra.mxu0 %v228
        %v3231 = vpop.f32.mrf.mxu0
        %v3232 = vadd.f32 %v3212, %v3231
        %3233 = vdwg.mxu0
        %3234 = vmatpush.xpose.msra.mxu0 %v1253
        %3235 = vmatpush.xpose.msra.mxu0 %v1221
        %3236 = vmatpush.xpose.msra.mxu0 %v1189
        %3237 = vmatpush.xpose.msra.mxu0 %v1157
        %3238 = vmatpush.xpose.msra.mxu0 %v1125
        %3239 = vmatpush.xpose.msra.mxu0 %v1093
        %3240 = vmatpush.xpose.msra.mxu0 %v1061
        %3241 = vmatpush.xpose.msra.mxu0 %v1029
        %3242 = vmatpush.xpose.msra.mxu0 %v997
        %3243 = vmatpush.xpose.msra.mxu0 %v965
        %3244 = vmatpush.xpose.msra.mxu0 %v933
        %3245 = vmatpush.xpose.msra.mxu0 %v901
        %3246 = vmatpush.xpose.msra.mxu0 %v869
        %3247 = vmatpush.xpose.msra.mxu0 %v837
        %3248 = vmatpush.xpose.msra.mxu0 %v805
        %3249 = vmatpush.xpose.msra.mxu0 %v773
        %3250 = vmatmul.f32.gmra.mxu0 %v229
        %v3251 = vpop.f32.mrf.mxu0
        %v3252 = vadd.f32 %v3232, %v3251
        %3253 = vdwg.mxu0
        %3254 = vmatpush.xpose.msra.mxu0 %v1254
        %3255 = vmatpush.xpose.msra.mxu0 %v1222
        %3256 = vmatpush.xpose.msra.mxu0 %v1190
        %3257 = vmatpush.xpose.msra.mxu0 %v1158
        %3258 = vmatpush.xpose.msra.mxu0 %v1126
        %3259 = vmatpush.xpose.msra.mxu0 %v1094
        %3260 = vmatpush.xpose.msra.mxu0 %v1062
        %3261 = vmatpush.xpose.msra.mxu0 %v1030
        %3262 = vmatpush.xpose.msra.mxu0 %v998
        %3263 = vmatpush.xpose.msra.mxu0 %v966
        %3264 = vmatpush.xpose.msra.mxu0 %v934
        %3265 = vmatpush.xpose.msra.mxu0 %v902
        %3266 = vmatpush.xpose.msra.mxu0 %v870
        %3267 = vmatpush.xpose.msra.mxu0 %v838
        %3268 = vmatpush.xpose.msra.mxu0 %v806
        %3269 = vmatpush.xpose.msra.mxu0 %v774
        %3270 = vmatmul.f32.gmra.mxu0 %v230
        %v3271 = vpop.f32.mrf.mxu0
        %v3272 = vadd.f32 %v3252, %v3271
        %3273 = vdwg.mxu0
        %3274 = vmatpush.xpose.msra.mxu0 %v1255
        %3275 = vmatpush.xpose.msra.mxu0 %v1223
        %3276 = vmatpush.xpose.msra.mxu0 %v1191
        %3277 = vmatpush.xpose.msra.mxu0 %v1159
        %3278 = vmatpush.xpose.msra.mxu0 %v1127
        %3279 = vmatpush.xpose.msra.mxu0 %v1095
        %3280 = vmatpush.xpose.msra.mxu0 %v1063
        %3281 = vmatpush.xpose.msra.mxu0 %v1031
        %3282 = vmatpush.xpose.msra.mxu0 %v999
        %3283 = vmatpush.xpose.msra.mxu0 %v967
        %3284 = vmatpush.xpose.msra.mxu0 %v935
        %3285 = vmatpush.xpose.msra.mxu0 %v903
        %3286 = vmatpush.xpose.msra.mxu0 %v871
        %3287 = vmatpush.xpose.msra.mxu0 %v839
        %3288 = vmatpush.xpose.msra.mxu0 %v807
        %3289 = vmatpush.xpose.msra.mxu0 %v775
        %3290 = vmatmul.f32.gmra.mxu0 %v231
        %v3291 = vpop.f32.mrf.mxu0
        %v3292 = vadd.f32 %v3272, %v3291
        %3293 = vdwg.mxu0
        %3294 = vmatpush.xpose.msra.mxu0 %v1256
        %3295 = vmatpush.xpose.msra.mxu0 %v1224
        %3296 = vmatpush.xpose.msra.mxu0 %v1192
        %3297 = vmatpush.xpose.msra.mxu0 %v1160
        %3298 = vmatpush.xpose.msra.mxu0 %v1128
        %3299 = vmatpush.xpose.msra.mxu0 %v1096
        %3300 = vmatpush.xpose.msra.mxu0 %v1064
        %3301 = vmatpush.xpose.msra.mxu0 %v1032
        %3302 = vmatpush.xpose.msra.mxu0 %v1000
        %3303 = vmatpush.xpose.msra.mxu0 %v968
        %3304 = vmatpush.xpose.msra.mxu0 %v936
        %3305 = vmatpush.xpose.msra.mxu0 %v904
        %3306 = vmatpush.xpose.msra.mxu0 %v872
        %3307 = vmatpush.xpose.msra.mxu0 %v840
        %3308 = vmatpush.xpose.msra.mxu0 %v808
        %3309 = vmatpush.xpose.msra.mxu0 %v776
        %3310 = vmatmul.f32.gmra.mxu0 %v232
        %v3311 = vpop.f32.mrf.mxu0
        %v3312 = vadd.f32 %v3292, %v3311
        %3313 = vdwg.mxu0
        %3314 = vmatpush.xpose.msra.mxu0 %v1257
        %3315 = vmatpush.xpose.msra.mxu0 %v1225
        %3316 = vmatpush.xpose.msra.mxu0 %v1193
        %3317 = vmatpush.xpose.msra.mxu0 %v1161
        %3318 = vmatpush.xpose.msra.mxu0 %v1129
        %3319 = vmatpush.xpose.msra.mxu0 %v1097
        %3320 = vmatpush.xpose.msra.mxu0 %v1065
        %3321 = vmatpush.xpose.msra.mxu0 %v1033
        %3322 = vmatpush.xpose.msra.mxu0 %v1001
        %3323 = vmatpush.xpose.msra.mxu0 %v969
        %3324 = vmatpush.xpose.msra.mxu0 %v937
        %3325 = vmatpush.xpose.msra.mxu0 %v905
        %3326 = vmatpush.xpose.msra.mxu0 %v873
        %3327 = vmatpush.xpose.msra.mxu0 %v841
        %3328 = vmatpush.xpose.msra.mxu0 %v809
        %3329 = vmatpush.xpose.msra.mxu0 %v777
        %3330 = vmatmul.f32.gmra.mxu0 %v233
        %v3331 = vpop.f32.mrf.mxu0
        %v3332 = vadd.f32 %v3312, %v3331
        %3333 = vdwg.mxu0
        %3334 = vmatpush.xpose.msra.mxu0 %v1258
        %3335 = vmatpush.xpose.msra.mxu0 %v1226
        %3336 = vmatpush.xpose.msra.mxu0 %v1194
        %3337 = vmatpush.xpose.msra.mxu0 %v1162
        %3338 = vmatpush.xpose.msra.mxu0 %v1130
        %3339 = vmatpush.xpose.msra.mxu0 %v1098
        %3340 = vmatpush.xpose.msra.mxu0 %v1066
        %3341 = vmatpush.xpose.msra.mxu0 %v1034
        %3342 = vmatpush.xpose.msra.mxu0 %v1002
        %3343 = vmatpush.xpose.msra.mxu0 %v970
        %3344 = vmatpush.xpose.msra.mxu0 %v938
        %3345 = vmatpush.xpose.msra.mxu0 %v906
        %3346 = vmatpush.xpose.msra.mxu0 %v874
        %3347 = vmatpush.xpose.msra.mxu0 %v842
        %3348 = vmatpush.xpose.msra.mxu0 %v810
        %3349 = vmatpush.xpose.msra.mxu0 %v778
        %3350 = vmatmul.f32.gmra.mxu0 %v234
        %v3351 = vpop.f32.mrf.mxu0
        %v3352 = vadd.f32 %v3332, %v3351
        %3353 = vdwg.mxu0
        %3354 = vmatpush.xpose.msra.mxu0 %v1259
        %3355 = vmatpush.xpose.msra.mxu0 %v1227
        %3356 = vmatpush.xpose.msra.mxu0 %v1195
        %3357 = vmatpush.xpose.msra.mxu0 %v1163
        %3358 = vmatpush.xpose.msra.mxu0 %v1131
        %3359 = vmatpush.xpose.msra.mxu0 %v1099
        %3360 = vmatpush.xpose.msra.mxu0 %v1067
        %3361 = vmatpush.xpose.msra.mxu0 %v1035
        %3362 = vmatpush.xpose.msra.mxu0 %v1003
        %3363 = vmatpush.xpose.msra.mxu0 %v971
        %3364 = vmatpush.xpose.msra.mxu0 %v939
        %3365 = vmatpush.xpose.msra.mxu0 %v907
        %3366 = vmatpush.xpose.msra.mxu0 %v875
        %3367 = vmatpush.xpose.msra.mxu0 %v843
        %3368 = vmatpush.xpose.msra.mxu0 %v811
        %3369 = vmatpush.xpose.msra.mxu0 %v779
        %3370 = vmatmul.f32.gmra.mxu0 %v235
        %v3371 = vpop.f32.mrf.mxu0
        %v3372 = vadd.f32 %v3352, %v3371
        %3373 = vdwg.mxu0
        %3374 = vmatpush.xpose.msra.mxu0 %v1260
        %3375 = vmatpush.xpose.msra.mxu0 %v1228
        %3376 = vmatpush.xpose.msra.mxu0 %v1196
        %3377 = vmatpush.xpose.msra.mxu0 %v1164
        %3378 = vmatpush.xpose.msra.mxu0 %v1132
        %3379 = vmatpush.xpose.msra.mxu0 %v1100
        %3380 = vmatpush.xpose.msra.mxu0 %v1068
        %3381 = vmatpush.xpose.msra.mxu0 %v1036
        %3382 = vmatpush.xpose.msra.mxu0 %v1004
        %3383 = vmatpush.xpose.msra.mxu0 %v972
        %3384 = vmatpush.xpose.msra.mxu0 %v940
        %3385 = vmatpush.xpose.msra.mxu0 %v908
        %3386 = vmatpush.xpose.msra.mxu0 %v876
        %3387 = vmatpush.xpose.msra.mxu0 %v844
        %3388 = vmatpush.xpose.msra.mxu0 %v812
        %3389 = vmatpush.xpose.msra.mxu0 %v780
        %3390 = vmatmul.f32.gmra.mxu0 %v236
        %v3391 = vpop.f32.mrf.mxu0
        %v3392 = vadd.f32 %v3372, %v3391
        %3393 = vdwg.mxu0
        %3394 = vmatpush.xpose.msra.mxu0 %v1261
        %3395 = vmatpush.xpose.msra.mxu0 %v1229
        %3396 = vmatpush.xpose.msra.mxu0 %v1197
        %3397 = vmatpush.xpose.msra.mxu0 %v1165
        %3398 = vmatpush.xpose.msra.mxu0 %v1133
        %3399 = vmatpush.xpose.msra.mxu0 %v1101
        %3400 = vmatpush.xpose.msra.mxu0 %v1069
        %3401 = vmatpush.xpose.msra.mxu0 %v1037
        %3402 = vmatpush.xpose.msra.mxu0 %v1005
        %3403 = vmatpush.xpose.msra.mxu0 %v973
        %3404 = vmatpush.xpose.msra.mxu0 %v941
        %3405 = vmatpush.xpose.msra.mxu0 %v909
        %3406 = vmatpush.xpose.msra.mxu0 %v877
        %3407 = vmatpush.xpose.msra.mxu0 %v845
        %3408 = vmatpush.xpose.msra.mxu0 %v813
        %3409 = vmatpush.xpose.msra.mxu0 %v781
        %3410 = vmatmul.f32.gmra.mxu0 %v237
        %v3411 = vpop.f32.mrf.mxu0
        %v3412 = vadd.f32 %v3392, %v3411
        %3413 = vdwg.mxu0
        %3414 = vmatpush.xpose.msra.mxu0 %v1262
        %3415 = vmatpush.xpose.msra.mxu0 %v1230
        %3416 = vmatpush.xpose.msra.mxu0 %v1198
        %3417 = vmatpush.xpose.msra.mxu0 %v1166
        %3418 = vmatpush.xpose.msra.mxu0 %v1134
        %3419 = vmatpush.xpose.msra.mxu0 %v1102
        %3420 = vmatpush.xpose.msra.mxu0 %v1070
        %3421 = vmatpush.xpose.msra.mxu0 %v1038
        %3422 = vmatpush.xpose.msra.mxu0 %v1006
        %3423 = vmatpush.xpose.msra.mxu0 %v974
        %3424 = vmatpush.xpose.msra.mxu0 %v942
        %3425 = vmatpush.xpose.msra.mxu0 %v910
        %3426 = vmatpush.xpose.msra.mxu0 %v878
        %3427 = vmatpush.xpose.msra.mxu0 %v846
        %3428 = vmatpush.xpose.msra.mxu0 %v814
        %3429 = vmatpush.xpose.msra.mxu0 %v782
        %3430 = vmatmul.f32.gmra.mxu0 %v238
        %v3431 = vpop.f32.mrf.mxu0
        %v3432 = vadd.f32 %v3412, %v3431
        %3433 = vdwg.mxu0
        %3434 = vmatpush.xpose.msra.mxu0 %v1263
        %3435 = vmatpush.xpose.msra.mxu0 %v1231
        %3436 = vmatpush.xpose.msra.mxu0 %v1199
        %3437 = vmatpush.xpose.msra.mxu0 %v1167
        %3438 = vmatpush.xpose.msra.mxu0 %v1135
        %3439 = vmatpush.xpose.msra.mxu0 %v1103
        %3440 = vmatpush.xpose.msra.mxu0 %v1071
        %3441 = vmatpush.xpose.msra.mxu0 %v1039
        %3442 = vmatpush.xpose.msra.mxu0 %v1007
        %3443 = vmatpush.xpose.msra.mxu0 %v975
        %3444 = vmatpush.xpose.msra.mxu0 %v943
        %3445 = vmatpush.xpose.msra.mxu0 %v911
        %3446 = vmatpush.xpose.msra.mxu0 %v879
        %3447 = vmatpush.xpose.msra.mxu0 %v847
        %3448 = vmatpush.xpose.msra.mxu0 %v815
        %3449 = vmatpush.xpose.msra.mxu0 %v783
        %3450 = vmatmul.f32.gmra.mxu0 %v239
        %v3451 = vpop.f32.mrf.mxu0
        %v3452 = vadd.f32 %v3432, %v3451
        %3453 = vdwg.mxu0
        %3454 = vmatpush.xpose.msra.mxu0 %v1264
        %3455 = vmatpush.xpose.msra.mxu0 %v1232
        %3456 = vmatpush.xpose.msra.mxu0 %v1200
        %3457 = vmatpush.xpose.msra.mxu0 %v1168
        %3458 = vmatpush.xpose.msra.mxu0 %v1136
        %3459 = vmatpush.xpose.msra.mxu0 %v1104
        %3460 = vmatpush.xpose.msra.mxu0 %v1072
        %3461 = vmatpush.xpose.msra.mxu0 %v1040
        %3462 = vmatpush.xpose.msra.mxu0 %v1008
        %3463 = vmatpush.xpose.msra.mxu0 %v976
        %3464 = vmatpush.xpose.msra.mxu0 %v944
        %3465 = vmatpush.xpose.msra.mxu0 %v912
        %3466 = vmatpush.xpose.msra.mxu0 %v880
        %3467 = vmatpush.xpose.msra.mxu0 %v848
        %3468 = vmatpush.xpose.msra.mxu0 %v816
        %3469 = vmatpush.xpose.msra.mxu0 %v784
        %3470 = vmatmul.f32.gmra.mxu0 %v240
        %v3471 = vpop.f32.mrf.mxu0
        %v3472 = vadd.f32 %v3452, %v3471
        %3473 = vdwg.mxu0
        %3474 = vmatpush.xpose.msra.mxu0 %v1265
        %3475 = vmatpush.xpose.msra.mxu0 %v1233
        %3476 = vmatpush.xpose.msra.mxu0 %v1201
        %3477 = vmatpush.xpose.msra.mxu0 %v1169
        %3478 = vmatpush.xpose.msra.mxu0 %v1137
        %3479 = vmatpush.xpose.msra.mxu0 %v1105
        %3480 = vmatpush.xpose.msra.mxu0 %v1073
        %3481 = vmatpush.xpose.msra.mxu0 %v1041
        %3482 = vmatpush.xpose.msra.mxu0 %v1009
        %3483 = vmatpush.xpose.msra.mxu0 %v977
        %3484 = vmatpush.xpose.msra.mxu0 %v945
        %3485 = vmatpush.xpose.msra.mxu0 %v913
        %3486 = vmatpush.xpose.msra.mxu0 %v881
        %3487 = vmatpush.xpose.msra.mxu0 %v849
        %3488 = vmatpush.xpose.msra.mxu0 %v817
        %3489 = vmatpush.xpose.msra.mxu0 %v785
        %3490 = vmatmul.f32.gmra.mxu0 %v241
        %v3491 = vpop.f32.mrf.mxu0
        %v3492 = vadd.f32 %v3472, %v3491
        %3493 = vdwg.mxu0
        %3494 = vmatpush.xpose.msra.mxu0 %v1266
        %3495 = vmatpush.xpose.msra.mxu0 %v1234
        %3496 = vmatpush.xpose.msra.mxu0 %v1202
        %3497 = vmatpush.xpose.msra.mxu0 %v1170
        %3498 = vmatpush.xpose.msra.mxu0 %v1138
        %3499 = vmatpush.xpose.msra.mxu0 %v1106
        %3500 = vmatpush.xpose.msra.mxu0 %v1074
        %3501 = vmatpush.xpose.msra.mxu0 %v1042
        %3502 = vmatpush.xpose.msra.mxu0 %v1010
        %3503 = vmatpush.xpose.msra.mxu0 %v978
        %3504 = vmatpush.xpose.msra.mxu0 %v946
        %3505 = vmatpush.xpose.msra.mxu0 %v914
        %3506 = vmatpush.xpose.msra.mxu0 %v882
        %3507 = vmatpush.xpose.msra.mxu0 %v850
        %3508 = vmatpush.xpose.msra.mxu0 %v818
        %3509 = vmatpush.xpose.msra.mxu0 %v786
        %3510 = vmatmul.f32.gmra.mxu0 %v242
        %v3511 = vpop.f32.mrf.mxu0
        %v3512 = vadd.f32 %v3492, %v3511
        %3513 = vdwg.mxu0
        %3514 = vmatpush.xpose.msra.mxu0 %v1267
        %3515 = vmatpush.xpose.msra.mxu0 %v1235
        %3516 = vmatpush.xpose.msra.mxu0 %v1203
        %3517 = vmatpush.xpose.msra.mxu0 %v1171
        %3518 = vmatpush.xpose.msra.mxu0 %v1139
        %3519 = vmatpush.xpose.msra.mxu0 %v1107
        %3520 = vmatpush.xpose.msra.mxu0 %v1075
        %3521 = vmatpush.xpose.msra.mxu0 %v1043
        %3522 = vmatpush.xpose.msra.mxu0 %v1011
        %3523 = vmatpush.xpose.msra.mxu0 %v979
        %3524 = vmatpush.xpose.msra.mxu0 %v947
        %3525 = vmatpush.xpose.msra.mxu0 %v915
        %3526 = vmatpush.xpose.msra.mxu0 %v883
        %3527 = vmatpush.xpose.msra.mxu0 %v851
        %3528 = vmatpush.xpose.msra.mxu0 %v819
        %3529 = vmatpush.xpose.msra.mxu0 %v787
        %3530 = vmatmul.f32.gmra.mxu0 %v243
        %v3531 = vpop.f32.mrf.mxu0
        %v3532 = vadd.f32 %v3512, %v3531
        %3533 = vdwg.mxu0
        %3534 = vmatpush.xpose.msra.mxu0 %v1268
        %3535 = vmatpush.xpose.msra.mxu0 %v1236
        %3536 = vmatpush.xpose.msra.mxu0 %v1204
        %3537 = vmatpush.xpose.msra.mxu0 %v1172
        %3538 = vmatpush.xpose.msra.mxu0 %v1140
        %3539 = vmatpush.xpose.msra.mxu0 %v1108
        %3540 = vmatpush.xpose.msra.mxu0 %v1076
        %3541 = vmatpush.xpose.msra.mxu0 %v1044
        %3542 = vmatpush.xpose.msra.mxu0 %v1012
        %3543 = vmatpush.xpose.msra.mxu0 %v980
        %3544 = vmatpush.xpose.msra.mxu0 %v948
        %3545 = vmatpush.xpose.msra.mxu0 %v916
        %3546 = vmatpush.xpose.msra.mxu0 %v884
        %3547 = vmatpush.xpose.msra.mxu0 %v852
        %3548 = vmatpush.xpose.msra.mxu0 %v820
        %3549 = vmatpush.xpose.msra.mxu0 %v788
        %3550 = vmatmul.f32.gmra.mxu0 %v244
        %v3551 = vpop.f32.mrf.mxu0
        %v3552 = vadd.f32 %v3532, %v3551
        %3553 = vdwg.mxu0
        %3554 = vmatpush.xpose.msra.mxu0 %v1269
        %3555 = vmatpush.xpose.msra.mxu0 %v1237
        %3556 = vmatpush.xpose.msra.mxu0 %v1205
        %3557 = vmatpush.xpose.msra.mxu0 %v1173
        %3558 = vmatpush.xpose.msra.mxu0 %v1141
        %3559 = vmatpush.xpose.msra.mxu0 %v1109
        %3560 = vmatpush.xpose.msra.mxu0 %v1077
        %3561 = vmatpush.xpose.msra.mxu0 %v1045
        %3562 = vmatpush.xpose.msra.mxu0 %v1013
        %3563 = vmatpush.xpose.msra.mxu0 %v981
        %3564 = vmatpush.xpose.msra.mxu0 %v949
        %3565 = vmatpush.xpose.msra.mxu0 %v917
        %3566 = vmatpush.xpose.msra.mxu0 %v885
        %3567 = vmatpush.xpose.msra.mxu0 %v853
        %3568 = vmatpush.xpose.msra.mxu0 %v821
        %3569 = vmatpush.xpose.msra.mxu0 %v789
        %3570 = vmatmul.f32.gmra.mxu0 %v245
        %v3571 = vpop.f32.mrf.mxu0
        %v3572 = vadd.f32 %v3552, %v3571
        %3573 = vdwg.mxu0
        %3574 = vmatpush.xpose.msra.mxu0 %v1750
        %3575 = vmatpush.xpose.msra.mxu0 %v1718
        %3576 = vmatpush.xpose.msra.mxu0 %v1686
        %3577 = vmatpush.xpose.msra.mxu0 %v1654
        %3578 = vmatpush.xpose.msra.mxu0 %v1622
        %3579 = vmatpush.xpose.msra.mxu0 %v1590
        %3580 = vmatpush.xpose.msra.mxu0 %v1558
        %3581 = vmatpush.xpose.msra.mxu0 %v1526
        %3582 = vmatpush.xpose.msra.mxu0 %v1494
        %3583 = vmatpush.xpose.msra.mxu0 %v1462
        %3584 = vmatpush.xpose.msra.mxu0 %v1430
        %3585 = vmatpush.xpose.msra.mxu0 %v1398
        %3586 = vmatpush.xpose.msra.mxu0 %v1366
        %3587 = vmatpush.xpose.msra.mxu0 %v1334
        %3588 = vmatpush.xpose.msra.mxu0 %v1302
        %3589 = vmatpush.xpose.msra.mxu0 %v1270
        %3590 = vmatmul.f32.gmra.mxu0 %v214
        %v3591 = vpop.f32.mrf.mxu0
        %v3592 = vadd.f32 0.0, %v3591
        %3593 = vdwg.mxu0
        %3594 = vmatpush.xpose.msra.mxu0 %v1751
        %3595 = vmatpush.xpose.msra.mxu0 %v1719
        %3596 = vmatpush.xpose.msra.mxu0 %v1687
        %3597 = vmatpush.xpose.msra.mxu0 %v1655
        %3598 = vmatpush.xpose.msra.mxu0 %v1623
        %3599 = vmatpush.xpose.msra.mxu0 %v1591
        %3600 = vmatpush.xpose.msra.mxu0 %v1559
        %3601 = vmatpush.xpose.msra.mxu0 %v1527
        %3602 = vmatpush.xpose.msra.mxu0 %v1495
        %3603 = vmatpush.xpose.msra.mxu0 %v1463
        %3604 = vmatpush.xpose.msra.mxu0 %v1431
        %3605 = vmatpush.xpose.msra.mxu0 %v1399
        %3606 = vmatpush.xpose.msra.mxu0 %v1367
        %3607 = vmatpush.xpose.msra.mxu0 %v1335
        %3608 = vmatpush.xpose.msra.mxu0 %v1303
        %3609 = vmatpush.xpose.msra.mxu0 %v1271
        %3610 = vmatmul.f32.gmra.mxu0 %v215
        %v3611 = vpop.f32.mrf.mxu0
        %v3612 = vadd.f32 %v3592, %v3611
        %3613 = vdwg.mxu0
        %3614 = vmatpush.xpose.msra.mxu0 %v1752
        %3615 = vmatpush.xpose.msra.mxu0 %v1720
        %3616 = vmatpush.xpose.msra.mxu0 %v1688
        %3617 = vmatpush.xpose.msra.mxu0 %v1656
        %3618 = vmatpush.xpose.msra.mxu0 %v1624
        %3619 = vmatpush.xpose.msra.mxu0 %v1592
        %3620 = vmatpush.xpose.msra.mxu0 %v1560
        %3621 = vmatpush.xpose.msra.mxu0 %v1528
        %3622 = vmatpush.xpose.msra.mxu0 %v1496
        %3623 = vmatpush.xpose.msra.mxu0 %v1464
        %3624 = vmatpush.xpose.msra.mxu0 %v1432
        %3625 = vmatpush.xpose.msra.mxu0 %v1400
        %3626 = vmatpush.xpose.msra.mxu0 %v1368
        %3627 = vmatpush.xpose.msra.mxu0 %v1336
        %3628 = vmatpush.xpose.msra.mxu0 %v1304
        %3629 = vmatpush.xpose.msra.mxu0 %v1272
        %3630 = vmatmul.f32.gmra.mxu0 %v216
        %v3631 = vpop.f32.mrf.mxu0
        %v3632 = vadd.f32 %v3612, %v3631
        %3633 = vdwg.mxu0
        %3634 = vmatpush.xpose.msra.mxu0 %v1753
        %3635 = vmatpush.xpose.msra.mxu0 %v1721
        %3636 = vmatpush.xpose.msra.mxu0 %v1689
        %3637 = vmatpush.xpose.msra.mxu0 %v1657
        %3638 = vmatpush.xpose.msra.mxu0 %v1625
        %3639 = vmatpush.xpose.msra.mxu0 %v1593
        %3640 = vmatpush.xpose.msra.mxu0 %v1561
        %3641 = vmatpush.xpose.msra.mxu0 %v1529
        %3642 = vmatpush.xpose.msra.mxu0 %v1497
        %3643 = vmatpush.xpose.msra.mxu0 %v1465
        %3644 = vmatpush.xpose.msra.mxu0 %v1433
        %3645 = vmatpush.xpose.msra.mxu0 %v1401
        %3646 = vmatpush.xpose.msra.mxu0 %v1369
        %3647 = vmatpush.xpose.msra.mxu0 %v1337
        %3648 = vmatpush.xpose.msra.mxu0 %v1305
        %3649 = vmatpush.xpose.msra.mxu0 %v1273
        %3650 = vmatmul.f32.gmra.mxu0 %v217
        %v3651 = vpop.f32.mrf.mxu0
        %v3652 = vadd.f32 %v3632, %v3651
        %3653 = vdwg.mxu0
        %3654 = vmatpush.xpose.msra.mxu0 %v1754
        %3655 = vmatpush.xpose.msra.mxu0 %v1722
        %3656 = vmatpush.xpose.msra.mxu0 %v1690
        %3657 = vmatpush.xpose.msra.mxu0 %v1658
        %3658 = vmatpush.xpose.msra.mxu0 %v1626
        %3659 = vmatpush.xpose.msra.mxu0 %v1594
        %3660 = vmatpush.xpose.msra.mxu0 %v1562
        %3661 = vmatpush.xpose.msra.mxu0 %v1530
        %3662 = vmatpush.xpose.msra.mxu0 %v1498
        %3663 = vmatpush.xpose.msra.mxu0 %v1466
        %3664 = vmatpush.xpose.msra.mxu0 %v1434
        %3665 = vmatpush.xpose.msra.mxu0 %v1402
        %3666 = vmatpush.xpose.msra.mxu0 %v1370
        %3667 = vmatpush.xpose.msra.mxu0 %v1338
        %3668 = vmatpush.xpose.msra.mxu0 %v1306
        %3669 = vmatpush.xpose.msra.mxu0 %v1274
        %3670 = vmatmul.f32.gmra.mxu0 %v218
        %v3671 = vpop.f32.mrf.mxu0
        %v3672 = vadd.f32 %v3652, %v3671
        %3673 = vdwg.mxu0
        %3674 = vmatpush.xpose.msra.mxu0 %v1755
        %3675 = vmatpush.xpose.msra.mxu0 %v1723
        %3676 = vmatpush.xpose.msra.mxu0 %v1691
        %3677 = vmatpush.xpose.msra.mxu0 %v1659
        %3678 = vmatpush.xpose.msra.mxu0 %v1627
        %3679 = vmatpush.xpose.msra.mxu0 %v1595
        %3680 = vmatpush.xpose.msra.mxu0 %v1563
        %3681 = vmatpush.xpose.msra.mxu0 %v1531
        %3682 = vmatpush.xpose.msra.mxu0 %v1499
        %3683 = vmatpush.xpose.msra.mxu0 %v1467
        %3684 = vmatpush.xpose.msra.mxu0 %v1435
        %3685 = vmatpush.xpose.msra.mxu0 %v1403
        %3686 = vmatpush.xpose.msra.mxu0 %v1371
        %3687 = vmatpush.xpose.msra.mxu0 %v1339
        %3688 = vmatpush.xpose.msra.mxu0 %v1307
        %3689 = vmatpush.xpose.msra.mxu0 %v1275
        %3690 = vmatmul.f32.gmra.mxu0 %v219
        %v3691 = vpop.f32.mrf.mxu0
        %v3692 = vadd.f32 %v3672, %v3691
        %3693 = vdwg.mxu0
        %3694 = vmatpush.xpose.msra.mxu0 %v1756
        %3695 = vmatpush.xpose.msra.mxu0 %v1724
        %3696 = vmatpush.xpose.msra.mxu0 %v1692
        %3697 = vmatpush.xpose.msra.mxu0 %v1660
        %3698 = vmatpush.xpose.msra.mxu0 %v1628
        %3699 = vmatpush.xpose.msra.mxu0 %v1596
        %3700 = vmatpush.xpose.msra.mxu0 %v1564
        %3701 = vmatpush.xpose.msra.mxu0 %v1532
        %3702 = vmatpush.xpose.msra.mxu0 %v1500
        %3703 = vmatpush.xpose.msra.mxu0 %v1468
        %3704 = vmatpush.xpose.msra.mxu0 %v1436
        %3705 = vmatpush.xpose.msra.mxu0 %v1404
        %3706 = vmatpush.xpose.msra.mxu0 %v1372
        %3707 = vmatpush.xpose.msra.mxu0 %v1340
        %3708 = vmatpush.xpose.msra.mxu0 %v1308
        %3709 = vmatpush.xpose.msra.mxu0 %v1276
        %3710 = vmatmul.f32.gmra.mxu0 %v220
        %v3711 = vpop.f32.mrf.mxu0
        %v3712 = vadd.f32 %v3692, %v3711
        %3713 = vdwg.mxu0
        %3714 = vmatpush.xpose.msra.mxu0 %v1757
        %3715 = vmatpush.xpose.msra.mxu0 %v1725
        %3716 = vmatpush.xpose.msra.mxu0 %v1693
        %3717 = vmatpush.xpose.msra.mxu0 %v1661
        %3718 = vmatpush.xpose.msra.mxu0 %v1629
        %3719 = vmatpush.xpose.msra.mxu0 %v1597
        %3720 = vmatpush.xpose.msra.mxu0 %v1565
        %3721 = vmatpush.xpose.msra.mxu0 %v1533
        %3722 = vmatpush.xpose.msra.mxu0 %v1501
        %3723 = vmatpush.xpose.msra.mxu0 %v1469
        %3724 = vmatpush.xpose.msra.mxu0 %v1437
        %3725 = vmatpush.xpose.msra.mxu0 %v1405
        %3726 = vmatpush.xpose.msra.mxu0 %v1373
        %3727 = vmatpush.xpose.msra.mxu0 %v1341
        %3728 = vmatpush.xpose.msra.mxu0 %v1309
        %3729 = vmatpush.xpose.msra.mxu0 %v1277
        %3730 = vmatmul.f32.gmra.mxu0 %v221
        %v3731 = vpop.f32.mrf.mxu0
        %v3732 = vadd.f32 %v3712, %v3731
        %3733 = vdwg.mxu0
        %3734 = vmatpush.xpose.msra.mxu0 %v1758
        %3735 = vmatpush.xpose.msra.mxu0 %v1726
        %3736 = vmatpush.xpose.msra.mxu0 %v1694
        %3737 = vmatpush.xpose.msra.mxu0 %v1662
        %3738 = vmatpush.xpose.msra.mxu0 %v1630
        %3739 = vmatpush.xpose.msra.mxu0 %v1598
        %3740 = vmatpush.xpose.msra.mxu0 %v1566
        %3741 = vmatpush.xpose.msra.mxu0 %v1534
        %3742 = vmatpush.xpose.msra.mxu0 %v1502
        %3743 = vmatpush.xpose.msra.mxu0 %v1470
        %3744 = vmatpush.xpose.msra.mxu0 %v1438
        %3745 = vmatpush.xpose.msra.mxu0 %v1406
        %3746 = vmatpush.xpose.msra.mxu0 %v1374
        %3747 = vmatpush.xpose.msra.mxu0 %v1342
        %3748 = vmatpush.xpose.msra.mxu0 %v1310
        %3749 = vmatpush.xpose.msra.mxu0 %v1278
        %3750 = vmatmul.f32.gmra.mxu0 %v222
        %v3751 = vpop.f32.mrf.mxu0
        %v3752 = vadd.f32 %v3732, %v3751
        %3753 = vdwg.mxu0
        %3754 = vmatpush.xpose.msra.mxu0 %v1759
        %3755 = vmatpush.xpose.msra.mxu0 %v1727
        %3756 = vmatpush.xpose.msra.mxu0 %v1695
        %3757 = vmatpush.xpose.msra.mxu0 %v1663
        %3758 = vmatpush.xpose.msra.mxu0 %v1631
        %3759 = vmatpush.xpose.msra.mxu0 %v1599
        %3760 = vmatpush.xpose.msra.mxu0 %v1567
        %3761 = vmatpush.xpose.msra.mxu0 %v1535
        %3762 = vmatpush.xpose.msra.mxu0 %v1503
        %3763 = vmatpush.xpose.msra.mxu0 %v1471
        %3764 = vmatpush.xpose.msra.mxu0 %v1439
        %3765 = vmatpush.xpose.msra.mxu0 %v1407
        %3766 = vmatpush.xpose.msra.mxu0 %v1375
        %3767 = vmatpush.xpose.msra.mxu0 %v1343
        %3768 = vmatpush.xpose.msra.mxu0 %v1311
        %3769 = vmatpush.xpose.msra.mxu0 %v1279
        %3770 = vmatmul.f32.gmra.mxu0 %v223
        %v3771 = vpop.f32.mrf.mxu0
        %v3772 = vadd.f32 %v3752, %v3771
        %3773 = vdwg.mxu0
        %3774 = vmatpush.xpose.msra.mxu0 %v1760
        %3775 = vmatpush.xpose.msra.mxu0 %v1728
        %3776 = vmatpush.xpose.msra.mxu0 %v1696
        %3777 = vmatpush.xpose.msra.mxu0 %v1664
        %3778 = vmatpush.xpose.msra.mxu0 %v1632
        %3779 = vmatpush.xpose.msra.mxu0 %v1600
        %3780 = vmatpush.xpose.msra.mxu0 %v1568
        %3781 = vmatpush.xpose.msra.mxu0 %v1536
        %3782 = vmatpush.xpose.msra.mxu0 %v1504
        %3783 = vmatpush.xpose.msra.mxu0 %v1472
        %3784 = vmatpush.xpose.msra.mxu0 %v1440
        %3785 = vmatpush.xpose.msra.mxu0 %v1408
        %3786 = vmatpush.xpose.msra.mxu0 %v1376
        %3787 = vmatpush.xpose.msra.mxu0 %v1344
        %3788 = vmatpush.xpose.msra.mxu0 %v1312
        %3789 = vmatpush.xpose.msra.mxu0 %v1280
        %3790 = vmatmul.f32.gmra.mxu0 %v224
        %v3791 = vpop.f32.mrf.mxu0
        %v3792 = vadd.f32 %v3772, %v3791
        %3793 = vdwg.mxu0
        %3794 = vmatpush.xpose.msra.mxu0 %v1761
        %3795 = vmatpush.xpose.msra.mxu0 %v1729
        %3796 = vmatpush.xpose.msra.mxu0 %v1697
        %3797 = vmatpush.xpose.msra.mxu0 %v1665
        %3798 = vmatpush.xpose.msra.mxu0 %v1633
        %3799 = vmatpush.xpose.msra.mxu0 %v1601
        %3800 = vmatpush.xpose.msra.mxu0 %v1569
        %3801 = vmatpush.xpose.msra.mxu0 %v1537
        %3802 = vmatpush.xpose.msra.mxu0 %v1505
        %3803 = vmatpush.xpose.msra.mxu0 %v1473
        %3804 = vmatpush.xpose.msra.mxu0 %v1441
        %3805 = vmatpush.xpose.msra.mxu0 %v1409
        %3806 = vmatpush.xpose.msra.mxu0 %v1377
        %3807 = vmatpush.xpose.msra.mxu0 %v1345
        %3808 = vmatpush.xpose.msra.mxu0 %v1313
        %3809 = vmatpush.xpose.msra.mxu0 %v1281
        %3810 = vmatmul.f32.gmra.mxu0 %v225
        %v3811 = vpop.f32.mrf.mxu0
        %v3812 = vadd.f32 %v3792, %v3811
        %3813 = vdwg.mxu0
        %3814 = vmatpush.xpose.msra.mxu0 %v1762
        %3815 = vmatpush.xpose.msra.mxu0 %v1730
        %3816 = vmatpush.xpose.msra.mxu0 %v1698
        %3817 = vmatpush.xpose.msra.mxu0 %v1666
        %3818 = vmatpush.xpose.msra.mxu0 %v1634
        %3819 = vmatpush.xpose.msra.mxu0 %v1602
        %3820 = vmatpush.xpose.msra.mxu0 %v1570
        %3821 = vmatpush.xpose.msra.mxu0 %v1538
        %3822 = vmatpush.xpose.msra.mxu0 %v1506
        %3823 = vmatpush.xpose.msra.mxu0 %v1474
        %3824 = vmatpush.xpose.msra.mxu0 %v1442
        %3825 = vmatpush.xpose.msra.mxu0 %v1410
        %3826 = vmatpush.xpose.msra.mxu0 %v1378
        %3827 = vmatpush.xpose.msra.mxu0 %v1346
        %3828 = vmatpush.xpose.msra.mxu0 %v1314
        %3829 = vmatpush.xpose.msra.mxu0 %v1282
        %3830 = vmatmul.f32.gmra.mxu0 %v226
        %v3831 = vpop.f32.mrf.mxu0
        %v3832 = vadd.f32 %v3812, %v3831
        %3833 = vdwg.mxu0
        %3834 = vmatpush.xpose.msra.mxu0 %v1763
        %3835 = vmatpush.xpose.msra.mxu0 %v1731
        %3836 = vmatpush.xpose.msra.mxu0 %v1699
        %3837 = vmatpush.xpose.msra.mxu0 %v1667
        %3838 = vmatpush.xpose.msra.mxu0 %v1635
        %3839 = vmatpush.xpose.msra.mxu0 %v1603
        %3840 = vmatpush.xpose.msra.mxu0 %v1571
        %3841 = vmatpush.xpose.msra.mxu0 %v1539
        %3842 = vmatpush.xpose.msra.mxu0 %v1507
        %3843 = vmatpush.xpose.msra.mxu0 %v1475
        %3844 = vmatpush.xpose.msra.mxu0 %v1443
        %3845 = vmatpush.xpose.msra.mxu0 %v1411
        %3846 = vmatpush.xpose.msra.mxu0 %v1379
        %3847 = vmatpush.xpose.msra.mxu0 %v1347
        %3848 = vmatpush.xpose.msra.mxu0 %v1315
        %3849 = vmatpush.xpose.msra.mxu0 %v1283
        %3850 = vmatmul.f32.gmra.mxu0 %v227
        %v3851 = vpop.f32.mrf.mxu0
        %v3852 = vadd.f32 %v3832, %v3851
        %3853 = vdwg.mxu0
        %3854 = vmatpush.xpose.msra.mxu0 %v1764
        %3855 = vmatpush.xpose.msra.mxu0 %v1732
        %3856 = vmatpush.xpose.msra.mxu0 %v1700
        %3857 = vmatpush.xpose.msra.mxu0 %v1668
        %3858 = vmatpush.xpose.msra.mxu0 %v1636
        %3859 = vmatpush.xpose.msra.mxu0 %v1604
        %3860 = vmatpush.xpose.msra.mxu0 %v1572
        %3861 = vmatpush.xpose.msra.mxu0 %v1540
        %3862 = vmatpush.xpose.msra.mxu0 %v1508
        %3863 = vmatpush.xpose.msra.mxu0 %v1476
        %3864 = vmatpush.xpose.msra.mxu0 %v1444
        %3865 = vmatpush.xpose.msra.mxu0 %v1412
        %3866 = vmatpush.xpose.msra.mxu0 %v1380
        %3867 = vmatpush.xpose.msra.mxu0 %v1348
        %3868 = vmatpush.xpose.msra.mxu0 %v1316
        %3869 = vmatpush.xpose.msra.mxu0 %v1284
        %3870 = vmatmul.f32.gmra.mxu0 %v228
        %v3871 = vpop.f32.mrf.mxu0
        %v3872 = vadd.f32 %v3852, %v3871
        %3873 = vdwg.mxu0
        %3874 = vmatpush.xpose.msra.mxu0 %v1765
        %3875 = vmatpush.xpose.msra.mxu0 %v1733
        %3876 = vmatpush.xpose.msra.mxu0 %v1701
        %3877 = vmatpush.xpose.msra.mxu0 %v1669
        %3878 = vmatpush.xpose.msra.mxu0 %v1637
        %3879 = vmatpush.xpose.msra.mxu0 %v1605
        %3880 = vmatpush.xpose.msra.mxu0 %v1573
        %3881 = vmatpush.xpose.msra.mxu0 %v1541
        %3882 = vmatpush.xpose.msra.mxu0 %v1509
        %3883 = vmatpush.xpose.msra.mxu0 %v1477
        %3884 = vmatpush.xpose.msra.mxu0 %v1445
        %3885 = vmatpush.xpose.msra.mxu0 %v1413
        %3886 = vmatpush.xpose.msra.mxu0 %v1381
        %3887 = vmatpush.xpose.msra.mxu0 %v1349
        %3888 = vmatpush.xpose.msra.mxu0 %v1317
        %3889 = vmatpush.xpose.msra.mxu0 %v1285
        %3890 = vmatmul.f32.gmra.mxu0 %v229
        %v3891 = vpop.f32.mrf.mxu0
        %v3892 = vadd.f32 %v3872, %v3891
        %3893 = vdwg.mxu0
        %3894 = vmatpush.xpose.msra.mxu0 %v1766
        %3895 = vmatpush.xpose.msra.mxu0 %v1734
        %3896 = vmatpush.xpose.msra.mxu0 %v1702
        %3897 = vmatpush.xpose.msra.mxu0 %v1670
        %3898 = vmatpush.xpose.msra.mxu0 %v1638
        %3899 = vmatpush.xpose.msra.mxu0 %v1606
        %3900 = vmatpush.xpose.msra.mxu0 %v1574
        %3901 = vmatpush.xpose.msra.mxu0 %v1542
        %3902 = vmatpush.xpose.msra.mxu0 %v1510
        %3903 = vmatpush.xpose.msra.mxu0 %v1478
        %3904 = vmatpush.xpose.msra.mxu0 %v1446
        %3905 = vmatpush.xpose.msra.mxu0 %v1414
        %3906 = vmatpush.xpose.msra.mxu0 %v1382
        %3907 = vmatpush.xpose.msra.mxu0 %v1350
        %3908 = vmatpush.xpose.msra.mxu0 %v1318
        %3909 = vmatpush.xpose.msra.mxu0 %v1286
        %3910 = vmatmul.f32.gmra.mxu0 %v230
        %v3911 = vpop.f32.mrf.mxu0
        %v3912 = vadd.f32 %v3892, %v3911
        %3913 = vdwg.mxu0
        %3914 = vmatpush.xpose.msra.mxu0 %v1767
        %3915 = vmatpush.xpose.msra.mxu0 %v1735
        %3916 = vmatpush.xpose.msra.mxu0 %v1703
        %3917 = vmatpush.xpose.msra.mxu0 %v1671
        %3918 = vmatpush.xpose.msra.mxu0 %v1639
        %3919 = vmatpush.xpose.msra.mxu0 %v1607
        %3920 = vmatpush.xpose.msra.mxu0 %v1575
        %3921 = vmatpush.xpose.msra.mxu0 %v1543
        %3922 = vmatpush.xpose.msra.mxu0 %v1511
        %3923 = vmatpush.xpose.msra.mxu0 %v1479
        %3924 = vmatpush.xpose.msra.mxu0 %v1447
        %3925 = vmatpush.xpose.msra.mxu0 %v1415
        %3926 = vmatpush.xpose.msra.mxu0 %v1383
        %3927 = vmatpush.xpose.msra.mxu0 %v1351
        %3928 = vmatpush.xpose.msra.mxu0 %v1319
        %3929 = vmatpush.xpose.msra.mxu0 %v1287
        %3930 = vmatmul.f32.gmra.mxu0 %v231
        %v3931 = vpop.f32.mrf.mxu0
        %v3932 = vadd.f32 %v3912, %v3931
        %3933 = vdwg.mxu0
        %3934 = vmatpush.xpose.msra.mxu0 %v1768
        %3935 = vmatpush.xpose.msra.mxu0 %v1736
        %3936 = vmatpush.xpose.msra.mxu0 %v1704
        %3937 = vmatpush.xpose.msra.mxu0 %v1672
        %3938 = vmatpush.xpose.msra.mxu0 %v1640
        %3939 = vmatpush.xpose.msra.mxu0 %v1608
        %3940 = vmatpush.xpose.msra.mxu0 %v1576
        %3941 = vmatpush.xpose.msra.mxu0 %v1544
        %3942 = vmatpush.xpose.msra.mxu0 %v1512
        %3943 = vmatpush.xpose.msra.mxu0 %v1480
        %3944 = vmatpush.xpose.msra.mxu0 %v1448
        %3945 = vmatpush.xpose.msra.mxu0 %v1416
        %3946 = vmatpush.xpose.msra.mxu0 %v1384
        %3947 = vmatpush.xpose.msra.mxu0 %v1352
        %3948 = vmatpush.xpose.msra.mxu0 %v1320
        %3949 = vmatpush.xpose.msra.mxu0 %v1288
        %3950 = vmatmul.f32.gmra.mxu0 %v232
        %v3951 = vpop.f32.mrf.mxu0
        %v3952 = vadd.f32 %v3932, %v3951
        %3953 = vdwg.mxu0
        %3954 = vmatpush.xpose.msra.mxu0 %v1769
        %3955 = vmatpush.xpose.msra.mxu0 %v1737
        %3956 = vmatpush.xpose.msra.mxu0 %v1705
        %3957 = vmatpush.xpose.msra.mxu0 %v1673
        %3958 = vmatpush.xpose.msra.mxu0 %v1641
        %3959 = vmatpush.xpose.msra.mxu0 %v1609
        %3960 = vmatpush.xpose.msra.mxu0 %v1577
        %3961 = vmatpush.xpose.msra.mxu0 %v1545
        %3962 = vmatpush.xpose.msra.mxu0 %v1513
        %3963 = vmatpush.xpose.msra.mxu0 %v1481
        %3964 = vmatpush.xpose.msra.mxu0 %v1449
        %3965 = vmatpush.xpose.msra.mxu0 %v1417
        %3966 = vmatpush.xpose.msra.mxu0 %v1385
        %3967 = vmatpush.xpose.msra.mxu0 %v1353
        %3968 = vmatpush.xpose.msra.mxu0 %v1321
        %3969 = vmatpush.xpose.msra.mxu0 %v1289
        %3970 = vmatmul.f32.gmra.mxu0 %v233
        %v3971 = vpop.f32.mrf.mxu0
        %v3972 = vadd.f32 %v3952, %v3971
        %3973 = vdwg.mxu0
        %3974 = vmatpush.xpose.msra.mxu0 %v1770
        %3975 = vmatpush.xpose.msra.mxu0 %v1738
        %3976 = vmatpush.xpose.msra.mxu0 %v1706
        %3977 = vmatpush.xpose.msra.mxu0 %v1674
        %3978 = vmatpush.xpose.msra.mxu0 %v1642
        %3979 = vmatpush.xpose.msra.mxu0 %v1610
        %3980 = vmatpush.xpose.msra.mxu0 %v1578
        %3981 = vmatpush.xpose.msra.mxu0 %v1546
        %3982 = vmatpush.xpose.msra.mxu0 %v1514
        %3983 = vmatpush.xpose.msra.mxu0 %v1482
        %3984 = vmatpush.xpose.msra.mxu0 %v1450
        %3985 = vmatpush.xpose.msra.mxu0 %v1418
        %3986 = vmatpush.xpose.msra.mxu0 %v1386
        %3987 = vmatpush.xpose.msra.mxu0 %v1354
        %3988 = vmatpush.xpose.msra.mxu0 %v1322
        %3989 = vmatpush.xpose.msra.mxu0 %v1290
        %3990 = vmatmul.f32.gmra.mxu0 %v234
        %v3991 = vpop.f32.mrf.mxu0
        %v3992 = vadd.f32 %v3972, %v3991
        %3993 = vdwg.mxu0
        %3994 = vmatpush.xpose.msra.mxu0 %v1771
        %3995 = vmatpush.xpose.msra.mxu0 %v1739
        %3996 = vmatpush.xpose.msra.mxu0 %v1707
        %3997 = vmatpush.xpose.msra.mxu0 %v1675
        %3998 = vmatpush.xpose.msra.mxu0 %v1643
        %3999 = vmatpush.xpose.msra.mxu0 %v1611
        %4000 = vmatpush.xpose.msra.mxu0 %v1579
        %4001 = vmatpush.xpose.msra.mxu0 %v1547
        %4002 = vmatpush.xpose.msra.mxu0 %v1515
        %4003 = vmatpush.xpose.msra.mxu0 %v1483
        %4004 = vmatpush.xpose.msra.mxu0 %v1451
        %4005 = vmatpush.xpose.msra.mxu0 %v1419
        %4006 = vmatpush.xpose.msra.mxu0 %v1387
        %4007 = vmatpush.xpose.msra.mxu0 %v1355
        %4008 = vmatpush.xpose.msra.mxu0 %v1323
        %4009 = vmatpush.xpose.msra.mxu0 %v1291
        %4010 = vmatmul.f32.gmra.mxu0 %v235
        %v4011 = vpop.f32.mrf.mxu0
        %v4012 = vadd.f32 %v3992, %v4011
        %4013 = vdwg.mxu0
        %4014 = vmatpush.xpose.msra.mxu0 %v1772
        %4015 = vmatpush.xpose.msra.mxu0 %v1740
        %4016 = vmatpush.xpose.msra.mxu0 %v1708
        %4017 = vmatpush.xpose.msra.mxu0 %v1676
        %4018 = vmatpush.xpose.msra.mxu0 %v1644
        %4019 = vmatpush.xpose.msra.mxu0 %v1612
        %4020 = vmatpush.xpose.msra.mxu0 %v1580
        %4021 = vmatpush.xpose.msra.mxu0 %v1548
        %4022 = vmatpush.xpose.msra.mxu0 %v1516
        %4023 = vmatpush.xpose.msra.mxu0 %v1484
        %4024 = vmatpush.xpose.msra.mxu0 %v1452
        %4025 = vmatpush.xpose.msra.mxu0 %v1420
        %4026 = vmatpush.xpose.msra.mxu0 %v1388
        %4027 = vmatpush.xpose.msra.mxu0 %v1356
        %4028 = vmatpush.xpose.msra.mxu0 %v1324
        %4029 = vmatpush.xpose.msra.mxu0 %v1292
        %4030 = vmatmul.f32.gmra.mxu0 %v236
        %v4031 = vpop.f32.mrf.mxu0
        %v4032 = vadd.f32 %v4012, %v4031
        %4033 = vdwg.mxu0
        %4034 = vmatpush.xpose.msra.mxu0 %v1773
        %4035 = vmatpush.xpose.msra.mxu0 %v1741
        %4036 = vmatpush.xpose.msra.mxu0 %v1709
        %4037 = vmatpush.xpose.msra.mxu0 %v1677
        %4038 = vmatpush.xpose.msra.mxu0 %v1645
        %4039 = vmatpush.xpose.msra.mxu0 %v1613
        %4040 = vmatpush.xpose.msra.mxu0 %v1581
        %4041 = vmatpush.xpose.msra.mxu0 %v1549
        %4042 = vmatpush.xpose.msra.mxu0 %v1517
        %4043 = vmatpush.xpose.msra.mxu0 %v1485
        %4044 = vmatpush.xpose.msra.mxu0 %v1453
        %4045 = vmatpush.xpose.msra.mxu0 %v1421
        %4046 = vmatpush.xpose.msra.mxu0 %v1389
        %4047 = vmatpush.xpose.msra.mxu0 %v1357
        %4048 = vmatpush.xpose.msra.mxu0 %v1325
        %4049 = vmatpush.xpose.msra.mxu0 %v1293
        %4050 = vmatmul.f32.gmra.mxu0 %v237
        %v4051 = vpop.f32.mrf.mxu0
        %v4052 = vadd.f32 %v4032, %v4051
        %4053 = vdwg.mxu0
        %4054 = vmatpush.xpose.msra.mxu0 %v1774
        %4055 = vmatpush.xpose.msra.mxu0 %v1742
        %4056 = vmatpush.xpose.msra.mxu0 %v1710
        %4057 = vmatpush.xpose.msra.mxu0 %v1678
        %4058 = vmatpush.xpose.msra.mxu0 %v1646
        %4059 = vmatpush.xpose.msra.mxu0 %v1614
        %4060 = vmatpush.xpose.msra.mxu0 %v1582
        %4061 = vmatpush.xpose.msra.mxu0 %v1550
        %4062 = vmatpush.xpose.msra.mxu0 %v1518
        %4063 = vmatpush.xpose.msra.mxu0 %v1486
        %4064 = vmatpush.xpose.msra.mxu0 %v1454
        %4065 = vmatpush.xpose.msra.mxu0 %v1422
        %4066 = vmatpush.xpose.msra.mxu0 %v1390
        %4067 = vmatpush.xpose.msra.mxu0 %v1358
        %4068 = vmatpush.xpose.msra.mxu0 %v1326
        %4069 = vmatpush.xpose.msra.mxu0 %v1294
        %4070 = vmatmul.f32.gmra.mxu0 %v238
        %v4071 = vpop.f32.mrf.mxu0
        %v4072 = vadd.f32 %v4052, %v4071
        %4073 = vdwg.mxu0
        %4074 = vmatpush.xpose.msra.mxu0 %v1775
        %4075 = vmatpush.xpose.msra.mxu0 %v1743
        %4076 = vmatpush.xpose.msra.mxu0 %v1711
        %4077 = vmatpush.xpose.msra.mxu0 %v1679
        %4078 = vmatpush.xpose.msra.mxu0 %v1647
        %4079 = vmatpush.xpose.msra.mxu0 %v1615
        %4080 = vmatpush.xpose.msra.mxu0 %v1583
        %4081 = vmatpush.xpose.msra.mxu0 %v1551
        %4082 = vmatpush.xpose.msra.mxu0 %v1519
        %4083 = vmatpush.xpose.msra.mxu0 %v1487
        %4084 = vmatpush.xpose.msra.mxu0 %v1455
        %4085 = vmatpush.xpose.msra.mxu0 %v1423
        %4086 = vmatpush.xpose.msra.mxu0 %v1391
        %4087 = vmatpush.xpose.msra.mxu0 %v1359
        %4088 = vmatpush.xpose.msra.mxu0 %v1327
        %4089 = vmatpush.xpose.msra.mxu0 %v1295
        %4090 = vmatmul.f32.gmra.mxu0 %v239
        %v4091 = vpop.f32.mrf.mxu0
        %v4092 = vadd.f32 %v4072, %v4091
        %4093 = vdwg.mxu0
        %4094 = vmatpush.xpose.msra.mxu0 %v1776
        %4095 = vmatpush.xpose.msra.mxu0 %v1744
        %4096 = vmatpush.xpose.msra.mxu0 %v1712
        %4097 = vmatpush.xpose.msra.mxu0 %v1680
        %4098 = vmatpush.xpose.msra.mxu0 %v1648
        %4099 = vmatpush.xpose.msra.mxu0 %v1616
        %4100 = vmatpush.xpose.msra.mxu0 %v1584
        %4101 = vmatpush.xpose.msra.mxu0 %v1552
        %4102 = vmatpush.xpose.msra.mxu0 %v1520
        %4103 = vmatpush.xpose.msra.mxu0 %v1488
        %4104 = vmatpush.xpose.msra.mxu0 %v1456
        %4105 = vmatpush.xpose.msra.mxu0 %v1424
        %4106 = vmatpush.xpose.msra.mxu0 %v1392
        %4107 = vmatpush.xpose.msra.mxu0 %v1360
        %4108 = vmatpush.xpose.msra.mxu0 %v1328
        %4109 = vmatpush.xpose.msra.mxu0 %v1296
        %4110 = vmatmul.f32.gmra.mxu0 %v240
        %v4111 = vpop.f32.mrf.mxu0
        %v4112 = vadd.f32 %v4092, %v4111
        %4113 = vdwg.mxu0
        %4114 = vmatpush.xpose.msra.mxu0 %v1777
        %4115 = vmatpush.xpose.msra.mxu0 %v1745
        %4116 = vmatpush.xpose.msra.mxu0 %v1713
        %4117 = vmatpush.xpose.msra.mxu0 %v1681
        %4118 = vmatpush.xpose.msra.mxu0 %v1649
        %4119 = vmatpush.xpose.msra.mxu0 %v1617
        %4120 = vmatpush.xpose.msra.mxu0 %v1585
        %4121 = vmatpush.xpose.msra.mxu0 %v1553
        %4122 = vmatpush.xpose.msra.mxu0 %v1521
        %4123 = vmatpush.xpose.msra.mxu0 %v1489
        %4124 = vmatpush.xpose.msra.mxu0 %v1457
        %4125 = vmatpush.xpose.msra.mxu0 %v1425
        %4126 = vmatpush.xpose.msra.mxu0 %v1393
        %4127 = vmatpush.xpose.msra.mxu0 %v1361
        %4128 = vmatpush.xpose.msra.mxu0 %v1329
        %4129 = vmatpush.xpose.msra.mxu0 %v1297
        %4130 = vmatmul.f32.gmra.mxu0 %v241
        %v4131 = vpop.f32.mrf.mxu0
        %v4132 = vadd.f32 %v4112, %v4131
        %4133 = vdwg.mxu0
        %4134 = vmatpush.xpose.msra.mxu0 %v1778
        %4135 = vmatpush.xpose.msra.mxu0 %v1746
        %4136 = vmatpush.xpose.msra.mxu0 %v1714
        %4137 = vmatpush.xpose.msra.mxu0 %v1682
        %4138 = vmatpush.xpose.msra.mxu0 %v1650
        %4139 = vmatpush.xpose.msra.mxu0 %v1618
        %4140 = vmatpush.xpose.msra.mxu0 %v1586
        %4141 = vmatpush.xpose.msra.mxu0 %v1554
        %4142 = vmatpush.xpose.msra.mxu0 %v1522
        %4143 = vmatpush.xpose.msra.mxu0 %v1490
        %4144 = vmatpush.xpose.msra.mxu0 %v1458
        %4145 = vmatpush.xpose.msra.mxu0 %v1426
        %4146 = vmatpush.xpose.msra.mxu0 %v1394
        %4147 = vmatpush.xpose.msra.mxu0 %v1362
        %4148 = vmatpush.xpose.msra.mxu0 %v1330
        %4149 = vmatpush.xpose.msra.mxu0 %v1298
        %4150 = vmatmul.f32.gmra.mxu0 %v242
        %v4151 = vpop.f32.mrf.mxu0
        %v4152 = vadd.f32 %v4132, %v4151
        %4153 = vdwg.mxu0
        %4154 = vmatpush.xpose.msra.mxu0 %v1779
        %4155 = vmatpush.xpose.msra.mxu0 %v1747
        %4156 = vmatpush.xpose.msra.mxu0 %v1715
        %4157 = vmatpush.xpose.msra.mxu0 %v1683
        %4158 = vmatpush.xpose.msra.mxu0 %v1651
        %4159 = vmatpush.xpose.msra.mxu0 %v1619
        %4160 = vmatpush.xpose.msra.mxu0 %v1587
        %4161 = vmatpush.xpose.msra.mxu0 %v1555
        %4162 = vmatpush.xpose.msra.mxu0 %v1523
        %4163 = vmatpush.xpose.msra.mxu0 %v1491
        %4164 = vmatpush.xpose.msra.mxu0 %v1459
        %4165 = vmatpush.xpose.msra.mxu0 %v1427
        %4166 = vmatpush.xpose.msra.mxu0 %v1395
        %4167 = vmatpush.xpose.msra.mxu0 %v1363
        %4168 = vmatpush.xpose.msra.mxu0 %v1331
        %4169 = vmatpush.xpose.msra.mxu0 %v1299
        %4170 = vmatmul.f32.gmra.mxu0 %v243
        %v4171 = vpop.f32.mrf.mxu0
        %v4172 = vadd.f32 %v4152, %v4171
        %4173 = vdwg.mxu0
        %4174 = vmatpush.xpose.msra.mxu0 %v1780
        %4175 = vmatpush.xpose.msra.mxu0 %v1748
        %4176 = vmatpush.xpose.msra.mxu0 %v1716
        %4177 = vmatpush.xpose.msra.mxu0 %v1684
        %4178 = vmatpush.xpose.msra.mxu0 %v1652
        %4179 = vmatpush.xpose.msra.mxu0 %v1620
        %4180 = vmatpush.xpose.msra.mxu0 %v1588
        %4181 = vmatpush.xpose.msra.mxu0 %v1556
        %4182 = vmatpush.xpose.msra.mxu0 %v1524
        %4183 = vmatpush.xpose.msra.mxu0 %v1492
        %4184 = vmatpush.xpose.msra.mxu0 %v1460
        %4185 = vmatpush.xpose.msra.mxu0 %v1428
        %4186 = vmatpush.xpose.msra.mxu0 %v1396
        %4187 = vmatpush.xpose.msra.mxu0 %v1364
        %4188 = vmatpush.xpose.msra.mxu0 %v1332
        %4189 = vmatpush.xpose.msra.mxu0 %v1300
        %4190 = vmatmul.f32.gmra.mxu0 %v244
        %v4191 = vpop.f32.mrf.mxu0
        %v4192 = vadd.f32 %v4172, %v4191
        %4193 = vdwg.mxu0
        %4194 = vmatpush.xpose.msra.mxu0 %v1781
        %4195 = vmatpush.xpose.msra.mxu0 %v1749
        %4196 = vmatpush.xpose.msra.mxu0 %v1717
        %4197 = vmatpush.xpose.msra.mxu0 %v1685
        %4198 = vmatpush.xpose.msra.mxu0 %v1653
        %4199 = vmatpush.xpose.msra.mxu0 %v1621
        %4200 = vmatpush.xpose.msra.mxu0 %v1589
        %4201 = vmatpush.xpose.msra.mxu0 %v1557
        %4202 = vmatpush.xpose.msra.mxu0 %v1525
        %4203 = vmatpush.xpose.msra.mxu0 %v1493
        %4204 = vmatpush.xpose.msra.mxu0 %v1461
        %4205 = vmatpush.xpose.msra.mxu0 %v1429
        %4206 = vmatpush.xpose.msra.mxu0 %v1397
        %4207 = vmatpush.xpose.msra.mxu0 %v1365
        %4208 = vmatpush.xpose.msra.mxu0 %v1333
        %4209 = vmatpush.xpose.msra.mxu0 %v1301
        %4210 = vmatmul.f32.gmra.mxu0 %v245
        %v4211 = vpop.f32.mrf.mxu0
        %v4212 = vadd.f32 %v4192, %v4211
        %4213 = vdwg.mxu0
        %4214 = vmatpush.xpose.msra.mxu0 %v2262
        %4215 = vmatpush.xpose.msra.mxu0 %v2230
        %4216 = vmatpush.xpose.msra.mxu0 %v2198
        %4217 = vmatpush.xpose.msra.mxu0 %v2166
        %4218 = vmatpush.xpose.msra.mxu0 %v2134
        %4219 = vmatpush.xpose.msra.mxu0 %v2102
        %4220 = vmatpush.xpose.msra.mxu0 %v2070
        %4221 = vmatpush.xpose.msra.mxu0 %v2038
        %4222 = vmatpush.xpose.msra.mxu0 %v2006
        %4223 = vmatpush.xpose.msra.mxu0 %v1974
        %4224 = vmatpush.xpose.msra.mxu0 %v1942
        %4225 = vmatpush.xpose.msra.mxu0 %v1910
        %4226 = vmatpush.xpose.msra.mxu0 %v1878
        %4227 = vmatpush.xpose.msra.mxu0 %v1846
        %4228 = vmatpush.xpose.msra.mxu0 %v1814
        %4229 = vmatpush.xpose.msra.mxu0 %v1782
        %4230 = vmatmul.f32.gmra.mxu0 %v214
        %v4231 = vpop.f32.mrf.mxu0
        %v4232 = vadd.f32 0.0, %v4231
        %4233 = vdwg.mxu0
        %4234 = vmatpush.xpose.msra.mxu0 %v2263
        %4235 = vmatpush.xpose.msra.mxu0 %v2231
        %4236 = vmatpush.xpose.msra.mxu0 %v2199
        %4237 = vmatpush.xpose.msra.mxu0 %v2167
        %4238 = vmatpush.xpose.msra.mxu0 %v2135
        %4239 = vmatpush.xpose.msra.mxu0 %v2103
        %4240 = vmatpush.xpose.msra.mxu0 %v2071
        %4241 = vmatpush.xpose.msra.mxu0 %v2039
        %4242 = vmatpush.xpose.msra.mxu0 %v2007
        %4243 = vmatpush.xpose.msra.mxu0 %v1975
        %4244 = vmatpush.xpose.msra.mxu0 %v1943
        %4245 = vmatpush.xpose.msra.mxu0 %v1911
        %4246 = vmatpush.xpose.msra.mxu0 %v1879
        %4247 = vmatpush.xpose.msra.mxu0 %v1847
        %4248 = vmatpush.xpose.msra.mxu0 %v1815
        %4249 = vmatpush.xpose.msra.mxu0 %v1783
        %4250 = vmatmul.f32.gmra.mxu0 %v215
        %v4251 = vpop.f32.mrf.mxu0
        %v4252 = vadd.f32 %v4232, %v4251
        %4253 = vdwg.mxu0
        %4254 = vmatpush.xpose.msra.mxu0 %v2264
        %4255 = vmatpush.xpose.msra.mxu0 %v2232
        %4256 = vmatpush.xpose.msra.mxu0 %v2200
        %4257 = vmatpush.xpose.msra.mxu0 %v2168
        %4258 = vmatpush.xpose.msra.mxu0 %v2136
        %4259 = vmatpush.xpose.msra.mxu0 %v2104
        %4260 = vmatpush.xpose.msra.mxu0 %v2072
        %4261 = vmatpush.xpose.msra.mxu0 %v2040
        %4262 = vmatpush.xpose.msra.mxu0 %v2008
        %4263 = vmatpush.xpose.msra.mxu0 %v1976
        %4264 = vmatpush.xpose.msra.mxu0 %v1944
        %4265 = vmatpush.xpose.msra.mxu0 %v1912
        %4266 = vmatpush.xpose.msra.mxu0 %v1880
        %4267 = vmatpush.xpose.msra.mxu0 %v1848
        %4268 = vmatpush.xpose.msra.mxu0 %v1816
        %4269 = vmatpush.xpose.msra.mxu0 %v1784
        %4270 = vmatmul.f32.gmra.mxu0 %v216
        %v4271 = vpop.f32.mrf.mxu0
        %v4272 = vadd.f32 %v4252, %v4271
        %4273 = vdwg.mxu0
        %4274 = vmatpush.xpose.msra.mxu0 %v2265
        %4275 = vmatpush.xpose.msra.mxu0 %v2233
        %4276 = vmatpush.xpose.msra.mxu0 %v2201
        %4277 = vmatpush.xpose.msra.mxu0 %v2169
        %4278 = vmatpush.xpose.msra.mxu0 %v2137
        %4279 = vmatpush.xpose.msra.mxu0 %v2105
        %4280 = vmatpush.xpose.msra.mxu0 %v2073
        %4281 = vmatpush.xpose.msra.mxu0 %v2041
        %4282 = vmatpush.xpose.msra.mxu0 %v2009
        %4283 = vmatpush.xpose.msra.mxu0 %v1977
        %4284 = vmatpush.xpose.msra.mxu0 %v1945
        %4285 = vmatpush.xpose.msra.mxu0 %v1913
        %4286 = vmatpush.xpose.msra.mxu0 %v1881
        %4287 = vmatpush.xpose.msra.mxu0 %v1849
        %4288 = vmatpush.xpose.msra.mxu0 %v1817
        %4289 = vmatpush.xpose.msra.mxu0 %v1785
        %4290 = vmatmul.f32.gmra.mxu0 %v217
        %v4291 = vpop.f32.mrf.mxu0
        %v4292 = vadd.f32 %v4272, %v4291
        %4293 = vdwg.mxu0
        %4294 = vmatpush.xpose.msra.mxu0 %v2266
        %4295 = vmatpush.xpose.msra.mxu0 %v2234
        %4296 = vmatpush.xpose.msra.mxu0 %v2202
        %4297 = vmatpush.xpose.msra.mxu0 %v2170
        %4298 = vmatpush.xpose.msra.mxu0 %v2138
        %4299 = vmatpush.xpose.msra.mxu0 %v2106
        %4300 = vmatpush.xpose.msra.mxu0 %v2074
        %4301 = vmatpush.xpose.msra.mxu0 %v2042
        %4302 = vmatpush.xpose.msra.mxu0 %v2010
        %4303 = vmatpush.xpose.msra.mxu0 %v1978
        %4304 = vmatpush.xpose.msra.mxu0 %v1946
        %4305 = vmatpush.xpose.msra.mxu0 %v1914
        %4306 = vmatpush.xpose.msra.mxu0 %v1882
        %4307 = vmatpush.xpose.msra.mxu0 %v1850
        %4308 = vmatpush.xpose.msra.mxu0 %v1818
        %4309 = vmatpush.xpose.msra.mxu0 %v1786
        %4310 = vmatmul.f32.gmra.mxu0 %v218
        %v4311 = vpop.f32.mrf.mxu0
        %v4312 = vadd.f32 %v4292, %v4311
        %4313 = vdwg.mxu0
        %4314 = vmatpush.xpose.msra.mxu0 %v2267
        %4315 = vmatpush.xpose.msra.mxu0 %v2235
        %4316 = vmatpush.xpose.msra.mxu0 %v2203
        %4317 = vmatpush.xpose.msra.mxu0 %v2171
        %4318 = vmatpush.xpose.msra.mxu0 %v2139
        %4319 = vmatpush.xpose.msra.mxu0 %v2107
        %4320 = vmatpush.xpose.msra.mxu0 %v2075
        %4321 = vmatpush.xpose.msra.mxu0 %v2043
        %4322 = vmatpush.xpose.msra.mxu0 %v2011
        %4323 = vmatpush.xpose.msra.mxu0 %v1979
        %4324 = vmatpush.xpose.msra.mxu0 %v1947
        %4325 = vmatpush.xpose.msra.mxu0 %v1915
        %4326 = vmatpush.xpose.msra.mxu0 %v1883
        %4327 = vmatpush.xpose.msra.mxu0 %v1851
        %4328 = vmatpush.xpose.msra.mxu0 %v1819
        %4329 = vmatpush.xpose.msra.mxu0 %v1787
        %4330 = vmatmul.f32.gmra.mxu0 %v219
        %v4331 = vpop.f32.mrf.mxu0
        %v4332 = vadd.f32 %v4312, %v4331
        %4333 = vdwg.mxu0
        %4334 = vmatpush.xpose.msra.mxu0 %v2268
        %4335 = vmatpush.xpose.msra.mxu0 %v2236
        %4336 = vmatpush.xpose.msra.mxu0 %v2204
        %4337 = vmatpush.xpose.msra.mxu0 %v2172
        %4338 = vmatpush.xpose.msra.mxu0 %v2140
        %4339 = vmatpush.xpose.msra.mxu0 %v2108
        %4340 = vmatpush.xpose.msra.mxu0 %v2076
        %4341 = vmatpush.xpose.msra.mxu0 %v2044
        %4342 = vmatpush.xpose.msra.mxu0 %v2012
        %4343 = vmatpush.xpose.msra.mxu0 %v1980
        %4344 = vmatpush.xpose.msra.mxu0 %v1948
        %4345 = vmatpush.xpose.msra.mxu0 %v1916
        %4346 = vmatpush.xpose.msra.mxu0 %v1884
        %4347 = vmatpush.xpose.msra.mxu0 %v1852
        %4348 = vmatpush.xpose.msra.mxu0 %v1820
        %4349 = vmatpush.xpose.msra.mxu0 %v1788
        %4350 = vmatmul.f32.gmra.mxu0 %v220
        %v4351 = vpop.f32.mrf.mxu0
        %v4352 = vadd.f32 %v4332, %v4351
        %4353 = vdwg.mxu0
        %4354 = vmatpush.xpose.msra.mxu0 %v2269
        %4355 = vmatpush.xpose.msra.mxu0 %v2237
        %4356 = vmatpush.xpose.msra.mxu0 %v2205
        %4357 = vmatpush.xpose.msra.mxu0 %v2173
        %4358 = vmatpush.xpose.msra.mxu0 %v2141
        %4359 = vmatpush.xpose.msra.mxu0 %v2109
        %4360 = vmatpush.xpose.msra.mxu0 %v2077
        %4361 = vmatpush.xpose.msra.mxu0 %v2045
        %4362 = vmatpush.xpose.msra.mxu0 %v2013
        %4363 = vmatpush.xpose.msra.mxu0 %v1981
        %4364 = vmatpush.xpose.msra.mxu0 %v1949
        %4365 = vmatpush.xpose.msra.mxu0 %v1917
        %4366 = vmatpush.xpose.msra.mxu0 %v1885
        %4367 = vmatpush.xpose.msra.mxu0 %v1853
        %4368 = vmatpush.xpose.msra.mxu0 %v1821
        %4369 = vmatpush.xpose.msra.mxu0 %v1789
        %4370 = vmatmul.f32.gmra.mxu0 %v221
        %v4371 = vpop.f32.mrf.mxu0
        %v4372 = vadd.f32 %v4352, %v4371
        %4373 = vdwg.mxu0
        %4374 = vmatpush.xpose.msra.mxu0 %v2270
        %4375 = vmatpush.xpose.msra.mxu0 %v2238
        %4376 = vmatpush.xpose.msra.mxu0 %v2206
        %4377 = vmatpush.xpose.msra.mxu0 %v2174
        %4378 = vmatpush.xpose.msra.mxu0 %v2142
        %4379 = vmatpush.xpose.msra.mxu0 %v2110
        %4380 = vmatpush.xpose.msra.mxu0 %v2078
        %4381 = vmatpush.xpose.msra.mxu0 %v2046
        %4382 = vmatpush.xpose.msra.mxu0 %v2014
        %4383 = vmatpush.xpose.msra.mxu0 %v1982
        %4384 = vmatpush.xpose.msra.mxu0 %v1950
        %4385 = vmatpush.xpose.msra.mxu0 %v1918
        %4386 = vmatpush.xpose.msra.mxu0 %v1886
        %4387 = vmatpush.xpose.msra.mxu0 %v1854
        %4388 = vmatpush.xpose.msra.mxu0 %v1822
        %4389 = vmatpush.xpose.msra.mxu0 %v1790
        %4390 = vmatmul.f32.gmra.mxu0 %v222
        %v4391 = vpop.f32.mrf.mxu0
        %v4392 = vadd.f32 %v4372, %v4391
        %4393 = vdwg.mxu0
        %4394 = vmatpush.xpose.msra.mxu0 %v2271
        %4395 = vmatpush.xpose.msra.mxu0 %v2239
        %4396 = vmatpush.xpose.msra.mxu0 %v2207
        %4397 = vmatpush.xpose.msra.mxu0 %v2175
        %4398 = vmatpush.xpose.msra.mxu0 %v2143
        %4399 = vmatpush.xpose.msra.mxu0 %v2111
        %4400 = vmatpush.xpose.msra.mxu0 %v2079
        %4401 = vmatpush.xpose.msra.mxu0 %v2047
        %4402 = vmatpush.xpose.msra.mxu0 %v2015
        %4403 = vmatpush.xpose.msra.mxu0 %v1983
        %4404 = vmatpush.xpose.msra.mxu0 %v1951
        %4405 = vmatpush.xpose.msra.mxu0 %v1919
        %4406 = vmatpush.xpose.msra.mxu0 %v1887
        %4407 = vmatpush.xpose.msra.mxu0 %v1855
        %4408 = vmatpush.xpose.msra.mxu0 %v1823
        %4409 = vmatpush.xpose.msra.mxu0 %v1791
        %4410 = vmatmul.f32.gmra.mxu0 %v223
        %v4411 = vpop.f32.mrf.mxu0
        %v4412 = vadd.f32 %v4392, %v4411
        %4413 = vdwg.mxu0
        %4414 = vmatpush.xpose.msra.mxu0 %v2272
        %4415 = vmatpush.xpose.msra.mxu0 %v2240
        %4416 = vmatpush.xpose.msra.mxu0 %v2208
        %4417 = vmatpush.xpose.msra.mxu0 %v2176
        %4418 = vmatpush.xpose.msra.mxu0 %v2144
        %4419 = vmatpush.xpose.msra.mxu0 %v2112
        %4420 = vmatpush.xpose.msra.mxu0 %v2080
        %4421 = vmatpush.xpose.msra.mxu0 %v2048
        %4422 = vmatpush.xpose.msra.mxu0 %v2016
        %4423 = vmatpush.xpose.msra.mxu0 %v1984
        %4424 = vmatpush.xpose.msra.mxu0 %v1952
        %4425 = vmatpush.xpose.msra.mxu0 %v1920
        %4426 = vmatpush.xpose.msra.mxu0 %v1888
        %4427 = vmatpush.xpose.msra.mxu0 %v1856
        %4428 = vmatpush.xpose.msra.mxu0 %v1824
        %4429 = vmatpush.xpose.msra.mxu0 %v1792
        %4430 = vmatmul.f32.gmra.mxu0 %v224
        %v4431 = vpop.f32.mrf.mxu0
        %v4432 = vadd.f32 %v4412, %v4431
        %4433 = vdwg.mxu0
        %4434 = vmatpush.xpose.msra.mxu0 %v2273
        %4435 = vmatpush.xpose.msra.mxu0 %v2241
        %4436 = vmatpush.xpose.msra.mxu0 %v2209
        %4437 = vmatpush.xpose.msra.mxu0 %v2177
        %4438 = vmatpush.xpose.msra.mxu0 %v2145
        %4439 = vmatpush.xpose.msra.mxu0 %v2113
        %4440 = vmatpush.xpose.msra.mxu0 %v2081
        %4441 = vmatpush.xpose.msra.mxu0 %v2049
        %4442 = vmatpush.xpose.msra.mxu0 %v2017
        %4443 = vmatpush.xpose.msra.mxu0 %v1985
        %4444 = vmatpush.xpose.msra.mxu0 %v1953
        %4445 = vmatpush.xpose.msra.mxu0 %v1921
        %4446 = vmatpush.xpose.msra.mxu0 %v1889
        %4447 = vmatpush.xpose.msra.mxu0 %v1857
        %4448 = vmatpush.xpose.msra.mxu0 %v1825
        %4449 = vmatpush.xpose.msra.mxu0 %v1793
        %4450 = vmatmul.f32.gmra.mxu0 %v225
        %v4451 = vpop.f32.mrf.mxu0
        %v4452 = vadd.f32 %v4432, %v4451
        %4453 = vdwg.mxu0
        %4454 = vmatpush.xpose.msra.mxu0 %v2274
        %4455 = vmatpush.xpose.msra.mxu0 %v2242
        %4456 = vmatpush.xpose.msra.mxu0 %v2210
        %4457 = vmatpush.xpose.msra.mxu0 %v2178
        %4458 = vmatpush.xpose.msra.mxu0 %v2146
        %4459 = vmatpush.xpose.msra.mxu0 %v2114
        %4460 = vmatpush.xpose.msra.mxu0 %v2082
        %4461 = vmatpush.xpose.msra.mxu0 %v2050
        %4462 = vmatpush.xpose.msra.mxu0 %v2018
        %4463 = vmatpush.xpose.msra.mxu0 %v1986
        %4464 = vmatpush.xpose.msra.mxu0 %v1954
        %4465 = vmatpush.xpose.msra.mxu0 %v1922
        %4466 = vmatpush.xpose.msra.mxu0 %v1890
        %4467 = vmatpush.xpose.msra.mxu0 %v1858
        %4468 = vmatpush.xpose.msra.mxu0 %v1826
        %4469 = vmatpush.xpose.msra.mxu0 %v1794
        %4470 = vmatmul.f32.gmra.mxu0 %v226
        %v4471 = vpop.f32.mrf.mxu0
        %v4472 = vadd.f32 %v4452, %v4471
        %4473 = vdwg.mxu0
        %4474 = vmatpush.xpose.msra.mxu0 %v2275
        %4475 = vmatpush.xpose.msra.mxu0 %v2243
        %4476 = vmatpush.xpose.msra.mxu0 %v2211
        %4477 = vmatpush.xpose.msra.mxu0 %v2179
        %4478 = vmatpush.xpose.msra.mxu0 %v2147
        %4479 = vmatpush.xpose.msra.mxu0 %v2115
        %4480 = vmatpush.xpose.msra.mxu0 %v2083
        %4481 = vmatpush.xpose.msra.mxu0 %v2051
        %4482 = vmatpush.xpose.msra.mxu0 %v2019
        %4483 = vmatpush.xpose.msra.mxu0 %v1987
        %4484 = vmatpush.xpose.msra.mxu0 %v1955
        %4485 = vmatpush.xpose.msra.mxu0 %v1923
        %4486 = vmatpush.xpose.msra.mxu0 %v1891
        %4487 = vmatpush.xpose.msra.mxu0 %v1859
        %4488 = vmatpush.xpose.msra.mxu0 %v1827
        %4489 = vmatpush.xpose.msra.mxu0 %v1795
        %4490 = vmatmul.f32.gmra.mxu0 %v227
        %v4491 = vpop.f32.mrf.mxu0
        %v4492 = vadd.f32 %v4472, %v4491
        %4493 = vdwg.mxu0
        %4494 = vmatpush.xpose.msra.mxu0 %v2276
        %4495 = vmatpush.xpose.msra.mxu0 %v2244
        %4496 = vmatpush.xpose.msra.mxu0 %v2212
        %4497 = vmatpush.xpose.msra.mxu0 %v2180
        %4498 = vmatpush.xpose.msra.mxu0 %v2148
        %4499 = vmatpush.xpose.msra.mxu0 %v2116
        %4500 = vmatpush.xpose.msra.mxu0 %v2084
        %4501 = vmatpush.xpose.msra.mxu0 %v2052
        %4502 = vmatpush.xpose.msra.mxu0 %v2020
        %4503 = vmatpush.xpose.msra.mxu0 %v1988
        %4504 = vmatpush.xpose.msra.mxu0 %v1956
        %4505 = vmatpush.xpose.msra.mxu0 %v1924
        %4506 = vmatpush.xpose.msra.mxu0 %v1892
        %4507 = vmatpush.xpose.msra.mxu0 %v1860
        %4508 = vmatpush.xpose.msra.mxu0 %v1828
        %4509 = vmatpush.xpose.msra.mxu0 %v1796
        %4510 = vmatmul.f32.gmra.mxu0 %v228
        %v4511 = vpop.f32.mrf.mxu0
        %v4512 = vadd.f32 %v4492, %v4511
        %4513 = vdwg.mxu0
        %4514 = vmatpush.xpose.msra.mxu0 %v2277
        %4515 = vmatpush.xpose.msra.mxu0 %v2245
        %4516 = vmatpush.xpose.msra.mxu0 %v2213
        %4517 = vmatpush.xpose.msra.mxu0 %v2181
        %4518 = vmatpush.xpose.msra.mxu0 %v2149
        %4519 = vmatpush.xpose.msra.mxu0 %v2117
        %4520 = vmatpush.xpose.msra.mxu0 %v2085
        %4521 = vmatpush.xpose.msra.mxu0 %v2053
        %4522 = vmatpush.xpose.msra.mxu0 %v2021
        %4523 = vmatpush.xpose.msra.mxu0 %v1989
        %4524 = vmatpush.xpose.msra.mxu0 %v1957
        %4525 = vmatpush.xpose.msra.mxu0 %v1925
        %4526 = vmatpush.xpose.msra.mxu0 %v1893
        %4527 = vmatpush.xpose.msra.mxu0 %v1861
        %4528 = vmatpush.xpose.msra.mxu0 %v1829
        %4529 = vmatpush.xpose.msra.mxu0 %v1797
        %4530 = vmatmul.f32.gmra.mxu0 %v229
        %v4531 = vpop.f32.mrf.mxu0
        %v4532 = vadd.f32 %v4512, %v4531
        %4533 = vdwg.mxu0
        %4534 = vmatpush.xpose.msra.mxu0 %v2278
        %4535 = vmatpush.xpose.msra.mxu0 %v2246
        %4536 = vmatpush.xpose.msra.mxu0 %v2214
        %4537 = vmatpush.xpose.msra.mxu0 %v2182
        %4538 = vmatpush.xpose.msra.mxu0 %v2150
        %4539 = vmatpush.xpose.msra.mxu0 %v2118
        %4540 = vmatpush.xpose.msra.mxu0 %v2086
        %4541 = vmatpush.xpose.msra.mxu0 %v2054
        %4542 = vmatpush.xpose.msra.mxu0 %v2022
        %4543 = vmatpush.xpose.msra.mxu0 %v1990
        %4544 = vmatpush.xpose.msra.mxu0 %v1958
        %4545 = vmatpush.xpose.msra.mxu0 %v1926
        %4546 = vmatpush.xpose.msra.mxu0 %v1894
        %4547 = vmatpush.xpose.msra.mxu0 %v1862
        %4548 = vmatpush.xpose.msra.mxu0 %v1830
        %4549 = vmatpush.xpose.msra.mxu0 %v1798
        %4550 = vmatmul.f32.gmra.mxu0 %v230
        %v4551 = vpop.f32.mrf.mxu0
        %v4552 = vadd.f32 %v4532, %v4551
        %4553 = vdwg.mxu0
        %4554 = vmatpush.xpose.msra.mxu0 %v2279
        %4555 = vmatpush.xpose.msra.mxu0 %v2247
        %4556 = vmatpush.xpose.msra.mxu0 %v2215
        %4557 = vmatpush.xpose.msra.mxu0 %v2183
        %4558 = vmatpush.xpose.msra.mxu0 %v2151
        %4559 = vmatpush.xpose.msra.mxu0 %v2119
        %4560 = vmatpush.xpose.msra.mxu0 %v2087
        %4561 = vmatpush.xpose.msra.mxu0 %v2055
        %4562 = vmatpush.xpose.msra.mxu0 %v2023
        %4563 = vmatpush.xpose.msra.mxu0 %v1991
        %4564 = vmatpush.xpose.msra.mxu0 %v1959
        %4565 = vmatpush.xpose.msra.mxu0 %v1927
        %4566 = vmatpush.xpose.msra.mxu0 %v1895
        %4567 = vmatpush.xpose.msra.mxu0 %v1863
        %4568 = vmatpush.xpose.msra.mxu0 %v1831
        %4569 = vmatpush.xpose.msra.mxu0 %v1799
        %4570 = vmatmul.f32.gmra.mxu0 %v231
        %v4571 = vpop.f32.mrf.mxu0
        %v4572 = vadd.f32 %v4552, %v4571
        %4573 = vdwg.mxu0
        %4574 = vmatpush.xpose.msra.mxu0 %v2280
        %4575 = vmatpush.xpose.msra.mxu0 %v2248
        %4576 = vmatpush.xpose.msra.mxu0 %v2216
        %4577 = vmatpush.xpose.msra.mxu0 %v2184
        %4578 = vmatpush.xpose.msra.mxu0 %v2152
        %4579 = vmatpush.xpose.msra.mxu0 %v2120
        %4580 = vmatpush.xpose.msra.mxu0 %v2088
        %4581 = vmatpush.xpose.msra.mxu0 %v2056
        %4582 = vmatpush.xpose.msra.mxu0 %v2024
        %4583 = vmatpush.xpose.msra.mxu0 %v1992
        %4584 = vmatpush.xpose.msra.mxu0 %v1960
        %4585 = vmatpush.xpose.msra.mxu0 %v1928
        %4586 = vmatpush.xpose.msra.mxu0 %v1896
        %4587 = vmatpush.xpose.msra.mxu0 %v1864
        %4588 = vmatpush.xpose.msra.mxu0 %v1832
        %4589 = vmatpush.xpose.msra.mxu0 %v1800
        %4590 = vmatmul.f32.gmra.mxu0 %v232
        %v4591 = vpop.f32.mrf.mxu0
        %v4592 = vadd.f32 %v4572, %v4591
        %4593 = vdwg.mxu0
        %4594 = vmatpush.xpose.msra.mxu0 %v2281
        %4595 = vmatpush.xpose.msra.mxu0 %v2249
        %4596 = vmatpush.xpose.msra.mxu0 %v2217
        %4597 = vmatpush.xpose.msra.mxu0 %v2185
        %4598 = vmatpush.xpose.msra.mxu0 %v2153
        %4599 = vmatpush.xpose.msra.mxu0 %v2121
        %4600 = vmatpush.xpose.msra.mxu0 %v2089
        %4601 = vmatpush.xpose.msra.mxu0 %v2057
        %4602 = vmatpush.xpose.msra.mxu0 %v2025
        %4603 = vmatpush.xpose.msra.mxu0 %v1993
        %4604 = vmatpush.xpose.msra.mxu0 %v1961
        %4605 = vmatpush.xpose.msra.mxu0 %v1929
        %4606 = vmatpush.xpose.msra.mxu0 %v1897
        %4607 = vmatpush.xpose.msra.mxu0 %v1865
        %4608 = vmatpush.xpose.msra.mxu0 %v1833
        %4609 = vmatpush.xpose.msra.mxu0 %v1801
        %4610 = vmatmul.f32.gmra.mxu0 %v233
        %v4611 = vpop.f32.mrf.mxu0
        %v4612 = vadd.f32 %v4592, %v4611
        %4613 = vdwg.mxu0
        %4614 = vmatpush.xpose.msra.mxu0 %v2282
        %4615 = vmatpush.xpose.msra.mxu0 %v2250
        %4616 = vmatpush.xpose.msra.mxu0 %v2218
        %4617 = vmatpush.xpose.msra.mxu0 %v2186
        %4618 = vmatpush.xpose.msra.mxu0 %v2154
        %4619 = vmatpush.xpose.msra.mxu0 %v2122
        %4620 = vmatpush.xpose.msra.mxu0 %v2090
        %4621 = vmatpush.xpose.msra.mxu0 %v2058
        %4622 = vmatpush.xpose.msra.mxu0 %v2026
        %4623 = vmatpush.xpose.msra.mxu0 %v1994
        %4624 = vmatpush.xpose.msra.mxu0 %v1962
        %4625 = vmatpush.xpose.msra.mxu0 %v1930
        %4626 = vmatpush.xpose.msra.mxu0 %v1898
        %4627 = vmatpush.xpose.msra.mxu0 %v1866
        %4628 = vmatpush.xpose.msra.mxu0 %v1834
        %4629 = vmatpush.xpose.msra.mxu0 %v1802
        %4630 = vmatmul.f32.gmra.mxu0 %v234
        %v4631 = vpop.f32.mrf.mxu0
        %v4632 = vadd.f32 %v4612, %v4631
        %4633 = vdwg.mxu0
        %4634 = vmatpush.xpose.msra.mxu0 %v2283
        %4635 = vmatpush.xpose.msra.mxu0 %v2251
        %4636 = vmatpush.xpose.msra.mxu0 %v2219
        %4637 = vmatpush.xpose.msra.mxu0 %v2187
        %4638 = vmatpush.xpose.msra.mxu0 %v2155
        %4639 = vmatpush.xpose.msra.mxu0 %v2123
        %4640 = vmatpush.xpose.msra.mxu0 %v2091
        %4641 = vmatpush.xpose.msra.mxu0 %v2059
        %4642 = vmatpush.xpose.msra.mxu0 %v2027
        %4643 = vmatpush.xpose.msra.mxu0 %v1995
        %4644 = vmatpush.xpose.msra.mxu0 %v1963
        %4645 = vmatpush.xpose.msra.mxu0 %v1931
        %4646 = vmatpush.xpose.msra.mxu0 %v1899
        %4647 = vmatpush.xpose.msra.mxu0 %v1867
        %4648 = vmatpush.xpose.msra.mxu0 %v1835
        %4649 = vmatpush.xpose.msra.mxu0 %v1803
        %4650 = vmatmul.f32.gmra.mxu0 %v235
        %v4651 = vpop.f32.mrf.mxu0
        %v4652 = vadd.f32 %v4632, %v4651
        %4653 = vdwg.mxu0
        %4654 = vmatpush.xpose.msra.mxu0 %v2284
        %4655 = vmatpush.xpose.msra.mxu0 %v2252
        %4656 = vmatpush.xpose.msra.mxu0 %v2220
        %4657 = vmatpush.xpose.msra.mxu0 %v2188
        %4658 = vmatpush.xpose.msra.mxu0 %v2156
        %4659 = vmatpush.xpose.msra.mxu0 %v2124
        %4660 = vmatpush.xpose.msra.mxu0 %v2092
        %4661 = vmatpush.xpose.msra.mxu0 %v2060
        %4662 = vmatpush.xpose.msra.mxu0 %v2028
        %4663 = vmatpush.xpose.msra.mxu0 %v1996
        %4664 = vmatpush.xpose.msra.mxu0 %v1964
        %4665 = vmatpush.xpose.msra.mxu0 %v1932
        %4666 = vmatpush.xpose.msra.mxu0 %v1900
        %4667 = vmatpush.xpose.msra.mxu0 %v1868
        %4668 = vmatpush.xpose.msra.mxu0 %v1836
        %4669 = vmatpush.xpose.msra.mxu0 %v1804
        %4670 = vmatmul.f32.gmra.mxu0 %v236
        %v4671 = vpop.f32.mrf.mxu0
        %v4672 = vadd.f32 %v4652, %v4671
        %4673 = vdwg.mxu0
        %4674 = vmatpush.xpose.msra.mxu0 %v2285
        %4675 = vmatpush.xpose.msra.mxu0 %v2253
        %4676 = vmatpush.xpose.msra.mxu0 %v2221
        %4677 = vmatpush.xpose.msra.mxu0 %v2189
        %4678 = vmatpush.xpose.msra.mxu0 %v2157
        %4679 = vmatpush.xpose.msra.mxu0 %v2125
        %4680 = vmatpush.xpose.msra.mxu0 %v2093
        %4681 = vmatpush.xpose.msra.mxu0 %v2061
        %4682 = vmatpush.xpose.msra.mxu0 %v2029
        %4683 = vmatpush.xpose.msra.mxu0 %v1997
        %4684 = vmatpush.xpose.msra.mxu0 %v1965
        %4685 = vmatpush.xpose.msra.mxu0 %v1933
        %4686 = vmatpush.xpose.msra.mxu0 %v1901
        %4687 = vmatpush.xpose.msra.mxu0 %v1869
        %4688 = vmatpush.xpose.msra.mxu0 %v1837
        %4689 = vmatpush.xpose.msra.mxu0 %v1805
        %4690 = vmatmul.f32.gmra.mxu0 %v237
        %v4691 = vpop.f32.mrf.mxu0
        %v4692 = vadd.f32 %v4672, %v4691
        %4693 = vdwg.mxu0
        %4694 = vmatpush.xpose.msra.mxu0 %v2286
        %4695 = vmatpush.xpose.msra.mxu0 %v2254
        %4696 = vmatpush.xpose.msra.mxu0 %v2222
        %4697 = vmatpush.xpose.msra.mxu0 %v2190
        %4698 = vmatpush.xpose.msra.mxu0 %v2158
        %4699 = vmatpush.xpose.msra.mxu0 %v2126
        %4700 = vmatpush.xpose.msra.mxu0 %v2094
        %4701 = vmatpush.xpose.msra.mxu0 %v2062
        %4702 = vmatpush.xpose.msra.mxu0 %v2030
        %4703 = vmatpush.xpose.msra.mxu0 %v1998
        %4704 = vmatpush.xpose.msra.mxu0 %v1966
        %4705 = vmatpush.xpose.msra.mxu0 %v1934
        %4706 = vmatpush.xpose.msra.mxu0 %v1902
        %4707 = vmatpush.xpose.msra.mxu0 %v1870
        %4708 = vmatpush.xpose.msra.mxu0 %v1838
        %4709 = vmatpush.xpose.msra.mxu0 %v1806
        %4710 = vmatmul.f32.gmra.mxu0 %v238
        %v4711 = vpop.f32.mrf.mxu0
        %v4712 = vadd.f32 %v4692, %v4711
        %4713 = vdwg.mxu0
        %4714 = vmatpush.xpose.msra.mxu0 %v2287
        %4715 = vmatpush.xpose.msra.mxu0 %v2255
        %4716 = vmatpush.xpose.msra.mxu0 %v2223
        %4717 = vmatpush.xpose.msra.mxu0 %v2191
        %4718 = vmatpush.xpose.msra.mxu0 %v2159
        %4719 = vmatpush.xpose.msra.mxu0 %v2127
        %4720 = vmatpush.xpose.msra.mxu0 %v2095
        %4721 = vmatpush.xpose.msra.mxu0 %v2063
        %4722 = vmatpush.xpose.msra.mxu0 %v2031
        %4723 = vmatpush.xpose.msra.mxu0 %v1999
        %4724 = vmatpush.xpose.msra.mxu0 %v1967
        %4725 = vmatpush.xpose.msra.mxu0 %v1935
        %4726 = vmatpush.xpose.msra.mxu0 %v1903
        %4727 = vmatpush.xpose.msra.mxu0 %v1871
        %4728 = vmatpush.xpose.msra.mxu0 %v1839
        %4729 = vmatpush.xpose.msra.mxu0 %v1807
        %4730 = vmatmul.f32.gmra.mxu0 %v239
        %v4731 = vpop.f32.mrf.mxu0
        %v4732 = vadd.f32 %v4712, %v4731
        %4733 = vdwg.mxu0
        %4734 = vmatpush.xpose.msra.mxu0 %v2288
        %4735 = vmatpush.xpose.msra.mxu0 %v2256
        %4736 = vmatpush.xpose.msra.mxu0 %v2224
        %4737 = vmatpush.xpose.msra.mxu0 %v2192
        %4738 = vmatpush.xpose.msra.mxu0 %v2160
        %4739 = vmatpush.xpose.msra.mxu0 %v2128
        %4740 = vmatpush.xpose.msra.mxu0 %v2096
        %4741 = vmatpush.xpose.msra.mxu0 %v2064
        %4742 = vmatpush.xpose.msra.mxu0 %v2032
        %4743 = vmatpush.xpose.msra.mxu0 %v2000
        %4744 = vmatpush.xpose.msra.mxu0 %v1968
        %4745 = vmatpush.xpose.msra.mxu0 %v1936
        %4746 = vmatpush.xpose.msra.mxu0 %v1904
        %4747 = vmatpush.xpose.msra.mxu0 %v1872
        %4748 = vmatpush.xpose.msra.mxu0 %v1840
        %4749 = vmatpush.xpose.msra.mxu0 %v1808
        %4750 = vmatmul.f32.gmra.mxu0 %v240
        %v4751 = vpop.f32.mrf.mxu0
        %v4752 = vadd.f32 %v4732, %v4751
        %4753 = vdwg.mxu0
        %4754 = vmatpush.xpose.msra.mxu0 %v2289
        %4755 = vmatpush.xpose.msra.mxu0 %v2257
        %4756 = vmatpush.xpose.msra.mxu0 %v2225
        %4757 = vmatpush.xpose.msra.mxu0 %v2193
        %4758 = vmatpush.xpose.msra.mxu0 %v2161
        %4759 = vmatpush.xpose.msra.mxu0 %v2129
        %4760 = vmatpush.xpose.msra.mxu0 %v2097
        %4761 = vmatpush.xpose.msra.mxu0 %v2065
        %4762 = vmatpush.xpose.msra.mxu0 %v2033
        %4763 = vmatpush.xpose.msra.mxu0 %v2001
        %4764 = vmatpush.xpose.msra.mxu0 %v1969
        %4765 = vmatpush.xpose.msra.mxu0 %v1937
        %4766 = vmatpush.xpose.msra.mxu0 %v1905
        %4767 = vmatpush.xpose.msra.mxu0 %v1873
        %4768 = vmatpush.xpose.msra.mxu0 %v1841
        %4769 = vmatpush.xpose.msra.mxu0 %v1809
        %4770 = vmatmul.f32.gmra.mxu0 %v241
        %v4771 = vpop.f32.mrf.mxu0
        %v4772 = vadd.f32 %v4752, %v4771
        %4773 = vdwg.mxu0
        %4774 = vmatpush.xpose.msra.mxu0 %v2290
        %4775 = vmatpush.xpose.msra.mxu0 %v2258
        %4776 = vmatpush.xpose.msra.mxu0 %v2226
        %4777 = vmatpush.xpose.msra.mxu0 %v2194
        %4778 = vmatpush.xpose.msra.mxu0 %v2162
        %4779 = vmatpush.xpose.msra.mxu0 %v2130
        %4780 = vmatpush.xpose.msra.mxu0 %v2098
        %4781 = vmatpush.xpose.msra.mxu0 %v2066
        %4782 = vmatpush.xpose.msra.mxu0 %v2034
        %4783 = vmatpush.xpose.msra.mxu0 %v2002
        %4784 = vmatpush.xpose.msra.mxu0 %v1970
        %4785 = vmatpush.xpose.msra.mxu0 %v1938
        %4786 = vmatpush.xpose.msra.mxu0 %v1906
        %4787 = vmatpush.xpose.msra.mxu0 %v1874
        %4788 = vmatpush.xpose.msra.mxu0 %v1842
        %4789 = vmatpush.xpose.msra.mxu0 %v1810
        %4790 = vmatmul.f32.gmra.mxu0 %v242
        %v4791 = vpop.f32.mrf.mxu0
        %v4792 = vadd.f32 %v4772, %v4791
        %4793 = vdwg.mxu0
        %4794 = vmatpush.xpose.msra.mxu0 %v2291
        %4795 = vmatpush.xpose.msra.mxu0 %v2259
        %4796 = vmatpush.xpose.msra.mxu0 %v2227
        %4797 = vmatpush.xpose.msra.mxu0 %v2195
        %4798 = vmatpush.xpose.msra.mxu0 %v2163
        %4799 = vmatpush.xpose.msra.mxu0 %v2131
        %4800 = vmatpush.xpose.msra.mxu0 %v2099
        %4801 = vmatpush.xpose.msra.mxu0 %v2067
        %4802 = vmatpush.xpose.msra.mxu0 %v2035
        %4803 = vmatpush.xpose.msra.mxu0 %v2003
        %4804 = vmatpush.xpose.msra.mxu0 %v1971
        %4805 = vmatpush.xpose.msra.mxu0 %v1939
        %4806 = vmatpush.xpose.msra.mxu0 %v1907
        %4807 = vmatpush.xpose.msra.mxu0 %v1875
        %4808 = vmatpush.xpose.msra.mxu0 %v1843
        %4809 = vmatpush.xpose.msra.mxu0 %v1811
        %4810 = vmatmul.f32.gmra.mxu0 %v243
        %v4811 = vpop.f32.mrf.mxu0
        %v4812 = vadd.f32 %v4792, %v4811
        %4813 = vdwg.mxu0
        %4814 = vmatpush.xpose.msra.mxu0 %v2292
        %4815 = vmatpush.xpose.msra.mxu0 %v2260
        %4816 = vmatpush.xpose.msra.mxu0 %v2228
        %4817 = vmatpush.xpose.msra.mxu0 %v2196
        %4818 = vmatpush.xpose.msra.mxu0 %v2164
        %4819 = vmatpush.xpose.msra.mxu0 %v2132
        %4820 = vmatpush.xpose.msra.mxu0 %v2100
        %4821 = vmatpush.xpose.msra.mxu0 %v2068
        %4822 = vmatpush.xpose.msra.mxu0 %v2036
        %4823 = vmatpush.xpose.msra.mxu0 %v2004
        %4824 = vmatpush.xpose.msra.mxu0 %v1972
        %4825 = vmatpush.xpose.msra.mxu0 %v1940
        %4826 = vmatpush.xpose.msra.mxu0 %v1908
        %4827 = vmatpush.xpose.msra.mxu0 %v1876
        %4828 = vmatpush.xpose.msra.mxu0 %v1844
        %4829 = vmatpush.xpose.msra.mxu0 %v1812
        %4830 = vmatmul.f32.gmra.mxu0 %v244
        %v4831 = vpop.f32.mrf.mxu0
        %v4832 = vadd.f32 %v4812, %v4831
        %4833 = vdwg.mxu0
        %4834 = vmatpush.xpose.msra.mxu0 %v2293
        %4835 = vmatpush.xpose.msra.mxu0 %v2261
        %4836 = vmatpush.xpose.msra.mxu0 %v2229
        %4837 = vmatpush.xpose.msra.mxu0 %v2197
        %4838 = vmatpush.xpose.msra.mxu0 %v2165
        %4839 = vmatpush.xpose.msra.mxu0 %v2133
        %4840 = vmatpush.xpose.msra.mxu0 %v2101
        %4841 = vmatpush.xpose.msra.mxu0 %v2069
        %4842 = vmatpush.xpose.msra.mxu0 %v2037
        %4843 = vmatpush.xpose.msra.mxu0 %v2005
        %4844 = vmatpush.xpose.msra.mxu0 %v1973
        %4845 = vmatpush.xpose.msra.mxu0 %v1941
        %4846 = vmatpush.xpose.msra.mxu0 %v1909
        %4847 = vmatpush.xpose.msra.mxu0 %v1877
        %4848 = vmatpush.xpose.msra.mxu0 %v1845
        %4849 = vmatpush.xpose.msra.mxu0 %v1813
        %4850 = vmatmul.f32.gmra.mxu0 %v245
        %v4851 = vpop.f32.mrf.mxu0
        %v4852 = vadd.f32 %v4832, %v4851
        %4853 = vdwg.mxu0
        %v4854 = vmax.f32 %v2932, 0.0
        %v4855 = vmax.f32 %v3572, 0.0
        %v4856 = vmax.f32 %v4212, 0.0
        %v4857 = vmax.f32 %v4852, 0.0
        %4858 = vst [vmem:[%s212] sm:$0xff] %v4854
        %4859 = vst [vmem:[%s212 + $0x8] sm:$0xff] %v4855
        %4860 = vst [vmem:[%s212 + $0x10] sm:$0xff] %v4856
        %4861 = vst [vmem:[%s212 + $0x18] sm:$0xff] %v4857
        %s4862 = smul.u32 4, %s22
        %p4863 = scmp.lt.s32.totalorder %s21, 0
        %s4864 = scalar_select %p4863, %s21, 0
        %p4865 = scmp.lt.s32.totalorder %s4862, 31
        %s4866 = scalar_select %p4865, %s4862, 31
        %s4867 = smul.addr %s4864, 32
        %s4868 = sadd.s32 %s4866, %s4867
        %s4869 = smul.addr %s4868, 8
        %s4870 = scalar_lea.vmem %s2, %s4869
        // Predicated region
        $region37: #{my_module_forward.2} parent=27 // pred_check
          %p4871 = pneg %p101
        $region38: #{my_module_forward.2} parent=27 // pred_check_branch
          %4873 = sbr.rel (%p4871) target = $region40
        $region39: #{my_module_forward.2} parent=27 // pred_region
          %s4874 = smul.u32 4, %s22
        $region40: #{my_module_forward.2} parent=27 // pred_fallthru
          _
      $region28: #{my_module_forward.2} parent=5 // pred_fallthru
        _
      %p4875 = scmp.le.s32.totalorder 2, %s12
      // Predicated region
      $region41: #{my_module_forward.2} parent=5 // pred_check
        %p4876 = pneg %p4875
      $region42: #{my_module_forward.2} parent=5 // pred_check_branch
        %4878 = sbr.rel (%p4876) target = $region44
      $region43: #{my_module_forward.2} parent=5 // pred_region
        %s4879 = ssub.s32 %s12, 2
        // Predicated region
        $region45: #{my_module_forward.2} parent=43 // pred_check
          %p4880 = pneg %p107
        $region46: #{my_module_forward.2} parent=43 // pred_check_branch
          %4882 = sbr.rel (%p4880) target = $region48
        $region47: #{my_module_forward.2} parent=43 // pred_region
          %s4883 = smul.u32 4, %s24
          %p4884 = scmp.lt.s32.totalorder %s23, 0
          %s4885 = scalar_select %p4884, %s23, 0
          %p4886 = scmp.lt.s32.totalorder %s4883, 31
          %s4887 = scalar_select %p4886, %s4883, 31
          %s4888 = smul.addr %s4885, 32
          %s4889 = sadd.s32 %s4887, %s4888
          %s4890 = smul.addr %s4889, 8
          %s4891 = scalar_lea.vmem %s2, %s4890
        $region48: #{my_module_forward.2} parent=43 // pred_fallthru
          _
      $region44: #{my_module_forward.2} parent=5 // pred_fallthru
        _
    $region6: #{my_module_forward.2} parent=1 // loop_footer
      %s16 = sadd.s32 1, %s12
    $region7: #{my_module_forward.2} parent=1 // loop_footer_branch
      %11 = sbr.rel target = $region3
    $region8: #{my_module_forward.2} parent=1 // loop_exit
      _
    %4892 = vsyncpa [#allocation3], 1
    %s4893 = scalar_lea.sflag [#allocation3], 1
    %4894 = vsyncpa %s4893, 1
    %4895 = vsyncpa [#allocation5], 1
    %s4896 = scalar_lea.sflag [#allocation5], 1
    %4897 = vsyncpa %s4896, 1

// kernel: my_module_forward.3
$region0: #{my_module_forward.3}
  #allocation0 [shape = 'u32[]', space=smem, size = 0x4, offset = 0x4, fixed_abs, tag = 'smem constant byte address 0x4 - core index']
  #allocation1 [shape = 'u32[72,128]{1,0:T(1,128)}', space=vmem, size = 0x9000, scoped, tag = 'internal scratch']
  %s0 = inlined_call_operand.vmem [shape: f32[8,4096], index: 0, kind: input, shape index: {}]
  %s1 = inlined_call_operand.vmem [shape: f32[4096,4096], index: 1, kind: input, shape index: {}]
  %s2 = inlined_call_operand.hbm [shape: f32[8,4096], index: 2, kind: output, shape index: {}]
  %s3 = sld [smem:[#allocation0]]
  $region41: #{my_module_forward.3} parent=0
    _
  %s5 = ssub.s32 1, %s3
  %s6 = scalar_select 0, %s5, %s3
  $region1: #{my_module_forward.3} parent=0
    #allocation2 [shape = 'u8[32768]{0}', space=vmem, size = 0x8000, scoped, tag = 'output window, operand 0']
    #allocation3 [shape = 's32[2]{0}', space=sflag, size = 0x8, scoped, tag = 'scoped memory for my_module_forward.3']
    %7 = vsyncpa [#allocation3], 0
    %s8 = scalar_lea.sflag [#allocation3], 1
    %9 = vsyncpa %s8, 0
    loop: start=0, step=1, limit=10
    $region2: #{my_module_forward.3} parent=1 // loop_pre_header
      _
    $region3: #{my_module_forward.3} parent=1 // loop_header
      %s11 = sphi 0, %s15
      %p12 = scmp.ge.s32.totalorder %s11, 10
      %s18 = sphi 0, %s30
      %s19 = sphi 0, %s26
      %s20 = sphi 0, %s18
      %s21 = sphi 0, %s19
      %s22 = sphi 0, %s20
      %s23 = sphi 0, %s21
      %s33 = sphi 0, %s35
      %s36 = sphi 0, %s33
      %s37 = sphi 0, %s36
      %s53 = sphi 0, %s37
      %s59 = sphi 0, %s61
      %s62 = sphi 0, %s59
      %s63 = sphi 0, %s62
      %s79 = sphi 0, %s63
      %s87 = sphi 0, %s89
      %s90 = sphi 0, %s87
      %s91 = sphi 0, %s90
      %s107 = sphi 0, %s91
    $region4: #{my_module_forward.3} parent=1 // loop_header_branch
      %14 = sbr.rel (%p12) target = $region8
    $region5: #{my_module_forward.3} parent=1 // loop_body
      %s16 = ssub.s32 %s11, 1
      %s17 = ssub.s32 %s11, 2
      %s24 = sadd.s32 1, %s19
      %p25 = scmp.ge.s32.totalorder %s24, 8
      %s26 = scalar_select %p25, 0, %s24
      %s27 = sadd.s32 1, %s18
      %s28 = scalar_select %p25, %s27, %s18
      %p29 = scmp.ge.s32.totalorder %s28, 1
      %s30 = scalar_select %p29, 0, %s28
      %s31 = ssub.s32 %s18, %s30
      %p32 = scmp.eq.s32.totalorder %s31, 0
      %s34 = sadd.s32 %s33, 1
      %s35 = scalar_select %p32, %s33, %s34
      %p38 = pneg %p32
      %p39 = scmp.eq.s32.totalorder %s11, 7
      %p40 = por %p38, %p39
      %p41 = scmp.ne.s32.totalorder %s33, %s36
      %p42 = scmp.eq.s32.totalorder %s11, 0
      %p43 = por %p41, %p42
      %p44 = scmp.ne.s32.totalorder %s33, %s36
      %p45 = scmp.eq.s32.totalorder %s16, 7
      %p46 = por %p44, %p45
      %p47 = scmp.ne.s32.totalorder %s36, %s37
      %p48 = scmp.eq.s32.totalorder %s16, 0
      %p49 = por %p47, %p48
      %p50 = scmp.ne.s32.totalorder %s36, %s37
      %p51 = scmp.eq.s32.totalorder %s17, 7
      %p52 = por %p50, %p51
      %p54 = scmp.ne.s32.totalorder %s37, %s53
      %p55 = scmp.eq.s32.totalorder %s17, 0
      %p56 = por %p54, %p55
      %s57 = ssub.s32 %s19, %s26
      %p58 = scmp.eq.s32.totalorder %s57, 0
      %s60 = sadd.s32 %s59, 1
      %s61 = scalar_select %p58, %s59, %s60
      %p64 = pneg %p58
      %p65 = scmp.eq.s32.totalorder %s11, 7
      %p66 = por %p64, %p65
      %p67 = scmp.ne.s32.totalorder %s59, %s62
      %p68 = scmp.eq.s32.totalorder %s11, 0
      %p69 = por %p67, %p68
      %p70 = scmp.ne.s32.totalorder %s59, %s62
      %p71 = scmp.eq.s32.totalorder %s16, 7
      %p72 = por %p70, %p71
      %p73 = scmp.ne.s32.totalorder %s62, %s63
      %p74 = scmp.eq.s32.totalorder %s16, 0
      %p75 = por %p73, %p74
      %p76 = scmp.ne.s32.totalorder %s62, %s63
      %p77 = scmp.eq.s32.totalorder %s17, 7
      %p78 = por %p76, %p77
      %p80 = scmp.ne.s32.totalorder %s63, %s79
      %p81 = scmp.eq.s32.totalorder %s17, 0
      %p82 = por %p80, %p81
      %s83 = ssub.s32 %s18, %s30
      %s84 = ssub.s32 %s19, %s26
      %s85 = sor.u32 %s83, %s84
      %p86 = scmp.eq.s32.totalorder %s85, 0
      %s88 = sadd.s32 %s87, 1
      %s89 = scalar_select %p86, %s87, %s88
      %p92 = pneg %p86
      %p93 = scmp.eq.s32.totalorder %s11, 7
      %p94 = por %p92, %p93
      %p95 = scmp.ne.s32.totalorder %s87, %s90
      %p96 = scmp.eq.s32.totalorder %s11, 0
      %p97 = por %p95, %p96
      %p98 = scmp.ne.s32.totalorder %s87, %s90
      %p99 = scmp.eq.s32.totalorder %s16, 7
      %p100 = por %p98, %p99
      %p101 = scmp.ne.s32.totalorder %s90, %s91
      %p102 = scmp.eq.s32.totalorder %s16, 0
      %p103 = por %p101, %p102
      %p104 = scmp.ne.s32.totalorder %s90, %s91
      %p105 = scmp.eq.s32.totalorder %s17, 7
      %p106 = por %p104, %p105
      %p108 = scmp.ne.s32.totalorder %s91, %s107
      %p109 = scmp.eq.s32.totalorder %s17, 0
      %p110 = por %p108, %p109
      %p111 = scmp.le.s32.totalorder 1, %s11
      %p112 = scmp.lt.s32.totalorder %s11, 9
      %p113 = pnand %p111, %p112
      %p114 = pneg %p113
      // Predicated region
      $region9: #{my_module_forward.3} parent=5 // pred_check
        _
      $region10: #{my_module_forward.3} parent=5 // pred_check_branch
        %116 = sbr.rel (%p113) target = $region12
      $region11: #{my_module_forward.3} parent=5 // pred_region
        %s117 = ssub.s32 %s11, 1
        // Predicated region
        $region13: #{my_module_forward.3} parent=11 // pred_check
          %p118 = pneg %p49
        $region14: #{my_module_forward.3} parent=11 // pred_check_branch
          %120 = sbr.rel (%p118) target = $region16
        $region15: #{my_module_forward.3} parent=11 // pred_region
          %p121 = scmp.lt.s32.totalorder %s20, 0
          %s122 = scalar_select %p121, %s20, 0
          %s123 = smul.addr %s122, 32
          %s124 = smul.addr %s123, 8
          %s125 = scalar_lea.vmem %s0, %s124
        $region16: #{my_module_forward.3} parent=11 // pred_fallthru
          _
      $region12: #{my_module_forward.3} parent=5 // pred_fallthru
        _
      %p126 = scmp.lt.s32.totalorder %s11, 8
      // Predicated region
      $region17: #{my_module_forward.3} parent=5 // pred_check
        %p127 = pneg %p126
      $region18: #{my_module_forward.3} parent=5 // pred_check_branch
        %129 = sbr.rel (%p127) target = $region20
      $region19: #{my_module_forward.3} parent=5 // pred_region
        // Predicated region
        $region21: #{my_module_forward.3} parent=19 // pred_check
          %p130 = pneg %p69
        $region22: #{my_module_forward.3} parent=19 // pred_check_branch
          %132 = sbr.rel (%p130) target = $region24
        $region23: #{my_module_forward.3} parent=19 // pred_region
          %s133 = smul.u32 64, %s19
          %p134 = scmp.lt.s32.totalorder %s133, 511
          %s135 = scalar_select %p134, %s133, 511
          %s136 = smul.addr %s135, 32
          %s137 = smul.addr %s136, 8
          %s138 = scalar_lea.vmem %s1, %s137
          %s139 = smul.u32 64, %s19
        $region24: #{my_module_forward.3} parent=19 // pred_fallthru
          _
      $region20: #{my_module_forward.3} parent=5 // pred_fallthru
        _
      %p140 = scmp.le.s32.totalorder 1, %s11
      %p141 = scmp.lt.s32.totalorder %s11, 9
      %p142 = pnand %p140, %p141
      %p143 = pneg %p142
      // Predicated region
      $region25: #{my_module_forward.3} parent=5 // pred_check
        _
      $region26: #{my_module_forward.3} parent=5 // pred_check_branch
        %145 = sbr.rel (%p142) target = $region28
      $region27: #{my_module_forward.3} parent=5 // pred_region
        %s146 = ssub.s32 %s11, 1
        %p147 = scmp.lt.s32.totalorder %s20, 0
        %s148 = scalar_select %p147, %s20, 0
        %s149 = smul.addr %s148, 32
        %s150 = smul.addr %s149, 8
        %s151 = scalar_lea.vmem %s0, %s150
        %p152 = pneg %p49
        %p153 = pneg %p46
        %s154 = smul.u32 64, %s21
        %p155 = scmp.lt.s32.totalorder %s154, 511
        %s156 = scalar_select %p155, %s154, 511
        %s157 = smul.addr %s156, 32
        %s158 = smul.addr %s157, 8
        %s159 = scalar_lea.vmem %s1, %s158
        %p160 = pneg %p75
        %p161 = pneg %p72
        %p162 = pneg %p103
        %p163 = pneg %p100
        %s164 = sand.u32 %s90, 1
        %s165 = scalar_lea.sflag [#allocation3], %s164
        %s166 = sand.u32 %s90, 1
        %s167 = smul.addr %s166, 32
        %s168 = scalar_lea.vmem [#allocation2], %s167
        %p169 = scmp.lt.s32.totalorder %s20, 0
        %s170 = scalar_select %p169, %s20, 0
        %s171 = smul.addr %s170, 32
        %s172 = smul.addr %s171, 8
        %s173 = scalar_lea.vmem %s0, %s172
        %s174 = smul.u32 64, %s21
        %p175 = scmp.lt.s32.totalorder %s174, 511
        %s176 = scalar_select %p175, %s174, 511
        %s177 = smul.addr %s176, 32
        %s178 = smul.addr %s177, 8
        %s179 = scalar_lea.vmem %s1, %s178
        %s180 = smul.u32 64, %s21
        %s181 = smul.u32 4, %s21
        %v182 = vld [vmem:[%s173] sm:$0xff]
        %v183 = vld [vmem:[%s173 + $0x8] sm:$0xff]
        %v184 = vld [vmem:[%s173 + $0x10] sm:$0xff]
        %v185 = vld [vmem:[%s173 + $0x18] sm:$0xff]
        %v186 = vld [vmem:[%s173 + $0x20] sm:$0xff]
        %v187 = vld [vmem:[%s173 + $0x28] sm:$0xff]
        %v188 = vld [vmem:[%s173 + $0x30] sm:$0xff]
        %v189 = vld [vmem:[%s173 + $0x38] sm:$0xff]
        %v190 = vld [vmem:[%s173 + $0x40] sm:$0xff]
        %v191 = vld [vmem:[%s173 + $0x48] sm:$0xff]
        %v192 = vld [vmem:[%s173 + $0x50] sm:$0xff]
        %v193 = vld [vmem:[%s173 + $0x58] sm:$0xff]
        %v194 = vld [vmem:[%s173 + $0x60] sm:$0xff]
        %v195 = vld [vmem:[%s173 + $0x68] sm:$0xff]
        %v196 = vld [vmem:[%s173 + $0x70] sm:$0xff]
        %v197 = vld [vmem:[%s173 + $0x78] sm:$0xff]
        %v198 = vld [vmem:[%s173 + $0x80] sm:$0xff]
        %v199 = vld [vmem:[%s173 + $0x88] sm:$0xff]
        %v200 = vld [vmem:[%s173 + $0x90] sm:$0xff]
        %v201 = vld [vmem:[%s173 + $0x98] sm:$0xff]
        %v202 = vld [vmem:[%s173 + $0xa0] sm:$0xff]
        %v203 = vld [vmem:[%s173 + $0xa8] sm:$0xff]
        %v204 = vld [vmem:[%s173 + $0xb0] sm:$0xff]
        %v205 = vld [vmem:[%s173 + $0xb8] sm:$0xff]
        %v206 = vld [vmem:[%s173 + $0xc0] sm:$0xff]
        %v207 = vld [vmem:[%s173 + $0xc8] sm:$0xff]
        %v208 = vld [vmem:[%s173 + $0xd0] sm:$0xff]
        %v209 = vld [vmem:[%s173 + $0xd8] sm:$0xff]
        %v210 = vld [vmem:[%s173 + $0xe0] sm:$0xff]
        %v211 = vld [vmem:[%s173 + $0xe8] sm:$0xff]
        %v212 = vld [vmem:[%s173 + $0xf0] sm:$0xff]
        %v213 = vld [vmem:[%s173 + $0xf8] sm:$0xff]
        %v214 = vld [vmem:[%s179] sm:$0xff]
        %v215 = vld [vmem:[%s179 + $0x8] sm:$0xff]
        %v216 = vld [vmem:[%s179 + $0x10] sm:$0xff]
        %v217 = vld [vmem:[%s179 + $0x18] sm:$0xff]
        %v218 = vld [vmem:[%s179 + $0x20] sm:$0xff]
        %v219 = vld [vmem:[%s179 + $0x28] sm:$0xff]
        %v220 = vld [vmem:[%s179 + $0x30] sm:$0xff]
        %v221 = vld [vmem:[%s179 + $0x38] sm:$0xff]
        %v222 = vld [vmem:[%s179 + $0x40] sm:$0xff]
        %v223 = vld [vmem:[%s179 + $0x48] sm:$0xff]
        %v224 = vld [vmem:[%s179 + $0x50] sm:$0xff]
        %v225 = vld [vmem:[%s179 + $0x58] sm:$0xff]
        %v226 = vld [vmem:[%s179 + $0x60] sm:$0xff]
        %v227 = vld [vmem:[%s179 + $0x68] sm:$0xff]
        %v228 = vld [vmem:[%s179 + $0x70] sm:$0xff]
        %v229 = vld [vmem:[%s179 + $0x78] sm:$0xff]
        %v230 = vld [vmem:[%s179 + $0x80] sm:$0xff]
        %v231 = vld [vmem:[%s179 + $0x88] sm:$0xff]
        %v232 = vld [vmem:[%s179 + $0x90] sm:$0xff]
        %v233 = vld [vmem:[%s179 + $0x98] sm:$0xff]
        %v234 = vld [vmem:[%s179 + $0xa0] sm:$0xff]
        %v235 = vld [vmem:[%s179 + $0xa8] sm:$0xff]
        %v236 = vld [vmem:[%s179 + $0xb0] sm:$0xff]
        %v237 = vld [vmem:[%s179 + $0xb8] sm:$0xff]
        %v238 = vld [vmem:[%s179 + $0xc0] sm:$0xff]
        %v239 = vld [vmem:[%s179 + $0xc8] sm:$0xff]
        %v240 = vld [vmem:[%s179 + $0xd0] sm:$0xff]
        %v241 = vld [vmem:[%s179 + $0xd8] sm:$0xff]
        %v242 = vld [vmem:[%s179 + $0xe0] sm:$0xff]
        %v243 = vld [vmem:[%s179 + $0xe8] sm:$0xff]
        %v244 = vld [vmem:[%s179 + $0xf0] sm:$0xff]
        %v245 = vld [vmem:[%s179 + $0xf8] sm:$0xff]
        %v246 = vld [vmem:[%s179 + $0x100] sm:$0xff]
        %v247 = vld [vmem:[%s179 + $0x108] sm:$0xff]
        %v248 = vld [vmem:[%s179 + $0x110] sm:$0xff]
        %v249 = vld [vmem:[%s179 + $0x118] sm:$0xff]
        %v250 = vld [vmem:[%s179 + $0x120] sm:$0xff]
        %v251 = vld [vmem:[%s179 + $0x128] sm:$0xff]
        %v252 = vld [vmem:[%s179 + $0x130] sm:$0xff]
        %v253 = vld [vmem:[%s179 + $0x138] sm:$0xff]
        %v254 = vld [vmem:[%s179 + $0x140] sm:$0xff]
        %v255 = vld [vmem:[%s179 + $0x148] sm:$0xff]
        %v256 = vld [vmem:[%s179 + $0x150] sm:$0xff]
        %v257 = vld [vmem:[%s179 + $0x158] sm:$0xff]
        %v258 = vld [vmem:[%s179 + $0x160] sm:$0xff]
        %v259 = vld [vmem:[%s179 + $0x168] sm:$0xff]
        %v260 = vld [vmem:[%s179 + $0x170] sm:$0xff]
        %v261 = vld [vmem:[%s179 + $0x178] sm:$0xff]
        %v262 = vld [vmem:[%s179 + $0x180] sm:$0xff]
        %v263 = vld [vmem:[%s179 + $0x188] sm:$0xff]
        %v264 = vld [vmem:[%s179 + $0x190] sm:$0xff]
        %v265 = vld [vmem:[%s179 + $0x198] sm:$0xff]
        %v266 = vld [vmem:[%s179 + $0x1a0] sm:$0xff]
        %v267 = vld [vmem:[%s179 + $0x1a8] sm:$0xff]
        %v268 = vld [vmem:[%s179 + $0x1b0] sm:$0xff]
        %v269 = vld [vmem:[%s179 + $0x1b8] sm:$0xff]
        %v270 = vld [vmem:[%s179 + $0x1c0] sm:$0xff]
        %v271 = vld [vmem:[%s179 + $0x1c8] sm:$0xff]
        %v272 = vld [vmem:[%s179 + $0x1d0] sm:$0xff]
        %v273 = vld [vmem:[%s179 + $0x1d8] sm:$0xff]
        %v274 = vld [vmem:[%s179 + $0x1e0] sm:$0xff]
        %v275 = vld [vmem:[%s179 + $0x1e8] sm:$0xff]
        %v276 = vld [vmem:[%s179 + $0x1f0] sm:$0xff]
        %v277 = vld [vmem:[%s179 + $0x1f8] sm:$0xff]
        %v278 = vld [vmem:[%s179 + $0x200] sm:$0xff]
        %v279 = vld [vmem:[%s179 + $0x208] sm:$0xff]
        %v280 = vld [vmem:[%s179 + $0x210] sm:$0xff]
        %v281 = vld [vmem:[%s179 + $0x218] sm:$0xff]
        %v282 = vld [vmem:[%s179 + $0x220] sm:$0xff]
        %v283 = vld [vmem:[%s179 + $0x228] sm:$0xff]
        %v284 = vld [vmem:[%s179 + $0x230] sm:$0xff]
        %v285 = vld [vmem:[%s179 + $0x238] sm:$0xff]
        %v286 = vld [vmem:[%s179 + $0x240] sm:$0xff]
        %v287 = vld [vmem:[%s179 + $0x248] sm:$0xff]
        %v288 = vld [vmem:[%s179 + $0x250] sm:$0xff]
        %v289 = vld [vmem:[%s179 + $0x258] sm:$0xff]
        %v290 = vld [vmem:[%s179 + $0x260] sm:$0xff]
        %v291 = vld [vmem:[%s179 + $0x268] sm:$0xff]
        %v292 = vld [vmem:[%s179 + $0x270] sm:$0xff]
        %v293 = vld [vmem:[%s179 + $0x278] sm:$0xff]
        %v294 = vld [vmem:[%s179 + $0x280] sm:$0xff]
        %v295 = vld [vmem:[%s179 + $0x288] sm:$0xff]
        %v296 = vld [vmem:[%s179 + $0x290] sm:$0xff]
        %v297 = vld [vmem:[%s179 + $0x298] sm:$0xff]
        %v298 = vld [vmem:[%s179 + $0x2a0] sm:$0xff]
        %v299 = vld [vmem:[%s179 + $0x2a8] sm:$0xff]
        %v300 = vld [vmem:[%s179 + $0x2b0] sm:$0xff]
        %v301 = vld [vmem:[%s179 + $0x2b8] sm:$0xff]
        %v302 = vld [vmem:[%s179 + $0x2c0] sm:$0xff]
        %v303 = vld [vmem:[%s179 + $0x2c8] sm:$0xff]
        %v304 = vld [vmem:[%s179 + $0x2d0] sm:$0xff]
        %v305 = vld [vmem:[%s179 + $0x2d8] sm:$0xff]
        %v306 = vld [vmem:[%s179 + $0x2e0] sm:$0xff]
        %v307 = vld [vmem:[%s179 + $0x2e8] sm:$0xff]
        %v308 = vld [vmem:[%s179 + $0x2f0] sm:$0xff]
        %v309 = vld [vmem:[%s179 + $0x2f8] sm:$0xff]
        %v310 = vld [vmem:[%s179 + $0x300] sm:$0xff]
        %v311 = vld [vmem:[%s179 + $0x308] sm:$0xff]
        %v312 = vld [vmem:[%s179 + $0x310] sm:$0xff]
        %v313 = vld [vmem:[%s179 + $0x318] sm:$0xff]
        %v314 = vld [vmem:[%s179 + $0x320] sm:$0xff]
        %v315 = vld [vmem:[%s179 + $0x328] sm:$0xff]
        %v316 = vld [vmem:[%s179 + $0x330] sm:$0xff]
        %v317 = vld [vmem:[%s179 + $0x338] sm:$0xff]
        %v318 = vld [vmem:[%s179 + $0x340] sm:$0xff]
        %v319 = vld [vmem:[%s179 + $0x348] sm:$0xff]
        %v320 = vld [vmem:[%s179 + $0x350] sm:$0xff]
        %v321 = vld [vmem:[%s179 + $0x358] sm:$0xff]
        %v322 = vld [vmem:[%s179 + $0x360] sm:$0xff]
        %v323 = vld [vmem:[%s179 + $0x368] sm:$0xff]
        %v324 = vld [vmem:[%s179 + $0x370] sm:$0xff]
        %v325 = vld [vmem:[%s179 + $0x378] sm:$0xff]
        %v326 = vld [vmem:[%s179 + $0x380] sm:$0xff]
        %v327 = vld [vmem:[%s179 + $0x388] sm:$0xff]
        %v328 = vld [vmem:[%s179 + $0x390] sm:$0xff]
        %v329 = vld [vmem:[%s179 + $0x398] sm:$0xff]
        %v330 = vld [vmem:[%s179 + $0x3a0] sm:$0xff]
        %v331 = vld [vmem:[%s179 + $0x3a8] sm:$0xff]
        %v332 = vld [vmem:[%s179 + $0x3b0] sm:$0xff]
        %v333 = vld [vmem:[%s179 + $0x3b8] sm:$0xff]
        %v334 = vld [vmem:[%s179 + $0x3c0] sm:$0xff]
        %v335 = vld [vmem:[%s179 + $0x3c8] sm:$0xff]
        %v336 = vld [vmem:[%s179 + $0x3d0] sm:$0xff]
        %v337 = vld [vmem:[%s179 + $0x3d8] sm:$0xff]
        %v338 = vld [vmem:[%s179 + $0x3e0] sm:$0xff]
        %v339 = vld [vmem:[%s179 + $0x3e8] sm:$0xff]
        %v340 = vld [vmem:[%s179 + $0x3f0] sm:$0xff]
        %v341 = vld [vmem:[%s179 + $0x3f8] sm:$0xff]
        %v342 = vld [vmem:[%s179 + $0x400] sm:$0xff]
        %v343 = vld [vmem:[%s179 + $0x408] sm:$0xff]
        %v344 = vld [vmem:[%s179 + $0x410] sm:$0xff]
        %v345 = vld [vmem:[%s179 + $0x418] sm:$0xff]
        %v346 = vld [vmem:[%s179 + $0x420] sm:$0xff]
        %v347 = vld [vmem:[%s179 + $0x428] sm:$0xff]
        %v348 = vld [vmem:[%s179 + $0x430] sm:$0xff]
        %v349 = vld [vmem:[%s179 + $0x438] sm:$0xff]
        %v350 = vld [vmem:[%s179 + $0x440] sm:$0xff]
        %v351 = vld [vmem:[%s179 + $0x448] sm:$0xff]
        %v352 = vld [vmem:[%s179 + $0x450] sm:$0xff]
        %v353 = vld [vmem:[%s179 + $0x458] sm:$0xff]
        %v354 = vld [vmem:[%s179 + $0x460] sm:$0xff]
        %v355 = vld [vmem:[%s179 + $0x468] sm:$0xff]
        %v356 = vld [vmem:[%s179 + $0x470] sm:$0xff]
        %v357 = vld [vmem:[%s179 + $0x478] sm:$0xff]
        %v358 = vld [vmem:[%s179 + $0x480] sm:$0xff]
        %v359 = vld [vmem:[%s179 + $0x488] sm:$0xff]
        %v360 = vld [vmem:[%s179 + $0x490] sm:$0xff]
        %v361 = vld [vmem:[%s179 + $0x498] sm:$0xff]
        %v362 = vld [vmem:[%s179 + $0x4a0] sm:$0xff]
        %v363 = vld [vmem:[%s179 + $0x4a8] sm:$0xff]
        %v364 = vld [vmem:[%s179 + $0x4b0] sm:$0xff]
        %v365 = vld [vmem:[%s179 + $0x4b8] sm:$0xff]
        %v366 = vld [vmem:[%s179 + $0x4c0] sm:$0xff]
        %v367 = vld [vmem:[%s179 + $0x4c8] sm:$0xff]
        %v368 = vld [vmem:[%s179 + $0x4d0] sm:$0xff]
        %v369 = vld [vmem:[%s179 + $0x4d8] sm:$0xff]
        %v370 = vld [vmem:[%s179 + $0x4e0] sm:$0xff]
        %v371 = vld [vmem:[%s179 + $0x4e8] sm:$0xff]
        %v372 = vld [vmem:[%s179 + $0x4f0] sm:$0xff]
        %v373 = vld [vmem:[%s179 + $0x4f8] sm:$0xff]
        %v374 = vld [vmem:[%s179 + $0x500] sm:$0xff]
        %v375 = vld [vmem:[%s179 + $0x508] sm:$0xff]
        %v376 = vld [vmem:[%s179 + $0x510] sm:$0xff]
        %v377 = vld [vmem:[%s179 + $0x518] sm:$0xff]
        %v378 = vld [vmem:[%s179 + $0x520] sm:$0xff]
        %v379 = vld [vmem:[%s179 + $0x528] sm:$0xff]
        %v380 = vld [vmem:[%s179 + $0x530] sm:$0xff]
        %v381 = vld [vmem:[%s179 + $0x538] sm:$0xff]
        %v382 = vld [vmem:[%s179 + $0x540] sm:$0xff]
        %v383 = vld [vmem:[%s179 + $0x548] sm:$0xff]
        %v384 = vld [vmem:[%s179 + $0x550] sm:$0xff]
        %v385 = vld [vmem:[%s179 + $0x558] sm:$0xff]
        %v386 = vld [vmem:[%s179 + $0x560] sm:$0xff]
        %v387 = vld [vmem:[%s179 + $0x568] sm:$0xff]
        %v388 = vld [vmem:[%s179 + $0x570] sm:$0xff]
        %v389 = vld [vmem:[%s179 + $0x578] sm:$0xff]
        %v390 = vld [vmem:[%s179 + $0x580] sm:$0xff]
        %v391 = vld [vmem:[%s179 + $0x588] sm:$0xff]
        %v392 = vld [vmem:[%s179 + $0x590] sm:$0xff]
        %v393 = vld [vmem:[%s179 + $0x598] sm:$0xff]
        %v394 = vld [vmem:[%s179 + $0x5a0] sm:$0xff]
        %v395 = vld [vmem:[%s179 + $0x5a8] sm:$0xff]
        %v396 = vld [vmem:[%s179 + $0x5b0] sm:$0xff]
        %v397 = vld [vmem:[%s179 + $0x5b8] sm:$0xff]
        %v398 = vld [vmem:[%s179 + $0x5c0] sm:$0xff]
        %v399 = vld [vmem:[%s179 + $0x5c8] sm:$0xff]
        %v400 = vld [vmem:[%s179 + $0x5d0] sm:$0xff]
        %v401 = vld [vmem:[%s179 + $0x5d8] sm:$0xff]
        %v402 = vld [vmem:[%s179 + $0x5e0] sm:$0xff]
        %v403 = vld [vmem:[%s179 + $0x5e8] sm:$0xff]
        %v404 = vld [vmem:[%s179 + $0x5f0] sm:$0xff]
        %v405 = vld [vmem:[%s179 + $0x5f8] sm:$0xff]
        %v406 = vld [vmem:[%s179 + $0x600] sm:$0xff]
        %v407 = vld [vmem:[%s179 + $0x608] sm:$0xff]
        %v408 = vld [vmem:[%s179 + $0x610] sm:$0xff]
        %v409 = vld [vmem:[%s179 + $0x618] sm:$0xff]
        %v410 = vld [vmem:[%s179 + $0x620] sm:$0xff]
        %v411 = vld [vmem:[%s179 + $0x628] sm:$0xff]
        %v412 = vld [vmem:[%s179 + $0x630] sm:$0xff]
        %v413 = vld [vmem:[%s179 + $0x638] sm:$0xff]
        %v414 = vld [vmem:[%s179 + $0x640] sm:$0xff]
        %v415 = vld [vmem:[%s179 + $0x648] sm:$0xff]
        %v416 = vld [vmem:[%s179 + $0x650] sm:$0xff]
        %v417 = vld [vmem:[%s179 + $0x658] sm:$0xff]
        %v418 = vld [vmem:[%s179 + $0x660] sm:$0xff]
        %v419 = vld [vmem:[%s179 + $0x668] sm:$0xff]
        %v420 = vld [vmem:[%s179 + $0x670] sm:$0xff]
        %v421 = vld [vmem:[%s179 + $0x678] sm:$0xff]
        %v422 = vld [vmem:[%s179 + $0x680] sm:$0xff]
        %v423 = vld [vmem:[%s179 + $0x688] sm:$0xff]
        %v424 = vld [vmem:[%s179 + $0x690] sm:$0xff]
        %v425 = vld [vmem:[%s179 + $0x698] sm:$0xff]
        %v426 = vld [vmem:[%s179 + $0x6a0] sm:$0xff]
        %v427 = vld [vmem:[%s179 + $0x6a8] sm:$0xff]
        %v428 = vld [vmem:[%s179 + $0x6b0] sm:$0xff]
        %v429 = vld [vmem:[%s179 + $0x6b8] sm:$0xff]
        %v430 = vld [vmem:[%s179 + $0x6c0] sm:$0xff]
        %v431 = vld [vmem:[%s179 + $0x6c8] sm:$0xff]
        %v432 = vld [vmem:[%s179 + $0x6d0] sm:$0xff]
        %v433 = vld [vmem:[%s179 + $0x6d8] sm:$0xff]
        %v434 = vld [vmem:[%s179 + $0x6e0] sm:$0xff]
        %v435 = vld [vmem:[%s179 + $0x6e8] sm:$0xff]
        %v436 = vld [vmem:[%s179 + $0x6f0] sm:$0xff]
        %v437 = vld [vmem:[%s179 + $0x6f8] sm:$0xff]
        %v438 = vld [vmem:[%s179 + $0x700] sm:$0xff]
        %v439 = vld [vmem:[%s179 + $0x708] sm:$0xff]
        %v440 = vld [vmem:[%s179 + $0x710] sm:$0xff]
        %v441 = vld [vmem:[%s179 + $0x718] sm:$0xff]
        %v442 = vld [vmem:[%s179 + $0x720] sm:$0xff]
        %v443 = vld [vmem:[%s179 + $0x728] sm:$0xff]
        %v444 = vld [vmem:[%s179 + $0x730] sm:$0xff]
        %v445 = vld [vmem:[%s179 + $0x738] sm:$0xff]
        %v446 = vld [vmem:[%s179 + $0x740] sm:$0xff]
        %v447 = vld [vmem:[%s179 + $0x748] sm:$0xff]
        %v448 = vld [vmem:[%s179 + $0x750] sm:$0xff]
        %v449 = vld [vmem:[%s179 + $0x758] sm:$0xff]
        %v450 = vld [vmem:[%s179 + $0x760] sm:$0xff]
        %v451 = vld [vmem:[%s179 + $0x768] sm:$0xff]
        %v452 = vld [vmem:[%s179 + $0x770] sm:$0xff]
        %v453 = vld [vmem:[%s179 + $0x778] sm:$0xff]
        %v454 = vld [vmem:[%s179 + $0x780] sm:$0xff]
        %v455 = vld [vmem:[%s179 + $0x788] sm:$0xff]
        %v456 = vld [vmem:[%s179 + $0x790] sm:$0xff]
        %v457 = vld [vmem:[%s179 + $0x798] sm:$0xff]
        %v458 = vld [vmem:[%s179 + $0x7a0] sm:$0xff]
        %v459 = vld [vmem:[%s179 + $0x7a8] sm:$0xff]
        %v460 = vld [vmem:[%s179 + $0x7b0] sm:$0xff]
        %v461 = vld [vmem:[%s179 + $0x7b8] sm:$0xff]
        %v462 = vld [vmem:[%s179 + $0x7c0] sm:$0xff]
        %v463 = vld [vmem:[%s179 + $0x7c8] sm:$0xff]
        %v464 = vld [vmem:[%s179 + $0x7d0] sm:$0xff]
        %v465 = vld [vmem:[%s179 + $0x7d8] sm:$0xff]
        %v466 = vld [vmem:[%s179 + $0x7e0] sm:$0xff]
        %v467 = vld [vmem:[%s179 + $0x7e8] sm:$0xff]
        %v468 = vld [vmem:[%s179 + $0x7f0] sm:$0xff]
        %v469 = vld [vmem:[%s179 + $0x7f8] sm:$0xff]
        %v470 = vld [vmem:[%s179 + $0x800] sm:$0xff]
        %v471 = vld [vmem:[%s179 + $0x808] sm:$0xff]
        %v472 = vld [vmem:[%s179 + $0x810] sm:$0xff]
        %v473 = vld [vmem:[%s179 + $0x818] sm:$0xff]
        %v474 = vld [vmem:[%s179 + $0x820] sm:$0xff]
        %v475 = vld [vmem:[%s179 + $0x828] sm:$0xff]
        %v476 = vld [vmem:[%s179 + $0x830] sm:$0xff]
        %v477 = vld [vmem:[%s179 + $0x838] sm:$0xff]
        %v478 = vld [vmem:[%s179 + $0x840] sm:$0xff]
        %v479 = vld [vmem:[%s179 + $0x848] sm:$0xff]
        %v480 = vld [vmem:[%s179 + $0x850] sm:$0xff]
        %v481 = vld [vmem:[%s179 + $0x858] sm:$0xff]
        %v482 = vld [vmem:[%s179 + $0x860] sm:$0xff]
        %v483 = vld [vmem:[%s179 + $0x868] sm:$0xff]
        %v484 = vld [vmem:[%s179 + $0x870] sm:$0xff]
        %v485 = vld [vmem:[%s179 + $0x878] sm:$0xff]
        %v486 = vld [vmem:[%s179 + $0x880] sm:$0xff]
        %v487 = vld [vmem:[%s179 + $0x888] sm:$0xff]
        %v488 = vld [vmem:[%s179 + $0x890] sm:$0xff]
        %v489 = vld [vmem:[%s179 + $0x898] sm:$0xff]
        %v490 = vld [vmem:[%s179 + $0x8a0] sm:$0xff]
        %v491 = vld [vmem:[%s179 + $0x8a8] sm:$0xff]
        %v492 = vld [vmem:[%s179 + $0x8b0] sm:$0xff]
        %v493 = vld [vmem:[%s179 + $0x8b8] sm:$0xff]
        %v494 = vld [vmem:[%s179 + $0x8c0] sm:$0xff]
        %v495 = vld [vmem:[%s179 + $0x8c8] sm:$0xff]
        %v496 = vld [vmem:[%s179 + $0x8d0] sm:$0xff]
        %v497 = vld [vmem:[%s179 + $0x8d8] sm:$0xff]
        %v498 = vld [vmem:[%s179 + $0x8e0] sm:$0xff]
        %v499 = vld [vmem:[%s179 + $0x8e8] sm:$0xff]
        %v500 = vld [vmem:[%s179 + $0x8f0] sm:$0xff]
        %v501 = vld [vmem:[%s179 + $0x8f8] sm:$0xff]
        %v502 = vld [vmem:[%s179 + $0x900] sm:$0xff]
        %v503 = vld [vmem:[%s179 + $0x908] sm:$0xff]
        %v504 = vld [vmem:[%s179 + $0x910] sm:$0xff]
        %v505 = vld [vmem:[%s179 + $0x918] sm:$0xff]
        %v506 = vld [vmem:[%s179 + $0x920] sm:$0xff]
        %v507 = vld [vmem:[%s179 + $0x928] sm:$0xff]
        %v508 = vld [vmem:[%s179 + $0x930] sm:$0xff]
        %v509 = vld [vmem:[%s179 + $0x938] sm:$0xff]
        %v510 = vld [vmem:[%s179 + $0x940] sm:$0xff]
        %v511 = vld [vmem:[%s179 + $0x948] sm:$0xff]
        %v512 = vld [vmem:[%s179 + $0x950] sm:$0xff]
        %v513 = vld [vmem:[%s179 + $0x958] sm:$0xff]
        %v514 = vld [vmem:[%s179 + $0x960] sm:$0xff]
        %v515 = vld [vmem:[%s179 + $0x968] sm:$0xff]
        %v516 = vld [vmem:[%s179 + $0x970] sm:$0xff]
        %v517 = vld [vmem:[%s179 + $0x978] sm:$0xff]
        %v518 = vld [vmem:[%s179 + $0x980] sm:$0xff]
        %v519 = vld [vmem:[%s179 + $0x988] sm:$0xff]
        %v520 = vld [vmem:[%s179 + $0x990] sm:$0xff]
        %v521 = vld [vmem:[%s179 + $0x998] sm:$0xff]
        %v522 = vld [vmem:[%s179 + $0x9a0] sm:$0xff]
        %v523 = vld [vmem:[%s179 + $0x9a8] sm:$0xff]
        %v524 = vld [vmem:[%s179 + $0x9b0] sm:$0xff]
        %v525 = vld [vmem:[%s179 + $0x9b8] sm:$0xff]
        %v526 = vld [vmem:[%s179 + $0x9c0] sm:$0xff]
        %v527 = vld [vmem:[%s179 + $0x9c8] sm:$0xff]
        %v528 = vld [vmem:[%s179 + $0x9d0] sm:$0xff]
        %v529 = vld [vmem:[%s179 + $0x9d8] sm:$0xff]
        %v530 = vld [vmem:[%s179 + $0x9e0] sm:$0xff]
        %v531 = vld [vmem:[%s179 + $0x9e8] sm:$0xff]
        %v532 = vld [vmem:[%s179 + $0x9f0] sm:$0xff]
        %v533 = vld [vmem:[%s179 + $0x9f8] sm:$0xff]
        %v534 = vld [vmem:[%s179 + $0xa00] sm:$0xff]
        %v535 = vld [vmem:[%s179 + $0xa08] sm:$0xff]
        %v536 = vld [vmem:[%s179 + $0xa10] sm:$0xff]
        %v537 = vld [vmem:[%s179 + $0xa18] sm:$0xff]
        %v538 = vld [vmem:[%s179 + $0xa20] sm:$0xff]
        %v539 = vld [vmem:[%s179 + $0xa28] sm:$0xff]
        %v540 = vld [vmem:[%s179 + $0xa30] sm:$0xff]
        %v541 = vld [vmem:[%s179 + $0xa38] sm:$0xff]
        %v542 = vld [vmem:[%s179 + $0xa40] sm:$0xff]
        %v543 = vld [vmem:[%s179 + $0xa48] sm:$0xff]
        %v544 = vld [vmem:[%s179 + $0xa50] sm:$0xff]
        %v545 = vld [vmem:[%s179 + $0xa58] sm:$0xff]
        %v546 = vld [vmem:[%s179 + $0xa60] sm:$0xff]
        %v547 = vld [vmem:[%s179 + $0xa68] sm:$0xff]
        %v548 = vld [vmem:[%s179 + $0xa70] sm:$0xff]
        %v549 = vld [vmem:[%s179 + $0xa78] sm:$0xff]
        %v550 = vld [vmem:[%s179 + $0xa80] sm:$0xff]
        %v551 = vld [vmem:[%s179 + $0xa88] sm:$0xff]
        %v552 = vld [vmem:[%s179 + $0xa90] sm:$0xff]
        %v553 = vld [vmem:[%s179 + $0xa98] sm:$0xff]
        %v554 = vld [vmem:[%s179 + $0xaa0] sm:$0xff]
        %v555 = vld [vmem:[%s179 + $0xaa8] sm:$0xff]
        %v556 = vld [vmem:[%s179 + $0xab0] sm:$0xff]
        %v557 = vld [vmem:[%s179 + $0xab8] sm:$0xff]
        %v558 = vld [vmem:[%s179 + $0xac0] sm:$0xff]
        %v559 = vld [vmem:[%s179 + $0xac8] sm:$0xff]
        %v560 = vld [vmem:[%s179 + $0xad0] sm:$0xff]
        %v561 = vld [vmem:[%s179 + $0xad8] sm:$0xff]
        %v562 = vld [vmem:[%s179 + $0xae0] sm:$0xff]
        %v563 = vld [vmem:[%s179 + $0xae8] sm:$0xff]
        %v564 = vld [vmem:[%s179 + $0xaf0] sm:$0xff]
        %v565 = vld [vmem:[%s179 + $0xaf8] sm:$0xff]
        %v566 = vld [vmem:[%s179 + $0xb00] sm:$0xff]
        %v567 = vld [vmem:[%s179 + $0xb08] sm:$0xff]
        %v568 = vld [vmem:[%s179 + $0xb10] sm:$0xff]
        %v569 = vld [vmem:[%s179 + $0xb18] sm:$0xff]
        %v570 = vld [vmem:[%s179 + $0xb20] sm:$0xff]
        %v571 = vld [vmem:[%s179 + $0xb28] sm:$0xff]
        %v572 = vld [vmem:[%s179 + $0xb30] sm:$0xff]
        %v573 = vld [vmem:[%s179 + $0xb38] sm:$0xff]
        %v574 = vld [vmem:[%s179 + $0xb40] sm:$0xff]
        %v575 = vld [vmem:[%s179 + $0xb48] sm:$0xff]
        %v576 = vld [vmem:[%s179 + $0xb50] sm:$0xff]
        %v577 = vld [vmem:[%s179 + $0xb58] sm:$0xff]
        %v578 = vld [vmem:[%s179 + $0xb60] sm:$0xff]
        %v579 = vld [vmem:[%s179 + $0xb68] sm:$0xff]
        %v580 = vld [vmem:[%s179 + $0xb70] sm:$0xff]
        %v581 = vld [vmem:[%s179 + $0xb78] sm:$0xff]
        %v582 = vld [vmem:[%s179 + $0xb80] sm:$0xff]
        %v583 = vld [vmem:[%s179 + $0xb88] sm:$0xff]
        %v584 = vld [vmem:[%s179 + $0xb90] sm:$0xff]
        %v585 = vld [vmem:[%s179 + $0xb98] sm:$0xff]
        %v586 = vld [vmem:[%s179 + $0xba0] sm:$0xff]
        %v587 = vld [vmem:[%s179 + $0xba8] sm:$0xff]
        %v588 = vld [vmem:[%s179 + $0xbb0] sm:$0xff]
        %v589 = vld [vmem:[%s179 + $0xbb8] sm:$0xff]
        %v590 = vld [vmem:[%s179 + $0xbc0] sm:$0xff]
        %v591 = vld [vmem:[%s179 + $0xbc8] sm:$0xff]
        %v592 = vld [vmem:[%s179 + $0xbd0] sm:$0xff]
        %v593 = vld [vmem:[%s179 + $0xbd8] sm:$0xff]
        %v594 = vld [vmem:[%s179 + $0xbe0] sm:$0xff]
        %v595 = vld [vmem:[%s179 + $0xbe8] sm:$0xff]
        %v596 = vld [vmem:[%s179 + $0xbf0] sm:$0xff]
        %v597 = vld [vmem:[%s179 + $0xbf8] sm:$0xff]
        %v598 = vld [vmem:[%s179 + $0xc00] sm:$0xff]
        %v599 = vld [vmem:[%s179 + $0xc08] sm:$0xff]
        %v600 = vld [vmem:[%s179 + $0xc10] sm:$0xff]
        %v601 = vld [vmem:[%s179 + $0xc18] sm:$0xff]
        %v602 = vld [vmem:[%s179 + $0xc20] sm:$0xff]
        %v603 = vld [vmem:[%s179 + $0xc28] sm:$0xff]
        %v604 = vld [vmem:[%s179 + $0xc30] sm:$0xff]
        %v605 = vld [vmem:[%s179 + $0xc38] sm:$0xff]
        %v606 = vld [vmem:[%s179 + $0xc40] sm:$0xff]
        %v607 = vld [vmem:[%s179 + $0xc48] sm:$0xff]
        %v608 = vld [vmem:[%s179 + $0xc50] sm:$0xff]
        %v609 = vld [vmem:[%s179 + $0xc58] sm:$0xff]
        %v610 = vld [vmem:[%s179 + $0xc60] sm:$0xff]
        %v611 = vld [vmem:[%s179 + $0xc68] sm:$0xff]
        %v612 = vld [vmem:[%s179 + $0xc70] sm:$0xff]
        %v613 = vld [vmem:[%s179 + $0xc78] sm:$0xff]
        %v614 = vld [vmem:[%s179 + $0xc80] sm:$0xff]
        %v615 = vld [vmem:[%s179 + $0xc88] sm:$0xff]
        %v616 = vld [vmem:[%s179 + $0xc90] sm:$0xff]
        %v617 = vld [vmem:[%s179 + $0xc98] sm:$0xff]
        %v618 = vld [vmem:[%s179 + $0xca0] sm:$0xff]
        %v619 = vld [vmem:[%s179 + $0xca8] sm:$0xff]
        %v620 = vld [vmem:[%s179 + $0xcb0] sm:$0xff]
        %v621 = vld [vmem:[%s179 + $0xcb8] sm:$0xff]
        %v622 = vld [vmem:[%s179 + $0xcc0] sm:$0xff]
        %v623 = vld [vmem:[%s179 + $0xcc8] sm:$0xff]
        %v624 = vld [vmem:[%s179 + $0xcd0] sm:$0xff]
        %v625 = vld [vmem:[%s179 + $0xcd8] sm:$0xff]
        %v626 = vld [vmem:[%s179 + $0xce0] sm:$0xff]
        %v627 = vld [vmem:[%s179 + $0xce8] sm:$0xff]
        %v628 = vld [vmem:[%s179 + $0xcf0] sm:$0xff]
        %v629 = vld [vmem:[%s179 + $0xcf8] sm:$0xff]
        %v630 = vld [vmem:[%s179 + $0xd00] sm:$0xff]
        %v631 = vld [vmem:[%s179 + $0xd08] sm:$0xff]
        %v632 = vld [vmem:[%s179 + $0xd10] sm:$0xff]
        %v633 = vld [vmem:[%s179 + $0xd18] sm:$0xff]
        %v634 = vld [vmem:[%s179 + $0xd20] sm:$0xff]
        %v635 = vld [vmem:[%s179 + $0xd28] sm:$0xff]
        %v636 = vld [vmem:[%s179 + $0xd30] sm:$0xff]
        %v637 = vld [vmem:[%s179 + $0xd38] sm:$0xff]
        %v638 = vld [vmem:[%s179 + $0xd40] sm:$0xff]
        %v639 = vld [vmem:[%s179 + $0xd48] sm:$0xff]
        %v640 = vld [vmem:[%s179 + $0xd50] sm:$0xff]
        %v641 = vld [vmem:[%s179 + $0xd58] sm:$0xff]
        %v642 = vld [vmem:[%s179 + $0xd60] sm:$0xff]
        %v643 = vld [vmem:[%s179 + $0xd68] sm:$0xff]
        %v644 = vld [vmem:[%s179 + $0xd70] sm:$0xff]
        %v645 = vld [vmem:[%s179 + $0xd78] sm:$0xff]
        %v646 = vld [vmem:[%s179 + $0xd80] sm:$0xff]
        %v647 = vld [vmem:[%s179 + $0xd88] sm:$0xff]
        %v648 = vld [vmem:[%s179 + $0xd90] sm:$0xff]
        %v649 = vld [vmem:[%s179 + $0xd98] sm:$0xff]
        %v650 = vld [vmem:[%s179 + $0xda0] sm:$0xff]
        %v651 = vld [vmem:[%s179 + $0xda8] sm:$0xff]
        %v652 = vld [vmem:[%s179 + $0xdb0] sm:$0xff]
        %v653 = vld [vmem:[%s179 + $0xdb8] sm:$0xff]
        %v654 = vld [vmem:[%s179 + $0xdc0] sm:$0xff]
        %v655 = vld [vmem:[%s179 + $0xdc8] sm:$0xff]
        %v656 = vld [vmem:[%s179 + $0xdd0] sm:$0xff]
        %v657 = vld [vmem:[%s179 + $0xdd8] sm:$0xff]
        %v658 = vld [vmem:[%s179 + $0xde0] sm:$0xff]
        %v659 = vld [vmem:[%s179 + $0xde8] sm:$0xff]
        %v660 = vld [vmem:[%s179 + $0xdf0] sm:$0xff]
        %v661 = vld [vmem:[%s179 + $0xdf8] sm:$0xff]
        %v662 = vld [vmem:[%s179 + $0xe00] sm:$0xff]
        %v663 = vld [vmem:[%s179 + $0xe08] sm:$0xff]
        %v664 = vld [vmem:[%s179 + $0xe10] sm:$0xff]
        %v665 = vld [vmem:[%s179 + $0xe18] sm:$0xff]
        %v666 = vld [vmem:[%s179 + $0xe20] sm:$0xff]
        %v667 = vld [vmem:[%s179 + $0xe28] sm:$0xff]
        %v668 = vld [vmem:[%s179 + $0xe30] sm:$0xff]
        %v669 = vld [vmem:[%s179 + $0xe38] sm:$0xff]
        %v670 = vld [vmem:[%s179 + $0xe40] sm:$0xff]
        %v671 = vld [vmem:[%s179 + $0xe48] sm:$0xff]
        %v672 = vld [vmem:[%s179 + $0xe50] sm:$0xff]
        %v673 = vld [vmem:[%s179 + $0xe58] sm:$0xff]
        %v674 = vld [vmem:[%s179 + $0xe60] sm:$0xff]
        %v675 = vld [vmem:[%s179 + $0xe68] sm:$0xff]
        %v676 = vld [vmem:[%s179 + $0xe70] sm:$0xff]
        %v677 = vld [vmem:[%s179 + $0xe78] sm:$0xff]
        %v678 = vld [vmem:[%s179 + $0xe80] sm:$0xff]
        %v679 = vld [vmem:[%s179 + $0xe88] sm:$0xff]
        %v680 = vld [vmem:[%s179 + $0xe90] sm:$0xff]
        %v681 = vld [vmem:[%s179 + $0xe98] sm:$0xff]
        %v682 = vld [vmem:[%s179 + $0xea0] sm:$0xff]
        %v683 = vld [vmem:[%s179 + $0xea8] sm:$0xff]
        %v684 = vld [vmem:[%s179 + $0xeb0] sm:$0xff]
        %v685 = vld [vmem:[%s179 + $0xeb8] sm:$0xff]
        %v686 = vld [vmem:[%s179 + $0xec0] sm:$0xff]
        %v687 = vld [vmem:[%s179 + $0xec8] sm:$0xff]
        %v688 = vld [vmem:[%s179 + $0xed0] sm:$0xff]
        %v689 = vld [vmem:[%s179 + $0xed8] sm:$0xff]
        %v690 = vld [vmem:[%s179 + $0xee0] sm:$0xff]
        %v691 = vld [vmem:[%s179 + $0xee8] sm:$0xff]
        %v692 = vld [vmem:[%s179 + $0xef0] sm:$0xff]
        %v693 = vld [vmem:[%s179 + $0xef8] sm:$0xff]
        %v694 = vld [vmem:[%s179 + $0xf00] sm:$0xff]
        %v695 = vld [vmem:[%s179 + $0xf08] sm:$0xff]
        %v696 = vld [vmem:[%s179 + $0xf10] sm:$0xff]
        %v697 = vld [vmem:[%s179 + $0xf18] sm:$0xff]
        %v698 = vld [vmem:[%s179 + $0xf20] sm:$0xff]
        %v699 = vld [vmem:[%s179 + $0xf28] sm:$0xff]
        %v700 = vld [vmem:[%s179 + $0xf30] sm:$0xff]
        %v701 = vld [vmem:[%s179 + $0xf38] sm:$0xff]
        %v702 = vld [vmem:[%s179 + $0xf40] sm:$0xff]
        %v703 = vld [vmem:[%s179 + $0xf48] sm:$0xff]
        %v704 = vld [vmem:[%s179 + $0xf50] sm:$0xff]
        %v705 = vld [vmem:[%s179 + $0xf58] sm:$0xff]
        %v706 = vld [vmem:[%s179 + $0xf60] sm:$0xff]
        %v707 = vld [vmem:[%s179 + $0xf68] sm:$0xff]
        %v708 = vld [vmem:[%s179 + $0xf70] sm:$0xff]
        %v709 = vld [vmem:[%s179 + $0xf78] sm:$0xff]
        %v710 = vld [vmem:[%s179 + $0xf80] sm:$0xff]
        %v711 = vld [vmem:[%s179 + $0xf88] sm:$0xff]
        %v712 = vld [vmem:[%s179 + $0xf90] sm:$0xff]
        %v713 = vld [vmem:[%s179 + $0xf98] sm:$0xff]
        %v714 = vld [vmem:[%s179 + $0xfa0] sm:$0xff]
        %v715 = vld [vmem:[%s179 + $0xfa8] sm:$0xff]
        %v716 = vld [vmem:[%s179 + $0xfb0] sm:$0xff]
        %v717 = vld [vmem:[%s179 + $0xfb8] sm:$0xff]
        %v718 = vld [vmem:[%s179 + $0xfc0] sm:$0xff]
        %v719 = vld [vmem:[%s179 + $0xfc8] sm:$0xff]
        %v720 = vld [vmem:[%s179 + $0xfd0] sm:$0xff]
        %v721 = vld [vmem:[%s179 + $0xfd8] sm:$0xff]
        %v722 = vld [vmem:[%s179 + $0xfe0] sm:$0xff]
        %v723 = vld [vmem:[%s179 + $0xfe8] sm:$0xff]
        %v724 = vld [vmem:[%s179 + $0xff0] sm:$0xff]
        %v725 = vld [vmem:[%s179 + $0xff8] sm:$0xff]
        %v726 = vld [vmem:[%s179 + $0x1000] sm:$0xff]
        %v727 = vld [vmem:[%s179 + $0x1008] sm:$0xff]
        %v728 = vld [vmem:[%s179 + $0x1010] sm:$0xff]
        %v729 = vld [vmem:[%s179 + $0x1018] sm:$0xff]
        %v730 = vld [vmem:[%s179 + $0x1020] sm:$0xff]
        %v731 = vld [vmem:[%s179 + $0x1028] sm:$0xff]
        %v732 = vld [vmem:[%s179 + $0x1030] sm:$0xff]
        %v733 = vld [vmem:[%s179 + $0x1038] sm:$0xff]
        %v734 = vld [vmem:[%s179 + $0x1040] sm:$0xff]
        %v735 = vld [vmem:[%s179 + $0x1048] sm:$0xff]
        %v736 = vld [vmem:[%s179 + $0x1050] sm:$0xff]
        %v737 = vld [vmem:[%s179 + $0x1058] sm:$0xff]
        %v738 = vld [vmem:[%s179 + $0x1060] sm:$0xff]
        %v739 = vld [vmem:[%s179 + $0x1068] sm:$0xff]
        %v740 = vld [vmem:[%s179 + $0x1070] sm:$0xff]
        %v741 = vld [vmem:[%s179 + $0x1078] sm:$0xff]
        %v742 = vld [vmem:[%s179 + $0x1080] sm:$0xff]
        %v743 = vld [vmem:[%s179 + $0x1088] sm:$0xff]
        %v744 = vld [vmem:[%s179 + $0x1090] sm:$0xff]
        %v745 = vld [vmem:[%s179 + $0x1098] sm:$0xff]
        %v746 = vld [vmem:[%s179 + $0x10a0] sm:$0xff]
        %v747 = vld [vmem:[%s179 + $0x10a8] sm:$0xff]
        %v748 = vld [vmem:[%s179 + $0x10b0] sm:$0xff]
        %v749 = vld [vmem:[%s179 + $0x10b8] sm:$0xff]
        %v750 = vld [vmem:[%s179 + $0x10c0] sm:$0xff]
        %v751 = vld [vmem:[%s179 + $0x10c8] sm:$0xff]
        %v752 = vld [vmem:[%s179 + $0x10d0] sm:$0xff]
        %v753 = vld [vmem:[%s179 + $0x10d8] sm:$0xff]
        %v754 = vld [vmem:[%s179 + $0x10e0] sm:$0xff]
        %v755 = vld [vmem:[%s179 + $0x10e8] sm:$0xff]
        %v756 = vld [vmem:[%s179 + $0x10f0] sm:$0xff]
        %v757 = vld [vmem:[%s179 + $0x10f8] sm:$0xff]
        %v758 = vld [vmem:[%s179 + $0x1100] sm:$0xff]
        %v759 = vld [vmem:[%s179 + $0x1108] sm:$0xff]
        %v760 = vld [vmem:[%s179 + $0x1110] sm:$0xff]
        %v761 = vld [vmem:[%s179 + $0x1118] sm:$0xff]
        %v762 = vld [vmem:[%s179 + $0x1120] sm:$0xff]
        %v763 = vld [vmem:[%s179 + $0x1128] sm:$0xff]
        %v764 = vld [vmem:[%s179 + $0x1130] sm:$0xff]
        %v765 = vld [vmem:[%s179 + $0x1138] sm:$0xff]
        %v766 = vld [vmem:[%s179 + $0x1140] sm:$0xff]
        %v767 = vld [vmem:[%s179 + $0x1148] sm:$0xff]
        %v768 = vld [vmem:[%s179 + $0x1150] sm:$0xff]
        %v769 = vld [vmem:[%s179 + $0x1158] sm:$0xff]
        %v770 = vld [vmem:[%s179 + $0x1160] sm:$0xff]
        %v771 = vld [vmem:[%s179 + $0x1168] sm:$0xff]
        %v772 = vld [vmem:[%s179 + $0x1170] sm:$0xff]
        %v773 = vld [vmem:[%s179 + $0x1178] sm:$0xff]
        %v774 = vld [vmem:[%s179 + $0x1180] sm:$0xff]
        %v775 = vld [vmem:[%s179 + $0x1188] sm:$0xff]
        %v776 = vld [vmem:[%s179 + $0x1190] sm:$0xff]
        %v777 = vld [vmem:[%s179 + $0x1198] sm:$0xff]
        %v778 = vld [vmem:[%s179 + $0x11a0] sm:$0xff]
        %v779 = vld [vmem:[%s179 + $0x11a8] sm:$0xff]
        %v780 = vld [vmem:[%s179 + $0x11b0] sm:$0xff]
        %v781 = vld [vmem:[%s179 + $0x11b8] sm:$0xff]
        %v782 = vld [vmem:[%s179 + $0x11c0] sm:$0xff]
        %v783 = vld [vmem:[%s179 + $0x11c8] sm:$0xff]
        %v784 = vld [vmem:[%s179 + $0x11d0] sm:$0xff]
        %v785 = vld [vmem:[%s179 + $0x11d8] sm:$0xff]
        %v786 = vld [vmem:[%s179 + $0x11e0] sm:$0xff]
        %v787 = vld [vmem:[%s179 + $0x11e8] sm:$0xff]
        %v788 = vld [vmem:[%s179 + $0x11f0] sm:$0xff]
        %v789 = vld [vmem:[%s179 + $0x11f8] sm:$0xff]
        %v790 = vld [vmem:[%s179 + $0x1200] sm:$0xff]
        %v791 = vld [vmem:[%s179 + $0x1208] sm:$0xff]
        %v792 = vld [vmem:[%s179 + $0x1210] sm:$0xff]
        %v793 = vld [vmem:[%s179 + $0x1218] sm:$0xff]
        %v794 = vld [vmem:[%s179 + $0x1220] sm:$0xff]
        %v795 = vld [vmem:[%s179 + $0x1228] sm:$0xff]
        %v796 = vld [vmem:[%s179 + $0x1230] sm:$0xff]
        %v797 = vld [vmem:[%s179 + $0x1238] sm:$0xff]
        %v798 = vld [vmem:[%s179 + $0x1240] sm:$0xff]
        %v799 = vld [vmem:[%s179 + $0x1248] sm:$0xff]
        %v800 = vld [vmem:[%s179 + $0x1250] sm:$0xff]
        %v801 = vld [vmem:[%s179 + $0x1258] sm:$0xff]
        %v802 = vld [vmem:[%s179 + $0x1260] sm:$0xff]
        %v803 = vld [vmem:[%s179 + $0x1268] sm:$0xff]
        %v804 = vld [vmem:[%s179 + $0x1270] sm:$0xff]
        %v805 = vld [vmem:[%s179 + $0x1278] sm:$0xff]
        %v806 = vld [vmem:[%s179 + $0x1280] sm:$0xff]
        %v807 = vld [vmem:[%s179 + $0x1288] sm:$0xff]
        %v808 = vld [vmem:[%s179 + $0x1290] sm:$0xff]
        %v809 = vld [vmem:[%s179 + $0x1298] sm:$0xff]
        %v810 = vld [vmem:[%s179 + $0x12a0] sm:$0xff]
        %v811 = vld [vmem:[%s179 + $0x12a8] sm:$0xff]
        %v812 = vld [vmem:[%s179 + $0x12b0] sm:$0xff]
        %v813 = vld [vmem:[%s179 + $0x12b8] sm:$0xff]
        %v814 = vld [vmem:[%s179 + $0x12c0] sm:$0xff]
        %v815 = vld [vmem:[%s179 + $0x12c8] sm:$0xff]
        %v816 = vld [vmem:[%s179 + $0x12d0] sm:$0xff]
        %v817 = vld [vmem:[%s179 + $0x12d8] sm:$0xff]
        %v818 = vld [vmem:[%s179 + $0x12e0] sm:$0xff]
        %v819 = vld [vmem:[%s179 + $0x12e8] sm:$0xff]
        %v820 = vld [vmem:[%s179 + $0x12f0] sm:$0xff]
        %v821 = vld [vmem:[%s179 + $0x12f8] sm:$0xff]
        %v822 = vld [vmem:[%s179 + $0x1300] sm:$0xff]
        %v823 = vld [vmem:[%s179 + $0x1308] sm:$0xff]
        %v824 = vld [vmem:[%s179 + $0x1310] sm:$0xff]
        %v825 = vld [vmem:[%s179 + $0x1318] sm:$0xff]
        %v826 = vld [vmem:[%s179 + $0x1320] sm:$0xff]
        %v827 = vld [vmem:[%s179 + $0x1328] sm:$0xff]
        %v828 = vld [vmem:[%s179 + $0x1330] sm:$0xff]
        %v829 = vld [vmem:[%s179 + $0x1338] sm:$0xff]
        %v830 = vld [vmem:[%s179 + $0x1340] sm:$0xff]
        %v831 = vld [vmem:[%s179 + $0x1348] sm:$0xff]
        %v832 = vld [vmem:[%s179 + $0x1350] sm:$0xff]
        %v833 = vld [vmem:[%s179 + $0x1358] sm:$0xff]
        %v834 = vld [vmem:[%s179 + $0x1360] sm:$0xff]
        %v835 = vld [vmem:[%s179 + $0x1368] sm:$0xff]
        %v836 = vld [vmem:[%s179 + $0x1370] sm:$0xff]
        %v837 = vld [vmem:[%s179 + $0x1378] sm:$0xff]
        %v838 = vld [vmem:[%s179 + $0x1380] sm:$0xff]
        %v839 = vld [vmem:[%s179 + $0x1388] sm:$0xff]
        %v840 = vld [vmem:[%s179 + $0x1390] sm:$0xff]
        %v841 = vld [vmem:[%s179 + $0x1398] sm:$0xff]
        %v842 = vld [vmem:[%s179 + $0x13a0] sm:$0xff]
        %v843 = vld [vmem:[%s179 + $0x13a8] sm:$0xff]
        %v844 = vld [vmem:[%s179 + $0x13b0] sm:$0xff]
        %v845 = vld [vmem:[%s179 + $0x13b8] sm:$0xff]
        %v846 = vld [vmem:[%s179 + $0x13c0] sm:$0xff]
        %v847 = vld [vmem:[%s179 + $0x13c8] sm:$0xff]
        %v848 = vld [vmem:[%s179 + $0x13d0] sm:$0xff]
        %v849 = vld [vmem:[%s179 + $0x13d8] sm:$0xff]
        %v850 = vld [vmem:[%s179 + $0x13e0] sm:$0xff]
        %v851 = vld [vmem:[%s179 + $0x13e8] sm:$0xff]
        %v852 = vld [vmem:[%s179 + $0x13f0] sm:$0xff]
        %v853 = vld [vmem:[%s179 + $0x13f8] sm:$0xff]
        %v854 = vld [vmem:[%s179 + $0x1400] sm:$0xff]
        %v855 = vld [vmem:[%s179 + $0x1408] sm:$0xff]
        %v856 = vld [vmem:[%s179 + $0x1410] sm:$0xff]
        %v857 = vld [vmem:[%s179 + $0x1418] sm:$0xff]
        %v858 = vld [vmem:[%s179 + $0x1420] sm:$0xff]
        %v859 = vld [vmem:[%s179 + $0x1428] sm:$0xff]
        %v860 = vld [vmem:[%s179 + $0x1430] sm:$0xff]
        %v861 = vld [vmem:[%s179 + $0x1438] sm:$0xff]
        %v862 = vld [vmem:[%s179 + $0x1440] sm:$0xff]
        %v863 = vld [vmem:[%s179 + $0x1448] sm:$0xff]
        %v864 = vld [vmem:[%s179 + $0x1450] sm:$0xff]
        %v865 = vld [vmem:[%s179 + $0x1458] sm:$0xff]
        %v866 = vld [vmem:[%s179 + $0x1460] sm:$0xff]
        %v867 = vld [vmem:[%s179 + $0x1468] sm:$0xff]
        %v868 = vld [vmem:[%s179 + $0x1470] sm:$0xff]
        %v869 = vld [vmem:[%s179 + $0x1478] sm:$0xff]
        %v870 = vld [vmem:[%s179 + $0x1480] sm:$0xff]
        %v871 = vld [vmem:[%s179 + $0x1488] sm:$0xff]
        %v872 = vld [vmem:[%s179 + $0x1490] sm:$0xff]
        %v873 = vld [vmem:[%s179 + $0x1498] sm:$0xff]
        %v874 = vld [vmem:[%s179 + $0x14a0] sm:$0xff]
        %v875 = vld [vmem:[%s179 + $0x14a8] sm:$0xff]
        %v876 = vld [vmem:[%s179 + $0x14b0] sm:$0xff]
        %v877 = vld [vmem:[%s179 + $0x14b8] sm:$0xff]
        %v878 = vld [vmem:[%s179 + $0x14c0] sm:$0xff]
        %v879 = vld [vmem:[%s179 + $0x14c8] sm:$0xff]
        %v880 = vld [vmem:[%s179 + $0x14d0] sm:$0xff]
        %v881 = vld [vmem:[%s179 + $0x14d8] sm:$0xff]
        %v882 = vld [vmem:[%s179 + $0x14e0] sm:$0xff]
        %v883 = vld [vmem:[%s179 + $0x14e8] sm:$0xff]
        %v884 = vld [vmem:[%s179 + $0x14f0] sm:$0xff]
        %v885 = vld [vmem:[%s179 + $0x14f8] sm:$0xff]
        %v886 = vld [vmem:[%s179 + $0x1500] sm:$0xff]
        %v887 = vld [vmem:[%s179 + $0x1508] sm:$0xff]
        %v888 = vld [vmem:[%s179 + $0x1510] sm:$0xff]
        %v889 = vld [vmem:[%s179 + $0x1518] sm:$0xff]
        %v890 = vld [vmem:[%s179 + $0x1520] sm:$0xff]
        %v891 = vld [vmem:[%s179 + $0x1528] sm:$0xff]
        %v892 = vld [vmem:[%s179 + $0x1530] sm:$0xff]
        %v893 = vld [vmem:[%s179 + $0x1538] sm:$0xff]
        %v894 = vld [vmem:[%s179 + $0x1540] sm:$0xff]
        %v895 = vld [vmem:[%s179 + $0x1548] sm:$0xff]
        %v896 = vld [vmem:[%s179 + $0x1550] sm:$0xff]
        %v897 = vld [vmem:[%s179 + $0x1558] sm:$0xff]
        %v898 = vld [vmem:[%s179 + $0x1560] sm:$0xff]
        %v899 = vld [vmem:[%s179 + $0x1568] sm:$0xff]
        %v900 = vld [vmem:[%s179 + $0x1570] sm:$0xff]
        %v901 = vld [vmem:[%s179 + $0x1578] sm:$0xff]
        %v902 = vld [vmem:[%s179 + $0x1580] sm:$0xff]
        %v903 = vld [vmem:[%s179 + $0x1588] sm:$0xff]
        %v904 = vld [vmem:[%s179 + $0x1590] sm:$0xff]
        %v905 = vld [vmem:[%s179 + $0x1598] sm:$0xff]
        %v906 = vld [vmem:[%s179 + $0x15a0] sm:$0xff]
        %v907 = vld [vmem:[%s179 + $0x15a8] sm:$0xff]
        %v908 = vld [vmem:[%s179 + $0x15b0] sm:$0xff]
        %v909 = vld [vmem:[%s179 + $0x15b8] sm:$0xff]
        %v910 = vld [vmem:[%s179 + $0x15c0] sm:$0xff]
        %v911 = vld [vmem:[%s179 + $0x15c8] sm:$0xff]
        %v912 = vld [vmem:[%s179 + $0x15d0] sm:$0xff]
        %v913 = vld [vmem:[%s179 + $0x15d8] sm:$0xff]
        %v914 = vld [vmem:[%s179 + $0x15e0] sm:$0xff]
        %v915 = vld [vmem:[%s179 + $0x15e8] sm:$0xff]
        %v916 = vld [vmem:[%s179 + $0x15f0] sm:$0xff]
        %v917 = vld [vmem:[%s179 + $0x15f8] sm:$0xff]
        %v918 = vld [vmem:[%s179 + $0x1600] sm:$0xff]
        %v919 = vld [vmem:[%s179 + $0x1608] sm:$0xff]
        %v920 = vld [vmem:[%s179 + $0x1610] sm:$0xff]
        %v921 = vld [vmem:[%s179 + $0x1618] sm:$0xff]
        %v922 = vld [vmem:[%s179 + $0x1620] sm:$0xff]
        %v923 = vld [vmem:[%s179 + $0x1628] sm:$0xff]
        %v924 = vld [vmem:[%s179 + $0x1630] sm:$0xff]
        %v925 = vld [vmem:[%s179 + $0x1638] sm:$0xff]
        %v926 = vld [vmem:[%s179 + $0x1640] sm:$0xff]
        %v927 = vld [vmem:[%s179 + $0x1648] sm:$0xff]
        %v928 = vld [vmem:[%s179 + $0x1650] sm:$0xff]
        %v929 = vld [vmem:[%s179 + $0x1658] sm:$0xff]
        %v930 = vld [vmem:[%s179 + $0x1660] sm:$0xff]
        %v931 = vld [vmem:[%s179 + $0x1668] sm:$0xff]
        %v932 = vld [vmem:[%s179 + $0x1670] sm:$0xff]
        %v933 = vld [vmem:[%s179 + $0x1678] sm:$0xff]
        %v934 = vld [vmem:[%s179 + $0x1680] sm:$0xff]
        %v935 = vld [vmem:[%s179 + $0x1688] sm:$0xff]
        %v936 = vld [vmem:[%s179 + $0x1690] sm:$0xff]
        %v937 = vld [vmem:[%s179 + $0x1698] sm:$0xff]
        %v938 = vld [vmem:[%s179 + $0x16a0] sm:$0xff]
        %v939 = vld [vmem:[%s179 + $0x16a8] sm:$0xff]
        %v940 = vld [vmem:[%s179 + $0x16b0] sm:$0xff]
        %v941 = vld [vmem:[%s179 + $0x16b8] sm:$0xff]
        %v942 = vld [vmem:[%s179 + $0x16c0] sm:$0xff]
        %v943 = vld [vmem:[%s179 + $0x16c8] sm:$0xff]
        %v944 = vld [vmem:[%s179 + $0x16d0] sm:$0xff]
        %v945 = vld [vmem:[%s179 + $0x16d8] sm:$0xff]
        %v946 = vld [vmem:[%s179 + $0x16e0] sm:$0xff]
        %v947 = vld [vmem:[%s179 + $0x16e8] sm:$0xff]
        %v948 = vld [vmem:[%s179 + $0x16f0] sm:$0xff]
        %v949 = vld [vmem:[%s179 + $0x16f8] sm:$0xff]
        %v950 = vld [vmem:[%s179 + $0x1700] sm:$0xff]
        %v951 = vld [vmem:[%s179 + $0x1708] sm:$0xff]
        %v952 = vld [vmem:[%s179 + $0x1710] sm:$0xff]
        %v953 = vld [vmem:[%s179 + $0x1718] sm:$0xff]
        %v954 = vld [vmem:[%s179 + $0x1720] sm:$0xff]
        %v955 = vld [vmem:[%s179 + $0x1728] sm:$0xff]
        %v956 = vld [vmem:[%s179 + $0x1730] sm:$0xff]
        %v957 = vld [vmem:[%s179 + $0x1738] sm:$0xff]
        %v958 = vld [vmem:[%s179 + $0x1740] sm:$0xff]
        %v959 = vld [vmem:[%s179 + $0x1748] sm:$0xff]
        %v960 = vld [vmem:[%s179 + $0x1750] sm:$0xff]
        %v961 = vld [vmem:[%s179 + $0x1758] sm:$0xff]
        %v962 = vld [vmem:[%s179 + $0x1760] sm:$0xff]
        %v963 = vld [vmem:[%s179 + $0x1768] sm:$0xff]
        %v964 = vld [vmem:[%s179 + $0x1770] sm:$0xff]
        %v965 = vld [vmem:[%s179 + $0x1778] sm:$0xff]
        %v966 = vld [vmem:[%s179 + $0x1780] sm:$0xff]
        %v967 = vld [vmem:[%s179 + $0x1788] sm:$0xff]
        %v968 = vld [vmem:[%s179 + $0x1790] sm:$0xff]
        %v969 = vld [vmem:[%s179 + $0x1798] sm:$0xff]
        %v970 = vld [vmem:[%s179 + $0x17a0] sm:$0xff]
        %v971 = vld [vmem:[%s179 + $0x17a8] sm:$0xff]
        %v972 = vld [vmem:[%s179 + $0x17b0] sm:$0xff]
        %v973 = vld [vmem:[%s179 + $0x17b8] sm:$0xff]
        %v974 = vld [vmem:[%s179 + $0x17c0] sm:$0xff]
        %v975 = vld [vmem:[%s179 + $0x17c8] sm:$0xff]
        %v976 = vld [vmem:[%s179 + $0x17d0] sm:$0xff]
        %v977 = vld [vmem:[%s179 + $0x17d8] sm:$0xff]
        %v978 = vld [vmem:[%s179 + $0x17e0] sm:$0xff]
        %v979 = vld [vmem:[%s179 + $0x17e8] sm:$0xff]
        %v980 = vld [vmem:[%s179 + $0x17f0] sm:$0xff]
        %v981 = vld [vmem:[%s179 + $0x17f8] sm:$0xff]
        %v982 = vld [vmem:[%s179 + $0x1800] sm:$0xff]
        %v983 = vld [vmem:[%s179 + $0x1808] sm:$0xff]
        %v984 = vld [vmem:[%s179 + $0x1810] sm:$0xff]
        %v985 = vld [vmem:[%s179 + $0x1818] sm:$0xff]
        %v986 = vld [vmem:[%s179 + $0x1820] sm:$0xff]
        %v987 = vld [vmem:[%s179 + $0x1828] sm:$0xff]
        %v988 = vld [vmem:[%s179 + $0x1830] sm:$0xff]
        %v989 = vld [vmem:[%s179 + $0x1838] sm:$0xff]
        %v990 = vld [vmem:[%s179 + $0x1840] sm:$0xff]
        %v991 = vld [vmem:[%s179 + $0x1848] sm:$0xff]
        %v992 = vld [vmem:[%s179 + $0x1850] sm:$0xff]
        %v993 = vld [vmem:[%s179 + $0x1858] sm:$0xff]
        %v994 = vld [vmem:[%s179 + $0x1860] sm:$0xff]
        %v995 = vld [vmem:[%s179 + $0x1868] sm:$0xff]
        %v996 = vld [vmem:[%s179 + $0x1870] sm:$0xff]
        %v997 = vld [vmem:[%s179 + $0x1878] sm:$0xff]
        %v998 = vld [vmem:[%s179 + $0x1880] sm:$0xff]
        %v999 = vld [vmem:[%s179 + $0x1888] sm:$0xff]
        %v1000 = vld [vmem:[%s179 + $0x1890] sm:$0xff]
        %v1001 = vld [vmem:[%s179 + $0x1898] sm:$0xff]
        %v1002 = vld [vmem:[%s179 + $0x18a0] sm:$0xff]
        %v1003 = vld [vmem:[%s179 + $0x18a8] sm:$0xff]
        %v1004 = vld [vmem:[%s179 + $0x18b0] sm:$0xff]
        %v1005 = vld [vmem:[%s179 + $0x18b8] sm:$0xff]
        %v1006 = vld [vmem:[%s179 + $0x18c0] sm:$0xff]
        %v1007 = vld [vmem:[%s179 + $0x18c8] sm:$0xff]
        %v1008 = vld [vmem:[%s179 + $0x18d0] sm:$0xff]
        %v1009 = vld [vmem:[%s179 + $0x18d8] sm:$0xff]
        %v1010 = vld [vmem:[%s179 + $0x18e0] sm:$0xff]
        %v1011 = vld [vmem:[%s179 + $0x18e8] sm:$0xff]
        %v1012 = vld [vmem:[%s179 + $0x18f0] sm:$0xff]
        %v1013 = vld [vmem:[%s179 + $0x18f8] sm:$0xff]
        %v1014 = vld [vmem:[%s179 + $0x1900] sm:$0xff]
        %v1015 = vld [vmem:[%s179 + $0x1908] sm:$0xff]
        %v1016 = vld [vmem:[%s179 + $0x1910] sm:$0xff]
        %v1017 = vld [vmem:[%s179 + $0x1918] sm:$0xff]
        %v1018 = vld [vmem:[%s179 + $0x1920] sm:$0xff]
        %v1019 = vld [vmem:[%s179 + $0x1928] sm:$0xff]
        %v1020 = vld [vmem:[%s179 + $0x1930] sm:$0xff]
        %v1021 = vld [vmem:[%s179 + $0x1938] sm:$0xff]
        %v1022 = vld [vmem:[%s179 + $0x1940] sm:$0xff]
        %v1023 = vld [vmem:[%s179 + $0x1948] sm:$0xff]
        %v1024 = vld [vmem:[%s179 + $0x1950] sm:$0xff]
        %v1025 = vld [vmem:[%s179 + $0x1958] sm:$0xff]
        %v1026 = vld [vmem:[%s179 + $0x1960] sm:$0xff]
        %v1027 = vld [vmem:[%s179 + $0x1968] sm:$0xff]
        %v1028 = vld [vmem:[%s179 + $0x1970] sm:$0xff]
        %v1029 = vld [vmem:[%s179 + $0x1978] sm:$0xff]
        %v1030 = vld [vmem:[%s179 + $0x1980] sm:$0xff]
        %v1031 = vld [vmem:[%s179 + $0x1988] sm:$0xff]
        %v1032 = vld [vmem:[%s179 + $0x1990] sm:$0xff]
        %v1033 = vld [vmem:[%s179 + $0x1998] sm:$0xff]
        %v1034 = vld [vmem:[%s179 + $0x19a0] sm:$0xff]
        %v1035 = vld [vmem:[%s179 + $0x19a8] sm:$0xff]
        %v1036 = vld [vmem:[%s179 + $0x19b0] sm:$0xff]
        %v1037 = vld [vmem:[%s179 + $0x19b8] sm:$0xff]
        %v1038 = vld [vmem:[%s179 + $0x19c0] sm:$0xff]
        %v1039 = vld [vmem:[%s179 + $0x19c8] sm:$0xff]
        %v1040 = vld [vmem:[%s179 + $0x19d0] sm:$0xff]
        %v1041 = vld [vmem:[%s179 + $0x19d8] sm:$0xff]
        %v1042 = vld [vmem:[%s179 + $0x19e0] sm:$0xff]
        %v1043 = vld [vmem:[%s179 + $0x19e8] sm:$0xff]
        %v1044 = vld [vmem:[%s179 + $0x19f0] sm:$0xff]
        %v1045 = vld [vmem:[%s179 + $0x19f8] sm:$0xff]
        %v1046 = vld [vmem:[%s179 + $0x1a00] sm:$0xff]
        %v1047 = vld [vmem:[%s179 + $0x1a08] sm:$0xff]
        %v1048 = vld [vmem:[%s179 + $0x1a10] sm:$0xff]
        %v1049 = vld [vmem:[%s179 + $0x1a18] sm:$0xff]
        %v1050 = vld [vmem:[%s179 + $0x1a20] sm:$0xff]
        %v1051 = vld [vmem:[%s179 + $0x1a28] sm:$0xff]
        %v1052 = vld [vmem:[%s179 + $0x1a30] sm:$0xff]
        %v1053 = vld [vmem:[%s179 + $0x1a38] sm:$0xff]
        %v1054 = vld [vmem:[%s179 + $0x1a40] sm:$0xff]
        %v1055 = vld [vmem:[%s179 + $0x1a48] sm:$0xff]
        %v1056 = vld [vmem:[%s179 + $0x1a50] sm:$0xff]
        %v1057 = vld [vmem:[%s179 + $0x1a58] sm:$0xff]
        %v1058 = vld [vmem:[%s179 + $0x1a60] sm:$0xff]
        %v1059 = vld [vmem:[%s179 + $0x1a68] sm:$0xff]
        %v1060 = vld [vmem:[%s179 + $0x1a70] sm:$0xff]
        %v1061 = vld [vmem:[%s179 + $0x1a78] sm:$0xff]
        %v1062 = vld [vmem:[%s179 + $0x1a80] sm:$0xff]
        %v1063 = vld [vmem:[%s179 + $0x1a88] sm:$0xff]
        %v1064 = vld [vmem:[%s179 + $0x1a90] sm:$0xff]
        %v1065 = vld [vmem:[%s179 + $0x1a98] sm:$0xff]
        %v1066 = vld [vmem:[%s179 + $0x1aa0] sm:$0xff]
        %v1067 = vld [vmem:[%s179 + $0x1aa8] sm:$0xff]
        %v1068 = vld [vmem:[%s179 + $0x1ab0] sm:$0xff]
        %v1069 = vld [vmem:[%s179 + $0x1ab8] sm:$0xff]
        %v1070 = vld [vmem:[%s179 + $0x1ac0] sm:$0xff]
        %v1071 = vld [vmem:[%s179 + $0x1ac8] sm:$0xff]
        %v1072 = vld [vmem:[%s179 + $0x1ad0] sm:$0xff]
        %v1073 = vld [vmem:[%s179 + $0x1ad8] sm:$0xff]
        %v1074 = vld [vmem:[%s179 + $0x1ae0] sm:$0xff]
        %v1075 = vld [vmem:[%s179 + $0x1ae8] sm:$0xff]
        %v1076 = vld [vmem:[%s179 + $0x1af0] sm:$0xff]
        %v1077 = vld [vmem:[%s179 + $0x1af8] sm:$0xff]
        %v1078 = vld [vmem:[%s179 + $0x1b00] sm:$0xff]
        %v1079 = vld [vmem:[%s179 + $0x1b08] sm:$0xff]
        %v1080 = vld [vmem:[%s179 + $0x1b10] sm:$0xff]
        %v1081 = vld [vmem:[%s179 + $0x1b18] sm:$0xff]
        %v1082 = vld [vmem:[%s179 + $0x1b20] sm:$0xff]
        %v1083 = vld [vmem:[%s179 + $0x1b28] sm:$0xff]
        %v1084 = vld [vmem:[%s179 + $0x1b30] sm:$0xff]
        %v1085 = vld [vmem:[%s179 + $0x1b38] sm:$0xff]
        %v1086 = vld [vmem:[%s179 + $0x1b40] sm:$0xff]
        %v1087 = vld [vmem:[%s179 + $0x1b48] sm:$0xff]
        %v1088 = vld [vmem:[%s179 + $0x1b50] sm:$0xff]
        %v1089 = vld [vmem:[%s179 + $0x1b58] sm:$0xff]
        %v1090 = vld [vmem:[%s179 + $0x1b60] sm:$0xff]
        %v1091 = vld [vmem:[%s179 + $0x1b68] sm:$0xff]
        %v1092 = vld [vmem:[%s179 + $0x1b70] sm:$0xff]
        %v1093 = vld [vmem:[%s179 + $0x1b78] sm:$0xff]
        %v1094 = vld [vmem:[%s179 + $0x1b80] sm:$0xff]
        %v1095 = vld [vmem:[%s179 + $0x1b88] sm:$0xff]
        %v1096 = vld [vmem:[%s179 + $0x1b90] sm:$0xff]
        %v1097 = vld [vmem:[%s179 + $0x1b98] sm:$0xff]
        %v1098 = vld [vmem:[%s179 + $0x1ba0] sm:$0xff]
        %v1099 = vld [vmem:[%s179 + $0x1ba8] sm:$0xff]
        %v1100 = vld [vmem:[%s179 + $0x1bb0] sm:$0xff]
        %v1101 = vld [vmem:[%s179 + $0x1bb8] sm:$0xff]
        %v1102 = vld [vmem:[%s179 + $0x1bc0] sm:$0xff]
        %v1103 = vld [vmem:[%s179 + $0x1bc8] sm:$0xff]
        %v1104 = vld [vmem:[%s179 + $0x1bd0] sm:$0xff]
        %v1105 = vld [vmem:[%s179 + $0x1bd8] sm:$0xff]
        %v1106 = vld [vmem:[%s179 + $0x1be0] sm:$0xff]
        %v1107 = vld [vmem:[%s179 + $0x1be8] sm:$0xff]
        %v1108 = vld [vmem:[%s179 + $0x1bf0] sm:$0xff]
        %v1109 = vld [vmem:[%s179 + $0x1bf8] sm:$0xff]
        %v1110 = vld [vmem:[%s179 + $0x1c00] sm:$0xff]
        %v1111 = vld [vmem:[%s179 + $0x1c08] sm:$0xff]
        %v1112 = vld [vmem:[%s179 + $0x1c10] sm:$0xff]
        %v1113 = vld [vmem:[%s179 + $0x1c18] sm:$0xff]
        %v1114 = vld [vmem:[%s179 + $0x1c20] sm:$0xff]
        %v1115 = vld [vmem:[%s179 + $0x1c28] sm:$0xff]
        %v1116 = vld [vmem:[%s179 + $0x1c30] sm:$0xff]
        %v1117 = vld [vmem:[%s179 + $0x1c38] sm:$0xff]
        %v1118 = vld [vmem:[%s179 + $0x1c40] sm:$0xff]
        %v1119 = vld [vmem:[%s179 + $0x1c48] sm:$0xff]
        %v1120 = vld [vmem:[%s179 + $0x1c50] sm:$0xff]
        %v1121 = vld [vmem:[%s179 + $0x1c58] sm:$0xff]
        %v1122 = vld [vmem:[%s179 + $0x1c60] sm:$0xff]
        %v1123 = vld [vmem:[%s179 + $0x1c68] sm:$0xff]
        %v1124 = vld [vmem:[%s179 + $0x1c70] sm:$0xff]
        %v1125 = vld [vmem:[%s179 + $0x1c78] sm:$0xff]
        %v1126 = vld [vmem:[%s179 + $0x1c80] sm:$0xff]
        %v1127 = vld [vmem:[%s179 + $0x1c88] sm:$0xff]
        %v1128 = vld [vmem:[%s179 + $0x1c90] sm:$0xff]
        %v1129 = vld [vmem:[%s179 + $0x1c98] sm:$0xff]
        %v1130 = vld [vmem:[%s179 + $0x1ca0] sm:$0xff]
        %v1131 = vld [vmem:[%s179 + $0x1ca8] sm:$0xff]
        %v1132 = vld [vmem:[%s179 + $0x1cb0] sm:$0xff]
        %v1133 = vld [vmem:[%s179 + $0x1cb8] sm:$0xff]
        %v1134 = vld [vmem:[%s179 + $0x1cc0] sm:$0xff]
        %v1135 = vld [vmem:[%s179 + $0x1cc8] sm:$0xff]
        %v1136 = vld [vmem:[%s179 + $0x1cd0] sm:$0xff]
        %v1137 = vld [vmem:[%s179 + $0x1cd8] sm:$0xff]
        %v1138 = vld [vmem:[%s179 + $0x1ce0] sm:$0xff]
        %v1139 = vld [vmem:[%s179 + $0x1ce8] sm:$0xff]
        %v1140 = vld [vmem:[%s179 + $0x1cf0] sm:$0xff]
        %v1141 = vld [vmem:[%s179 + $0x1cf8] sm:$0xff]
        %v1142 = vld [vmem:[%s179 + $0x1d00] sm:$0xff]
        %v1143 = vld [vmem:[%s179 + $0x1d08] sm:$0xff]
        %v1144 = vld [vmem:[%s179 + $0x1d10] sm:$0xff]
        %v1145 = vld [vmem:[%s179 + $0x1d18] sm:$0xff]
        %v1146 = vld [vmem:[%s179 + $0x1d20] sm:$0xff]
        %v1147 = vld [vmem:[%s179 + $0x1d28] sm:$0xff]
        %v1148 = vld [vmem:[%s179 + $0x1d30] sm:$0xff]
        %v1149 = vld [vmem:[%s179 + $0x1d38] sm:$0xff]
        %v1150 = vld [vmem:[%s179 + $0x1d40] sm:$0xff]
        %v1151 = vld [vmem:[%s179 + $0x1d48] sm:$0xff]
        %v1152 = vld [vmem:[%s179 + $0x1d50] sm:$0xff]
        %v1153 = vld [vmem:[%s179 + $0x1d58] sm:$0xff]
        %v1154 = vld [vmem:[%s179 + $0x1d60] sm:$0xff]
        %v1155 = vld [vmem:[%s179 + $0x1d68] sm:$0xff]
        %v1156 = vld [vmem:[%s179 + $0x1d70] sm:$0xff]
        %v1157 = vld [vmem:[%s179 + $0x1d78] sm:$0xff]
        %v1158 = vld [vmem:[%s179 + $0x1d80] sm:$0xff]
        %v1159 = vld [vmem:[%s179 + $0x1d88] sm:$0xff]
        %v1160 = vld [vmem:[%s179 + $0x1d90] sm:$0xff]
        %v1161 = vld [vmem:[%s179 + $0x1d98] sm:$0xff]
        %v1162 = vld [vmem:[%s179 + $0x1da0] sm:$0xff]
        %v1163 = vld [vmem:[%s179 + $0x1da8] sm:$0xff]
        %v1164 = vld [vmem:[%s179 + $0x1db0] sm:$0xff]
        %v1165 = vld [vmem:[%s179 + $0x1db8] sm:$0xff]
        %v1166 = vld [vmem:[%s179 + $0x1dc0] sm:$0xff]
        %v1167 = vld [vmem:[%s179 + $0x1dc8] sm:$0xff]
        %v1168 = vld [vmem:[%s179 + $0x1dd0] sm:$0xff]
        %v1169 = vld [vmem:[%s179 + $0x1dd8] sm:$0xff]
        %v1170 = vld [vmem:[%s179 + $0x1de0] sm:$0xff]
        %v1171 = vld [vmem:[%s179 + $0x1de8] sm:$0xff]
        %v1172 = vld [vmem:[%s179 + $0x1df0] sm:$0xff]
        %v1173 = vld [vmem:[%s179 + $0x1df8] sm:$0xff]
        %v1174 = vld [vmem:[%s179 + $0x1e00] sm:$0xff]
        %v1175 = vld [vmem:[%s179 + $0x1e08] sm:$0xff]
        %v1176 = vld [vmem:[%s179 + $0x1e10] sm:$0xff]
        %v1177 = vld [vmem:[%s179 + $0x1e18] sm:$0xff]
        %v1178 = vld [vmem:[%s179 + $0x1e20] sm:$0xff]
        %v1179 = vld [vmem:[%s179 + $0x1e28] sm:$0xff]
        %v1180 = vld [vmem:[%s179 + $0x1e30] sm:$0xff]
        %v1181 = vld [vmem:[%s179 + $0x1e38] sm:$0xff]
        %v1182 = vld [vmem:[%s179 + $0x1e40] sm:$0xff]
        %v1183 = vld [vmem:[%s179 + $0x1e48] sm:$0xff]
        %v1184 = vld [vmem:[%s179 + $0x1e50] sm:$0xff]
        %v1185 = vld [vmem:[%s179 + $0x1e58] sm:$0xff]
        %v1186 = vld [vmem:[%s179 + $0x1e60] sm:$0xff]
        %v1187 = vld [vmem:[%s179 + $0x1e68] sm:$0xff]
        %v1188 = vld [vmem:[%s179 + $0x1e70] sm:$0xff]
        %v1189 = vld [vmem:[%s179 + $0x1e78] sm:$0xff]
        %v1190 = vld [vmem:[%s179 + $0x1e80] sm:$0xff]
        %v1191 = vld [vmem:[%s179 + $0x1e88] sm:$0xff]
        %v1192 = vld [vmem:[%s179 + $0x1e90] sm:$0xff]
        %v1193 = vld [vmem:[%s179 + $0x1e98] sm:$0xff]
        %v1194 = vld [vmem:[%s179 + $0x1ea0] sm:$0xff]
        %v1195 = vld [vmem:[%s179 + $0x1ea8] sm:$0xff]
        %v1196 = vld [vmem:[%s179 + $0x1eb0] sm:$0xff]
        %v1197 = vld [vmem:[%s179 + $0x1eb8] sm:$0xff]
        %v1198 = vld [vmem:[%s179 + $0x1ec0] sm:$0xff]
        %v1199 = vld [vmem:[%s179 + $0x1ec8] sm:$0xff]
        %v1200 = vld [vmem:[%s179 + $0x1ed0] sm:$0xff]
        %v1201 = vld [vmem:[%s179 + $0x1ed8] sm:$0xff]
        %v1202 = vld [vmem:[%s179 + $0x1ee0] sm:$0xff]
        %v1203 = vld [vmem:[%s179 + $0x1ee8] sm:$0xff]
        %v1204 = vld [vmem:[%s179 + $0x1ef0] sm:$0xff]
        %v1205 = vld [vmem:[%s179 + $0x1ef8] sm:$0xff]
        %v1206 = vld [vmem:[%s179 + $0x1f00] sm:$0xff]
        %v1207 = vld [vmem:[%s179 + $0x1f08] sm:$0xff]
        %v1208 = vld [vmem:[%s179 + $0x1f10] sm:$0xff]
        %v1209 = vld [vmem:[%s179 + $0x1f18] sm:$0xff]
        %v1210 = vld [vmem:[%s179 + $0x1f20] sm:$0xff]
        %v1211 = vld [vmem:[%s179 + $0x1f28] sm:$0xff]
        %v1212 = vld [vmem:[%s179 + $0x1f30] sm:$0xff]
        %v1213 = vld [vmem:[%s179 + $0x1f38] sm:$0xff]
        %v1214 = vld [vmem:[%s179 + $0x1f40] sm:$0xff]
        %v1215 = vld [vmem:[%s179 + $0x1f48] sm:$0xff]
        %v1216 = vld [vmem:[%s179 + $0x1f50] sm:$0xff]
        %v1217 = vld [vmem:[%s179 + $0x1f58] sm:$0xff]
        %v1218 = vld [vmem:[%s179 + $0x1f60] sm:$0xff]
        %v1219 = vld [vmem:[%s179 + $0x1f68] sm:$0xff]
        %v1220 = vld [vmem:[%s179 + $0x1f70] sm:$0xff]
        %v1221 = vld [vmem:[%s179 + $0x1f78] sm:$0xff]
        %v1222 = vld [vmem:[%s179 + $0x1f80] sm:$0xff]
        %v1223 = vld [vmem:[%s179 + $0x1f88] sm:$0xff]
        %v1224 = vld [vmem:[%s179 + $0x1f90] sm:$0xff]
        %v1225 = vld [vmem:[%s179 + $0x1f98] sm:$0xff]
        %v1226 = vld [vmem:[%s179 + $0x1fa0] sm:$0xff]
        %v1227 = vld [vmem:[%s179 + $0x1fa8] sm:$0xff]
        %v1228 = vld [vmem:[%s179 + $0x1fb0] sm:$0xff]
        %v1229 = vld [vmem:[%s179 + $0x1fb8] sm:$0xff]
        %v1230 = vld [vmem:[%s179 + $0x1fc0] sm:$0xff]
        %v1231 = vld [vmem:[%s179 + $0x1fc8] sm:$0xff]
        %v1232 = vld [vmem:[%s179 + $0x1fd0] sm:$0xff]
        %v1233 = vld [vmem:[%s179 + $0x1fd8] sm:$0xff]
        %v1234 = vld [vmem:[%s179 + $0x1fe0] sm:$0xff]
        %v1235 = vld [vmem:[%s179 + $0x1fe8] sm:$0xff]
        %v1236 = vld [vmem:[%s179 + $0x1ff0] sm:$0xff]
        %v1237 = vld [vmem:[%s179 + $0x1ff8] sm:$0xff]
        %v1238 = vld [vmem:[%s179 + $0x2000] sm:$0xff]
        %v1239 = vld [vmem:[%s179 + $0x2008] sm:$0xff]
        %v1240 = vld [vmem:[%s179 + $0x2010] sm:$0xff]
        %v1241 = vld [vmem:[%s179 + $0x2018] sm:$0xff]
        %v1242 = vld [vmem:[%s179 + $0x2020] sm:$0xff]
        %v1243 = vld [vmem:[%s179 + $0x2028] sm:$0xff]
        %v1244 = vld [vmem:[%s179 + $0x2030] sm:$0xff]
        %v1245 = vld [vmem:[%s179 + $0x2038] sm:$0xff]
        %v1246 = vld [vmem:[%s179 + $0x2040] sm:$0xff]
        %v1247 = vld [vmem:[%s179 + $0x2048] sm:$0xff]
        %v1248 = vld [vmem:[%s179 + $0x2050] sm:$0xff]
        %v1249 = vld [vmem:[%s179 + $0x2058] sm:$0xff]
        %v1250 = vld [vmem:[%s179 + $0x2060] sm:$0xff]
        %v1251 = vld [vmem:[%s179 + $0x2068] sm:$0xff]
        %v1252 = vld [vmem:[%s179 + $0x2070] sm:$0xff]
        %v1253 = vld [vmem:[%s179 + $0x2078] sm:$0xff]
        %v1254 = vld [vmem:[%s179 + $0x2080] sm:$0xff]
        %v1255 = vld [vmem:[%s179 + $0x2088] sm:$0xff]
        %v1256 = vld [vmem:[%s179 + $0x2090] sm:$0xff]
        %v1257 = vld [vmem:[%s179 + $0x2098] sm:$0xff]
        %v1258 = vld [vmem:[%s179 + $0x20a0] sm:$0xff]
        %v1259 = vld [vmem:[%s179 + $0x20a8] sm:$0xff]
        %v1260 = vld [vmem:[%s179 + $0x20b0] sm:$0xff]
        %v1261 = vld [vmem:[%s179 + $0x20b8] sm:$0xff]
        %v1262 = vld [vmem:[%s179 + $0x20c0] sm:$0xff]
        %v1263 = vld [vmem:[%s179 + $0x20c8] sm:$0xff]
        %v1264 = vld [vmem:[%s179 + $0x20d0] sm:$0xff]
        %v1265 = vld [vmem:[%s179 + $0x20d8] sm:$0xff]
        %v1266 = vld [vmem:[%s179 + $0x20e0] sm:$0xff]
        %v1267 = vld [vmem:[%s179 + $0x20e8] sm:$0xff]
        %v1268 = vld [vmem:[%s179 + $0x20f0] sm:$0xff]
        %v1269 = vld [vmem:[%s179 + $0x20f8] sm:$0xff]
        %v1270 = vld [vmem:[%s179 + $0x2100] sm:$0xff]
        %v1271 = vld [vmem:[%s179 + $0x2108] sm:$0xff]
        %v1272 = vld [vmem:[%s179 + $0x2110] sm:$0xff]
        %v1273 = vld [vmem:[%s179 + $0x2118] sm:$0xff]
        %v1274 = vld [vmem:[%s179 + $0x2120] sm:$0xff]
        %v1275 = vld [vmem:[%s179 + $0x2128] sm:$0xff]
        %v1276 = vld [vmem:[%s179 + $0x2130] sm:$0xff]
        %v1277 = vld [vmem:[%s179 + $0x2138] sm:$0xff]
        %v1278 = vld [vmem:[%s179 + $0x2140] sm:$0xff]
        %v1279 = vld [vmem:[%s179 + $0x2148] sm:$0xff]
        %v1280 = vld [vmem:[%s179 + $0x2150] sm:$0xff]
        %v1281 = vld [vmem:[%s179 + $0x2158] sm:$0xff]
        %v1282 = vld [vmem:[%s179 + $0x2160] sm:$0xff]
        %v1283 = vld [vmem:[%s179 + $0x2168] sm:$0xff]
        %v1284 = vld [vmem:[%s179 + $0x2170] sm:$0xff]
        %v1285 = vld [vmem:[%s179 + $0x2178] sm:$0xff]
        %v1286 = vld [vmem:[%s179 + $0x2180] sm:$0xff]
        %v1287 = vld [vmem:[%s179 + $0x2188] sm:$0xff]
        %v1288 = vld [vmem:[%s179 + $0x2190] sm:$0xff]
        %v1289 = vld [vmem:[%s179 + $0x2198] sm:$0xff]
        %v1290 = vld [vmem:[%s179 + $0x21a0] sm:$0xff]
        %v1291 = vld [vmem:[%s179 + $0x21a8] sm:$0xff]
        %v1292 = vld [vmem:[%s179 + $0x21b0] sm:$0xff]
        %v1293 = vld [vmem:[%s179 + $0x21b8] sm:$0xff]
        %v1294 = vld [vmem:[%s179 + $0x21c0] sm:$0xff]
        %v1295 = vld [vmem:[%s179 + $0x21c8] sm:$0xff]
        %v1296 = vld [vmem:[%s179 + $0x21d0] sm:$0xff]
        %v1297 = vld [vmem:[%s179 + $0x21d8] sm:$0xff]
        %v1298 = vld [vmem:[%s179 + $0x21e0] sm:$0xff]
        %v1299 = vld [vmem:[%s179 + $0x21e8] sm:$0xff]
        %v1300 = vld [vmem:[%s179 + $0x21f0] sm:$0xff]
        %v1301 = vld [vmem:[%s179 + $0x21f8] sm:$0xff]
        %v1302 = vld [vmem:[%s179 + $0x2200] sm:$0xff]
        %v1303 = vld [vmem:[%s179 + $0x2208] sm:$0xff]
        %v1304 = vld [vmem:[%s179 + $0x2210] sm:$0xff]
        %v1305 = vld [vmem:[%s179 + $0x2218] sm:$0xff]
        %v1306 = vld [vmem:[%s179 + $0x2220] sm:$0xff]
        %v1307 = vld [vmem:[%s179 + $0x2228] sm:$0xff]
        %v1308 = vld [vmem:[%s179 + $0x2230] sm:$0xff]
        %v1309 = vld [vmem:[%s179 + $0x2238] sm:$0xff]
        %v1310 = vld [vmem:[%s179 + $0x2240] sm:$0xff]
        %v1311 = vld [vmem:[%s179 + $0x2248] sm:$0xff]
        %v1312 = vld [vmem:[%s179 + $0x2250] sm:$0xff]
        %v1313 = vld [vmem:[%s179 + $0x2258] sm:$0xff]
        %v1314 = vld [vmem:[%s179 + $0x2260] sm:$0xff]
        %v1315 = vld [vmem:[%s179 + $0x2268] sm:$0xff]
        %v1316 = vld [vmem:[%s179 + $0x2270] sm:$0xff]
        %v1317 = vld [vmem:[%s179 + $0x2278] sm:$0xff]
        %v1318 = vld [vmem:[%s179 + $0x2280] sm:$0xff]
        %v1319 = vld [vmem:[%s179 + $0x2288] sm:$0xff]
        %v1320 = vld [vmem:[%s179 + $0x2290] sm:$0xff]
        %v1321 = vld [vmem:[%s179 + $0x2298] sm:$0xff]
        %v1322 = vld [vmem:[%s179 + $0x22a0] sm:$0xff]
        %v1323 = vld [vmem:[%s179 + $0x22a8] sm:$0xff]
        %v1324 = vld [vmem:[%s179 + $0x22b0] sm:$0xff]
        %v1325 = vld [vmem:[%s179 + $0x22b8] sm:$0xff]
        %v1326 = vld [vmem:[%s179 + $0x22c0] sm:$0xff]
        %v1327 = vld [vmem:[%s179 + $0x22c8] sm:$0xff]
        %v1328 = vld [vmem:[%s179 + $0x22d0] sm:$0xff]
        %v1329 = vld [vmem:[%s179 + $0x22d8] sm:$0xff]
        %v1330 = vld [vmem:[%s179 + $0x22e0] sm:$0xff]
        %v1331 = vld [vmem:[%s179 + $0x22e8] sm:$0xff]
        %v1332 = vld [vmem:[%s179 + $0x22f0] sm:$0xff]
        %v1333 = vld [vmem:[%s179 + $0x22f8] sm:$0xff]
        %v1334 = vld [vmem:[%s179 + $0x2300] sm:$0xff]
        %v1335 = vld [vmem:[%s179 + $0x2308] sm:$0xff]
        %v1336 = vld [vmem:[%s179 + $0x2310] sm:$0xff]
        %v1337 = vld [vmem:[%s179 + $0x2318] sm:$0xff]
        %v1338 = vld [vmem:[%s179 + $0x2320] sm:$0xff]
        %v1339 = vld [vmem:[%s179 + $0x2328] sm:$0xff]
        %v1340 = vld [vmem:[%s179 + $0x2330] sm:$0xff]
        %v1341 = vld [vmem:[%s179 + $0x2338] sm:$0xff]
        %v1342 = vld [vmem:[%s179 + $0x2340] sm:$0xff]
        %v1343 = vld [vmem:[%s179 + $0x2348] sm:$0xff]
        %v1344 = vld [vmem:[%s179 + $0x2350] sm:$0xff]
        %v1345 = vld [vmem:[%s179 + $0x2358] sm:$0xff]
        %v1346 = vld [vmem:[%s179 + $0x2360] sm:$0xff]
        %v1347 = vld [vmem:[%s179 + $0x2368] sm:$0xff]
        %v1348 = vld [vmem:[%s179 + $0x2370] sm:$0xff]
        %v1349 = vld [vmem:[%s179 + $0x2378] sm:$0xff]
        %v1350 = vld [vmem:[%s179 + $0x2380] sm:$0xff]
        %v1351 = vld [vmem:[%s179 + $0x2388] sm:$0xff]
        %v1352 = vld [vmem:[%s179 + $0x2390] sm:$0xff]
        %v1353 = vld [vmem:[%s179 + $0x2398] sm:$0xff]
        %v1354 = vld [vmem:[%s179 + $0x23a0] sm:$0xff]
        %v1355 = vld [vmem:[%s179 + $0x23a8] sm:$0xff]
        %v1356 = vld [vmem:[%s179 + $0x23b0] sm:$0xff]
        %v1357 = vld [vmem:[%s179 + $0x23b8] sm:$0xff]
        %v1358 = vld [vmem:[%s179 + $0x23c0] sm:$0xff]
        %v1359 = vld [vmem:[%s179 + $0x23c8] sm:$0xff]
        %v1360 = vld [vmem:[%s179 + $0x23d0] sm:$0xff]
        %v1361 = vld [vmem:[%s179 + $0x23d8] sm:$0xff]
        %v1362 = vld [vmem:[%s179 + $0x23e0] sm:$0xff]
        %v1363 = vld [vmem:[%s179 + $0x23e8] sm:$0xff]
        %v1364 = vld [vmem:[%s179 + $0x23f0] sm:$0xff]
        %v1365 = vld [vmem:[%s179 + $0x23f8] sm:$0xff]
        %v1366 = vld [vmem:[%s179 + $0x2400] sm:$0xff]
        %v1367 = vld [vmem:[%s179 + $0x2408] sm:$0xff]
        %v1368 = vld [vmem:[%s179 + $0x2410] sm:$0xff]
        %v1369 = vld [vmem:[%s179 + $0x2418] sm:$0xff]
        %v1370 = vld [vmem:[%s179 + $0x2420] sm:$0xff]
        %v1371 = vld [vmem:[%s179 + $0x2428] sm:$0xff]
        %v1372 = vld [vmem:[%s179 + $0x2430] sm:$0xff]
        %v1373 = vld [vmem:[%s179 + $0x2438] sm:$0xff]
        %v1374 = vld [vmem:[%s179 + $0x2440] sm:$0xff]
        %v1375 = vld [vmem:[%s179 + $0x2448] sm:$0xff]
        %v1376 = vld [vmem:[%s179 + $0x2450] sm:$0xff]
        %v1377 = vld [vmem:[%s179 + $0x2458] sm:$0xff]
        %v1378 = vld [vmem:[%s179 + $0x2460] sm:$0xff]
        %v1379 = vld [vmem:[%s179 + $0x2468] sm:$0xff]
        %v1380 = vld [vmem:[%s179 + $0x2470] sm:$0xff]
        %v1381 = vld [vmem:[%s179 + $0x2478] sm:$0xff]
        %v1382 = vld [vmem:[%s179 + $0x2480] sm:$0xff]
        %v1383 = vld [vmem:[%s179 + $0x2488] sm:$0xff]
        %v1384 = vld [vmem:[%s179 + $0x2490] sm:$0xff]
        %v1385 = vld [vmem:[%s179 + $0x2498] sm:$0xff]
        %v1386 = vld [vmem:[%s179 + $0x24a0] sm:$0xff]
        %v1387 = vld [vmem:[%s179 + $0x24a8] sm:$0xff]
        %v1388 = vld [vmem:[%s179 + $0x24b0] sm:$0xff]
        %v1389 = vld [vmem:[%s179 + $0x24b8] sm:$0xff]
        %v1390 = vld [vmem:[%s179 + $0x24c0] sm:$0xff]
        %v1391 = vld [vmem:[%s179 + $0x24c8] sm:$0xff]
        %v1392 = vld [vmem:[%s179 + $0x24d0] sm:$0xff]
        %v1393 = vld [vmem:[%s179 + $0x24d8] sm:$0xff]
        %v1394 = vld [vmem:[%s179 + $0x24e0] sm:$0xff]
        %v1395 = vld [vmem:[%s179 + $0x24e8] sm:$0xff]
        %v1396 = vld [vmem:[%s179 + $0x24f0] sm:$0xff]
        %v1397 = vld [vmem:[%s179 + $0x24f8] sm:$0xff]
        %v1398 = vld [vmem:[%s179 + $0x2500] sm:$0xff]
        %v1399 = vld [vmem:[%s179 + $0x2508] sm:$0xff]
        %v1400 = vld [vmem:[%s179 + $0x2510] sm:$0xff]
        %v1401 = vld [vmem:[%s179 + $0x2518] sm:$0xff]
        %v1402 = vld [vmem:[%s179 + $0x2520] sm:$0xff]
        %v1403 = vld [vmem:[%s179 + $0x2528] sm:$0xff]
        %v1404 = vld [vmem:[%s179 + $0x2530] sm:$0xff]
        %v1405 = vld [vmem:[%s179 + $0x2538] sm:$0xff]
        %v1406 = vld [vmem:[%s179 + $0x2540] sm:$0xff]
        %v1407 = vld [vmem:[%s179 + $0x2548] sm:$0xff]
        %v1408 = vld [vmem:[%s179 + $0x2550] sm:$0xff]
        %v1409 = vld [vmem:[%s179 + $0x2558] sm:$0xff]
        %v1410 = vld [vmem:[%s179 + $0x2560] sm:$0xff]
        %v1411 = vld [vmem:[%s179 + $0x2568] sm:$0xff]
        %v1412 = vld [vmem:[%s179 + $0x2570] sm:$0xff]
        %v1413 = vld [vmem:[%s179 + $0x2578] sm:$0xff]
        %v1414 = vld [vmem:[%s179 + $0x2580] sm:$0xff]
        %v1415 = vld [vmem:[%s179 + $0x2588] sm:$0xff]
        %v1416 = vld [vmem:[%s179 + $0x2590] sm:$0xff]
        %v1417 = vld [vmem:[%s179 + $0x2598] sm:$0xff]
        %v1418 = vld [vmem:[%s179 + $0x25a0] sm:$0xff]
        %v1419 = vld [vmem:[%s179 + $0x25a8] sm:$0xff]
        %v1420 = vld [vmem:[%s179 + $0x25b0] sm:$0xff]
        %v1421 = vld [vmem:[%s179 + $0x25b8] sm:$0xff]
        %v1422 = vld [vmem:[%s179 + $0x25c0] sm:$0xff]
        %v1423 = vld [vmem:[%s179 + $0x25c8] sm:$0xff]
        %v1424 = vld [vmem:[%s179 + $0x25d0] sm:$0xff]
        %v1425 = vld [vmem:[%s179 + $0x25d8] sm:$0xff]
        %v1426 = vld [vmem:[%s179 + $0x25e0] sm:$0xff]
        %v1427 = vld [vmem:[%s179 + $0x25e8] sm:$0xff]
        %v1428 = vld [vmem:[%s179 + $0x25f0] sm:$0xff]
        %v1429 = vld [vmem:[%s179 + $0x25f8] sm:$0xff]
        %v1430 = vld [vmem:[%s179 + $0x2600] sm:$0xff]
        %v1431 = vld [vmem:[%s179 + $0x2608] sm:$0xff]
        %v1432 = vld [vmem:[%s179 + $0x2610] sm:$0xff]
        %v1433 = vld [vmem:[%s179 + $0x2618] sm:$0xff]
        %v1434 = vld [vmem:[%s179 + $0x2620] sm:$0xff]
        %v1435 = vld [vmem:[%s179 + $0x2628] sm:$0xff]
        %v1436 = vld [vmem:[%s179 + $0x2630] sm:$0xff]
        %v1437 = vld [vmem:[%s179 + $0x2638] sm:$0xff]
        %v1438 = vld [vmem:[%s179 + $0x2640] sm:$0xff]
        %v1439 = vld [vmem:[%s179 + $0x2648] sm:$0xff]
        %v1440 = vld [vmem:[%s179 + $0x2650] sm:$0xff]
        %v1441 = vld [vmem:[%s179 + $0x2658] sm:$0xff]
        %v1442 = vld [vmem:[%s179 + $0x2660] sm:$0xff]
        %v1443 = vld [vmem:[%s179 + $0x2668] sm:$0xff]
        %v1444 = vld [vmem:[%s179 + $0x2670] sm:$0xff]
        %v1445 = vld [vmem:[%s179 + $0x2678] sm:$0xff]
        %v1446 = vld [vmem:[%s179 + $0x2680] sm:$0xff]
        %v1447 = vld [vmem:[%s179 + $0x2688] sm:$0xff]
        %v1448 = vld [vmem:[%s179 + $0x2690] sm:$0xff]
        %v1449 = vld [vmem:[%s179 + $0x2698] sm:$0xff]
        %v1450 = vld [vmem:[%s179 + $0x26a0] sm:$0xff]
        %v1451 = vld [vmem:[%s179 + $0x26a8] sm:$0xff]
        %v1452 = vld [vmem:[%s179 + $0x26b0] sm:$0xff]
        %v1453 = vld [vmem:[%s179 + $0x26b8] sm:$0xff]
        %v1454 = vld [vmem:[%s179 + $0x26c0] sm:$0xff]
        %v1455 = vld [vmem:[%s179 + $0x26c8] sm:$0xff]
        %v1456 = vld [vmem:[%s179 + $0x26d0] sm:$0xff]
        %v1457 = vld [vmem:[%s179 + $0x26d8] sm:$0xff]
        %v1458 = vld [vmem:[%s179 + $0x26e0] sm:$0xff]
        %v1459 = vld [vmem:[%s179 + $0x26e8] sm:$0xff]
        %v1460 = vld [vmem:[%s179 + $0x26f0] sm:$0xff]
        %v1461 = vld [vmem:[%s179 + $0x26f8] sm:$0xff]
        %v1462 = vld [vmem:[%s179 + $0x2700] sm:$0xff]
        %v1463 = vld [vmem:[%s179 + $0x2708] sm:$0xff]
        %v1464 = vld [vmem:[%s179 + $0x2710] sm:$0xff]
        %v1465 = vld [vmem:[%s179 + $0x2718] sm:$0xff]
        %v1466 = vld [vmem:[%s179 + $0x2720] sm:$0xff]
        %v1467 = vld [vmem:[%s179 + $0x2728] sm:$0xff]
        %v1468 = vld [vmem:[%s179 + $0x2730] sm:$0xff]
        %v1469 = vld [vmem:[%s179 + $0x2738] sm:$0xff]
        %v1470 = vld [vmem:[%s179 + $0x2740] sm:$0xff]
        %v1471 = vld [vmem:[%s179 + $0x2748] sm:$0xff]
        %v1472 = vld [vmem:[%s179 + $0x2750] sm:$0xff]
        %v1473 = vld [vmem:[%s179 + $0x2758] sm:$0xff]
        %v1474 = vld [vmem:[%s179 + $0x2760] sm:$0xff]
        %v1475 = vld [vmem:[%s179 + $0x2768] sm:$0xff]
        %v1476 = vld [vmem:[%s179 + $0x2770] sm:$0xff]
        %v1477 = vld [vmem:[%s179 + $0x2778] sm:$0xff]
        %v1478 = vld [vmem:[%s179 + $0x2780] sm:$0xff]
        %v1479 = vld [vmem:[%s179 + $0x2788] sm:$0xff]
        %v1480 = vld [vmem:[%s179 + $0x2790] sm:$0xff]
        %v1481 = vld [vmem:[%s179 + $0x2798] sm:$0xff]
        %v1482 = vld [vmem:[%s179 + $0x27a0] sm:$0xff]
        %v1483 = vld [vmem:[%s179 + $0x27a8] sm:$0xff]
        %v1484 = vld [vmem:[%s179 + $0x27b0] sm:$0xff]
        %v1485 = vld [vmem:[%s179 + $0x27b8] sm:$0xff]
        %v1486 = vld [vmem:[%s179 + $0x27c0] sm:$0xff]
        %v1487 = vld [vmem:[%s179 + $0x27c8] sm:$0xff]
        %v1488 = vld [vmem:[%s179 + $0x27d0] sm:$0xff]
        %v1489 = vld [vmem:[%s179 + $0x27d8] sm:$0xff]
        %v1490 = vld [vmem:[%s179 + $0x27e0] sm:$0xff]
        %v1491 = vld [vmem:[%s179 + $0x27e8] sm:$0xff]
        %v1492 = vld [vmem:[%s179 + $0x27f0] sm:$0xff]
        %v1493 = vld [vmem:[%s179 + $0x27f8] sm:$0xff]
        %v1494 = vld [vmem:[%s179 + $0x2800] sm:$0xff]
        %v1495 = vld [vmem:[%s179 + $0x2808] sm:$0xff]
        %v1496 = vld [vmem:[%s179 + $0x2810] sm:$0xff]
        %v1497 = vld [vmem:[%s179 + $0x2818] sm:$0xff]
        %v1498 = vld [vmem:[%s179 + $0x2820] sm:$0xff]
        %v1499 = vld [vmem:[%s179 + $0x2828] sm:$0xff]
        %v1500 = vld [vmem:[%s179 + $0x2830] sm:$0xff]
        %v1501 = vld [vmem:[%s179 + $0x2838] sm:$0xff]
        %v1502 = vld [vmem:[%s179 + $0x2840] sm:$0xff]
        %v1503 = vld [vmem:[%s179 + $0x2848] sm:$0xff]
        %v1504 = vld [vmem:[%s179 + $0x2850] sm:$0xff]
        %v1505 = vld [vmem:[%s179 + $0x2858] sm:$0xff]
        %v1506 = vld [vmem:[%s179 + $0x2860] sm:$0xff]
        %v1507 = vld [vmem:[%s179 + $0x2868] sm:$0xff]
        %v1508 = vld [vmem:[%s179 + $0x2870] sm:$0xff]
        %v1509 = vld [vmem:[%s179 + $0x2878] sm:$0xff]
        %v1510 = vld [vmem:[%s179 + $0x2880] sm:$0xff]
        %v1511 = vld [vmem:[%s179 + $0x2888] sm:$0xff]
        %v1512 = vld [vmem:[%s179 + $0x2890] sm:$0xff]
        %v1513 = vld [vmem:[%s179 + $0x2898] sm:$0xff]
        %v1514 = vld [vmem:[%s179 + $0x28a0] sm:$0xff]
        %v1515 = vld [vmem:[%s179 + $0x28a8] sm:$0xff]
        %v1516 = vld [vmem:[%s179 + $0x28b0] sm:$0xff]
        %v1517 = vld [vmem:[%s179 + $0x28b8] sm:$0xff]
        %v1518 = vld [vmem:[%s179 + $0x28c0] sm:$0xff]
        %v1519 = vld [vmem:[%s179 + $0x28c8] sm:$0xff]
        %v1520 = vld [vmem:[%s179 + $0x28d0] sm:$0xff]
        %v1521 = vld [vmem:[%s179 + $0x28d8] sm:$0xff]
        %v1522 = vld [vmem:[%s179 + $0x28e0] sm:$0xff]
        %v1523 = vld [vmem:[%s179 + $0x28e8] sm:$0xff]
        %v1524 = vld [vmem:[%s179 + $0x28f0] sm:$0xff]
        %v1525 = vld [vmem:[%s179 + $0x28f8] sm:$0xff]
        %v1526 = vld [vmem:[%s179 + $0x2900] sm:$0xff]
        %v1527 = vld [vmem:[%s179 + $0x2908] sm:$0xff]
        %v1528 = vld [vmem:[%s179 + $0x2910] sm:$0xff]
        %v1529 = vld [vmem:[%s179 + $0x2918] sm:$0xff]
        %v1530 = vld [vmem:[%s179 + $0x2920] sm:$0xff]
        %v1531 = vld [vmem:[%s179 + $0x2928] sm:$0xff]
        %v1532 = vld [vmem:[%s179 + $0x2930] sm:$0xff]
        %v1533 = vld [vmem:[%s179 + $0x2938] sm:$0xff]
        %v1534 = vld [vmem:[%s179 + $0x2940] sm:$0xff]
        %v1535 = vld [vmem:[%s179 + $0x2948] sm:$0xff]
        %v1536 = vld [vmem:[%s179 + $0x2950] sm:$0xff]
        %v1537 = vld [vmem:[%s179 + $0x2958] sm:$0xff]
        %v1538 = vld [vmem:[%s179 + $0x2960] sm:$0xff]
        %v1539 = vld [vmem:[%s179 + $0x2968] sm:$0xff]
        %v1540 = vld [vmem:[%s179 + $0x2970] sm:$0xff]
        %v1541 = vld [vmem:[%s179 + $0x2978] sm:$0xff]
        %v1542 = vld [vmem:[%s179 + $0x2980] sm:$0xff]
        %v1543 = vld [vmem:[%s179 + $0x2988] sm:$0xff]
        %v1544 = vld [vmem:[%s179 + $0x2990] sm:$0xff]
        %v1545 = vld [vmem:[%s179 + $0x2998] sm:$0xff]
        %v1546 = vld [vmem:[%s179 + $0x29a0] sm:$0xff]
        %v1547 = vld [vmem:[%s179 + $0x29a8] sm:$0xff]
        %v1548 = vld [vmem:[%s179 + $0x29b0] sm:$0xff]
        %v1549 = vld [vmem:[%s179 + $0x29b8] sm:$0xff]
        %v1550 = vld [vmem:[%s179 + $0x29c0] sm:$0xff]
        %v1551 = vld [vmem:[%s179 + $0x29c8] sm:$0xff]
        %v1552 = vld [vmem:[%s179 + $0x29d0] sm:$0xff]
        %v1553 = vld [vmem:[%s179 + $0x29d8] sm:$0xff]
        %v1554 = vld [vmem:[%s179 + $0x29e0] sm:$0xff]
        %v1555 = vld [vmem:[%s179 + $0x29e8] sm:$0xff]
        %v1556 = vld [vmem:[%s179 + $0x29f0] sm:$0xff]
        %v1557 = vld [vmem:[%s179 + $0x29f8] sm:$0xff]
        %v1558 = vld [vmem:[%s179 + $0x2a00] sm:$0xff]
        %v1559 = vld [vmem:[%s179 + $0x2a08] sm:$0xff]
        %v1560 = vld [vmem:[%s179 + $0x2a10] sm:$0xff]
        %v1561 = vld [vmem:[%s179 + $0x2a18] sm:$0xff]
        %v1562 = vld [vmem:[%s179 + $0x2a20] sm:$0xff]
        %v1563 = vld [vmem:[%s179 + $0x2a28] sm:$0xff]
        %v1564 = vld [vmem:[%s179 + $0x2a30] sm:$0xff]
        %v1565 = vld [vmem:[%s179 + $0x2a38] sm:$0xff]
        %v1566 = vld [vmem:[%s179 + $0x2a40] sm:$0xff]
        %v1567 = vld [vmem:[%s179 + $0x2a48] sm:$0xff]
        %v1568 = vld [vmem:[%s179 + $0x2a50] sm:$0xff]
        %v1569 = vld [vmem:[%s179 + $0x2a58] sm:$0xff]
        %v1570 = vld [vmem:[%s179 + $0x2a60] sm:$0xff]
        %v1571 = vld [vmem:[%s179 + $0x2a68] sm:$0xff]
        %v1572 = vld [vmem:[%s179 + $0x2a70] sm:$0xff]
        %v1573 = vld [vmem:[%s179 + $0x2a78] sm:$0xff]
        %v1574 = vld [vmem:[%s179 + $0x2a80] sm:$0xff]
        %v1575 = vld [vmem:[%s179 + $0x2a88] sm:$0xff]
        %v1576 = vld [vmem:[%s179 + $0x2a90] sm:$0xff]
        %v1577 = vld [vmem:[%s179 + $0x2a98] sm:$0xff]
        %v1578 = vld [vmem:[%s179 + $0x2aa0] sm:$0xff]
        %v1579 = vld [vmem:[%s179 + $0x2aa8] sm:$0xff]
        %v1580 = vld [vmem:[%s179 + $0x2ab0] sm:$0xff]
        %v1581 = vld [vmem:[%s179 + $0x2ab8] sm:$0xff]
        %v1582 = vld [vmem:[%s179 + $0x2ac0] sm:$0xff]
        %v1583 = vld [vmem:[%s179 + $0x2ac8] sm:$0xff]
        %v1584 = vld [vmem:[%s179 + $0x2ad0] sm:$0xff]
        %v1585 = vld [vmem:[%s179 + $0x2ad8] sm:$0xff]
        %v1586 = vld [vmem:[%s179 + $0x2ae0] sm:$0xff]
        %v1587 = vld [vmem:[%s179 + $0x2ae8] sm:$0xff]
        %v1588 = vld [vmem:[%s179 + $0x2af0] sm:$0xff]
        %v1589 = vld [vmem:[%s179 + $0x2af8] sm:$0xff]
        %v1590 = vld [vmem:[%s179 + $0x2b00] sm:$0xff]
        %v1591 = vld [vmem:[%s179 + $0x2b08] sm:$0xff]
        %v1592 = vld [vmem:[%s179 + $0x2b10] sm:$0xff]
        %v1593 = vld [vmem:[%s179 + $0x2b18] sm:$0xff]
        %v1594 = vld [vmem:[%s179 + $0x2b20] sm:$0xff]
        %v1595 = vld [vmem:[%s179 + $0x2b28] sm:$0xff]
        %v1596 = vld [vmem:[%s179 + $0x2b30] sm:$0xff]
        %v1597 = vld [vmem:[%s179 + $0x2b38] sm:$0xff]
        %v1598 = vld [vmem:[%s179 + $0x2b40] sm:$0xff]
        %v1599 = vld [vmem:[%s179 + $0x2b48] sm:$0xff]
        %v1600 = vld [vmem:[%s179 + $0x2b50] sm:$0xff]
        %v1601 = vld [vmem:[%s179 + $0x2b58] sm:$0xff]
        %v1602 = vld [vmem:[%s179 + $0x2b60] sm:$0xff]
        %v1603 = vld [vmem:[%s179 + $0x2b68] sm:$0xff]
        %v1604 = vld [vmem:[%s179 + $0x2b70] sm:$0xff]
        %v1605 = vld [vmem:[%s179 + $0x2b78] sm:$0xff]
        %v1606 = vld [vmem:[%s179 + $0x2b80] sm:$0xff]
        %v1607 = vld [vmem:[%s179 + $0x2b88] sm:$0xff]
        %v1608 = vld [vmem:[%s179 + $0x2b90] sm:$0xff]
        %v1609 = vld [vmem:[%s179 + $0x2b98] sm:$0xff]
        %v1610 = vld [vmem:[%s179 + $0x2ba0] sm:$0xff]
        %v1611 = vld [vmem:[%s179 + $0x2ba8] sm:$0xff]
        %v1612 = vld [vmem:[%s179 + $0x2bb0] sm:$0xff]
        %v1613 = vld [vmem:[%s179 + $0x2bb8] sm:$0xff]
        %v1614 = vld [vmem:[%s179 + $0x2bc0] sm:$0xff]
        %v1615 = vld [vmem:[%s179 + $0x2bc8] sm:$0xff]
        %v1616 = vld [vmem:[%s179 + $0x2bd0] sm:$0xff]
        %v1617 = vld [vmem:[%s179 + $0x2bd8] sm:$0xff]
        %v1618 = vld [vmem:[%s179 + $0x2be0] sm:$0xff]
        %v1619 = vld [vmem:[%s179 + $0x2be8] sm:$0xff]
        %v1620 = vld [vmem:[%s179 + $0x2bf0] sm:$0xff]
        %v1621 = vld [vmem:[%s179 + $0x2bf8] sm:$0xff]
        %v1622 = vld [vmem:[%s179 + $0x2c00] sm:$0xff]
        %v1623 = vld [vmem:[%s179 + $0x2c08] sm:$0xff]
        %v1624 = vld [vmem:[%s179 + $0x2c10] sm:$0xff]
        %v1625 = vld [vmem:[%s179 + $0x2c18] sm:$0xff]
        %v1626 = vld [vmem:[%s179 + $0x2c20] sm:$0xff]
        %v1627 = vld [vmem:[%s179 + $0x2c28] sm:$0xff]
        %v1628 = vld [vmem:[%s179 + $0x2c30] sm:$0xff]
        %v1629 = vld [vmem:[%s179 + $0x2c38] sm:$0xff]
        %v1630 = vld [vmem:[%s179 + $0x2c40] sm:$0xff]
        %v1631 = vld [vmem:[%s179 + $0x2c48] sm:$0xff]
        %v1632 = vld [vmem:[%s179 + $0x2c50] sm:$0xff]
        %v1633 = vld [vmem:[%s179 + $0x2c58] sm:$0xff]
        %v1634 = vld [vmem:[%s179 + $0x2c60] sm:$0xff]
        %v1635 = vld [vmem:[%s179 + $0x2c68] sm:$0xff]
        %v1636 = vld [vmem:[%s179 + $0x2c70] sm:$0xff]
        %v1637 = vld [vmem:[%s179 + $0x2c78] sm:$0xff]
        %v1638 = vld [vmem:[%s179 + $0x2c80] sm:$0xff]
        %v1639 = vld [vmem:[%s179 + $0x2c88] sm:$0xff]
        %v1640 = vld [vmem:[%s179 + $0x2c90] sm:$0xff]
        %v1641 = vld [vmem:[%s179 + $0x2c98] sm:$0xff]
        %v1642 = vld [vmem:[%s179 + $0x2ca0] sm:$0xff]
        %v1643 = vld [vmem:[%s179 + $0x2ca8] sm:$0xff]
        %v1644 = vld [vmem:[%s179 + $0x2cb0] sm:$0xff]
        %v1645 = vld [vmem:[%s179 + $0x2cb8] sm:$0xff]
        %v1646 = vld [vmem:[%s179 + $0x2cc0] sm:$0xff]
        %v1647 = vld [vmem:[%s179 + $0x2cc8] sm:$0xff]
        %v1648 = vld [vmem:[%s179 + $0x2cd0] sm:$0xff]
        %v1649 = vld [vmem:[%s179 + $0x2cd8] sm:$0xff]
        %v1650 = vld [vmem:[%s179 + $0x2ce0] sm:$0xff]
        %v1651 = vld [vmem:[%s179 + $0x2ce8] sm:$0xff]
        %v1652 = vld [vmem:[%s179 + $0x2cf0] sm:$0xff]
        %v1653 = vld [vmem:[%s179 + $0x2cf8] sm:$0xff]
        %v1654 = vld [vmem:[%s179 + $0x2d00] sm:$0xff]
        %v1655 = vld [vmem:[%s179 + $0x2d08] sm:$0xff]
        %v1656 = vld [vmem:[%s179 + $0x2d10] sm:$0xff]
        %v1657 = vld [vmem:[%s179 + $0x2d18] sm:$0xff]
        %v1658 = vld [vmem:[%s179 + $0x2d20] sm:$0xff]
        %v1659 = vld [vmem:[%s179 + $0x2d28] sm:$0xff]
        %v1660 = vld [vmem:[%s179 + $0x2d30] sm:$0xff]
        %v1661 = vld [vmem:[%s179 + $0x2d38] sm:$0xff]
        %v1662 = vld [vmem:[%s179 + $0x2d40] sm:$0xff]
        %v1663 = vld [vmem:[%s179 + $0x2d48] sm:$0xff]
        %v1664 = vld [vmem:[%s179 + $0x2d50] sm:$0xff]
        %v1665 = vld [vmem:[%s179 + $0x2d58] sm:$0xff]
        %v1666 = vld [vmem:[%s179 + $0x2d60] sm:$0xff]
        %v1667 = vld [vmem:[%s179 + $0x2d68] sm:$0xff]
        %v1668 = vld [vmem:[%s179 + $0x2d70] sm:$0xff]
        %v1669 = vld [vmem:[%s179 + $0x2d78] sm:$0xff]
        %v1670 = vld [vmem:[%s179 + $0x2d80] sm:$0xff]
        %v1671 = vld [vmem:[%s179 + $0x2d88] sm:$0xff]
        %v1672 = vld [vmem:[%s179 + $0x2d90] sm:$0xff]
        %v1673 = vld [vmem:[%s179 + $0x2d98] sm:$0xff]
        %v1674 = vld [vmem:[%s179 + $0x2da0] sm:$0xff]
        %v1675 = vld [vmem:[%s179 + $0x2da8] sm:$0xff]
        %v1676 = vld [vmem:[%s179 + $0x2db0] sm:$0xff]
        %v1677 = vld [vmem:[%s179 + $0x2db8] sm:$0xff]
        %v1678 = vld [vmem:[%s179 + $0x2dc0] sm:$0xff]
        %v1679 = vld [vmem:[%s179 + $0x2dc8] sm:$0xff]
        %v1680 = vld [vmem:[%s179 + $0x2dd0] sm:$0xff]
        %v1681 = vld [vmem:[%s179 + $0x2dd8] sm:$0xff]
        %v1682 = vld [vmem:[%s179 + $0x2de0] sm:$0xff]
        %v1683 = vld [vmem:[%s179 + $0x2de8] sm:$0xff]
        %v1684 = vld [vmem:[%s179 + $0x2df0] sm:$0xff]
        %v1685 = vld [vmem:[%s179 + $0x2df8] sm:$0xff]
        %v1686 = vld [vmem:[%s179 + $0x2e00] sm:$0xff]
        %v1687 = vld [vmem:[%s179 + $0x2e08] sm:$0xff]
        %v1688 = vld [vmem:[%s179 + $0x2e10] sm:$0xff]
        %v1689 = vld [vmem:[%s179 + $0x2e18] sm:$0xff]
        %v1690 = vld [vmem:[%s179 + $0x2e20] sm:$0xff]
        %v1691 = vld [vmem:[%s179 + $0x2e28] sm:$0xff]
        %v1692 = vld [vmem:[%s179 + $0x2e30] sm:$0xff]
        %v1693 = vld [vmem:[%s179 + $0x2e38] sm:$0xff]
        %v1694 = vld [vmem:[%s179 + $0x2e40] sm:$0xff]
        %v1695 = vld [vmem:[%s179 + $0x2e48] sm:$0xff]
        %v1696 = vld [vmem:[%s179 + $0x2e50] sm:$0xff]
        %v1697 = vld [vmem:[%s179 + $0x2e58] sm:$0xff]
        %v1698 = vld [vmem:[%s179 + $0x2e60] sm:$0xff]
        %v1699 = vld [vmem:[%s179 + $0x2e68] sm:$0xff]
        %v1700 = vld [vmem:[%s179 + $0x2e70] sm:$0xff]
        %v1701 = vld [vmem:[%s179 + $0x2e78] sm:$0xff]
        %v1702 = vld [vmem:[%s179 + $0x2e80] sm:$0xff]
        %v1703 = vld [vmem:[%s179 + $0x2e88] sm:$0xff]
        %v1704 = vld [vmem:[%s179 + $0x2e90] sm:$0xff]
        %v1705 = vld [vmem:[%s179 + $0x2e98] sm:$0xff]
        %v1706 = vld [vmem:[%s179 + $0x2ea0] sm:$0xff]
        %v1707 = vld [vmem:[%s179 + $0x2ea8] sm:$0xff]
        %v1708 = vld [vmem:[%s179 + $0x2eb0] sm:$0xff]
        %v1709 = vld [vmem:[%s179 + $0x2eb8] sm:$0xff]
        %v1710 = vld [vmem:[%s179 + $0x2ec0] sm:$0xff]
        %v1711 = vld [vmem:[%s179 + $0x2ec8] sm:$0xff]
        %v1712 = vld [vmem:[%s179 + $0x2ed0] sm:$0xff]
        %v1713 = vld [vmem:[%s179 + $0x2ed8] sm:$0xff]
        %v1714 = vld [vmem:[%s179 + $0x2ee0] sm:$0xff]
        %v1715 = vld [vmem:[%s179 + $0x2ee8] sm:$0xff]
        %v1716 = vld [vmem:[%s179 + $0x2ef0] sm:$0xff]
        %v1717 = vld [vmem:[%s179 + $0x2ef8] sm:$0xff]
        %v1718 = vld [vmem:[%s179 + $0x2f00] sm:$0xff]
        %v1719 = vld [vmem:[%s179 + $0x2f08] sm:$0xff]
        %v1720 = vld [vmem:[%s179 + $0x2f10] sm:$0xff]
        %v1721 = vld [vmem:[%s179 + $0x2f18] sm:$0xff]
        %v1722 = vld [vmem:[%s179 + $0x2f20] sm:$0xff]
        %v1723 = vld [vmem:[%s179 + $0x2f28] sm:$0xff]
        %v1724 = vld [vmem:[%s179 + $0x2f30] sm:$0xff]
        %v1725 = vld [vmem:[%s179 + $0x2f38] sm:$0xff]
        %v1726 = vld [vmem:[%s179 + $0x2f40] sm:$0xff]
        %v1727 = vld [vmem:[%s179 + $0x2f48] sm:$0xff]
        %v1728 = vld [vmem:[%s179 + $0x2f50] sm:$0xff]
        %v1729 = vld [vmem:[%s179 + $0x2f58] sm:$0xff]
        %v1730 = vld [vmem:[%s179 + $0x2f60] sm:$0xff]
        %v1731 = vld [vmem:[%s179 + $0x2f68] sm:$0xff]
        %v1732 = vld [vmem:[%s179 + $0x2f70] sm:$0xff]
        %v1733 = vld [vmem:[%s179 + $0x2f78] sm:$0xff]
        %v1734 = vld [vmem:[%s179 + $0x2f80] sm:$0xff]
        %v1735 = vld [vmem:[%s179 + $0x2f88] sm:$0xff]
        %v1736 = vld [vmem:[%s179 + $0x2f90] sm:$0xff]
        %v1737 = vld [vmem:[%s179 + $0x2f98] sm:$0xff]
        %v1738 = vld [vmem:[%s179 + $0x2fa0] sm:$0xff]
        %v1739 = vld [vmem:[%s179 + $0x2fa8] sm:$0xff]
        %v1740 = vld [vmem:[%s179 + $0x2fb0] sm:$0xff]
        %v1741 = vld [vmem:[%s179 + $0x2fb8] sm:$0xff]
        %v1742 = vld [vmem:[%s179 + $0x2fc0] sm:$0xff]
        %v1743 = vld [vmem:[%s179 + $0x2fc8] sm:$0xff]
        %v1744 = vld [vmem:[%s179 + $0x2fd0] sm:$0xff]
        %v1745 = vld [vmem:[%s179 + $0x2fd8] sm:$0xff]
        %v1746 = vld [vmem:[%s179 + $0x2fe0] sm:$0xff]
        %v1747 = vld [vmem:[%s179 + $0x2fe8] sm:$0xff]
        %v1748 = vld [vmem:[%s179 + $0x2ff0] sm:$0xff]
        %v1749 = vld [vmem:[%s179 + $0x2ff8] sm:$0xff]
        %v1750 = vld [vmem:[%s179 + $0x3000] sm:$0xff]
        %v1751 = vld [vmem:[%s179 + $0x3008] sm:$0xff]
        %v1752 = vld [vmem:[%s179 + $0x3010] sm:$0xff]
        %v1753 = vld [vmem:[%s179 + $0x3018] sm:$0xff]
        %v1754 = vld [vmem:[%s179 + $0x3020] sm:$0xff]
        %v1755 = vld [vmem:[%s179 + $0x3028] sm:$0xff]
        %v1756 = vld [vmem:[%s179 + $0x3030] sm:$0xff]
        %v1757 = vld [vmem:[%s179 + $0x3038] sm:$0xff]
        %v1758 = vld [vmem:[%s179 + $0x3040] sm:$0xff]
        %v1759 = vld [vmem:[%s179 + $0x3048] sm:$0xff]
        %v1760 = vld [vmem:[%s179 + $0x3050] sm:$0xff]
        %v1761 = vld [vmem:[%s179 + $0x3058] sm:$0xff]
        %v1762 = vld [vmem:[%s179 + $0x3060] sm:$0xff]
        %v1763 = vld [vmem:[%s179 + $0x3068] sm:$0xff]
        %v1764 = vld [vmem:[%s179 + $0x3070] sm:$0xff]
        %v1765 = vld [vmem:[%s179 + $0x3078] sm:$0xff]
        %v1766 = vld [vmem:[%s179 + $0x3080] sm:$0xff]
        %v1767 = vld [vmem:[%s179 + $0x3088] sm:$0xff]
        %v1768 = vld [vmem:[%s179 + $0x3090] sm:$0xff]
        %v1769 = vld [vmem:[%s179 + $0x3098] sm:$0xff]
        %v1770 = vld [vmem:[%s179 + $0x30a0] sm:$0xff]
        %v1771 = vld [vmem:[%s179 + $0x30a8] sm:$0xff]
        %v1772 = vld [vmem:[%s179 + $0x30b0] sm:$0xff]
        %v1773 = vld [vmem:[%s179 + $0x30b8] sm:$0xff]
        %v1774 = vld [vmem:[%s179 + $0x30c0] sm:$0xff]
        %v1775 = vld [vmem:[%s179 + $0x30c8] sm:$0xff]
        %v1776 = vld [vmem:[%s179 + $0x30d0] sm:$0xff]
        %v1777 = vld [vmem:[%s179 + $0x30d8] sm:$0xff]
        %v1778 = vld [vmem:[%s179 + $0x30e0] sm:$0xff]
        %v1779 = vld [vmem:[%s179 + $0x30e8] sm:$0xff]
        %v1780 = vld [vmem:[%s179 + $0x30f0] sm:$0xff]
        %v1781 = vld [vmem:[%s179 + $0x30f8] sm:$0xff]
        %v1782 = vld [vmem:[%s179 + $0x3100] sm:$0xff]
        %v1783 = vld [vmem:[%s179 + $0x3108] sm:$0xff]
        %v1784 = vld [vmem:[%s179 + $0x3110] sm:$0xff]
        %v1785 = vld [vmem:[%s179 + $0x3118] sm:$0xff]
        %v1786 = vld [vmem:[%s179 + $0x3120] sm:$0xff]
        %v1787 = vld [vmem:[%s179 + $0x3128] sm:$0xff]
        %v1788 = vld [vmem:[%s179 + $0x3130] sm:$0xff]
        %v1789 = vld [vmem:[%s179 + $0x3138] sm:$0xff]
        %v1790 = vld [vmem:[%s179 + $0x3140] sm:$0xff]
        %v1791 = vld [vmem:[%s179 + $0x3148] sm:$0xff]
        %v1792 = vld [vmem:[%s179 + $0x3150] sm:$0xff]
        %v1793 = vld [vmem:[%s179 + $0x3158] sm:$0xff]
        %v1794 = vld [vmem:[%s179 + $0x3160] sm:$0xff]
        %v1795 = vld [vmem:[%s179 + $0x3168] sm:$0xff]
        %v1796 = vld [vmem:[%s179 + $0x3170] sm:$0xff]
        %v1797 = vld [vmem:[%s179 + $0x3178] sm:$0xff]
        %v1798 = vld [vmem:[%s179 + $0x3180] sm:$0xff]
        %v1799 = vld [vmem:[%s179 + $0x3188] sm:$0xff]
        %v1800 = vld [vmem:[%s179 + $0x3190] sm:$0xff]
        %v1801 = vld [vmem:[%s179 + $0x3198] sm:$0xff]
        %v1802 = vld [vmem:[%s179 + $0x31a0] sm:$0xff]
        %v1803 = vld [vmem:[%s179 + $0x31a8] sm:$0xff]
        %v1804 = vld [vmem:[%s179 + $0x31b0] sm:$0xff]
        %v1805 = vld [vmem:[%s179 + $0x31b8] sm:$0xff]
        %v1806 = vld [vmem:[%s179 + $0x31c0] sm:$0xff]
        %v1807 = vld [vmem:[%s179 + $0x31c8] sm:$0xff]
        %v1808 = vld [vmem:[%s179 + $0x31d0] sm:$0xff]
        %v1809 = vld [vmem:[%s179 + $0x31d8] sm:$0xff]
        %v1810 = vld [vmem:[%s179 + $0x31e0] sm:$0xff]
        %v1811 = vld [vmem:[%s179 + $0x31e8] sm:$0xff]
        %v1812 = vld [vmem:[%s179 + $0x31f0] sm:$0xff]
        %v1813 = vld [vmem:[%s179 + $0x31f8] sm:$0xff]
        %v1814 = vld [vmem:[%s179 + $0x3200] sm:$0xff]
        %v1815 = vld [vmem:[%s179 + $0x3208] sm:$0xff]
        %v1816 = vld [vmem:[%s179 + $0x3210] sm:$0xff]
        %v1817 = vld [vmem:[%s179 + $0x3218] sm:$0xff]
        %v1818 = vld [vmem:[%s179 + $0x3220] sm:$0xff]
        %v1819 = vld [vmem:[%s179 + $0x3228] sm:$0xff]
        %v1820 = vld [vmem:[%s179 + $0x3230] sm:$0xff]
        %v1821 = vld [vmem:[%s179 + $0x3238] sm:$0xff]
        %v1822 = vld [vmem:[%s179 + $0x3240] sm:$0xff]
        %v1823 = vld [vmem:[%s179 + $0x3248] sm:$0xff]
        %v1824 = vld [vmem:[%s179 + $0x3250] sm:$0xff]
        %v1825 = vld [vmem:[%s179 + $0x3258] sm:$0xff]
        %v1826 = vld [vmem:[%s179 + $0x3260] sm:$0xff]
        %v1827 = vld [vmem:[%s179 + $0x3268] sm:$0xff]
        %v1828 = vld [vmem:[%s179 + $0x3270] sm:$0xff]
        %v1829 = vld [vmem:[%s179 + $0x3278] sm:$0xff]
        %v1830 = vld [vmem:[%s179 + $0x3280] sm:$0xff]
        %v1831 = vld [vmem:[%s179 + $0x3288] sm:$0xff]
        %v1832 = vld [vmem:[%s179 + $0x3290] sm:$0xff]
        %v1833 = vld [vmem:[%s179 + $0x3298] sm:$0xff]
        %v1834 = vld [vmem:[%s179 + $0x32a0] sm:$0xff]
        %v1835 = vld [vmem:[%s179 + $0x32a8] sm:$0xff]
        %v1836 = vld [vmem:[%s179 + $0x32b0] sm:$0xff]
        %v1837 = vld [vmem:[%s179 + $0x32b8] sm:$0xff]
        %v1838 = vld [vmem:[%s179 + $0x32c0] sm:$0xff]
        %v1839 = vld [vmem:[%s179 + $0x32c8] sm:$0xff]
        %v1840 = vld [vmem:[%s179 + $0x32d0] sm:$0xff]
        %v1841 = vld [vmem:[%s179 + $0x32d8] sm:$0xff]
        %v1842 = vld [vmem:[%s179 + $0x32e0] sm:$0xff]
        %v1843 = vld [vmem:[%s179 + $0x32e8] sm:$0xff]
        %v1844 = vld [vmem:[%s179 + $0x32f0] sm:$0xff]
        %v1845 = vld [vmem:[%s179 + $0x32f8] sm:$0xff]
        %v1846 = vld [vmem:[%s179 + $0x3300] sm:$0xff]
        %v1847 = vld [vmem:[%s179 + $0x3308] sm:$0xff]
        %v1848 = vld [vmem:[%s179 + $0x3310] sm:$0xff]
        %v1849 = vld [vmem:[%s179 + $0x3318] sm:$0xff]
        %v1850 = vld [vmem:[%s179 + $0x3320] sm:$0xff]
        %v1851 = vld [vmem:[%s179 + $0x3328] sm:$0xff]
        %v1852 = vld [vmem:[%s179 + $0x3330] sm:$0xff]
        %v1853 = vld [vmem:[%s179 + $0x3338] sm:$0xff]
        %v1854 = vld [vmem:[%s179 + $0x3340] sm:$0xff]
        %v1855 = vld [vmem:[%s179 + $0x3348] sm:$0xff]
        %v1856 = vld [vmem:[%s179 + $0x3350] sm:$0xff]
        %v1857 = vld [vmem:[%s179 + $0x3358] sm:$0xff]
        %v1858 = vld [vmem:[%s179 + $0x3360] sm:$0xff]
        %v1859 = vld [vmem:[%s179 + $0x3368] sm:$0xff]
        %v1860 = vld [vmem:[%s179 + $0x3370] sm:$0xff]
        %v1861 = vld [vmem:[%s179 + $0x3378] sm:$0xff]
        %v1862 = vld [vmem:[%s179 + $0x3380] sm:$0xff]
        %v1863 = vld [vmem:[%s179 + $0x3388] sm:$0xff]
        %v1864 = vld [vmem:[%s179 + $0x3390] sm:$0xff]
        %v1865 = vld [vmem:[%s179 + $0x3398] sm:$0xff]
        %v1866 = vld [vmem:[%s179 + $0x33a0] sm:$0xff]
        %v1867 = vld [vmem:[%s179 + $0x33a8] sm:$0xff]
        %v1868 = vld [vmem:[%s179 + $0x33b0] sm:$0xff]
        %v1869 = vld [vmem:[%s179 + $0x33b8] sm:$0xff]
        %v1870 = vld [vmem:[%s179 + $0x33c0] sm:$0xff]
        %v1871 = vld [vmem:[%s179 + $0x33c8] sm:$0xff]
        %v1872 = vld [vmem:[%s179 + $0x33d0] sm:$0xff]
        %v1873 = vld [vmem:[%s179 + $0x33d8] sm:$0xff]
        %v1874 = vld [vmem:[%s179 + $0x33e0] sm:$0xff]
        %v1875 = vld [vmem:[%s179 + $0x33e8] sm:$0xff]
        %v1876 = vld [vmem:[%s179 + $0x33f0] sm:$0xff]
        %v1877 = vld [vmem:[%s179 + $0x33f8] sm:$0xff]
        %v1878 = vld [vmem:[%s179 + $0x3400] sm:$0xff]
        %v1879 = vld [vmem:[%s179 + $0x3408] sm:$0xff]
        %v1880 = vld [vmem:[%s179 + $0x3410] sm:$0xff]
        %v1881 = vld [vmem:[%s179 + $0x3418] sm:$0xff]
        %v1882 = vld [vmem:[%s179 + $0x3420] sm:$0xff]
        %v1883 = vld [vmem:[%s179 + $0x3428] sm:$0xff]
        %v1884 = vld [vmem:[%s179 + $0x3430] sm:$0xff]
        %v1885 = vld [vmem:[%s179 + $0x3438] sm:$0xff]
        %v1886 = vld [vmem:[%s179 + $0x3440] sm:$0xff]
        %v1887 = vld [vmem:[%s179 + $0x3448] sm:$0xff]
        %v1888 = vld [vmem:[%s179 + $0x3450] sm:$0xff]
        %v1889 = vld [vmem:[%s179 + $0x3458] sm:$0xff]
        %v1890 = vld [vmem:[%s179 + $0x3460] sm:$0xff]
        %v1891 = vld [vmem:[%s179 + $0x3468] sm:$0xff]
        %v1892 = vld [vmem:[%s179 + $0x3470] sm:$0xff]
        %v1893 = vld [vmem:[%s179 + $0x3478] sm:$0xff]
        %v1894 = vld [vmem:[%s179 + $0x3480] sm:$0xff]
        %v1895 = vld [vmem:[%s179 + $0x3488] sm:$0xff]
        %v1896 = vld [vmem:[%s179 + $0x3490] sm:$0xff]
        %v1897 = vld [vmem:[%s179 + $0x3498] sm:$0xff]
        %v1898 = vld [vmem:[%s179 + $0x34a0] sm:$0xff]
        %v1899 = vld [vmem:[%s179 + $0x34a8] sm:$0xff]
        %v1900 = vld [vmem:[%s179 + $0x34b0] sm:$0xff]
        %v1901 = vld [vmem:[%s179 + $0x34b8] sm:$0xff]
        %v1902 = vld [vmem:[%s179 + $0x34c0] sm:$0xff]
        %v1903 = vld [vmem:[%s179 + $0x34c8] sm:$0xff]
        %v1904 = vld [vmem:[%s179 + $0x34d0] sm:$0xff]
        %v1905 = vld [vmem:[%s179 + $0x34d8] sm:$0xff]
        %v1906 = vld [vmem:[%s179 + $0x34e0] sm:$0xff]
        %v1907 = vld [vmem:[%s179 + $0x34e8] sm:$0xff]
        %v1908 = vld [vmem:[%s179 + $0x34f0] sm:$0xff]
        %v1909 = vld [vmem:[%s179 + $0x34f8] sm:$0xff]
        %v1910 = vld [vmem:[%s179 + $0x3500] sm:$0xff]
        %v1911 = vld [vmem:[%s179 + $0x3508] sm:$0xff]
        %v1912 = vld [vmem:[%s179 + $0x3510] sm:$0xff]
        %v1913 = vld [vmem:[%s179 + $0x3518] sm:$0xff]
        %v1914 = vld [vmem:[%s179 + $0x3520] sm:$0xff]
        %v1915 = vld [vmem:[%s179 + $0x3528] sm:$0xff]
        %v1916 = vld [vmem:[%s179 + $0x3530] sm:$0xff]
        %v1917 = vld [vmem:[%s179 + $0x3538] sm:$0xff]
        %v1918 = vld [vmem:[%s179 + $0x3540] sm:$0xff]
        %v1919 = vld [vmem:[%s179 + $0x3548] sm:$0xff]
        %v1920 = vld [vmem:[%s179 + $0x3550] sm:$0xff]
        %v1921 = vld [vmem:[%s179 + $0x3558] sm:$0xff]
        %v1922 = vld [vmem:[%s179 + $0x3560] sm:$0xff]
        %v1923 = vld [vmem:[%s179 + $0x3568] sm:$0xff]
        %v1924 = vld [vmem:[%s179 + $0x3570] sm:$0xff]
        %v1925 = vld [vmem:[%s179 + $0x3578] sm:$0xff]
        %v1926 = vld [vmem:[%s179 + $0x3580] sm:$0xff]
        %v1927 = vld [vmem:[%s179 + $0x3588] sm:$0xff]
        %v1928 = vld [vmem:[%s179 + $0x3590] sm:$0xff]
        %v1929 = vld [vmem:[%s179 + $0x3598] sm:$0xff]
        %v1930 = vld [vmem:[%s179 + $0x35a0] sm:$0xff]
        %v1931 = vld [vmem:[%s179 + $0x35a8] sm:$0xff]
        %v1932 = vld [vmem:[%s179 + $0x35b0] sm:$0xff]
        %v1933 = vld [vmem:[%s179 + $0x35b8] sm:$0xff]
        %v1934 = vld [vmem:[%s179 + $0x35c0] sm:$0xff]
        %v1935 = vld [vmem:[%s179 + $0x35c8] sm:$0xff]
        %v1936 = vld [vmem:[%s179 + $0x35d0] sm:$0xff]
        %v1937 = vld [vmem:[%s179 + $0x35d8] sm:$0xff]
        %v1938 = vld [vmem:[%s179 + $0x35e0] sm:$0xff]
        %v1939 = vld [vmem:[%s179 + $0x35e8] sm:$0xff]
        %v1940 = vld [vmem:[%s179 + $0x35f0] sm:$0xff]
        %v1941 = vld [vmem:[%s179 + $0x35f8] sm:$0xff]
        %v1942 = vld [vmem:[%s179 + $0x3600] sm:$0xff]
        %v1943 = vld [vmem:[%s179 + $0x3608] sm:$0xff]
        %v1944 = vld [vmem:[%s179 + $0x3610] sm:$0xff]
        %v1945 = vld [vmem:[%s179 + $0x3618] sm:$0xff]
        %v1946 = vld [vmem:[%s179 + $0x3620] sm:$0xff]
        %v1947 = vld [vmem:[%s179 + $0x3628] sm:$0xff]
        %v1948 = vld [vmem:[%s179 + $0x3630] sm:$0xff]
        %v1949 = vld [vmem:[%s179 + $0x3638] sm:$0xff]
        %v1950 = vld [vmem:[%s179 + $0x3640] sm:$0xff]
        %v1951 = vld [vmem:[%s179 + $0x3648] sm:$0xff]
        %v1952 = vld [vmem:[%s179 + $0x3650] sm:$0xff]
        %v1953 = vld [vmem:[%s179 + $0x3658] sm:$0xff]
        %v1954 = vld [vmem:[%s179 + $0x3660] sm:$0xff]
        %v1955 = vld [vmem:[%s179 + $0x3668] sm:$0xff]
        %v1956 = vld [vmem:[%s179 + $0x3670] sm:$0xff]
        %v1957 = vld [vmem:[%s179 + $0x3678] sm:$0xff]
        %v1958 = vld [vmem:[%s179 + $0x3680] sm:$0xff]
        %v1959 = vld [vmem:[%s179 + $0x3688] sm:$0xff]
        %v1960 = vld [vmem:[%s179 + $0x3690] sm:$0xff]
        %v1961 = vld [vmem:[%s179 + $0x3698] sm:$0xff]
        %v1962 = vld [vmem:[%s179 + $0x36a0] sm:$0xff]
        %v1963 = vld [vmem:[%s179 + $0x36a8] sm:$0xff]
        %v1964 = vld [vmem:[%s179 + $0x36b0] sm:$0xff]
        %v1965 = vld [vmem:[%s179 + $0x36b8] sm:$0xff]
        %v1966 = vld [vmem:[%s179 + $0x36c0] sm:$0xff]
        %v1967 = vld [vmem:[%s179 + $0x36c8] sm:$0xff]
        %v1968 = vld [vmem:[%s179 + $0x36d0] sm:$0xff]
        %v1969 = vld [vmem:[%s179 + $0x36d8] sm:$0xff]
        %v1970 = vld [vmem:[%s179 + $0x36e0] sm:$0xff]
        %v1971 = vld [vmem:[%s179 + $0x36e8] sm:$0xff]
        %v1972 = vld [vmem:[%s179 + $0x36f0] sm:$0xff]
        %v1973 = vld [vmem:[%s179 + $0x36f8] sm:$0xff]
        %v1974 = vld [vmem:[%s179 + $0x3700] sm:$0xff]
        %v1975 = vld [vmem:[%s179 + $0x3708] sm:$0xff]
        %v1976 = vld [vmem:[%s179 + $0x3710] sm:$0xff]
        %v1977 = vld [vmem:[%s179 + $0x3718] sm:$0xff]
        %v1978 = vld [vmem:[%s179 + $0x3720] sm:$0xff]
        %v1979 = vld [vmem:[%s179 + $0x3728] sm:$0xff]
        %v1980 = vld [vmem:[%s179 + $0x3730] sm:$0xff]
        %v1981 = vld [vmem:[%s179 + $0x3738] sm:$0xff]
        %v1982 = vld [vmem:[%s179 + $0x3740] sm:$0xff]
        %v1983 = vld [vmem:[%s179 + $0x3748] sm:$0xff]
        %v1984 = vld [vmem:[%s179 + $0x3750] sm:$0xff]
        %v1985 = vld [vmem:[%s179 + $0x3758] sm:$0xff]
        %v1986 = vld [vmem:[%s179 + $0x3760] sm:$0xff]
        %v1987 = vld [vmem:[%s179 + $0x3768] sm:$0xff]
        %v1988 = vld [vmem:[%s179 + $0x3770] sm:$0xff]
        %v1989 = vld [vmem:[%s179 + $0x3778] sm:$0xff]
        %v1990 = vld [vmem:[%s179 + $0x3780] sm:$0xff]
        %v1991 = vld [vmem:[%s179 + $0x3788] sm:$0xff]
        %v1992 = vld [vmem:[%s179 + $0x3790] sm:$0xff]
        %v1993 = vld [vmem:[%s179 + $0x3798] sm:$0xff]
        %v1994 = vld [vmem:[%s179 + $0x37a0] sm:$0xff]
        %v1995 = vld [vmem:[%s179 + $0x37a8] sm:$0xff]
        %v1996 = vld [vmem:[%s179 + $0x37b0] sm:$0xff]
        %v1997 = vld [vmem:[%s179 + $0x37b8] sm:$0xff]
        %v1998 = vld [vmem:[%s179 + $0x37c0] sm:$0xff]
        %v1999 = vld [vmem:[%s179 + $0x37c8] sm:$0xff]
        %v2000 = vld [vmem:[%s179 + $0x37d0] sm:$0xff]
        %v2001 = vld [vmem:[%s179 + $0x37d8] sm:$0xff]
        %v2002 = vld [vmem:[%s179 + $0x37e0] sm:$0xff]
        %v2003 = vld [vmem:[%s179 + $0x37e8] sm:$0xff]
        %v2004 = vld [vmem:[%s179 + $0x37f0] sm:$0xff]
        %v2005 = vld [vmem:[%s179 + $0x37f8] sm:$0xff]
        %v2006 = vld [vmem:[%s179 + $0x3800] sm:$0xff]
        %v2007 = vld [vmem:[%s179 + $0x3808] sm:$0xff]
        %v2008 = vld [vmem:[%s179 + $0x3810] sm:$0xff]
        %v2009 = vld [vmem:[%s179 + $0x3818] sm:$0xff]
        %v2010 = vld [vmem:[%s179 + $0x3820] sm:$0xff]
        %v2011 = vld [vmem:[%s179 + $0x3828] sm:$0xff]
        %v2012 = vld [vmem:[%s179 + $0x3830] sm:$0xff]
        %v2013 = vld [vmem:[%s179 + $0x3838] sm:$0xff]
        %v2014 = vld [vmem:[%s179 + $0x3840] sm:$0xff]
        %v2015 = vld [vmem:[%s179 + $0x3848] sm:$0xff]
        %v2016 = vld [vmem:[%s179 + $0x3850] sm:$0xff]
        %v2017 = vld [vmem:[%s179 + $0x3858] sm:$0xff]
        %v2018 = vld [vmem:[%s179 + $0x3860] sm:$0xff]
        %v2019 = vld [vmem:[%s179 + $0x3868] sm:$0xff]
        %v2020 = vld [vmem:[%s179 + $0x3870] sm:$0xff]
        %v2021 = vld [vmem:[%s179 + $0x3878] sm:$0xff]
        %v2022 = vld [vmem:[%s179 + $0x3880] sm:$0xff]
        %v2023 = vld [vmem:[%s179 + $0x3888] sm:$0xff]
        %v2024 = vld [vmem:[%s179 + $0x3890] sm:$0xff]
        %v2025 = vld [vmem:[%s179 + $0x3898] sm:$0xff]
        %v2026 = vld [vmem:[%s179 + $0x38a0] sm:$0xff]
        %v2027 = vld [vmem:[%s179 + $0x38a8] sm:$0xff]
        %v2028 = vld [vmem:[%s179 + $0x38b0] sm:$0xff]
        %v2029 = vld [vmem:[%s179 + $0x38b8] sm:$0xff]
        %v2030 = vld [vmem:[%s179 + $0x38c0] sm:$0xff]
        %v2031 = vld [vmem:[%s179 + $0x38c8] sm:$0xff]
        %v2032 = vld [vmem:[%s179 + $0x38d0] sm:$0xff]
        %v2033 = vld [vmem:[%s179 + $0x38d8] sm:$0xff]
        %v2034 = vld [vmem:[%s179 + $0x38e0] sm:$0xff]
        %v2035 = vld [vmem:[%s179 + $0x38e8] sm:$0xff]
        %v2036 = vld [vmem:[%s179 + $0x38f0] sm:$0xff]
        %v2037 = vld [vmem:[%s179 + $0x38f8] sm:$0xff]
        %v2038 = vld [vmem:[%s179 + $0x3900] sm:$0xff]
        %v2039 = vld [vmem:[%s179 + $0x3908] sm:$0xff]
        %v2040 = vld [vmem:[%s179 + $0x3910] sm:$0xff]
        %v2041 = vld [vmem:[%s179 + $0x3918] sm:$0xff]
        %v2042 = vld [vmem:[%s179 + $0x3920] sm:$0xff]
        %v2043 = vld [vmem:[%s179 + $0x3928] sm:$0xff]
        %v2044 = vld [vmem:[%s179 + $0x3930] sm:$0xff]
        %v2045 = vld [vmem:[%s179 + $0x3938] sm:$0xff]
        %v2046 = vld [vmem:[%s179 + $0x3940] sm:$0xff]
        %v2047 = vld [vmem:[%s179 + $0x3948] sm:$0xff]
        %v2048 = vld [vmem:[%s179 + $0x3950] sm:$0xff]
        %v2049 = vld [vmem:[%s179 + $0x3958] sm:$0xff]
        %v2050 = vld [vmem:[%s179 + $0x3960] sm:$0xff]
        %v2051 = vld [vmem:[%s179 + $0x3968] sm:$0xff]
        %v2052 = vld [vmem:[%s179 + $0x3970] sm:$0xff]
        %v2053 = vld [vmem:[%s179 + $0x3978] sm:$0xff]
        %v2054 = vld [vmem:[%s179 + $0x3980] sm:$0xff]
        %v2055 = vld [vmem:[%s179 + $0x3988] sm:$0xff]
        %v2056 = vld [vmem:[%s179 + $0x3990] sm:$0xff]
        %v2057 = vld [vmem:[%s179 + $0x3998] sm:$0xff]
        %v2058 = vld [vmem:[%s179 + $0x39a0] sm:$0xff]
        %v2059 = vld [vmem:[%s179 + $0x39a8] sm:$0xff]
        %v2060 = vld [vmem:[%s179 + $0x39b0] sm:$0xff]
        %v2061 = vld [vmem:[%s179 + $0x39b8] sm:$0xff]
        %v2062 = vld [vmem:[%s179 + $0x39c0] sm:$0xff]
        %v2063 = vld [vmem:[%s179 + $0x39c8] sm:$0xff]
        %v2064 = vld [vmem:[%s179 + $0x39d0] sm:$0xff]
        %v2065 = vld [vmem:[%s179 + $0x39d8] sm:$0xff]
        %v2066 = vld [vmem:[%s179 + $0x39e0] sm:$0xff]
        %v2067 = vld [vmem:[%s179 + $0x39e8] sm:$0xff]
        %v2068 = vld [vmem:[%s179 + $0x39f0] sm:$0xff]
        %v2069 = vld [vmem:[%s179 + $0x39f8] sm:$0xff]
        %v2070 = vld [vmem:[%s179 + $0x3a00] sm:$0xff]
        %v2071 = vld [vmem:[%s179 + $0x3a08] sm:$0xff]
        %v2072 = vld [vmem:[%s179 + $0x3a10] sm:$0xff]
        %v2073 = vld [vmem:[%s179 + $0x3a18] sm:$0xff]
        %v2074 = vld [vmem:[%s179 + $0x3a20] sm:$0xff]
        %v2075 = vld [vmem:[%s179 + $0x3a28] sm:$0xff]
        %v2076 = vld [vmem:[%s179 + $0x3a30] sm:$0xff]
        %v2077 = vld [vmem:[%s179 + $0x3a38] sm:$0xff]
        %v2078 = vld [vmem:[%s179 + $0x3a40] sm:$0xff]
        %v2079 = vld [vmem:[%s179 + $0x3a48] sm:$0xff]
        %v2080 = vld [vmem:[%s179 + $0x3a50] sm:$0xff]
        %v2081 = vld [vmem:[%s179 + $0x3a58] sm:$0xff]
        %v2082 = vld [vmem:[%s179 + $0x3a60] sm:$0xff]
        %v2083 = vld [vmem:[%s179 + $0x3a68] sm:$0xff]
        %v2084 = vld [vmem:[%s179 + $0x3a70] sm:$0xff]
        %v2085 = vld [vmem:[%s179 + $0x3a78] sm:$0xff]
        %v2086 = vld [vmem:[%s179 + $0x3a80] sm:$0xff]
        %v2087 = vld [vmem:[%s179 + $0x3a88] sm:$0xff]
        %v2088 = vld [vmem:[%s179 + $0x3a90] sm:$0xff]
        %v2089 = vld [vmem:[%s179 + $0x3a98] sm:$0xff]
        %v2090 = vld [vmem:[%s179 + $0x3aa0] sm:$0xff]
        %v2091 = vld [vmem:[%s179 + $0x3aa8] sm:$0xff]
        %v2092 = vld [vmem:[%s179 + $0x3ab0] sm:$0xff]
        %v2093 = vld [vmem:[%s179 + $0x3ab8] sm:$0xff]
        %v2094 = vld [vmem:[%s179 + $0x3ac0] sm:$0xff]
        %v2095 = vld [vmem:[%s179 + $0x3ac8] sm:$0xff]
        %v2096 = vld [vmem:[%s179 + $0x3ad0] sm:$0xff]
        %v2097 = vld [vmem:[%s179 + $0x3ad8] sm:$0xff]
        %v2098 = vld [vmem:[%s179 + $0x3ae0] sm:$0xff]
        %v2099 = vld [vmem:[%s179 + $0x3ae8] sm:$0xff]
        %v2100 = vld [vmem:[%s179 + $0x3af0] sm:$0xff]
        %v2101 = vld [vmem:[%s179 + $0x3af8] sm:$0xff]
        %v2102 = vld [vmem:[%s179 + $0x3b00] sm:$0xff]
        %v2103 = vld [vmem:[%s179 + $0x3b08] sm:$0xff]
        %v2104 = vld [vmem:[%s179 + $0x3b10] sm:$0xff]
        %v2105 = vld [vmem:[%s179 + $0x3b18] sm:$0xff]
        %v2106 = vld [vmem:[%s179 + $0x3b20] sm:$0xff]
        %v2107 = vld [vmem:[%s179 + $0x3b28] sm:$0xff]
        %v2108 = vld [vmem:[%s179 + $0x3b30] sm:$0xff]
        %v2109 = vld [vmem:[%s179 + $0x3b38] sm:$0xff]
        %v2110 = vld [vmem:[%s179 + $0x3b40] sm:$0xff]
        %v2111 = vld [vmem:[%s179 + $0x3b48] sm:$0xff]
        %v2112 = vld [vmem:[%s179 + $0x3b50] sm:$0xff]
        %v2113 = vld [vmem:[%s179 + $0x3b58] sm:$0xff]
        %v2114 = vld [vmem:[%s179 + $0x3b60] sm:$0xff]
        %v2115 = vld [vmem:[%s179 + $0x3b68] sm:$0xff]
        %v2116 = vld [vmem:[%s179 + $0x3b70] sm:$0xff]
        %v2117 = vld [vmem:[%s179 + $0x3b78] sm:$0xff]
        %v2118 = vld [vmem:[%s179 + $0x3b80] sm:$0xff]
        %v2119 = vld [vmem:[%s179 + $0x3b88] sm:$0xff]
        %v2120 = vld [vmem:[%s179 + $0x3b90] sm:$0xff]
        %v2121 = vld [vmem:[%s179 + $0x3b98] sm:$0xff]
        %v2122 = vld [vmem:[%s179 + $0x3ba0] sm:$0xff]
        %v2123 = vld [vmem:[%s179 + $0x3ba8] sm:$0xff]
        %v2124 = vld [vmem:[%s179 + $0x3bb0] sm:$0xff]
        %v2125 = vld [vmem:[%s179 + $0x3bb8] sm:$0xff]
        %v2126 = vld [vmem:[%s179 + $0x3bc0] sm:$0xff]
        %v2127 = vld [vmem:[%s179 + $0x3bc8] sm:$0xff]
        %v2128 = vld [vmem:[%s179 + $0x3bd0] sm:$0xff]
        %v2129 = vld [vmem:[%s179 + $0x3bd8] sm:$0xff]
        %v2130 = vld [vmem:[%s179 + $0x3be0] sm:$0xff]
        %v2131 = vld [vmem:[%s179 + $0x3be8] sm:$0xff]
        %v2132 = vld [vmem:[%s179 + $0x3bf0] sm:$0xff]
        %v2133 = vld [vmem:[%s179 + $0x3bf8] sm:$0xff]
        %v2134 = vld [vmem:[%s179 + $0x3c00] sm:$0xff]
        %v2135 = vld [vmem:[%s179 + $0x3c08] sm:$0xff]
        %v2136 = vld [vmem:[%s179 + $0x3c10] sm:$0xff]
        %v2137 = vld [vmem:[%s179 + $0x3c18] sm:$0xff]
        %v2138 = vld [vmem:[%s179 + $0x3c20] sm:$0xff]
        %v2139 = vld [vmem:[%s179 + $0x3c28] sm:$0xff]
        %v2140 = vld [vmem:[%s179 + $0x3c30] sm:$0xff]
        %v2141 = vld [vmem:[%s179 + $0x3c38] sm:$0xff]
        %v2142 = vld [vmem:[%s179 + $0x3c40] sm:$0xff]
        %v2143 = vld [vmem:[%s179 + $0x3c48] sm:$0xff]
        %v2144 = vld [vmem:[%s179 + $0x3c50] sm:$0xff]
        %v2145 = vld [vmem:[%s179 + $0x3c58] sm:$0xff]
        %v2146 = vld [vmem:[%s179 + $0x3c60] sm:$0xff]
        %v2147 = vld [vmem:[%s179 + $0x3c68] sm:$0xff]
        %v2148 = vld [vmem:[%s179 + $0x3c70] sm:$0xff]
        %v2149 = vld [vmem:[%s179 + $0x3c78] sm:$0xff]
        %v2150 = vld [vmem:[%s179 + $0x3c80] sm:$0xff]
        %v2151 = vld [vmem:[%s179 + $0x3c88] sm:$0xff]
        %v2152 = vld [vmem:[%s179 + $0x3c90] sm:$0xff]
        %v2153 = vld [vmem:[%s179 + $0x3c98] sm:$0xff]
        %v2154 = vld [vmem:[%s179 + $0x3ca0] sm:$0xff]
        %v2155 = vld [vmem:[%s179 + $0x3ca8] sm:$0xff]
        %v2156 = vld [vmem:[%s179 + $0x3cb0] sm:$0xff]
        %v2157 = vld [vmem:[%s179 + $0x3cb8] sm:$0xff]
        %v2158 = vld [vmem:[%s179 + $0x3cc0] sm:$0xff]
        %v2159 = vld [vmem:[%s179 + $0x3cc8] sm:$0xff]
        %v2160 = vld [vmem:[%s179 + $0x3cd0] sm:$0xff]
        %v2161 = vld [vmem:[%s179 + $0x3cd8] sm:$0xff]
        %v2162 = vld [vmem:[%s179 + $0x3ce0] sm:$0xff]
        %v2163 = vld [vmem:[%s179 + $0x3ce8] sm:$0xff]
        %v2164 = vld [vmem:[%s179 + $0x3cf0] sm:$0xff]
        %v2165 = vld [vmem:[%s179 + $0x3cf8] sm:$0xff]
        %v2166 = vld [vmem:[%s179 + $0x3d00] sm:$0xff]
        %v2167 = vld [vmem:[%s179 + $0x3d08] sm:$0xff]
        %v2168 = vld [vmem:[%s179 + $0x3d10] sm:$0xff]
        %v2169 = vld [vmem:[%s179 + $0x3d18] sm:$0xff]
        %v2170 = vld [vmem:[%s179 + $0x3d20] sm:$0xff]
        %v2171 = vld [vmem:[%s179 + $0x3d28] sm:$0xff]
        %v2172 = vld [vmem:[%s179 + $0x3d30] sm:$0xff]
        %v2173 = vld [vmem:[%s179 + $0x3d38] sm:$0xff]
        %v2174 = vld [vmem:[%s179 + $0x3d40] sm:$0xff]
        %v2175 = vld [vmem:[%s179 + $0x3d48] sm:$0xff]
        %v2176 = vld [vmem:[%s179 + $0x3d50] sm:$0xff]
        %v2177 = vld [vmem:[%s179 + $0x3d58] sm:$0xff]
        %v2178 = vld [vmem:[%s179 + $0x3d60] sm:$0xff]
        %v2179 = vld [vmem:[%s179 + $0x3d68] sm:$0xff]
        %v2180 = vld [vmem:[%s179 + $0x3d70] sm:$0xff]
        %v2181 = vld [vmem:[%s179 + $0x3d78] sm:$0xff]
        %v2182 = vld [vmem:[%s179 + $0x3d80] sm:$0xff]
        %v2183 = vld [vmem:[%s179 + $0x3d88] sm:$0xff]
        %v2184 = vld [vmem:[%s179 + $0x3d90] sm:$0xff]
        %v2185 = vld [vmem:[%s179 + $0x3d98] sm:$0xff]
        %v2186 = vld [vmem:[%s179 + $0x3da0] sm:$0xff]
        %v2187 = vld [vmem:[%s179 + $0x3da8] sm:$0xff]
        %v2188 = vld [vmem:[%s179 + $0x3db0] sm:$0xff]
        %v2189 = vld [vmem:[%s179 + $0x3db8] sm:$0xff]
        %v2190 = vld [vmem:[%s179 + $0x3dc0] sm:$0xff]
        %v2191 = vld [vmem:[%s179 + $0x3dc8] sm:$0xff]
        %v2192 = vld [vmem:[%s179 + $0x3dd0] sm:$0xff]
        %v2193 = vld [vmem:[%s179 + $0x3dd8] sm:$0xff]
        %v2194 = vld [vmem:[%s179 + $0x3de0] sm:$0xff]
        %v2195 = vld [vmem:[%s179 + $0x3de8] sm:$0xff]
        %v2196 = vld [vmem:[%s179 + $0x3df0] sm:$0xff]
        %v2197 = vld [vmem:[%s179 + $0x3df8] sm:$0xff]
        %v2198 = vld [vmem:[%s179 + $0x3e00] sm:$0xff]
        %v2199 = vld [vmem:[%s179 + $0x3e08] sm:$0xff]
        %v2200 = vld [vmem:[%s179 + $0x3e10] sm:$0xff]
        %v2201 = vld [vmem:[%s179 + $0x3e18] sm:$0xff]
        %v2202 = vld [vmem:[%s179 + $0x3e20] sm:$0xff]
        %v2203 = vld [vmem:[%s179 + $0x3e28] sm:$0xff]
        %v2204 = vld [vmem:[%s179 + $0x3e30] sm:$0xff]
        %v2205 = vld [vmem:[%s179 + $0x3e38] sm:$0xff]
        %v2206 = vld [vmem:[%s179 + $0x3e40] sm:$0xff]
        %v2207 = vld [vmem:[%s179 + $0x3e48] sm:$0xff]
        %v2208 = vld [vmem:[%s179 + $0x3e50] sm:$0xff]
        %v2209 = vld [vmem:[%s179 + $0x3e58] sm:$0xff]
        %v2210 = vld [vmem:[%s179 + $0x3e60] sm:$0xff]
        %v2211 = vld [vmem:[%s179 + $0x3e68] sm:$0xff]
        %v2212 = vld [vmem:[%s179 + $0x3e70] sm:$0xff]
        %v2213 = vld [vmem:[%s179 + $0x3e78] sm:$0xff]
        %v2214 = vld [vmem:[%s179 + $0x3e80] sm:$0xff]
        %v2215 = vld [vmem:[%s179 + $0x3e88] sm:$0xff]
        %v2216 = vld [vmem:[%s179 + $0x3e90] sm:$0xff]
        %v2217 = vld [vmem:[%s179 + $0x3e98] sm:$0xff]
        %v2218 = vld [vmem:[%s179 + $0x3ea0] sm:$0xff]
        %v2219 = vld [vmem:[%s179 + $0x3ea8] sm:$0xff]
        %v2220 = vld [vmem:[%s179 + $0x3eb0] sm:$0xff]
        %v2221 = vld [vmem:[%s179 + $0x3eb8] sm:$0xff]
        %v2222 = vld [vmem:[%s179 + $0x3ec0] sm:$0xff]
        %v2223 = vld [vmem:[%s179 + $0x3ec8] sm:$0xff]
        %v2224 = vld [vmem:[%s179 + $0x3ed0] sm:$0xff]
        %v2225 = vld [vmem:[%s179 + $0x3ed8] sm:$0xff]
        %v2226 = vld [vmem:[%s179 + $0x3ee0] sm:$0xff]
        %v2227 = vld [vmem:[%s179 + $0x3ee8] sm:$0xff]
        %v2228 = vld [vmem:[%s179 + $0x3ef0] sm:$0xff]
        %v2229 = vld [vmem:[%s179 + $0x3ef8] sm:$0xff]
        %v2230 = vld [vmem:[%s179 + $0x3f00] sm:$0xff]
        %v2231 = vld [vmem:[%s179 + $0x3f08] sm:$0xff]
        %v2232 = vld [vmem:[%s179 + $0x3f10] sm:$0xff]
        %v2233 = vld [vmem:[%s179 + $0x3f18] sm:$0xff]
        %v2234 = vld [vmem:[%s179 + $0x3f20] sm:$0xff]
        %v2235 = vld [vmem:[%s179 + $0x3f28] sm:$0xff]
        %v2236 = vld [vmem:[%s179 + $0x3f30] sm:$0xff]
        %v2237 = vld [vmem:[%s179 + $0x3f38] sm:$0xff]
        %v2238 = vld [vmem:[%s179 + $0x3f40] sm:$0xff]
        %v2239 = vld [vmem:[%s179 + $0x3f48] sm:$0xff]
        %v2240 = vld [vmem:[%s179 + $0x3f50] sm:$0xff]
        %v2241 = vld [vmem:[%s179 + $0x3f58] sm:$0xff]
        %v2242 = vld [vmem:[%s179 + $0x3f60] sm:$0xff]
        %v2243 = vld [vmem:[%s179 + $0x3f68] sm:$0xff]
        %v2244 = vld [vmem:[%s179 + $0x3f70] sm:$0xff]
        %v2245 = vld [vmem:[%s179 + $0x3f78] sm:$0xff]
        %v2246 = vld [vmem:[%s179 + $0x3f80] sm:$0xff]
        %v2247 = vld [vmem:[%s179 + $0x3f88] sm:$0xff]
        %v2248 = vld [vmem:[%s179 + $0x3f90] sm:$0xff]
        %v2249 = vld [vmem:[%s179 + $0x3f98] sm:$0xff]
        %v2250 = vld [vmem:[%s179 + $0x3fa0] sm:$0xff]
        %v2251 = vld [vmem:[%s179 + $0x3fa8] sm:$0xff]
        %v2252 = vld [vmem:[%s179 + $0x3fb0] sm:$0xff]
        %v2253 = vld [vmem:[%s179 + $0x3fb8] sm:$0xff]
        %v2254 = vld [vmem:[%s179 + $0x3fc0] sm:$0xff]
        %v2255 = vld [vmem:[%s179 + $0x3fc8] sm:$0xff]
        %v2256 = vld [vmem:[%s179 + $0x3fd0] sm:$0xff]
        %v2257 = vld [vmem:[%s179 + $0x3fd8] sm:$0xff]
        %v2258 = vld [vmem:[%s179 + $0x3fe0] sm:$0xff]
        %v2259 = vld [vmem:[%s179 + $0x3fe8] sm:$0xff]
        %v2260 = vld [vmem:[%s179 + $0x3ff0] sm:$0xff]
        %v2261 = vld [vmem:[%s179 + $0x3ff8] sm:$0xff]
        %2262 = vmatpush.xpose.msra.mxu0 %v694
        %2263 = vmatpush.xpose.msra.mxu0 %v662
        %2264 = vmatpush.xpose.msra.mxu0 %v630
        %2265 = vmatpush.xpose.msra.mxu0 %v598
        %2266 = vmatpush.xpose.msra.mxu0 %v566
        %2267 = vmatpush.xpose.msra.mxu0 %v534
        %2268 = vmatpush.xpose.msra.mxu0 %v502
        %2269 = vmatpush.xpose.msra.mxu0 %v470
        %2270 = vmatpush.xpose.msra.mxu0 %v438
        %2271 = vmatpush.xpose.msra.mxu0 %v406
        %2272 = vmatpush.xpose.msra.mxu0 %v374
        %2273 = vmatpush.xpose.msra.mxu0 %v342
        %2274 = vmatpush.xpose.msra.mxu0 %v310
        %2275 = vmatpush.xpose.msra.mxu0 %v278
        %2276 = vmatpush.xpose.msra.mxu0 %v246
        %2277 = vmatpush.xpose.msra.mxu0 %v214
        %2278 = vmatmul.f32.gmra.mxu0 %v182
        %v2279 = vpop.f32.mrf.mxu0
        %v2280 = vadd.f32 0.0, %v2279
        %2281 = vdwg.mxu0
        %2282 = vmatpush.xpose.msra.mxu0 %v695
        %2283 = vmatpush.xpose.msra.mxu0 %v663
        %2284 = vmatpush.xpose.msra.mxu0 %v631
        %2285 = vmatpush.xpose.msra.mxu0 %v599
        %2286 = vmatpush.xpose.msra.mxu0 %v567
        %2287 = vmatpush.xpose.msra.mxu0 %v535
        %2288 = vmatpush.xpose.msra.mxu0 %v503
        %2289 = vmatpush.xpose.msra.mxu0 %v471
        %2290 = vmatpush.xpose.msra.mxu0 %v439
        %2291 = vmatpush.xpose.msra.mxu0 %v407
        %2292 = vmatpush.xpose.msra.mxu0 %v375
        %2293 = vmatpush.xpose.msra.mxu0 %v343
        %2294 = vmatpush.xpose.msra.mxu0 %v311
        %2295 = vmatpush.xpose.msra.mxu0 %v279
        %2296 = vmatpush.xpose.msra.mxu0 %v247
        %2297 = vmatpush.xpose.msra.mxu0 %v215
        %2298 = vmatmul.f32.gmra.mxu0 %v183
        %v2299 = vpop.f32.mrf.mxu0
        %v2300 = vadd.f32 %v2280, %v2299
        %2301 = vdwg.mxu0
        %2302 = vmatpush.xpose.msra.mxu0 %v696
        %2303 = vmatpush.xpose.msra.mxu0 %v664
        %2304 = vmatpush.xpose.msra.mxu0 %v632
        %2305 = vmatpush.xpose.msra.mxu0 %v600
        %2306 = vmatpush.xpose.msra.mxu0 %v568
        %2307 = vmatpush.xpose.msra.mxu0 %v536
        %2308 = vmatpush.xpose.msra.mxu0 %v504
        %2309 = vmatpush.xpose.msra.mxu0 %v472
        %2310 = vmatpush.xpose.msra.mxu0 %v440
        %2311 = vmatpush.xpose.msra.mxu0 %v408
        %2312 = vmatpush.xpose.msra.mxu0 %v376
        %2313 = vmatpush.xpose.msra.mxu0 %v344
        %2314 = vmatpush.xpose.msra.mxu0 %v312
        %2315 = vmatpush.xpose.msra.mxu0 %v280
        %2316 = vmatpush.xpose.msra.mxu0 %v248
        %2317 = vmatpush.xpose.msra.mxu0 %v216
        %2318 = vmatmul.f32.gmra.mxu0 %v184
        %v2319 = vpop.f32.mrf.mxu0
        %v2320 = vadd.f32 %v2300, %v2319
        %2321 = vdwg.mxu0
        %2322 = vmatpush.xpose.msra.mxu0 %v697
        %2323 = vmatpush.xpose.msra.mxu0 %v665
        %2324 = vmatpush.xpose.msra.mxu0 %v633
        %2325 = vmatpush.xpose.msra.mxu0 %v601
        %2326 = vmatpush.xpose.msra.mxu0 %v569
        %2327 = vmatpush.xpose.msra.mxu0 %v537
        %2328 = vmatpush.xpose.msra.mxu0 %v505
        %2329 = vmatpush.xpose.msra.mxu0 %v473
        %2330 = vmatpush.xpose.msra.mxu0 %v441
        %2331 = vmatpush.xpose.msra.mxu0 %v409
        %2332 = vmatpush.xpose.msra.mxu0 %v377
        %2333 = vmatpush.xpose.msra.mxu0 %v345
        %2334 = vmatpush.xpose.msra.mxu0 %v313
        %2335 = vmatpush.xpose.msra.mxu0 %v281
        %2336 = vmatpush.xpose.msra.mxu0 %v249
        %2337 = vmatpush.xpose.msra.mxu0 %v217
        %2338 = vmatmul.f32.gmra.mxu0 %v185
        %v2339 = vpop.f32.mrf.mxu0
        %v2340 = vadd.f32 %v2320, %v2339
        %2341 = vdwg.mxu0
        %2342 = vmatpush.xpose.msra.mxu0 %v698
        %2343 = vmatpush.xpose.msra.mxu0 %v666
        %2344 = vmatpush.xpose.msra.mxu0 %v634
        %2345 = vmatpush.xpose.msra.mxu0 %v602
        %2346 = vmatpush.xpose.msra.mxu0 %v570
        %2347 = vmatpush.xpose.msra.mxu0 %v538
        %2348 = vmatpush.xpose.msra.mxu0 %v506
        %2349 = vmatpush.xpose.msra.mxu0 %v474
        %2350 = vmatpush.xpose.msra.mxu0 %v442
        %2351 = vmatpush.xpose.msra.mxu0 %v410
        %2352 = vmatpush.xpose.msra.mxu0 %v378
        %2353 = vmatpush.xpose.msra.mxu0 %v346
        %2354 = vmatpush.xpose.msra.mxu0 %v314
        %2355 = vmatpush.xpose.msra.mxu0 %v282
        %2356 = vmatpush.xpose.msra.mxu0 %v250
        %2357 = vmatpush.xpose.msra.mxu0 %v218
        %2358 = vmatmul.f32.gmra.mxu0 %v186
        %v2359 = vpop.f32.mrf.mxu0
        %v2360 = vadd.f32 %v2340, %v2359
        %2361 = vdwg.mxu0
        %2362 = vmatpush.xpose.msra.mxu0 %v699
        %2363 = vmatpush.xpose.msra.mxu0 %v667
        %2364 = vmatpush.xpose.msra.mxu0 %v635
        %2365 = vmatpush.xpose.msra.mxu0 %v603
        %2366 = vmatpush.xpose.msra.mxu0 %v571
        %2367 = vmatpush.xpose.msra.mxu0 %v539
        %2368 = vmatpush.xpose.msra.mxu0 %v507
        %2369 = vmatpush.xpose.msra.mxu0 %v475
        %2370 = vmatpush.xpose.msra.mxu0 %v443
        %2371 = vmatpush.xpose.msra.mxu0 %v411
        %2372 = vmatpush.xpose.msra.mxu0 %v379
        %2373 = vmatpush.xpose.msra.mxu0 %v347
        %2374 = vmatpush.xpose.msra.mxu0 %v315
        %2375 = vmatpush.xpose.msra.mxu0 %v283
        %2376 = vmatpush.xpose.msra.mxu0 %v251
        %2377 = vmatpush.xpose.msra.mxu0 %v219
        %2378 = vmatmul.f32.gmra.mxu0 %v187
        %v2379 = vpop.f32.mrf.mxu0
        %v2380 = vadd.f32 %v2360, %v2379
        %2381 = vdwg.mxu0
        %2382 = vmatpush.xpose.msra.mxu0 %v700
        %2383 = vmatpush.xpose.msra.mxu0 %v668
        %2384 = vmatpush.xpose.msra.mxu0 %v636
        %2385 = vmatpush.xpose.msra.mxu0 %v604
        %2386 = vmatpush.xpose.msra.mxu0 %v572
        %2387 = vmatpush.xpose.msra.mxu0 %v540
        %2388 = vmatpush.xpose.msra.mxu0 %v508
        %2389 = vmatpush.xpose.msra.mxu0 %v476
        %2390 = vmatpush.xpose.msra.mxu0 %v444
        %2391 = vmatpush.xpose.msra.mxu0 %v412
        %2392 = vmatpush.xpose.msra.mxu0 %v380
        %2393 = vmatpush.xpose.msra.mxu0 %v348
        %2394 = vmatpush.xpose.msra.mxu0 %v316
        %2395 = vmatpush.xpose.msra.mxu0 %v284
        %2396 = vmatpush.xpose.msra.mxu0 %v252
        %2397 = vmatpush.xpose.msra.mxu0 %v220
        %2398 = vmatmul.f32.gmra.mxu0 %v188
        %v2399 = vpop.f32.mrf.mxu0
        %v2400 = vadd.f32 %v2380, %v2399
        %2401 = vdwg.mxu0
        %2402 = vmatpush.xpose.msra.mxu0 %v701
        %2403 = vmatpush.xpose.msra.mxu0 %v669
        %2404 = vmatpush.xpose.msra.mxu0 %v637
        %2405 = vmatpush.xpose.msra.mxu0 %v605
        %2406 = vmatpush.xpose.msra.mxu0 %v573
        %2407 = vmatpush.xpose.msra.mxu0 %v541
        %2408 = vmatpush.xpose.msra.mxu0 %v509
        %2409 = vmatpush.xpose.msra.mxu0 %v477
        %2410 = vmatpush.xpose.msra.mxu0 %v445
        %2411 = vmatpush.xpose.msra.mxu0 %v413
        %2412 = vmatpush.xpose.msra.mxu0 %v381
        %2413 = vmatpush.xpose.msra.mxu0 %v349
        %2414 = vmatpush.xpose.msra.mxu0 %v317
        %2415 = vmatpush.xpose.msra.mxu0 %v285
        %2416 = vmatpush.xpose.msra.mxu0 %v253
        %2417 = vmatpush.xpose.msra.mxu0 %v221
        %2418 = vmatmul.f32.gmra.mxu0 %v189
        %v2419 = vpop.f32.mrf.mxu0
        %v2420 = vadd.f32 %v2400, %v2419
        %2421 = vdwg.mxu0
        %2422 = vmatpush.xpose.msra.mxu0 %v702
        %2423 = vmatpush.xpose.msra.mxu0 %v670
        %2424 = vmatpush.xpose.msra.mxu0 %v638
        %2425 = vmatpush.xpose.msra.mxu0 %v606
        %2426 = vmatpush.xpose.msra.mxu0 %v574
        %2427 = vmatpush.xpose.msra.mxu0 %v542
        %2428 = vmatpush.xpose.msra.mxu0 %v510
        %2429 = vmatpush.xpose.msra.mxu0 %v478
        %2430 = vmatpush.xpose.msra.mxu0 %v446
        %2431 = vmatpush.xpose.msra.mxu0 %v414
        %2432 = vmatpush.xpose.msra.mxu0 %v382
        %2433 = vmatpush.xpose.msra.mxu0 %v350
        %2434 = vmatpush.xpose.msra.mxu0 %v318
        %2435 = vmatpush.xpose.msra.mxu0 %v286
        %2436 = vmatpush.xpose.msra.mxu0 %v254
        %2437 = vmatpush.xpose.msra.mxu0 %v222
        %2438 = vmatmul.f32.gmra.mxu0 %v190
        %v2439 = vpop.f32.mrf.mxu0
        %v2440 = vadd.f32 %v2420, %v2439
        %2441 = vdwg.mxu0
        %2442 = vmatpush.xpose.msra.mxu0 %v703
        %2443 = vmatpush.xpose.msra.mxu0 %v671
        %2444 = vmatpush.xpose.msra.mxu0 %v639
        %2445 = vmatpush.xpose.msra.mxu0 %v607
        %2446 = vmatpush.xpose.msra.mxu0 %v575
        %2447 = vmatpush.xpose.msra.mxu0 %v543
        %2448 = vmatpush.xpose.msra.mxu0 %v511
        %2449 = vmatpush.xpose.msra.mxu0 %v479
        %2450 = vmatpush.xpose.msra.mxu0 %v447
        %2451 = vmatpush.xpose.msra.mxu0 %v415
        %2452 = vmatpush.xpose.msra.mxu0 %v383
        %2453 = vmatpush.xpose.msra.mxu0 %v351
        %2454 = vmatpush.xpose.msra.mxu0 %v319
        %2455 = vmatpush.xpose.msra.mxu0 %v287
        %2456 = vmatpush.xpose.msra.mxu0 %v255
        %2457 = vmatpush.xpose.msra.mxu0 %v223
        %2458 = vmatmul.f32.gmra.mxu0 %v191
        %v2459 = vpop.f32.mrf.mxu0
        %v2460 = vadd.f32 %v2440, %v2459
        %2461 = vdwg.mxu0
        %2462 = vmatpush.xpose.msra.mxu0 %v704
        %2463 = vmatpush.xpose.msra.mxu0 %v672
        %2464 = vmatpush.xpose.msra.mxu0 %v640
        %2465 = vmatpush.xpose.msra.mxu0 %v608
        %2466 = vmatpush.xpose.msra.mxu0 %v576
        %2467 = vmatpush.xpose.msra.mxu0 %v544
        %2468 = vmatpush.xpose.msra.mxu0 %v512
        %2469 = vmatpush.xpose.msra.mxu0 %v480
        %2470 = vmatpush.xpose.msra.mxu0 %v448
        %2471 = vmatpush.xpose.msra.mxu0 %v416
        %2472 = vmatpush.xpose.msra.mxu0 %v384
        %2473 = vmatpush.xpose.msra.mxu0 %v352
        %2474 = vmatpush.xpose.msra.mxu0 %v320
        %2475 = vmatpush.xpose.msra.mxu0 %v288
        %2476 = vmatpush.xpose.msra.mxu0 %v256
        %2477 = vmatpush.xpose.msra.mxu0 %v224
        %2478 = vmatmul.f32.gmra.mxu0 %v192
        %v2479 = vpop.f32.mrf.mxu0
        %v2480 = vadd.f32 %v2460, %v2479
        %2481 = vdwg.mxu0
        %2482 = vmatpush.xpose.msra.mxu0 %v705
        %2483 = vmatpush.xpose.msra.mxu0 %v673
        %2484 = vmatpush.xpose.msra.mxu0 %v641
        %2485 = vmatpush.xpose.msra.mxu0 %v609
        %2486 = vmatpush.xpose.msra.mxu0 %v577
        %2487 = vmatpush.xpose.msra.mxu0 %v545
        %2488 = vmatpush.xpose.msra.mxu0 %v513
        %2489 = vmatpush.xpose.msra.mxu0 %v481
        %2490 = vmatpush.xpose.msra.mxu0 %v449
        %2491 = vmatpush.xpose.msra.mxu0 %v417
        %2492 = vmatpush.xpose.msra.mxu0 %v385
        %2493 = vmatpush.xpose.msra.mxu0 %v353
        %2494 = vmatpush.xpose.msra.mxu0 %v321
        %2495 = vmatpush.xpose.msra.mxu0 %v289
        %2496 = vmatpush.xpose.msra.mxu0 %v257
        %2497 = vmatpush.xpose.msra.mxu0 %v225
        %2498 = vmatmul.f32.gmra.mxu0 %v193
        %v2499 = vpop.f32.mrf.mxu0
        %v2500 = vadd.f32 %v2480, %v2499
        %2501 = vdwg.mxu0
        %2502 = vmatpush.xpose.msra.mxu0 %v706
        %2503 = vmatpush.xpose.msra.mxu0 %v674
        %2504 = vmatpush.xpose.msra.mxu0 %v642
        %2505 = vmatpush.xpose.msra.mxu0 %v610
        %2506 = vmatpush.xpose.msra.mxu0 %v578
        %2507 = vmatpush.xpose.msra.mxu0 %v546
        %2508 = vmatpush.xpose.msra.mxu0 %v514
        %2509 = vmatpush.xpose.msra.mxu0 %v482
        %2510 = vmatpush.xpose.msra.mxu0 %v450
        %2511 = vmatpush.xpose.msra.mxu0 %v418
        %2512 = vmatpush.xpose.msra.mxu0 %v386
        %2513 = vmatpush.xpose.msra.mxu0 %v354
        %2514 = vmatpush.xpose.msra.mxu0 %v322
        %2515 = vmatpush.xpose.msra.mxu0 %v290
        %2516 = vmatpush.xpose.msra.mxu0 %v258
        %2517 = vmatpush.xpose.msra.mxu0 %v226
        %2518 = vmatmul.f32.gmra.mxu0 %v194
        %v2519 = vpop.f32.mrf.mxu0
        %v2520 = vadd.f32 %v2500, %v2519
        %2521 = vdwg.mxu0
        %2522 = vmatpush.xpose.msra.mxu0 %v707
        %2523 = vmatpush.xpose.msra.mxu0 %v675
        %2524 = vmatpush.xpose.msra.mxu0 %v643
        %2525 = vmatpush.xpose.msra.mxu0 %v611
        %2526 = vmatpush.xpose.msra.mxu0 %v579
        %2527 = vmatpush.xpose.msra.mxu0 %v547
        %2528 = vmatpush.xpose.msra.mxu0 %v515
        %2529 = vmatpush.xpose.msra.mxu0 %v483
        %2530 = vmatpush.xpose.msra.mxu0 %v451
        %2531 = vmatpush.xpose.msra.mxu0 %v419
        %2532 = vmatpush.xpose.msra.mxu0 %v387
        %2533 = vmatpush.xpose.msra.mxu0 %v355
        %2534 = vmatpush.xpose.msra.mxu0 %v323
        %2535 = vmatpush.xpose.msra.mxu0 %v291
        %2536 = vmatpush.xpose.msra.mxu0 %v259
        %2537 = vmatpush.xpose.msra.mxu0 %v227
        %2538 = vmatmul.f32.gmra.mxu0 %v195
        %v2539 = vpop.f32.mrf.mxu0
        %v2540 = vadd.f32 %v2520, %v2539
        %2541 = vdwg.mxu0
        %2542 = vmatpush.xpose.msra.mxu0 %v708
        %2543 = vmatpush.xpose.msra.mxu0 %v676
        %2544 = vmatpush.xpose.msra.mxu0 %v644
        %2545 = vmatpush.xpose.msra.mxu0 %v612
        %2546 = vmatpush.xpose.msra.mxu0 %v580
        %2547 = vmatpush.xpose.msra.mxu0 %v548
        %2548 = vmatpush.xpose.msra.mxu0 %v516
        %2549 = vmatpush.xpose.msra.mxu0 %v484
        %2550 = vmatpush.xpose.msra.mxu0 %v452
        %2551 = vmatpush.xpose.msra.mxu0 %v420
        %2552 = vmatpush.xpose.msra.mxu0 %v388
        %2553 = vmatpush.xpose.msra.mxu0 %v356
        %2554 = vmatpush.xpose.msra.mxu0 %v324
        %2555 = vmatpush.xpose.msra.mxu0 %v292
        %2556 = vmatpush.xpose.msra.mxu0 %v260
        %2557 = vmatpush.xpose.msra.mxu0 %v228
        %2558 = vmatmul.f32.gmra.mxu0 %v196
        %v2559 = vpop.f32.mrf.mxu0
        %v2560 = vadd.f32 %v2540, %v2559
        %2561 = vdwg.mxu0
        %2562 = vmatpush.xpose.msra.mxu0 %v709
        %2563 = vmatpush.xpose.msra.mxu0 %v677
        %2564 = vmatpush.xpose.msra.mxu0 %v645
        %2565 = vmatpush.xpose.msra.mxu0 %v613
        %2566 = vmatpush.xpose.msra.mxu0 %v581
        %2567 = vmatpush.xpose.msra.mxu0 %v549
        %2568 = vmatpush.xpose.msra.mxu0 %v517
        %2569 = vmatpush.xpose.msra.mxu0 %v485
        %2570 = vmatpush.xpose.msra.mxu0 %v453
        %2571 = vmatpush.xpose.msra.mxu0 %v421
        %2572 = vmatpush.xpose.msra.mxu0 %v389
        %2573 = vmatpush.xpose.msra.mxu0 %v357
        %2574 = vmatpush.xpose.msra.mxu0 %v325
        %2575 = vmatpush.xpose.msra.mxu0 %v293
        %2576 = vmatpush.xpose.msra.mxu0 %v261
        %2577 = vmatpush.xpose.msra.mxu0 %v229
        %2578 = vmatmul.f32.gmra.mxu0 %v197
        %v2579 = vpop.f32.mrf.mxu0
        %v2580 = vadd.f32 %v2560, %v2579
        %2581 = vdwg.mxu0
        %2582 = vmatpush.xpose.msra.mxu0 %v710
        %2583 = vmatpush.xpose.msra.mxu0 %v678
        %2584 = vmatpush.xpose.msra.mxu0 %v646
        %2585 = vmatpush.xpose.msra.mxu0 %v614
        %2586 = vmatpush.xpose.msra.mxu0 %v582
        %2587 = vmatpush.xpose.msra.mxu0 %v550
        %2588 = vmatpush.xpose.msra.mxu0 %v518
        %2589 = vmatpush.xpose.msra.mxu0 %v486
        %2590 = vmatpush.xpose.msra.mxu0 %v454
        %2591 = vmatpush.xpose.msra.mxu0 %v422
        %2592 = vmatpush.xpose.msra.mxu0 %v390
        %2593 = vmatpush.xpose.msra.mxu0 %v358
        %2594 = vmatpush.xpose.msra.mxu0 %v326
        %2595 = vmatpush.xpose.msra.mxu0 %v294
        %2596 = vmatpush.xpose.msra.mxu0 %v262
        %2597 = vmatpush.xpose.msra.mxu0 %v230
        %2598 = vmatmul.f32.gmra.mxu0 %v198
        %v2599 = vpop.f32.mrf.mxu0
        %v2600 = vadd.f32 %v2580, %v2599
        %2601 = vdwg.mxu0
        %2602 = vmatpush.xpose.msra.mxu0 %v711
        %2603 = vmatpush.xpose.msra.mxu0 %v679
        %2604 = vmatpush.xpose.msra.mxu0 %v647
        %2605 = vmatpush.xpose.msra.mxu0 %v615
        %2606 = vmatpush.xpose.msra.mxu0 %v583
        %2607 = vmatpush.xpose.msra.mxu0 %v551
        %2608 = vmatpush.xpose.msra.mxu0 %v519
        %2609 = vmatpush.xpose.msra.mxu0 %v487
        %2610 = vmatpush.xpose.msra.mxu0 %v455
        %2611 = vmatpush.xpose.msra.mxu0 %v423
        %2612 = vmatpush.xpose.msra.mxu0 %v391
        %2613 = vmatpush.xpose.msra.mxu0 %v359
        %2614 = vmatpush.xpose.msra.mxu0 %v327
        %2615 = vmatpush.xpose.msra.mxu0 %v295
        %2616 = vmatpush.xpose.msra.mxu0 %v263
        %2617 = vmatpush.xpose.msra.mxu0 %v231
        %2618 = vmatmul.f32.gmra.mxu0 %v199
        %v2619 = vpop.f32.mrf.mxu0
        %v2620 = vadd.f32 %v2600, %v2619
        %2621 = vdwg.mxu0
        %2622 = vmatpush.xpose.msra.mxu0 %v712
        %2623 = vmatpush.xpose.msra.mxu0 %v680
        %2624 = vmatpush.xpose.msra.mxu0 %v648
        %2625 = vmatpush.xpose.msra.mxu0 %v616
        %2626 = vmatpush.xpose.msra.mxu0 %v584
        %2627 = vmatpush.xpose.msra.mxu0 %v552
        %2628 = vmatpush.xpose.msra.mxu0 %v520
        %2629 = vmatpush.xpose.msra.mxu0 %v488
        %2630 = vmatpush.xpose.msra.mxu0 %v456
        %2631 = vmatpush.xpose.msra.mxu0 %v424
        %2632 = vmatpush.xpose.msra.mxu0 %v392
        %2633 = vmatpush.xpose.msra.mxu0 %v360
        %2634 = vmatpush.xpose.msra.mxu0 %v328
        %2635 = vmatpush.xpose.msra.mxu0 %v296
        %2636 = vmatpush.xpose.msra.mxu0 %v264
        %2637 = vmatpush.xpose.msra.mxu0 %v232
        %2638 = vmatmul.f32.gmra.mxu0 %v200
        %v2639 = vpop.f32.mrf.mxu0
        %v2640 = vadd.f32 %v2620, %v2639
        %2641 = vdwg.mxu0
        %2642 = vmatpush.xpose.msra.mxu0 %v713
        %2643 = vmatpush.xpose.msra.mxu0 %v681
        %2644 = vmatpush.xpose.msra.mxu0 %v649
        %2645 = vmatpush.xpose.msra.mxu0 %v617
        %2646 = vmatpush.xpose.msra.mxu0 %v585
        %2647 = vmatpush.xpose.msra.mxu0 %v553
        %2648 = vmatpush.xpose.msra.mxu0 %v521
        %2649 = vmatpush.xpose.msra.mxu0 %v489
        %2650 = vmatpush.xpose.msra.mxu0 %v457
        %2651 = vmatpush.xpose.msra.mxu0 %v425
        %2652 = vmatpush.xpose.msra.mxu0 %v393
        %2653 = vmatpush.xpose.msra.mxu0 %v361
        %2654 = vmatpush.xpose.msra.mxu0 %v329
        %2655 = vmatpush.xpose.msra.mxu0 %v297
        %2656 = vmatpush.xpose.msra.mxu0 %v265
        %2657 = vmatpush.xpose.msra.mxu0 %v233
        %2658 = vmatmul.f32.gmra.mxu0 %v201
        %v2659 = vpop.f32.mrf.mxu0
        %v2660 = vadd.f32 %v2640, %v2659
        %2661 = vdwg.mxu0
        %2662 = vmatpush.xpose.msra.mxu0 %v714
        %2663 = vmatpush.xpose.msra.mxu0 %v682
        %2664 = vmatpush.xpose.msra.mxu0 %v650
        %2665 = vmatpush.xpose.msra.mxu0 %v618
        %2666 = vmatpush.xpose.msra.mxu0 %v586
        %2667 = vmatpush.xpose.msra.mxu0 %v554
        %2668 = vmatpush.xpose.msra.mxu0 %v522
        %2669 = vmatpush.xpose.msra.mxu0 %v490
        %2670 = vmatpush.xpose.msra.mxu0 %v458
        %2671 = vmatpush.xpose.msra.mxu0 %v426
        %2672 = vmatpush.xpose.msra.mxu0 %v394
        %2673 = vmatpush.xpose.msra.mxu0 %v362
        %2674 = vmatpush.xpose.msra.mxu0 %v330
        %2675 = vmatpush.xpose.msra.mxu0 %v298
        %2676 = vmatpush.xpose.msra.mxu0 %v266
        %2677 = vmatpush.xpose.msra.mxu0 %v234
        %2678 = vmatmul.f32.gmra.mxu0 %v202
        %v2679 = vpop.f32.mrf.mxu0
        %v2680 = vadd.f32 %v2660, %v2679
        %2681 = vdwg.mxu0
        %2682 = vmatpush.xpose.msra.mxu0 %v715
        %2683 = vmatpush.xpose.msra.mxu0 %v683
        %2684 = vmatpush.xpose.msra.mxu0 %v651
        %2685 = vmatpush.xpose.msra.mxu0 %v619
        %2686 = vmatpush.xpose.msra.mxu0 %v587
        %2687 = vmatpush.xpose.msra.mxu0 %v555
        %2688 = vmatpush.xpose.msra.mxu0 %v523
        %2689 = vmatpush.xpose.msra.mxu0 %v491
        %2690 = vmatpush.xpose.msra.mxu0 %v459
        %2691 = vmatpush.xpose.msra.mxu0 %v427
        %2692 = vmatpush.xpose.msra.mxu0 %v395
        %2693 = vmatpush.xpose.msra.mxu0 %v363
        %2694 = vmatpush.xpose.msra.mxu0 %v331
        %2695 = vmatpush.xpose.msra.mxu0 %v299
        %2696 = vmatpush.xpose.msra.mxu0 %v267
        %2697 = vmatpush.xpose.msra.mxu0 %v235
        %2698 = vmatmul.f32.gmra.mxu0 %v203
        %v2699 = vpop.f32.mrf.mxu0
        %v2700 = vadd.f32 %v2680, %v2699
        %2701 = vdwg.mxu0
        %2702 = vmatpush.xpose.msra.mxu0 %v716
        %2703 = vmatpush.xpose.msra.mxu0 %v684
        %2704 = vmatpush.xpose.msra.mxu0 %v652
        %2705 = vmatpush.xpose.msra.mxu0 %v620
        %2706 = vmatpush.xpose.msra.mxu0 %v588
        %2707 = vmatpush.xpose.msra.mxu0 %v556
        %2708 = vmatpush.xpose.msra.mxu0 %v524
        %2709 = vmatpush.xpose.msra.mxu0 %v492
        %2710 = vmatpush.xpose.msra.mxu0 %v460
        %2711 = vmatpush.xpose.msra.mxu0 %v428
        %2712 = vmatpush.xpose.msra.mxu0 %v396
        %2713 = vmatpush.xpose.msra.mxu0 %v364
        %2714 = vmatpush.xpose.msra.mxu0 %v332
        %2715 = vmatpush.xpose.msra.mxu0 %v300
        %2716 = vmatpush.xpose.msra.mxu0 %v268
        %2717 = vmatpush.xpose.msra.mxu0 %v236
        %2718 = vmatmul.f32.gmra.mxu0 %v204
        %v2719 = vpop.f32.mrf.mxu0
        %v2720 = vadd.f32 %v2700, %v2719
        %2721 = vdwg.mxu0
        %2722 = vmatpush.xpose.msra.mxu0 %v717
        %2723 = vmatpush.xpose.msra.mxu0 %v685
        %2724 = vmatpush.xpose.msra.mxu0 %v653
        %2725 = vmatpush.xpose.msra.mxu0 %v621
        %2726 = vmatpush.xpose.msra.mxu0 %v589
        %2727 = vmatpush.xpose.msra.mxu0 %v557
        %2728 = vmatpush.xpose.msra.mxu0 %v525
        %2729 = vmatpush.xpose.msra.mxu0 %v493
        %2730 = vmatpush.xpose.msra.mxu0 %v461
        %2731 = vmatpush.xpose.msra.mxu0 %v429
        %2732 = vmatpush.xpose.msra.mxu0 %v397
        %2733 = vmatpush.xpose.msra.mxu0 %v365
        %2734 = vmatpush.xpose.msra.mxu0 %v333
        %2735 = vmatpush.xpose.msra.mxu0 %v301
        %2736 = vmatpush.xpose.msra.mxu0 %v269
        %2737 = vmatpush.xpose.msra.mxu0 %v237
        %2738 = vmatmul.f32.gmra.mxu0 %v205
        %v2739 = vpop.f32.mrf.mxu0
        %v2740 = vadd.f32 %v2720, %v2739
        %2741 = vdwg.mxu0
        %2742 = vmatpush.xpose.msra.mxu0 %v718
        %2743 = vmatpush.xpose.msra.mxu0 %v686
        %2744 = vmatpush.xpose.msra.mxu0 %v654
        %2745 = vmatpush.xpose.msra.mxu0 %v622
        %2746 = vmatpush.xpose.msra.mxu0 %v590
        %2747 = vmatpush.xpose.msra.mxu0 %v558
        %2748 = vmatpush.xpose.msra.mxu0 %v526
        %2749 = vmatpush.xpose.msra.mxu0 %v494
        %2750 = vmatpush.xpose.msra.mxu0 %v462
        %2751 = vmatpush.xpose.msra.mxu0 %v430
        %2752 = vmatpush.xpose.msra.mxu0 %v398
        %2753 = vmatpush.xpose.msra.mxu0 %v366
        %2754 = vmatpush.xpose.msra.mxu0 %v334
        %2755 = vmatpush.xpose.msra.mxu0 %v302
        %2756 = vmatpush.xpose.msra.mxu0 %v270
        %2757 = vmatpush.xpose.msra.mxu0 %v238
        %2758 = vmatmul.f32.gmra.mxu0 %v206
        %v2759 = vpop.f32.mrf.mxu0
        %v2760 = vadd.f32 %v2740, %v2759
        %2761 = vdwg.mxu0
        %2762 = vmatpush.xpose.msra.mxu0 %v719
        %2763 = vmatpush.xpose.msra.mxu0 %v687
        %2764 = vmatpush.xpose.msra.mxu0 %v655
        %2765 = vmatpush.xpose.msra.mxu0 %v623
        %2766 = vmatpush.xpose.msra.mxu0 %v591
        %2767 = vmatpush.xpose.msra.mxu0 %v559
        %2768 = vmatpush.xpose.msra.mxu0 %v527
        %2769 = vmatpush.xpose.msra.mxu0 %v495
        %2770 = vmatpush.xpose.msra.mxu0 %v463
        %2771 = vmatpush.xpose.msra.mxu0 %v431
        %2772 = vmatpush.xpose.msra.mxu0 %v399
        %2773 = vmatpush.xpose.msra.mxu0 %v367
        %2774 = vmatpush.xpose.msra.mxu0 %v335
        %2775 = vmatpush.xpose.msra.mxu0 %v303
        %2776 = vmatpush.xpose.msra.mxu0 %v271
        %2777 = vmatpush.xpose.msra.mxu0 %v239
        %2778 = vmatmul.f32.gmra.mxu0 %v207
        %v2779 = vpop.f32.mrf.mxu0
        %v2780 = vadd.f32 %v2760, %v2779
        %2781 = vdwg.mxu0
        %2782 = vmatpush.xpose.msra.mxu0 %v720
        %2783 = vmatpush.xpose.msra.mxu0 %v688
        %2784 = vmatpush.xpose.msra.mxu0 %v656
        %2785 = vmatpush.xpose.msra.mxu0 %v624
        %2786 = vmatpush.xpose.msra.mxu0 %v592
        %2787 = vmatpush.xpose.msra.mxu0 %v560
        %2788 = vmatpush.xpose.msra.mxu0 %v528
        %2789 = vmatpush.xpose.msra.mxu0 %v496
        %2790 = vmatpush.xpose.msra.mxu0 %v464
        %2791 = vmatpush.xpose.msra.mxu0 %v432
        %2792 = vmatpush.xpose.msra.mxu0 %v400
        %2793 = vmatpush.xpose.msra.mxu0 %v368
        %2794 = vmatpush.xpose.msra.mxu0 %v336
        %2795 = vmatpush.xpose.msra.mxu0 %v304
        %2796 = vmatpush.xpose.msra.mxu0 %v272
        %2797 = vmatpush.xpose.msra.mxu0 %v240
        %2798 = vmatmul.f32.gmra.mxu0 %v208
        %v2799 = vpop.f32.mrf.mxu0
        %v2800 = vadd.f32 %v2780, %v2799
        %2801 = vdwg.mxu0
        %2802 = vmatpush.xpose.msra.mxu0 %v721
        %2803 = vmatpush.xpose.msra.mxu0 %v689
        %2804 = vmatpush.xpose.msra.mxu0 %v657
        %2805 = vmatpush.xpose.msra.mxu0 %v625
        %2806 = vmatpush.xpose.msra.mxu0 %v593
        %2807 = vmatpush.xpose.msra.mxu0 %v561
        %2808 = vmatpush.xpose.msra.mxu0 %v529
        %2809 = vmatpush.xpose.msra.mxu0 %v497
        %2810 = vmatpush.xpose.msra.mxu0 %v465
        %2811 = vmatpush.xpose.msra.mxu0 %v433
        %2812 = vmatpush.xpose.msra.mxu0 %v401
        %2813 = vmatpush.xpose.msra.mxu0 %v369
        %2814 = vmatpush.xpose.msra.mxu0 %v337
        %2815 = vmatpush.xpose.msra.mxu0 %v305
        %2816 = vmatpush.xpose.msra.mxu0 %v273
        %2817 = vmatpush.xpose.msra.mxu0 %v241
        %2818 = vmatmul.f32.gmra.mxu0 %v209
        %v2819 = vpop.f32.mrf.mxu0
        %v2820 = vadd.f32 %v2800, %v2819
        %2821 = vdwg.mxu0
        %2822 = vmatpush.xpose.msra.mxu0 %v722
        %2823 = vmatpush.xpose.msra.mxu0 %v690
        %2824 = vmatpush.xpose.msra.mxu0 %v658
        %2825 = vmatpush.xpose.msra.mxu0 %v626
        %2826 = vmatpush.xpose.msra.mxu0 %v594
        %2827 = vmatpush.xpose.msra.mxu0 %v562
        %2828 = vmatpush.xpose.msra.mxu0 %v530
        %2829 = vmatpush.xpose.msra.mxu0 %v498
        %2830 = vmatpush.xpose.msra.mxu0 %v466
        %2831 = vmatpush.xpose.msra.mxu0 %v434
        %2832 = vmatpush.xpose.msra.mxu0 %v402
        %2833 = vmatpush.xpose.msra.mxu0 %v370
        %2834 = vmatpush.xpose.msra.mxu0 %v338
        %2835 = vmatpush.xpose.msra.mxu0 %v306
        %2836 = vmatpush.xpose.msra.mxu0 %v274
        %2837 = vmatpush.xpose.msra.mxu0 %v242
        %2838 = vmatmul.f32.gmra.mxu0 %v210
        %v2839 = vpop.f32.mrf.mxu0
        %v2840 = vadd.f32 %v2820, %v2839
        %2841 = vdwg.mxu0
        %2842 = vmatpush.xpose.msra.mxu0 %v723
        %2843 = vmatpush.xpose.msra.mxu0 %v691
        %2844 = vmatpush.xpose.msra.mxu0 %v659
        %2845 = vmatpush.xpose.msra.mxu0 %v627
        %2846 = vmatpush.xpose.msra.mxu0 %v595
        %2847 = vmatpush.xpose.msra.mxu0 %v563
        %2848 = vmatpush.xpose.msra.mxu0 %v531
        %2849 = vmatpush.xpose.msra.mxu0 %v499
        %2850 = vmatpush.xpose.msra.mxu0 %v467
        %2851 = vmatpush.xpose.msra.mxu0 %v435
        %2852 = vmatpush.xpose.msra.mxu0 %v403
        %2853 = vmatpush.xpose.msra.mxu0 %v371
        %2854 = vmatpush.xpose.msra.mxu0 %v339
        %2855 = vmatpush.xpose.msra.mxu0 %v307
        %2856 = vmatpush.xpose.msra.mxu0 %v275
        %2857 = vmatpush.xpose.msra.mxu0 %v243
        %2858 = vmatmul.f32.gmra.mxu0 %v211
        %v2859 = vpop.f32.mrf.mxu0
        %v2860 = vadd.f32 %v2840, %v2859
        %2861 = vdwg.mxu0
        %2862 = vmatpush.xpose.msra.mxu0 %v724
        %2863 = vmatpush.xpose.msra.mxu0 %v692
        %2864 = vmatpush.xpose.msra.mxu0 %v660
        %2865 = vmatpush.xpose.msra.mxu0 %v628
        %2866 = vmatpush.xpose.msra.mxu0 %v596
        %2867 = vmatpush.xpose.msra.mxu0 %v564
        %2868 = vmatpush.xpose.msra.mxu0 %v532
        %2869 = vmatpush.xpose.msra.mxu0 %v500
        %2870 = vmatpush.xpose.msra.mxu0 %v468
        %2871 = vmatpush.xpose.msra.mxu0 %v436
        %2872 = vmatpush.xpose.msra.mxu0 %v404
        %2873 = vmatpush.xpose.msra.mxu0 %v372
        %2874 = vmatpush.xpose.msra.mxu0 %v340
        %2875 = vmatpush.xpose.msra.mxu0 %v308
        %2876 = vmatpush.xpose.msra.mxu0 %v276
        %2877 = vmatpush.xpose.msra.mxu0 %v244
        %2878 = vmatmul.f32.gmra.mxu0 %v212
        %v2879 = vpop.f32.mrf.mxu0
        %v2880 = vadd.f32 %v2860, %v2879
        %2881 = vdwg.mxu0
        %2882 = vmatpush.xpose.msra.mxu0 %v725
        %2883 = vmatpush.xpose.msra.mxu0 %v693
        %2884 = vmatpush.xpose.msra.mxu0 %v661
        %2885 = vmatpush.xpose.msra.mxu0 %v629
        %2886 = vmatpush.xpose.msra.mxu0 %v597
        %2887 = vmatpush.xpose.msra.mxu0 %v565
        %2888 = vmatpush.xpose.msra.mxu0 %v533
        %2889 = vmatpush.xpose.msra.mxu0 %v501
        %2890 = vmatpush.xpose.msra.mxu0 %v469
        %2891 = vmatpush.xpose.msra.mxu0 %v437
        %2892 = vmatpush.xpose.msra.mxu0 %v405
        %2893 = vmatpush.xpose.msra.mxu0 %v373
        %2894 = vmatpush.xpose.msra.mxu0 %v341
        %2895 = vmatpush.xpose.msra.mxu0 %v309
        %2896 = vmatpush.xpose.msra.mxu0 %v277
        %2897 = vmatpush.xpose.msra.mxu0 %v245
        %2898 = vmatmul.f32.gmra.mxu0 %v213
        %v2899 = vpop.f32.mrf.mxu0
        %v2900 = vadd.f32 %v2880, %v2899
        %2901 = vdwg.mxu0
        %2902 = vmatpush.xpose.msra.mxu0 %v1206
        %2903 = vmatpush.xpose.msra.mxu0 %v1174
        %2904 = vmatpush.xpose.msra.mxu0 %v1142
        %2905 = vmatpush.xpose.msra.mxu0 %v1110
        %2906 = vmatpush.xpose.msra.mxu0 %v1078
        %2907 = vmatpush.xpose.msra.mxu0 %v1046
        %2908 = vmatpush.xpose.msra.mxu0 %v1014
        %2909 = vmatpush.xpose.msra.mxu0 %v982
        %2910 = vmatpush.xpose.msra.mxu0 %v950
        %2911 = vmatpush.xpose.msra.mxu0 %v918
        %2912 = vmatpush.xpose.msra.mxu0 %v886
        %2913 = vmatpush.xpose.msra.mxu0 %v854
        %2914 = vmatpush.xpose.msra.mxu0 %v822
        %2915 = vmatpush.xpose.msra.mxu0 %v790
        %2916 = vmatpush.xpose.msra.mxu0 %v758
        %2917 = vmatpush.xpose.msra.mxu0 %v726
        %2918 = vmatmul.f32.gmra.mxu0 %v182
        %v2919 = vpop.f32.mrf.mxu0
        %v2920 = vadd.f32 0.0, %v2919
        %2921 = vdwg.mxu0
        %2922 = vmatpush.xpose.msra.mxu0 %v1207
        %2923 = vmatpush.xpose.msra.mxu0 %v1175
        %2924 = vmatpush.xpose.msra.mxu0 %v1143
        %2925 = vmatpush.xpose.msra.mxu0 %v1111
        %2926 = vmatpush.xpose.msra.mxu0 %v1079
        %2927 = vmatpush.xpose.msra.mxu0 %v1047
        %2928 = vmatpush.xpose.msra.mxu0 %v1015
        %2929 = vmatpush.xpose.msra.mxu0 %v983
        %2930 = vmatpush.xpose.msra.mxu0 %v951
        %2931 = vmatpush.xpose.msra.mxu0 %v919
        %2932 = vmatpush.xpose.msra.mxu0 %v887
        %2933 = vmatpush.xpose.msra.mxu0 %v855
        %2934 = vmatpush.xpose.msra.mxu0 %v823
        %2935 = vmatpush.xpose.msra.mxu0 %v791
        %2936 = vmatpush.xpose.msra.mxu0 %v759
        %2937 = vmatpush.xpose.msra.mxu0 %v727
        %2938 = vmatmul.f32.gmra.mxu0 %v183
        %v2939 = vpop.f32.mrf.mxu0
        %v2940 = vadd.f32 %v2920, %v2939
        %2941 = vdwg.mxu0
        %2942 = vmatpush.xpose.msra.mxu0 %v1208
        %2943 = vmatpush.xpose.msra.mxu0 %v1176
        %2944 = vmatpush.xpose.msra.mxu0 %v1144
        %2945 = vmatpush.xpose.msra.mxu0 %v1112
        %2946 = vmatpush.xpose.msra.mxu0 %v1080
        %2947 = vmatpush.xpose.msra.mxu0 %v1048
        %2948 = vmatpush.xpose.msra.mxu0 %v1016
        %2949 = vmatpush.xpose.msra.mxu0 %v984
        %2950 = vmatpush.xpose.msra.mxu0 %v952
        %2951 = vmatpush.xpose.msra.mxu0 %v920
        %2952 = vmatpush.xpose.msra.mxu0 %v888
        %2953 = vmatpush.xpose.msra.mxu0 %v856
        %2954 = vmatpush.xpose.msra.mxu0 %v824
        %2955 = vmatpush.xpose.msra.mxu0 %v792
        %2956 = vmatpush.xpose.msra.mxu0 %v760
        %2957 = vmatpush.xpose.msra.mxu0 %v728
        %2958 = vmatmul.f32.gmra.mxu0 %v184
        %v2959 = vpop.f32.mrf.mxu0
        %v2960 = vadd.f32 %v2940, %v2959
        %2961 = vdwg.mxu0
        %2962 = vmatpush.xpose.msra.mxu0 %v1209
        %2963 = vmatpush.xpose.msra.mxu0 %v1177
        %2964 = vmatpush.xpose.msra.mxu0 %v1145
        %2965 = vmatpush.xpose.msra.mxu0 %v1113
        %2966 = vmatpush.xpose.msra.mxu0 %v1081
        %2967 = vmatpush.xpose.msra.mxu0 %v1049
        %2968 = vmatpush.xpose.msra.mxu0 %v1017
        %2969 = vmatpush.xpose.msra.mxu0 %v985
        %2970 = vmatpush.xpose.msra.mxu0 %v953
        %2971 = vmatpush.xpose.msra.mxu0 %v921
        %2972 = vmatpush.xpose.msra.mxu0 %v889
        %2973 = vmatpush.xpose.msra.mxu0 %v857
        %2974 = vmatpush.xpose.msra.mxu0 %v825
        %2975 = vmatpush.xpose.msra.mxu0 %v793
        %2976 = vmatpush.xpose.msra.mxu0 %v761
        %2977 = vmatpush.xpose.msra.mxu0 %v729
        %2978 = vmatmul.f32.gmra.mxu0 %v185
        %v2979 = vpop.f32.mrf.mxu0
        %v2980 = vadd.f32 %v2960, %v2979
        %2981 = vdwg.mxu0
        %2982 = vmatpush.xpose.msra.mxu0 %v1210
        %2983 = vmatpush.xpose.msra.mxu0 %v1178
        %2984 = vmatpush.xpose.msra.mxu0 %v1146
        %2985 = vmatpush.xpose.msra.mxu0 %v1114
        %2986 = vmatpush.xpose.msra.mxu0 %v1082
        %2987 = vmatpush.xpose.msra.mxu0 %v1050
        %2988 = vmatpush.xpose.msra.mxu0 %v1018
        %2989 = vmatpush.xpose.msra.mxu0 %v986
        %2990 = vmatpush.xpose.msra.mxu0 %v954
        %2991 = vmatpush.xpose.msra.mxu0 %v922
        %2992 = vmatpush.xpose.msra.mxu0 %v890
        %2993 = vmatpush.xpose.msra.mxu0 %v858
        %2994 = vmatpush.xpose.msra.mxu0 %v826
        %2995 = vmatpush.xpose.msra.mxu0 %v794
        %2996 = vmatpush.xpose.msra.mxu0 %v762
        %2997 = vmatpush.xpose.msra.mxu0 %v730
        %2998 = vmatmul.f32.gmra.mxu0 %v186
        %v2999 = vpop.f32.mrf.mxu0
        %v3000 = vadd.f32 %v2980, %v2999
        %3001 = vdwg.mxu0
        %3002 = vmatpush.xpose.msra.mxu0 %v1211
        %3003 = vmatpush.xpose.msra.mxu0 %v1179
        %3004 = vmatpush.xpose.msra.mxu0 %v1147
        %3005 = vmatpush.xpose.msra.mxu0 %v1115
        %3006 = vmatpush.xpose.msra.mxu0 %v1083
        %3007 = vmatpush.xpose.msra.mxu0 %v1051
        %3008 = vmatpush.xpose.msra.mxu0 %v1019
        %3009 = vmatpush.xpose.msra.mxu0 %v987
        %3010 = vmatpush.xpose.msra.mxu0 %v955
        %3011 = vmatpush.xpose.msra.mxu0 %v923
        %3012 = vmatpush.xpose.msra.mxu0 %v891
        %3013 = vmatpush.xpose.msra.mxu0 %v859
        %3014 = vmatpush.xpose.msra.mxu0 %v827
        %3015 = vmatpush.xpose.msra.mxu0 %v795
        %3016 = vmatpush.xpose.msra.mxu0 %v763
        %3017 = vmatpush.xpose.msra.mxu0 %v731
        %3018 = vmatmul.f32.gmra.mxu0 %v187
        %v3019 = vpop.f32.mrf.mxu0
        %v3020 = vadd.f32 %v3000, %v3019
        %3021 = vdwg.mxu0
        %3022 = vmatpush.xpose.msra.mxu0 %v1212
        %3023 = vmatpush.xpose.msra.mxu0 %v1180
        %3024 = vmatpush.xpose.msra.mxu0 %v1148
        %3025 = vmatpush.xpose.msra.mxu0 %v1116
        %3026 = vmatpush.xpose.msra.mxu0 %v1084
        %3027 = vmatpush.xpose.msra.mxu0 %v1052
        %3028 = vmatpush.xpose.msra.mxu0 %v1020
        %3029 = vmatpush.xpose.msra.mxu0 %v988
        %3030 = vmatpush.xpose.msra.mxu0 %v956
        %3031 = vmatpush.xpose.msra.mxu0 %v924
        %3032 = vmatpush.xpose.msra.mxu0 %v892
        %3033 = vmatpush.xpose.msra.mxu0 %v860
        %3034 = vmatpush.xpose.msra.mxu0 %v828
        %3035 = vmatpush.xpose.msra.mxu0 %v796
        %3036 = vmatpush.xpose.msra.mxu0 %v764
        %3037 = vmatpush.xpose.msra.mxu0 %v732
        %3038 = vmatmul.f32.gmra.mxu0 %v188
        %v3039 = vpop.f32.mrf.mxu0
        %v3040 = vadd.f32 %v3020, %v3039
        %3041 = vdwg.mxu0
        %3042 = vmatpush.xpose.msra.mxu0 %v1213
        %3043 = vmatpush.xpose.msra.mxu0 %v1181
        %3044 = vmatpush.xpose.msra.mxu0 %v1149
        %3045 = vmatpush.xpose.msra.mxu0 %v1117
        %3046 = vmatpush.xpose.msra.mxu0 %v1085
        %3047 = vmatpush.xpose.msra.mxu0 %v1053
        %3048 = vmatpush.xpose.msra.mxu0 %v1021
        %3049 = vmatpush.xpose.msra.mxu0 %v989
        %3050 = vmatpush.xpose.msra.mxu0 %v957
        %3051 = vmatpush.xpose.msra.mxu0 %v925
        %3052 = vmatpush.xpose.msra.mxu0 %v893
        %3053 = vmatpush.xpose.msra.mxu0 %v861
        %3054 = vmatpush.xpose.msra.mxu0 %v829
        %3055 = vmatpush.xpose.msra.mxu0 %v797
        %3056 = vmatpush.xpose.msra.mxu0 %v765
        %3057 = vmatpush.xpose.msra.mxu0 %v733
        %3058 = vmatmul.f32.gmra.mxu0 %v189
        %v3059 = vpop.f32.mrf.mxu0
        %v3060 = vadd.f32 %v3040, %v3059
        %3061 = vdwg.mxu0
        %3062 = vmatpush.xpose.msra.mxu0 %v1214
        %3063 = vmatpush.xpose.msra.mxu0 %v1182
        %3064 = vmatpush.xpose.msra.mxu0 %v1150
        %3065 = vmatpush.xpose.msra.mxu0 %v1118
        %3066 = vmatpush.xpose.msra.mxu0 %v1086
        %3067 = vmatpush.xpose.msra.mxu0 %v1054
        %3068 = vmatpush.xpose.msra.mxu0 %v1022
        %3069 = vmatpush.xpose.msra.mxu0 %v990
        %3070 = vmatpush.xpose.msra.mxu0 %v958
        %3071 = vmatpush.xpose.msra.mxu0 %v926
        %3072 = vmatpush.xpose.msra.mxu0 %v894
        %3073 = vmatpush.xpose.msra.mxu0 %v862
        %3074 = vmatpush.xpose.msra.mxu0 %v830
        %3075 = vmatpush.xpose.msra.mxu0 %v798
        %3076 = vmatpush.xpose.msra.mxu0 %v766
        %3077 = vmatpush.xpose.msra.mxu0 %v734
        %3078 = vmatmul.f32.gmra.mxu0 %v190
        %v3079 = vpop.f32.mrf.mxu0
        %v3080 = vadd.f32 %v3060, %v3079
        %3081 = vdwg.mxu0
        %3082 = vmatpush.xpose.msra.mxu0 %v1215
        %3083 = vmatpush.xpose.msra.mxu0 %v1183
        %3084 = vmatpush.xpose.msra.mxu0 %v1151
        %3085 = vmatpush.xpose.msra.mxu0 %v1119
        %3086 = vmatpush.xpose.msra.mxu0 %v1087
        %3087 = vmatpush.xpose.msra.mxu0 %v1055
        %3088 = vmatpush.xpose.msra.mxu0 %v1023
        %3089 = vmatpush.xpose.msra.mxu0 %v991
        %3090 = vmatpush.xpose.msra.mxu0 %v959
        %3091 = vmatpush.xpose.msra.mxu0 %v927
        %3092 = vmatpush.xpose.msra.mxu0 %v895
        %3093 = vmatpush.xpose.msra.mxu0 %v863
        %3094 = vmatpush.xpose.msra.mxu0 %v831
        %3095 = vmatpush.xpose.msra.mxu0 %v799
        %3096 = vmatpush.xpose.msra.mxu0 %v767
        %3097 = vmatpush.xpose.msra.mxu0 %v735
        %3098 = vmatmul.f32.gmra.mxu0 %v191
        %v3099 = vpop.f32.mrf.mxu0
        %v3100 = vadd.f32 %v3080, %v3099
        %3101 = vdwg.mxu0
        %3102 = vmatpush.xpose.msra.mxu0 %v1216
        %3103 = vmatpush.xpose.msra.mxu0 %v1184
        %3104 = vmatpush.xpose.msra.mxu0 %v1152
        %3105 = vmatpush.xpose.msra.mxu0 %v1120
        %3106 = vmatpush.xpose.msra.mxu0 %v1088
        %3107 = vmatpush.xpose.msra.mxu0 %v1056
        %3108 = vmatpush.xpose.msra.mxu0 %v1024
        %3109 = vmatpush.xpose.msra.mxu0 %v992
        %3110 = vmatpush.xpose.msra.mxu0 %v960
        %3111 = vmatpush.xpose.msra.mxu0 %v928
        %3112 = vmatpush.xpose.msra.mxu0 %v896
        %3113 = vmatpush.xpose.msra.mxu0 %v864
        %3114 = vmatpush.xpose.msra.mxu0 %v832
        %3115 = vmatpush.xpose.msra.mxu0 %v800
        %3116 = vmatpush.xpose.msra.mxu0 %v768
        %3117 = vmatpush.xpose.msra.mxu0 %v736
        %3118 = vmatmul.f32.gmra.mxu0 %v192
        %v3119 = vpop.f32.mrf.mxu0
        %v3120 = vadd.f32 %v3100, %v3119
        %3121 = vdwg.mxu0
        %3122 = vmatpush.xpose.msra.mxu0 %v1217
        %3123 = vmatpush.xpose.msra.mxu0 %v1185
        %3124 = vmatpush.xpose.msra.mxu0 %v1153
        %3125 = vmatpush.xpose.msra.mxu0 %v1121
        %3126 = vmatpush.xpose.msra.mxu0 %v1089
        %3127 = vmatpush.xpose.msra.mxu0 %v1057
        %3128 = vmatpush.xpose.msra.mxu0 %v1025
        %3129 = vmatpush.xpose.msra.mxu0 %v993
        %3130 = vmatpush.xpose.msra.mxu0 %v961
        %3131 = vmatpush.xpose.msra.mxu0 %v929
        %3132 = vmatpush.xpose.msra.mxu0 %v897
        %3133 = vmatpush.xpose.msra.mxu0 %v865
        %3134 = vmatpush.xpose.msra.mxu0 %v833
        %3135 = vmatpush.xpose.msra.mxu0 %v801
        %3136 = vmatpush.xpose.msra.mxu0 %v769
        %3137 = vmatpush.xpose.msra.mxu0 %v737
        %3138 = vmatmul.f32.gmra.mxu0 %v193
        %v3139 = vpop.f32.mrf.mxu0
        %v3140 = vadd.f32 %v3120, %v3139
        %3141 = vdwg.mxu0
        %3142 = vmatpush.xpose.msra.mxu0 %v1218
        %3143 = vmatpush.xpose.msra.mxu0 %v1186
        %3144 = vmatpush.xpose.msra.mxu0 %v1154
        %3145 = vmatpush.xpose.msra.mxu0 %v1122
        %3146 = vmatpush.xpose.msra.mxu0 %v1090
        %3147 = vmatpush.xpose.msra.mxu0 %v1058
        %3148 = vmatpush.xpose.msra.mxu0 %v1026
        %3149 = vmatpush.xpose.msra.mxu0 %v994
        %3150 = vmatpush.xpose.msra.mxu0 %v962
        %3151 = vmatpush.xpose.msra.mxu0 %v930
        %3152 = vmatpush.xpose.msra.mxu0 %v898
        %3153 = vmatpush.xpose.msra.mxu0 %v866
        %3154 = vmatpush.xpose.msra.mxu0 %v834
        %3155 = vmatpush.xpose.msra.mxu0 %v802
        %3156 = vmatpush.xpose.msra.mxu0 %v770
        %3157 = vmatpush.xpose.msra.mxu0 %v738
        %3158 = vmatmul.f32.gmra.mxu0 %v194
        %v3159 = vpop.f32.mrf.mxu0
        %v3160 = vadd.f32 %v3140, %v3159
        %3161 = vdwg.mxu0
        %3162 = vmatpush.xpose.msra.mxu0 %v1219
        %3163 = vmatpush.xpose.msra.mxu0 %v1187
        %3164 = vmatpush.xpose.msra.mxu0 %v1155
        %3165 = vmatpush.xpose.msra.mxu0 %v1123
        %3166 = vmatpush.xpose.msra.mxu0 %v1091
        %3167 = vmatpush.xpose.msra.mxu0 %v1059
        %3168 = vmatpush.xpose.msra.mxu0 %v1027
        %3169 = vmatpush.xpose.msra.mxu0 %v995
        %3170 = vmatpush.xpose.msra.mxu0 %v963
        %3171 = vmatpush.xpose.msra.mxu0 %v931
        %3172 = vmatpush.xpose.msra.mxu0 %v899
        %3173 = vmatpush.xpose.msra.mxu0 %v867
        %3174 = vmatpush.xpose.msra.mxu0 %v835
        %3175 = vmatpush.xpose.msra.mxu0 %v803
        %3176 = vmatpush.xpose.msra.mxu0 %v771
        %3177 = vmatpush.xpose.msra.mxu0 %v739
        %3178 = vmatmul.f32.gmra.mxu0 %v195
        %v3179 = vpop.f32.mrf.mxu0
        %v3180 = vadd.f32 %v3160, %v3179
        %3181 = vdwg.mxu0
        %3182 = vmatpush.xpose.msra.mxu0 %v1220
        %3183 = vmatpush.xpose.msra.mxu0 %v1188
        %3184 = vmatpush.xpose.msra.mxu0 %v1156
        %3185 = vmatpush.xpose.msra.mxu0 %v1124
        %3186 = vmatpush.xpose.msra.mxu0 %v1092
        %3187 = vmatpush.xpose.msra.mxu0 %v1060
        %3188 = vmatpush.xpose.msra.mxu0 %v1028
        %3189 = vmatpush.xpose.msra.mxu0 %v996
        %3190 = vmatpush.xpose.msra.mxu0 %v964
        %3191 = vmatpush.xpose.msra.mxu0 %v932
        %3192 = vmatpush.xpose.msra.mxu0 %v900
        %3193 = vmatpush.xpose.msra.mxu0 %v868
        %3194 = vmatpush.xpose.msra.mxu0 %v836
        %3195 = vmatpush.xpose.msra.mxu0 %v804
        %3196 = vmatpush.xpose.msra.mxu0 %v772
        %3197 = vmatpush.xpose.msra.mxu0 %v740
        %3198 = vmatmul.f32.gmra.mxu0 %v196
        %v3199 = vpop.f32.mrf.mxu0
        %v3200 = vadd.f32 %v3180, %v3199
        %3201 = vdwg.mxu0
        %3202 = vmatpush.xpose.msra.mxu0 %v1221
        %3203 = vmatpush.xpose.msra.mxu0 %v1189
        %3204 = vmatpush.xpose.msra.mxu0 %v1157
        %3205 = vmatpush.xpose.msra.mxu0 %v1125
        %3206 = vmatpush.xpose.msra.mxu0 %v1093
        %3207 = vmatpush.xpose.msra.mxu0 %v1061
        %3208 = vmatpush.xpose.msra.mxu0 %v1029
        %3209 = vmatpush.xpose.msra.mxu0 %v997
        %3210 = vmatpush.xpose.msra.mxu0 %v965
        %3211 = vmatpush.xpose.msra.mxu0 %v933
        %3212 = vmatpush.xpose.msra.mxu0 %v901
        %3213 = vmatpush.xpose.msra.mxu0 %v869
        %3214 = vmatpush.xpose.msra.mxu0 %v837
        %3215 = vmatpush.xpose.msra.mxu0 %v805
        %3216 = vmatpush.xpose.msra.mxu0 %v773
        %3217 = vmatpush.xpose.msra.mxu0 %v741
        %3218 = vmatmul.f32.gmra.mxu0 %v197
        %v3219 = vpop.f32.mrf.mxu0
        %v3220 = vadd.f32 %v3200, %v3219
        %3221 = vdwg.mxu0
        %3222 = vmatpush.xpose.msra.mxu0 %v1222
        %3223 = vmatpush.xpose.msra.mxu0 %v1190
        %3224 = vmatpush.xpose.msra.mxu0 %v1158
        %3225 = vmatpush.xpose.msra.mxu0 %v1126
        %3226 = vmatpush.xpose.msra.mxu0 %v1094
        %3227 = vmatpush.xpose.msra.mxu0 %v1062
        %3228 = vmatpush.xpose.msra.mxu0 %v1030
        %3229 = vmatpush.xpose.msra.mxu0 %v998
        %3230 = vmatpush.xpose.msra.mxu0 %v966
        %3231 = vmatpush.xpose.msra.mxu0 %v934
        %3232 = vmatpush.xpose.msra.mxu0 %v902
        %3233 = vmatpush.xpose.msra.mxu0 %v870
        %3234 = vmatpush.xpose.msra.mxu0 %v838
        %3235 = vmatpush.xpose.msra.mxu0 %v806
        %3236 = vmatpush.xpose.msra.mxu0 %v774
        %3237 = vmatpush.xpose.msra.mxu0 %v742
        %3238 = vmatmul.f32.gmra.mxu0 %v198
        %v3239 = vpop.f32.mrf.mxu0
        %v3240 = vadd.f32 %v3220, %v3239
        %3241 = vdwg.mxu0
        %3242 = vmatpush.xpose.msra.mxu0 %v1223
        %3243 = vmatpush.xpose.msra.mxu0 %v1191
        %3244 = vmatpush.xpose.msra.mxu0 %v1159
        %3245 = vmatpush.xpose.msra.mxu0 %v1127
        %3246 = vmatpush.xpose.msra.mxu0 %v1095
        %3247 = vmatpush.xpose.msra.mxu0 %v1063
        %3248 = vmatpush.xpose.msra.mxu0 %v1031
        %3249 = vmatpush.xpose.msra.mxu0 %v999
        %3250 = vmatpush.xpose.msra.mxu0 %v967
        %3251 = vmatpush.xpose.msra.mxu0 %v935
        %3252 = vmatpush.xpose.msra.mxu0 %v903
        %3253 = vmatpush.xpose.msra.mxu0 %v871
        %3254 = vmatpush.xpose.msra.mxu0 %v839
        %3255 = vmatpush.xpose.msra.mxu0 %v807
        %3256 = vmatpush.xpose.msra.mxu0 %v775
        %3257 = vmatpush.xpose.msra.mxu0 %v743
        %3258 = vmatmul.f32.gmra.mxu0 %v199
        %v3259 = vpop.f32.mrf.mxu0
        %v3260 = vadd.f32 %v3240, %v3259
        %3261 = vdwg.mxu0
        %3262 = vmatpush.xpose.msra.mxu0 %v1224
        %3263 = vmatpush.xpose.msra.mxu0 %v1192
        %3264 = vmatpush.xpose.msra.mxu0 %v1160
        %3265 = vmatpush.xpose.msra.mxu0 %v1128
        %3266 = vmatpush.xpose.msra.mxu0 %v1096
        %3267 = vmatpush.xpose.msra.mxu0 %v1064
        %3268 = vmatpush.xpose.msra.mxu0 %v1032
        %3269 = vmatpush.xpose.msra.mxu0 %v1000
        %3270 = vmatpush.xpose.msra.mxu0 %v968
        %3271 = vmatpush.xpose.msra.mxu0 %v936
        %3272 = vmatpush.xpose.msra.mxu0 %v904
        %3273 = vmatpush.xpose.msra.mxu0 %v872
        %3274 = vmatpush.xpose.msra.mxu0 %v840
        %3275 = vmatpush.xpose.msra.mxu0 %v808
        %3276 = vmatpush.xpose.msra.mxu0 %v776
        %3277 = vmatpush.xpose.msra.mxu0 %v744
        %3278 = vmatmul.f32.gmra.mxu0 %v200
        %v3279 = vpop.f32.mrf.mxu0
        %v3280 = vadd.f32 %v3260, %v3279
        %3281 = vdwg.mxu0
        %3282 = vmatpush.xpose.msra.mxu0 %v1225
        %3283 = vmatpush.xpose.msra.mxu0 %v1193
        %3284 = vmatpush.xpose.msra.mxu0 %v1161
        %3285 = vmatpush.xpose.msra.mxu0 %v1129
        %3286 = vmatpush.xpose.msra.mxu0 %v1097
        %3287 = vmatpush.xpose.msra.mxu0 %v1065
        %3288 = vmatpush.xpose.msra.mxu0 %v1033
        %3289 = vmatpush.xpose.msra.mxu0 %v1001
        %3290 = vmatpush.xpose.msra.mxu0 %v969
        %3291 = vmatpush.xpose.msra.mxu0 %v937
        %3292 = vmatpush.xpose.msra.mxu0 %v905
        %3293 = vmatpush.xpose.msra.mxu0 %v873
        %3294 = vmatpush.xpose.msra.mxu0 %v841
        %3295 = vmatpush.xpose.msra.mxu0 %v809
        %3296 = vmatpush.xpose.msra.mxu0 %v777
        %3297 = vmatpush.xpose.msra.mxu0 %v745
        %3298 = vmatmul.f32.gmra.mxu0 %v201
        %v3299 = vpop.f32.mrf.mxu0
        %v3300 = vadd.f32 %v3280, %v3299
        %3301 = vdwg.mxu0
        %3302 = vmatpush.xpose.msra.mxu0 %v1226
        %3303 = vmatpush.xpose.msra.mxu0 %v1194
        %3304 = vmatpush.xpose.msra.mxu0 %v1162
        %3305 = vmatpush.xpose.msra.mxu0 %v1130
        %3306 = vmatpush.xpose.msra.mxu0 %v1098
        %3307 = vmatpush.xpose.msra.mxu0 %v1066
        %3308 = vmatpush.xpose.msra.mxu0 %v1034
        %3309 = vmatpush.xpose.msra.mxu0 %v1002
        %3310 = vmatpush.xpose.msra.mxu0 %v970
        %3311 = vmatpush.xpose.msra.mxu0 %v938
        %3312 = vmatpush.xpose.msra.mxu0 %v906
        %3313 = vmatpush.xpose.msra.mxu0 %v874
        %3314 = vmatpush.xpose.msra.mxu0 %v842
        %3315 = vmatpush.xpose.msra.mxu0 %v810
        %3316 = vmatpush.xpose.msra.mxu0 %v778
        %3317 = vmatpush.xpose.msra.mxu0 %v746
        %3318 = vmatmul.f32.gmra.mxu0 %v202
        %v3319 = vpop.f32.mrf.mxu0
        %v3320 = vadd.f32 %v3300, %v3319
        %3321 = vdwg.mxu0
        %3322 = vmatpush.xpose.msra.mxu0 %v1227
        %3323 = vmatpush.xpose.msra.mxu0 %v1195
        %3324 = vmatpush.xpose.msra.mxu0 %v1163
        %3325 = vmatpush.xpose.msra.mxu0 %v1131
        %3326 = vmatpush.xpose.msra.mxu0 %v1099
        %3327 = vmatpush.xpose.msra.mxu0 %v1067
        %3328 = vmatpush.xpose.msra.mxu0 %v1035
        %3329 = vmatpush.xpose.msra.mxu0 %v1003
        %3330 = vmatpush.xpose.msra.mxu0 %v971
        %3331 = vmatpush.xpose.msra.mxu0 %v939
        %3332 = vmatpush.xpose.msra.mxu0 %v907
        %3333 = vmatpush.xpose.msra.mxu0 %v875
        %3334 = vmatpush.xpose.msra.mxu0 %v843
        %3335 = vmatpush.xpose.msra.mxu0 %v811
        %3336 = vmatpush.xpose.msra.mxu0 %v779
        %3337 = vmatpush.xpose.msra.mxu0 %v747
        %3338 = vmatmul.f32.gmra.mxu0 %v203
        %v3339 = vpop.f32.mrf.mxu0
        %v3340 = vadd.f32 %v3320, %v3339
        %3341 = vdwg.mxu0
        %3342 = vmatpush.xpose.msra.mxu0 %v1228
        %3343 = vmatpush.xpose.msra.mxu0 %v1196
        %3344 = vmatpush.xpose.msra.mxu0 %v1164
        %3345 = vmatpush.xpose.msra.mxu0 %v1132
        %3346 = vmatpush.xpose.msra.mxu0 %v1100
        %3347 = vmatpush.xpose.msra.mxu0 %v1068
        %3348 = vmatpush.xpose.msra.mxu0 %v1036
        %3349 = vmatpush.xpose.msra.mxu0 %v1004
        %3350 = vmatpush.xpose.msra.mxu0 %v972
        %3351 = vmatpush.xpose.msra.mxu0 %v940
        %3352 = vmatpush.xpose.msra.mxu0 %v908
        %3353 = vmatpush.xpose.msra.mxu0 %v876
        %3354 = vmatpush.xpose.msra.mxu0 %v844
        %3355 = vmatpush.xpose.msra.mxu0 %v812
        %3356 = vmatpush.xpose.msra.mxu0 %v780
        %3357 = vmatpush.xpose.msra.mxu0 %v748
        %3358 = vmatmul.f32.gmra.mxu0 %v204
        %v3359 = vpop.f32.mrf.mxu0
        %v3360 = vadd.f32 %v3340, %v3359
        %3361 = vdwg.mxu0
        %3362 = vmatpush.xpose.msra.mxu0 %v1229
        %3363 = vmatpush.xpose.msra.mxu0 %v1197
        %3364 = vmatpush.xpose.msra.mxu0 %v1165
        %3365 = vmatpush.xpose.msra.mxu0 %v1133
        %3366 = vmatpush.xpose.msra.mxu0 %v1101
        %3367 = vmatpush.xpose.msra.mxu0 %v1069
        %3368 = vmatpush.xpose.msra.mxu0 %v1037
        %3369 = vmatpush.xpose.msra.mxu0 %v1005
        %3370 = vmatpush.xpose.msra.mxu0 %v973
        %3371 = vmatpush.xpose.msra.mxu0 %v941
        %3372 = vmatpush.xpose.msra.mxu0 %v909
        %3373 = vmatpush.xpose.msra.mxu0 %v877
        %3374 = vmatpush.xpose.msra.mxu0 %v845
        %3375 = vmatpush.xpose.msra.mxu0 %v813
        %3376 = vmatpush.xpose.msra.mxu0 %v781
        %3377 = vmatpush.xpose.msra.mxu0 %v749
        %3378 = vmatmul.f32.gmra.mxu0 %v205
        %v3379 = vpop.f32.mrf.mxu0
        %v3380 = vadd.f32 %v3360, %v3379
        %3381 = vdwg.mxu0
        %3382 = vmatpush.xpose.msra.mxu0 %v1230
        %3383 = vmatpush.xpose.msra.mxu0 %v1198
        %3384 = vmatpush.xpose.msra.mxu0 %v1166
        %3385 = vmatpush.xpose.msra.mxu0 %v1134
        %3386 = vmatpush.xpose.msra.mxu0 %v1102
        %3387 = vmatpush.xpose.msra.mxu0 %v1070
        %3388 = vmatpush.xpose.msra.mxu0 %v1038
        %3389 = vmatpush.xpose.msra.mxu0 %v1006
        %3390 = vmatpush.xpose.msra.mxu0 %v974
        %3391 = vmatpush.xpose.msra.mxu0 %v942
        %3392 = vmatpush.xpose.msra.mxu0 %v910
        %3393 = vmatpush.xpose.msra.mxu0 %v878
        %3394 = vmatpush.xpose.msra.mxu0 %v846
        %3395 = vmatpush.xpose.msra.mxu0 %v814
        %3396 = vmatpush.xpose.msra.mxu0 %v782
        %3397 = vmatpush.xpose.msra.mxu0 %v750
        %3398 = vmatmul.f32.gmra.mxu0 %v206
        %v3399 = vpop.f32.mrf.mxu0
        %v3400 = vadd.f32 %v3380, %v3399
        %3401 = vdwg.mxu0
        %3402 = vmatpush.xpose.msra.mxu0 %v1231
        %3403 = vmatpush.xpose.msra.mxu0 %v1199
        %3404 = vmatpush.xpose.msra.mxu0 %v1167
        %3405 = vmatpush.xpose.msra.mxu0 %v1135
        %3406 = vmatpush.xpose.msra.mxu0 %v1103
        %3407 = vmatpush.xpose.msra.mxu0 %v1071
        %3408 = vmatpush.xpose.msra.mxu0 %v1039
        %3409 = vmatpush.xpose.msra.mxu0 %v1007
        %3410 = vmatpush.xpose.msra.mxu0 %v975
        %3411 = vmatpush.xpose.msra.mxu0 %v943
        %3412 = vmatpush.xpose.msra.mxu0 %v911
        %3413 = vmatpush.xpose.msra.mxu0 %v879
        %3414 = vmatpush.xpose.msra.mxu0 %v847
        %3415 = vmatpush.xpose.msra.mxu0 %v815
        %3416 = vmatpush.xpose.msra.mxu0 %v783
        %3417 = vmatpush.xpose.msra.mxu0 %v751
        %3418 = vmatmul.f32.gmra.mxu0 %v207
        %v3419 = vpop.f32.mrf.mxu0
        %v3420 = vadd.f32 %v3400, %v3419
        %3421 = vdwg.mxu0
        %3422 = vmatpush.xpose.msra.mxu0 %v1232
        %3423 = vmatpush.xpose.msra.mxu0 %v1200
        %3424 = vmatpush.xpose.msra.mxu0 %v1168
        %3425 = vmatpush.xpose.msra.mxu0 %v1136
        %3426 = vmatpush.xpose.msra.mxu0 %v1104
        %3427 = vmatpush.xpose.msra.mxu0 %v1072
        %3428 = vmatpush.xpose.msra.mxu0 %v1040
        %3429 = vmatpush.xpose.msra.mxu0 %v1008
        %3430 = vmatpush.xpose.msra.mxu0 %v976
        %3431 = vmatpush.xpose.msra.mxu0 %v944
        %3432 = vmatpush.xpose.msra.mxu0 %v912
        %3433 = vmatpush.xpose.msra.mxu0 %v880
        %3434 = vmatpush.xpose.msra.mxu0 %v848
        %3435 = vmatpush.xpose.msra.mxu0 %v816
        %3436 = vmatpush.xpose.msra.mxu0 %v784
        %3437 = vmatpush.xpose.msra.mxu0 %v752
        %3438 = vmatmul.f32.gmra.mxu0 %v208
        %v3439 = vpop.f32.mrf.mxu0
        %v3440 = vadd.f32 %v3420, %v3439
        %3441 = vdwg.mxu0
        %3442 = vmatpush.xpose.msra.mxu0 %v1233
        %3443 = vmatpush.xpose.msra.mxu0 %v1201
        %3444 = vmatpush.xpose.msra.mxu0 %v1169
        %3445 = vmatpush.xpose.msra.mxu0 %v1137
        %3446 = vmatpush.xpose.msra.mxu0 %v1105
        %3447 = vmatpush.xpose.msra.mxu0 %v1073
        %3448 = vmatpush.xpose.msra.mxu0 %v1041
        %3449 = vmatpush.xpose.msra.mxu0 %v1009
        %3450 = vmatpush.xpose.msra.mxu0 %v977
        %3451 = vmatpush.xpose.msra.mxu0 %v945
        %3452 = vmatpush.xpose.msra.mxu0 %v913
        %3453 = vmatpush.xpose.msra.mxu0 %v881
        %3454 = vmatpush.xpose.msra.mxu0 %v849
        %3455 = vmatpush.xpose.msra.mxu0 %v817
        %3456 = vmatpush.xpose.msra.mxu0 %v785
        %3457 = vmatpush.xpose.msra.mxu0 %v753
        %3458 = vmatmul.f32.gmra.mxu0 %v209
        %v3459 = vpop.f32.mrf.mxu0
        %v3460 = vadd.f32 %v3440, %v3459
        %3461 = vdwg.mxu0
        %3462 = vmatpush.xpose.msra.mxu0 %v1234
        %3463 = vmatpush.xpose.msra.mxu0 %v1202
        %3464 = vmatpush.xpose.msra.mxu0 %v1170
        %3465 = vmatpush.xpose.msra.mxu0 %v1138
        %3466 = vmatpush.xpose.msra.mxu0 %v1106
        %3467 = vmatpush.xpose.msra.mxu0 %v1074
        %3468 = vmatpush.xpose.msra.mxu0 %v1042
        %3469 = vmatpush.xpose.msra.mxu0 %v1010
        %3470 = vmatpush.xpose.msra.mxu0 %v978
        %3471 = vmatpush.xpose.msra.mxu0 %v946
        %3472 = vmatpush.xpose.msra.mxu0 %v914
        %3473 = vmatpush.xpose.msra.mxu0 %v882
        %3474 = vmatpush.xpose.msra.mxu0 %v850
        %3475 = vmatpush.xpose.msra.mxu0 %v818
        %3476 = vmatpush.xpose.msra.mxu0 %v786
        %3477 = vmatpush.xpose.msra.mxu0 %v754
        %3478 = vmatmul.f32.gmra.mxu0 %v210
        %v3479 = vpop.f32.mrf.mxu0
        %v3480 = vadd.f32 %v3460, %v3479
        %3481 = vdwg.mxu0
        %3482 = vmatpush.xpose.msra.mxu0 %v1235
        %3483 = vmatpush.xpose.msra.mxu0 %v1203
        %3484 = vmatpush.xpose.msra.mxu0 %v1171
        %3485 = vmatpush.xpose.msra.mxu0 %v1139
        %3486 = vmatpush.xpose.msra.mxu0 %v1107
        %3487 = vmatpush.xpose.msra.mxu0 %v1075
        %3488 = vmatpush.xpose.msra.mxu0 %v1043
        %3489 = vmatpush.xpose.msra.mxu0 %v1011
        %3490 = vmatpush.xpose.msra.mxu0 %v979
        %3491 = vmatpush.xpose.msra.mxu0 %v947
        %3492 = vmatpush.xpose.msra.mxu0 %v915
        %3493 = vmatpush.xpose.msra.mxu0 %v883
        %3494 = vmatpush.xpose.msra.mxu0 %v851
        %3495 = vmatpush.xpose.msra.mxu0 %v819
        %3496 = vmatpush.xpose.msra.mxu0 %v787
        %3497 = vmatpush.xpose.msra.mxu0 %v755
        %3498 = vmatmul.f32.gmra.mxu0 %v211
        %v3499 = vpop.f32.mrf.mxu0
        %v3500 = vadd.f32 %v3480, %v3499
        %3501 = vdwg.mxu0
        %3502 = vmatpush.xpose.msra.mxu0 %v1236
        %3503 = vmatpush.xpose.msra.mxu0 %v1204
        %3504 = vmatpush.xpose.msra.mxu0 %v1172
        %3505 = vmatpush.xpose.msra.mxu0 %v1140
        %3506 = vmatpush.xpose.msra.mxu0 %v1108
        %3507 = vmatpush.xpose.msra.mxu0 %v1076
        %3508 = vmatpush.xpose.msra.mxu0 %v1044
        %3509 = vmatpush.xpose.msra.mxu0 %v1012
        %3510 = vmatpush.xpose.msra.mxu0 %v980
        %3511 = vmatpush.xpose.msra.mxu0 %v948
        %3512 = vmatpush.xpose.msra.mxu0 %v916
        %3513 = vmatpush.xpose.msra.mxu0 %v884
        %3514 = vmatpush.xpose.msra.mxu0 %v852
        %3515 = vmatpush.xpose.msra.mxu0 %v820
        %3516 = vmatpush.xpose.msra.mxu0 %v788
        %3517 = vmatpush.xpose.msra.mxu0 %v756
        %3518 = vmatmul.f32.gmra.mxu0 %v212
        %v3519 = vpop.f32.mrf.mxu0
        %v3520 = vadd.f32 %v3500, %v3519
        %3521 = vdwg.mxu0
        %3522 = vmatpush.xpose.msra.mxu0 %v1237
        %3523 = vmatpush.xpose.msra.mxu0 %v1205
        %3524 = vmatpush.xpose.msra.mxu0 %v1173
        %3525 = vmatpush.xpose.msra.mxu0 %v1141
        %3526 = vmatpush.xpose.msra.mxu0 %v1109
        %3527 = vmatpush.xpose.msra.mxu0 %v1077
        %3528 = vmatpush.xpose.msra.mxu0 %v1045
        %3529 = vmatpush.xpose.msra.mxu0 %v1013
        %3530 = vmatpush.xpose.msra.mxu0 %v981
        %3531 = vmatpush.xpose.msra.mxu0 %v949
        %3532 = vmatpush.xpose.msra.mxu0 %v917
        %3533 = vmatpush.xpose.msra.mxu0 %v885
        %3534 = vmatpush.xpose.msra.mxu0 %v853
        %3535 = vmatpush.xpose.msra.mxu0 %v821
        %3536 = vmatpush.xpose.msra.mxu0 %v789
        %3537 = vmatpush.xpose.msra.mxu0 %v757
        %3538 = vmatmul.f32.gmra.mxu0 %v213
        %v3539 = vpop.f32.mrf.mxu0
        %v3540 = vadd.f32 %v3520, %v3539
        %3541 = vdwg.mxu0
        %3542 = vmatpush.xpose.msra.mxu0 %v1718
        %3543 = vmatpush.xpose.msra.mxu0 %v1686
        %3544 = vmatpush.xpose.msra.mxu0 %v1654
        %3545 = vmatpush.xpose.msra.mxu0 %v1622
        %3546 = vmatpush.xpose.msra.mxu0 %v1590
        %3547 = vmatpush.xpose.msra.mxu0 %v1558
        %3548 = vmatpush.xpose.msra.mxu0 %v1526
        %3549 = vmatpush.xpose.msra.mxu0 %v1494
        %3550 = vmatpush.xpose.msra.mxu0 %v1462
        %3551 = vmatpush.xpose.msra.mxu0 %v1430
        %3552 = vmatpush.xpose.msra.mxu0 %v1398
        %3553 = vmatpush.xpose.msra.mxu0 %v1366
        %3554 = vmatpush.xpose.msra.mxu0 %v1334
        %3555 = vmatpush.xpose.msra.mxu0 %v1302
        %3556 = vmatpush.xpose.msra.mxu0 %v1270
        %3557 = vmatpush.xpose.msra.mxu0 %v1238
        %3558 = vmatmul.f32.gmra.mxu0 %v182
        %v3559 = vpop.f32.mrf.mxu0
        %v3560 = vadd.f32 0.0, %v3559
        %3561 = vdwg.mxu0
        %3562 = vmatpush.xpose.msra.mxu0 %v1719
        %3563 = vmatpush.xpose.msra.mxu0 %v1687
        %3564 = vmatpush.xpose.msra.mxu0 %v1655
        %3565 = vmatpush.xpose.msra.mxu0 %v1623
        %3566 = vmatpush.xpose.msra.mxu0 %v1591
        %3567 = vmatpush.xpose.msra.mxu0 %v1559
        %3568 = vmatpush.xpose.msra.mxu0 %v1527
        %3569 = vmatpush.xpose.msra.mxu0 %v1495
        %3570 = vmatpush.xpose.msra.mxu0 %v1463
        %3571 = vmatpush.xpose.msra.mxu0 %v1431
        %3572 = vmatpush.xpose.msra.mxu0 %v1399
        %3573 = vmatpush.xpose.msra.mxu0 %v1367
        %3574 = vmatpush.xpose.msra.mxu0 %v1335
        %3575 = vmatpush.xpose.msra.mxu0 %v1303
        %3576 = vmatpush.xpose.msra.mxu0 %v1271
        %3577 = vmatpush.xpose.msra.mxu0 %v1239
        %3578 = vmatmul.f32.gmra.mxu0 %v183
        %v3579 = vpop.f32.mrf.mxu0
        %v3580 = vadd.f32 %v3560, %v3579
        %3581 = vdwg.mxu0
        %3582 = vmatpush.xpose.msra.mxu0 %v1720
        %3583 = vmatpush.xpose.msra.mxu0 %v1688
        %3584 = vmatpush.xpose.msra.mxu0 %v1656
        %3585 = vmatpush.xpose.msra.mxu0 %v1624
        %3586 = vmatpush.xpose.msra.mxu0 %v1592
        %3587 = vmatpush.xpose.msra.mxu0 %v1560
        %3588 = vmatpush.xpose.msra.mxu0 %v1528
        %3589 = vmatpush.xpose.msra.mxu0 %v1496
        %3590 = vmatpush.xpose.msra.mxu0 %v1464
        %3591 = vmatpush.xpose.msra.mxu0 %v1432
        %3592 = vmatpush.xpose.msra.mxu0 %v1400
        %3593 = vmatpush.xpose.msra.mxu0 %v1368
        %3594 = vmatpush.xpose.msra.mxu0 %v1336
        %3595 = vmatpush.xpose.msra.mxu0 %v1304
        %3596 = vmatpush.xpose.msra.mxu0 %v1272
        %3597 = vmatpush.xpose.msra.mxu0 %v1240
        %3598 = vmatmul.f32.gmra.mxu0 %v184
        %v3599 = vpop.f32.mrf.mxu0
        %v3600 = vadd.f32 %v3580, %v3599
        %3601 = vdwg.mxu0
        %3602 = vmatpush.xpose.msra.mxu0 %v1721
        %3603 = vmatpush.xpose.msra.mxu0 %v1689
        %3604 = vmatpush.xpose.msra.mxu0 %v1657
        %3605 = vmatpush.xpose.msra.mxu0 %v1625
        %3606 = vmatpush.xpose.msra.mxu0 %v1593
        %3607 = vmatpush.xpose.msra.mxu0 %v1561
        %3608 = vmatpush.xpose.msra.mxu0 %v1529
        %3609 = vmatpush.xpose.msra.mxu0 %v1497
        %3610 = vmatpush.xpose.msra.mxu0 %v1465
        %3611 = vmatpush.xpose.msra.mxu0 %v1433
        %3612 = vmatpush.xpose.msra.mxu0 %v1401
        %3613 = vmatpush.xpose.msra.mxu0 %v1369
        %3614 = vmatpush.xpose.msra.mxu0 %v1337
        %3615 = vmatpush.xpose.msra.mxu0 %v1305
        %3616 = vmatpush.xpose.msra.mxu0 %v1273
        %3617 = vmatpush.xpose.msra.mxu0 %v1241
        %3618 = vmatmul.f32.gmra.mxu0 %v185
        %v3619 = vpop.f32.mrf.mxu0
        %v3620 = vadd.f32 %v3600, %v3619
        %3621 = vdwg.mxu0
        %3622 = vmatpush.xpose.msra.mxu0 %v1722
        %3623 = vmatpush.xpose.msra.mxu0 %v1690
        %3624 = vmatpush.xpose.msra.mxu0 %v1658
        %3625 = vmatpush.xpose.msra.mxu0 %v1626
        %3626 = vmatpush.xpose.msra.mxu0 %v1594
        %3627 = vmatpush.xpose.msra.mxu0 %v1562
        %3628 = vmatpush.xpose.msra.mxu0 %v1530
        %3629 = vmatpush.xpose.msra.mxu0 %v1498
        %3630 = vmatpush.xpose.msra.mxu0 %v1466
        %3631 = vmatpush.xpose.msra.mxu0 %v1434
        %3632 = vmatpush.xpose.msra.mxu0 %v1402
        %3633 = vmatpush.xpose.msra.mxu0 %v1370
        %3634 = vmatpush.xpose.msra.mxu0 %v1338
        %3635 = vmatpush.xpose.msra.mxu0 %v1306
        %3636 = vmatpush.xpose.msra.mxu0 %v1274
        %3637 = vmatpush.xpose.msra.mxu0 %v1242
        %3638 = vmatmul.f32.gmra.mxu0 %v186
        %v3639 = vpop.f32.mrf.mxu0
        %v3640 = vadd.f32 %v3620, %v3639
        %3641 = vdwg.mxu0
        %3642 = vmatpush.xpose.msra.mxu0 %v1723
        %3643 = vmatpush.xpose.msra.mxu0 %v1691
        %3644 = vmatpush.xpose.msra.mxu0 %v1659
        %3645 = vmatpush.xpose.msra.mxu0 %v1627
        %3646 = vmatpush.xpose.msra.mxu0 %v1595
        %3647 = vmatpush.xpose.msra.mxu0 %v1563
        %3648 = vmatpush.xpose.msra.mxu0 %v1531
        %3649 = vmatpush.xpose.msra.mxu0 %v1499
        %3650 = vmatpush.xpose.msra.mxu0 %v1467
        %3651 = vmatpush.xpose.msra.mxu0 %v1435
        %3652 = vmatpush.xpose.msra.mxu0 %v1403
        %3653 = vmatpush.xpose.msra.mxu0 %v1371
        %3654 = vmatpush.xpose.msra.mxu0 %v1339
        %3655 = vmatpush.xpose.msra.mxu0 %v1307
        %3656 = vmatpush.xpose.msra.mxu0 %v1275
        %3657 = vmatpush.xpose.msra.mxu0 %v1243
        %3658 = vmatmul.f32.gmra.mxu0 %v187
        %v3659 = vpop.f32.mrf.mxu0
        %v3660 = vadd.f32 %v3640, %v3659
        %3661 = vdwg.mxu0
        %3662 = vmatpush.xpose.msra.mxu0 %v1724
        %3663 = vmatpush.xpose.msra.mxu0 %v1692
        %3664 = vmatpush.xpose.msra.mxu0 %v1660
        %3665 = vmatpush.xpose.msra.mxu0 %v1628
        %3666 = vmatpush.xpose.msra.mxu0 %v1596
        %3667 = vmatpush.xpose.msra.mxu0 %v1564
        %3668 = vmatpush.xpose.msra.mxu0 %v1532
        %3669 = vmatpush.xpose.msra.mxu0 %v1500
        %3670 = vmatpush.xpose.msra.mxu0 %v1468
        %3671 = vmatpush.xpose.msra.mxu0 %v1436
        %3672 = vmatpush.xpose.msra.mxu0 %v1404
        %3673 = vmatpush.xpose.msra.mxu0 %v1372
        %3674 = vmatpush.xpose.msra.mxu0 %v1340
        %3675 = vmatpush.xpose.msra.mxu0 %v1308
        %3676 = vmatpush.xpose.msra.mxu0 %v1276
        %3677 = vmatpush.xpose.msra.mxu0 %v1244
        %3678 = vmatmul.f32.gmra.mxu0 %v188
        %v3679 = vpop.f32.mrf.mxu0
        %v3680 = vadd.f32 %v3660, %v3679
        %3681 = vdwg.mxu0
        %3682 = vmatpush.xpose.msra.mxu0 %v1725
        %3683 = vmatpush.xpose.msra.mxu0 %v1693
        %3684 = vmatpush.xpose.msra.mxu0 %v1661
        %3685 = vmatpush.xpose.msra.mxu0 %v1629
        %3686 = vmatpush.xpose.msra.mxu0 %v1597
        %3687 = vmatpush.xpose.msra.mxu0 %v1565
        %3688 = vmatpush.xpose.msra.mxu0 %v1533
        %3689 = vmatpush.xpose.msra.mxu0 %v1501
        %3690 = vmatpush.xpose.msra.mxu0 %v1469
        %3691 = vmatpush.xpose.msra.mxu0 %v1437
        %3692 = vmatpush.xpose.msra.mxu0 %v1405
        %3693 = vmatpush.xpose.msra.mxu0 %v1373
        %3694 = vmatpush.xpose.msra.mxu0 %v1341
        %3695 = vmatpush.xpose.msra.mxu0 %v1309
        %3696 = vmatpush.xpose.msra.mxu0 %v1277
        %3697 = vmatpush.xpose.msra.mxu0 %v1245
        %3698 = vmatmul.f32.gmra.mxu0 %v189
        %v3699 = vpop.f32.mrf.mxu0
        %v3700 = vadd.f32 %v3680, %v3699
        %3701 = vdwg.mxu0
        %3702 = vmatpush.xpose.msra.mxu0 %v1726
        %3703 = vmatpush.xpose.msra.mxu0 %v1694
        %3704 = vmatpush.xpose.msra.mxu0 %v1662
        %3705 = vmatpush.xpose.msra.mxu0 %v1630
        %3706 = vmatpush.xpose.msra.mxu0 %v1598
        %3707 = vmatpush.xpose.msra.mxu0 %v1566
        %3708 = vmatpush.xpose.msra.mxu0 %v1534
        %3709 = vmatpush.xpose.msra.mxu0 %v1502
        %3710 = vmatpush.xpose.msra.mxu0 %v1470
        %3711 = vmatpush.xpose.msra.mxu0 %v1438
        %3712 = vmatpush.xpose.msra.mxu0 %v1406
        %3713 = vmatpush.xpose.msra.mxu0 %v1374
        %3714 = vmatpush.xpose.msra.mxu0 %v1342
        %3715 = vmatpush.xpose.msra.mxu0 %v1310
        %3716 = vmatpush.xpose.msra.mxu0 %v1278
        %3717 = vmatpush.xpose.msra.mxu0 %v1246
        %3718 = vmatmul.f32.gmra.mxu0 %v190
        %v3719 = vpop.f32.mrf.mxu0
        %v3720 = vadd.f32 %v3700, %v3719
        %3721 = vdwg.mxu0
        %3722 = vmatpush.xpose.msra.mxu0 %v1727
        %3723 = vmatpush.xpose.msra.mxu0 %v1695
        %3724 = vmatpush.xpose.msra.mxu0 %v1663
        %3725 = vmatpush.xpose.msra.mxu0 %v1631
        %3726 = vmatpush.xpose.msra.mxu0 %v1599
        %3727 = vmatpush.xpose.msra.mxu0 %v1567
        %3728 = vmatpush.xpose.msra.mxu0 %v1535
        %3729 = vmatpush.xpose.msra.mxu0 %v1503
        %3730 = vmatpush.xpose.msra.mxu0 %v1471
        %3731 = vmatpush.xpose.msra.mxu0 %v1439
        %3732 = vmatpush.xpose.msra.mxu0 %v1407
        %3733 = vmatpush.xpose.msra.mxu0 %v1375
        %3734 = vmatpush.xpose.msra.mxu0 %v1343
        %3735 = vmatpush.xpose.msra.mxu0 %v1311
        %3736 = vmatpush.xpose.msra.mxu0 %v1279
        %3737 = vmatpush.xpose.msra.mxu0 %v1247
        %3738 = vmatmul.f32.gmra.mxu0 %v191
        %v3739 = vpop.f32.mrf.mxu0
        %v3740 = vadd.f32 %v3720, %v3739
        %3741 = vdwg.mxu0
        %3742 = vmatpush.xpose.msra.mxu0 %v1728
        %3743 = vmatpush.xpose.msra.mxu0 %v1696
        %3744 = vmatpush.xpose.msra.mxu0 %v1664
        %3745 = vmatpush.xpose.msra.mxu0 %v1632
        %3746 = vmatpush.xpose.msra.mxu0 %v1600
        %3747 = vmatpush.xpose.msra.mxu0 %v1568
        %3748 = vmatpush.xpose.msra.mxu0 %v1536
        %3749 = vmatpush.xpose.msra.mxu0 %v1504
        %3750 = vmatpush.xpose.msra.mxu0 %v1472
        %3751 = vmatpush.xpose.msra.mxu0 %v1440
        %3752 = vmatpush.xpose.msra.mxu0 %v1408
        %3753 = vmatpush.xpose.msra.mxu0 %v1376
        %3754 = vmatpush.xpose.msra.mxu0 %v1344
        %3755 = vmatpush.xpose.msra.mxu0 %v1312
        %3756 = vmatpush.xpose.msra.mxu0 %v1280
        %3757 = vmatpush.xpose.msra.mxu0 %v1248
        %3758 = vmatmul.f32.gmra.mxu0 %v192
        %v3759 = vpop.f32.mrf.mxu0
        %v3760 = vadd.f32 %v3740, %v3759
        %3761 = vdwg.mxu0
        %3762 = vmatpush.xpose.msra.mxu0 %v1729
        %3763 = vmatpush.xpose.msra.mxu0 %v1697
        %3764 = vmatpush.xpose.msra.mxu0 %v1665
        %3765 = vmatpush.xpose.msra.mxu0 %v1633
        %3766 = vmatpush.xpose.msra.mxu0 %v1601
        %3767 = vmatpush.xpose.msra.mxu0 %v1569
        %3768 = vmatpush.xpose.msra.mxu0 %v1537
        %3769 = vmatpush.xpose.msra.mxu0 %v1505
        %3770 = vmatpush.xpose.msra.mxu0 %v1473
        %3771 = vmatpush.xpose.msra.mxu0 %v1441
        %3772 = vmatpush.xpose.msra.mxu0 %v1409
        %3773 = vmatpush.xpose.msra.mxu0 %v1377
        %3774 = vmatpush.xpose.msra.mxu0 %v1345
        %3775 = vmatpush.xpose.msra.mxu0 %v1313
        %3776 = vmatpush.xpose.msra.mxu0 %v1281
        %3777 = vmatpush.xpose.msra.mxu0 %v1249
        %3778 = vmatmul.f32.gmra.mxu0 %v193
        %v3779 = vpop.f32.mrf.mxu0
        %v3780 = vadd.f32 %v3760, %v3779
        %3781 = vdwg.mxu0
        %3782 = vmatpush.xpose.msra.mxu0 %v1730
        %3783 = vmatpush.xpose.msra.mxu0 %v1698
        %3784 = vmatpush.xpose.msra.mxu0 %v1666
        %3785 = vmatpush.xpose.msra.mxu0 %v1634
        %3786 = vmatpush.xpose.msra.mxu0 %v1602
        %3787 = vmatpush.xpose.msra.mxu0 %v1570
        %3788 = vmatpush.xpose.msra.mxu0 %v1538
        %3789 = vmatpush.xpose.msra.mxu0 %v1506
        %3790 = vmatpush.xpose.msra.mxu0 %v1474
        %3791 = vmatpush.xpose.msra.mxu0 %v1442
        %3792 = vmatpush.xpose.msra.mxu0 %v1410
        %3793 = vmatpush.xpose.msra.mxu0 %v1378
        %3794 = vmatpush.xpose.msra.mxu0 %v1346
        %3795 = vmatpush.xpose.msra.mxu0 %v1314
        %3796 = vmatpush.xpose.msra.mxu0 %v1282
        %3797 = vmatpush.xpose.msra.mxu0 %v1250
        %3798 = vmatmul.f32.gmra.mxu0 %v194
        %v3799 = vpop.f32.mrf.mxu0
        %v3800 = vadd.f32 %v3780, %v3799
        %3801 = vdwg.mxu0
        %3802 = vmatpush.xpose.msra.mxu0 %v1731
        %3803 = vmatpush.xpose.msra.mxu0 %v1699
        %3804 = vmatpush.xpose.msra.mxu0 %v1667
        %3805 = vmatpush.xpose.msra.mxu0 %v1635
        %3806 = vmatpush.xpose.msra.mxu0 %v1603
        %3807 = vmatpush.xpose.msra.mxu0 %v1571
        %3808 = vmatpush.xpose.msra.mxu0 %v1539
        %3809 = vmatpush.xpose.msra.mxu0 %v1507
        %3810 = vmatpush.xpose.msra.mxu0 %v1475
        %3811 = vmatpush.xpose.msra.mxu0 %v1443
        %3812 = vmatpush.xpose.msra.mxu0 %v1411
        %3813 = vmatpush.xpose.msra.mxu0 %v1379
        %3814 = vmatpush.xpose.msra.mxu0 %v1347
        %3815 = vmatpush.xpose.msra.mxu0 %v1315
        %3816 = vmatpush.xpose.msra.mxu0 %v1283
        %3817 = vmatpush.xpose.msra.mxu0 %v1251
        %3818 = vmatmul.f32.gmra.mxu0 %v195
        %v3819 = vpop.f32.mrf.mxu0
        %v3820 = vadd.f32 %v3800, %v3819
        %3821 = vdwg.mxu0
        %3822 = vmatpush.xpose.msra.mxu0 %v1732
        %3823 = vmatpush.xpose.msra.mxu0 %v1700
        %3824 = vmatpush.xpose.msra.mxu0 %v1668
        %3825 = vmatpush.xpose.msra.mxu0 %v1636
        %3826 = vmatpush.xpose.msra.mxu0 %v1604
        %3827 = vmatpush.xpose.msra.mxu0 %v1572
        %3828 = vmatpush.xpose.msra.mxu0 %v1540
        %3829 = vmatpush.xpose.msra.mxu0 %v1508
        %3830 = vmatpush.xpose.msra.mxu0 %v1476
        %3831 = vmatpush.xpose.msra.mxu0 %v1444
        %3832 = vmatpush.xpose.msra.mxu0 %v1412
        %3833 = vmatpush.xpose.msra.mxu0 %v1380
        %3834 = vmatpush.xpose.msra.mxu0 %v1348
        %3835 = vmatpush.xpose.msra.mxu0 %v1316
        %3836 = vmatpush.xpose.msra.mxu0 %v1284
        %3837 = vmatpush.xpose.msra.mxu0 %v1252
        %3838 = vmatmul.f32.gmra.mxu0 %v196
        %v3839 = vpop.f32.mrf.mxu0
        %v3840 = vadd.f32 %v3820, %v3839
        %3841 = vdwg.mxu0
        %3842 = vmatpush.xpose.msra.mxu0 %v1733
        %3843 = vmatpush.xpose.msra.mxu0 %v1701
        %3844 = vmatpush.xpose.msra.mxu0 %v1669
        %3845 = vmatpush.xpose.msra.mxu0 %v1637
        %3846 = vmatpush.xpose.msra.mxu0 %v1605
        %3847 = vmatpush.xpose.msra.mxu0 %v1573
        %3848 = vmatpush.xpose.msra.mxu0 %v1541
        %3849 = vmatpush.xpose.msra.mxu0 %v1509
        %3850 = vmatpush.xpose.msra.mxu0 %v1477
        %3851 = vmatpush.xpose.msra.mxu0 %v1445
        %3852 = vmatpush.xpose.msra.mxu0 %v1413
        %3853 = vmatpush.xpose.msra.mxu0 %v1381
        %3854 = vmatpush.xpose.msra.mxu0 %v1349
        %3855 = vmatpush.xpose.msra.mxu0 %v1317
        %3856 = vmatpush.xpose.msra.mxu0 %v1285
        %3857 = vmatpush.xpose.msra.mxu0 %v1253
        %3858 = vmatmul.f32.gmra.mxu0 %v197
        %v3859 = vpop.f32.mrf.mxu0
        %v3860 = vadd.f32 %v3840, %v3859
        %3861 = vdwg.mxu0
        %3862 = vmatpush.xpose.msra.mxu0 %v1734
        %3863 = vmatpush.xpose.msra.mxu0 %v1702
        %3864 = vmatpush.xpose.msra.mxu0 %v1670
        %3865 = vmatpush.xpose.msra.mxu0 %v1638
        %3866 = vmatpush.xpose.msra.mxu0 %v1606
        %3867 = vmatpush.xpose.msra.mxu0 %v1574
        %3868 = vmatpush.xpose.msra.mxu0 %v1542
        %3869 = vmatpush.xpose.msra.mxu0 %v1510
        %3870 = vmatpush.xpose.msra.mxu0 %v1478
        %3871 = vmatpush.xpose.msra.mxu0 %v1446
        %3872 = vmatpush.xpose.msra.mxu0 %v1414
        %3873 = vmatpush.xpose.msra.mxu0 %v1382
        %3874 = vmatpush.xpose.msra.mxu0 %v1350
        %3875 = vmatpush.xpose.msra.mxu0 %v1318
        %3876 = vmatpush.xpose.msra.mxu0 %v1286
        %3877 = vmatpush.xpose.msra.mxu0 %v1254
        %3878 = vmatmul.f32.gmra.mxu0 %v198
        %v3879 = vpop.f32.mrf.mxu0
        %v3880 = vadd.f32 %v3860, %v3879
        %3881 = vdwg.mxu0
        %3882 = vmatpush.xpose.msra.mxu0 %v1735
        %3883 = vmatpush.xpose.msra.mxu0 %v1703
        %3884 = vmatpush.xpose.msra.mxu0 %v1671
        %3885 = vmatpush.xpose.msra.mxu0 %v1639
        %3886 = vmatpush.xpose.msra.mxu0 %v1607
        %3887 = vmatpush.xpose.msra.mxu0 %v1575
        %3888 = vmatpush.xpose.msra.mxu0 %v1543
        %3889 = vmatpush.xpose.msra.mxu0 %v1511
        %3890 = vmatpush.xpose.msra.mxu0 %v1479
        %3891 = vmatpush.xpose.msra.mxu0 %v1447
        %3892 = vmatpush.xpose.msra.mxu0 %v1415
        %3893 = vmatpush.xpose.msra.mxu0 %v1383
        %3894 = vmatpush.xpose.msra.mxu0 %v1351
        %3895 = vmatpush.xpose.msra.mxu0 %v1319
        %3896 = vmatpush.xpose.msra.mxu0 %v1287
        %3897 = vmatpush.xpose.msra.mxu0 %v1255
        %3898 = vmatmul.f32.gmra.mxu0 %v199
        %v3899 = vpop.f32.mrf.mxu0
        %v3900 = vadd.f32 %v3880, %v3899
        %3901 = vdwg.mxu0
        %3902 = vmatpush.xpose.msra.mxu0 %v1736
        %3903 = vmatpush.xpose.msra.mxu0 %v1704
        %3904 = vmatpush.xpose.msra.mxu0 %v1672
        %3905 = vmatpush.xpose.msra.mxu0 %v1640
        %3906 = vmatpush.xpose.msra.mxu0 %v1608
        %3907 = vmatpush.xpose.msra.mxu0 %v1576
        %3908 = vmatpush.xpose.msra.mxu0 %v1544
        %3909 = vmatpush.xpose.msra.mxu0 %v1512
        %3910 = vmatpush.xpose.msra.mxu0 %v1480
        %3911 = vmatpush.xpose.msra.mxu0 %v1448
        %3912 = vmatpush.xpose.msra.mxu0 %v1416
        %3913 = vmatpush.xpose.msra.mxu0 %v1384
        %3914 = vmatpush.xpose.msra.mxu0 %v1352
        %3915 = vmatpush.xpose.msra.mxu0 %v1320
        %3916 = vmatpush.xpose.msra.mxu0 %v1288
        %3917 = vmatpush.xpose.msra.mxu0 %v1256
        %3918 = vmatmul.f32.gmra.mxu0 %v200
        %v3919 = vpop.f32.mrf.mxu0
        %v3920 = vadd.f32 %v3900, %v3919
        %3921 = vdwg.mxu0
        %3922 = vmatpush.xpose.msra.mxu0 %v1737
        %3923 = vmatpush.xpose.msra.mxu0 %v1705
        %3924 = vmatpush.xpose.msra.mxu0 %v1673
        %3925 = vmatpush.xpose.msra.mxu0 %v1641
        %3926 = vmatpush.xpose.msra.mxu0 %v1609
        %3927 = vmatpush.xpose.msra.mxu0 %v1577
        %3928 = vmatpush.xpose.msra.mxu0 %v1545
        %3929 = vmatpush.xpose.msra.mxu0 %v1513
        %3930 = vmatpush.xpose.msra.mxu0 %v1481
        %3931 = vmatpush.xpose.msra.mxu0 %v1449
        %3932 = vmatpush.xpose.msra.mxu0 %v1417
        %3933 = vmatpush.xpose.msra.mxu0 %v1385
        %3934 = vmatpush.xpose.msra.mxu0 %v1353
        %3935 = vmatpush.xpose.msra.mxu0 %v1321
        %3936 = vmatpush.xpose.msra.mxu0 %v1289
        %3937 = vmatpush.xpose.msra.mxu0 %v1257
        %3938 = vmatmul.f32.gmra.mxu0 %v201
        %v3939 = vpop.f32.mrf.mxu0
        %v3940 = vadd.f32 %v3920, %v3939
        %3941 = vdwg.mxu0
        %3942 = vmatpush.xpose.msra.mxu0 %v1738
        %3943 = vmatpush.xpose.msra.mxu0 %v1706
        %3944 = vmatpush.xpose.msra.mxu0 %v1674
        %3945 = vmatpush.xpose.msra.mxu0 %v1642
        %3946 = vmatpush.xpose.msra.mxu0 %v1610
        %3947 = vmatpush.xpose.msra.mxu0 %v1578
        %3948 = vmatpush.xpose.msra.mxu0 %v1546
        %3949 = vmatpush.xpose.msra.mxu0 %v1514
        %3950 = vmatpush.xpose.msra.mxu0 %v1482
        %3951 = vmatpush.xpose.msra.mxu0 %v1450
        %3952 = vmatpush.xpose.msra.mxu0 %v1418
        %3953 = vmatpush.xpose.msra.mxu0 %v1386
        %3954 = vmatpush.xpose.msra.mxu0 %v1354
        %3955 = vmatpush.xpose.msra.mxu0 %v1322
        %3956 = vmatpush.xpose.msra.mxu0 %v1290
        %3957 = vmatpush.xpose.msra.mxu0 %v1258
        %3958 = vmatmul.f32.gmra.mxu0 %v202
        %v3959 = vpop.f32.mrf.mxu0
        %v3960 = vadd.f32 %v3940, %v3959
        %3961 = vdwg.mxu0
        %3962 = vmatpush.xpose.msra.mxu0 %v1739
        %3963 = vmatpush.xpose.msra.mxu0 %v1707
        %3964 = vmatpush.xpose.msra.mxu0 %v1675
        %3965 = vmatpush.xpose.msra.mxu0 %v1643
        %3966 = vmatpush.xpose.msra.mxu0 %v1611
        %3967 = vmatpush.xpose.msra.mxu0 %v1579
        %3968 = vmatpush.xpose.msra.mxu0 %v1547
        %3969 = vmatpush.xpose.msra.mxu0 %v1515
        %3970 = vmatpush.xpose.msra.mxu0 %v1483
        %3971 = vmatpush.xpose.msra.mxu0 %v1451
        %3972 = vmatpush.xpose.msra.mxu0 %v1419
        %3973 = vmatpush.xpose.msra.mxu0 %v1387
        %3974 = vmatpush.xpose.msra.mxu0 %v1355
        %3975 = vmatpush.xpose.msra.mxu0 %v1323
        %3976 = vmatpush.xpose.msra.mxu0 %v1291
        %3977 = vmatpush.xpose.msra.mxu0 %v1259
        %3978 = vmatmul.f32.gmra.mxu0 %v203
        %v3979 = vpop.f32.mrf.mxu0
        %v3980 = vadd.f32 %v3960, %v3979
        %3981 = vdwg.mxu0
        %3982 = vmatpush.xpose.msra.mxu0 %v1740
        %3983 = vmatpush.xpose.msra.mxu0 %v1708
        %3984 = vmatpush.xpose.msra.mxu0 %v1676
        %3985 = vmatpush.xpose.msra.mxu0 %v1644
        %3986 = vmatpush.xpose.msra.mxu0 %v1612
        %3987 = vmatpush.xpose.msra.mxu0 %v1580
        %3988 = vmatpush.xpose.msra.mxu0 %v1548
        %3989 = vmatpush.xpose.msra.mxu0 %v1516
        %3990 = vmatpush.xpose.msra.mxu0 %v1484
        %3991 = vmatpush.xpose.msra.mxu0 %v1452
        %3992 = vmatpush.xpose.msra.mxu0 %v1420
        %3993 = vmatpush.xpose.msra.mxu0 %v1388
        %3994 = vmatpush.xpose.msra.mxu0 %v1356
        %3995 = vmatpush.xpose.msra.mxu0 %v1324
        %3996 = vmatpush.xpose.msra.mxu0 %v1292
        %3997 = vmatpush.xpose.msra.mxu0 %v1260
        %3998 = vmatmul.f32.gmra.mxu0 %v204
        %v3999 = vpop.f32.mrf.mxu0
        %v4000 = vadd.f32 %v3980, %v3999
        %4001 = vdwg.mxu0
        %4002 = vmatpush.xpose.msra.mxu0 %v1741
        %4003 = vmatpush.xpose.msra.mxu0 %v1709
        %4004 = vmatpush.xpose.msra.mxu0 %v1677
        %4005 = vmatpush.xpose.msra.mxu0 %v1645
        %4006 = vmatpush.xpose.msra.mxu0 %v1613
        %4007 = vmatpush.xpose.msra.mxu0 %v1581
        %4008 = vmatpush.xpose.msra.mxu0 %v1549
        %4009 = vmatpush.xpose.msra.mxu0 %v1517
        %4010 = vmatpush.xpose.msra.mxu0 %v1485
        %4011 = vmatpush.xpose.msra.mxu0 %v1453
        %4012 = vmatpush.xpose.msra.mxu0 %v1421
        %4013 = vmatpush.xpose.msra.mxu0 %v1389
        %4014 = vmatpush.xpose.msra.mxu0 %v1357
        %4015 = vmatpush.xpose.msra.mxu0 %v1325
        %4016 = vmatpush.xpose.msra.mxu0 %v1293
        %4017 = vmatpush.xpose.msra.mxu0 %v1261
        %4018 = vmatmul.f32.gmra.mxu0 %v205
        %v4019 = vpop.f32.mrf.mxu0
        %v4020 = vadd.f32 %v4000, %v4019
        %4021 = vdwg.mxu0
        %4022 = vmatpush.xpose.msra.mxu0 %v1742
        %4023 = vmatpush.xpose.msra.mxu0 %v1710
        %4024 = vmatpush.xpose.msra.mxu0 %v1678
        %4025 = vmatpush.xpose.msra.mxu0 %v1646
        %4026 = vmatpush.xpose.msra.mxu0 %v1614
        %4027 = vmatpush.xpose.msra.mxu0 %v1582
        %4028 = vmatpush.xpose.msra.mxu0 %v1550
        %4029 = vmatpush.xpose.msra.mxu0 %v1518
        %4030 = vmatpush.xpose.msra.mxu0 %v1486
        %4031 = vmatpush.xpose.msra.mxu0 %v1454
        %4032 = vmatpush.xpose.msra.mxu0 %v1422
        %4033 = vmatpush.xpose.msra.mxu0 %v1390
        %4034 = vmatpush.xpose.msra.mxu0 %v1358
        %4035 = vmatpush.xpose.msra.mxu0 %v1326
        %4036 = vmatpush.xpose.msra.mxu0 %v1294
        %4037 = vmatpush.xpose.msra.mxu0 %v1262
        %4038 = vmatmul.f32.gmra.mxu0 %v206
        %v4039 = vpop.f32.mrf.mxu0
        %v4040 = vadd.f32 %v4020, %v4039
        %4041 = vdwg.mxu0
        %4042 = vmatpush.xpose.msra.mxu0 %v1743
        %4043 = vmatpush.xpose.msra.mxu0 %v1711
        %4044 = vmatpush.xpose.msra.mxu0 %v1679
        %4045 = vmatpush.xpose.msra.mxu0 %v1647
        %4046 = vmatpush.xpose.msra.mxu0 %v1615
        %4047 = vmatpush.xpose.msra.mxu0 %v1583
        %4048 = vmatpush.xpose.msra.mxu0 %v1551
        %4049 = vmatpush.xpose.msra.mxu0 %v1519
        %4050 = vmatpush.xpose.msra.mxu0 %v1487
        %4051 = vmatpush.xpose.msra.mxu0 %v1455
        %4052 = vmatpush.xpose.msra.mxu0 %v1423
        %4053 = vmatpush.xpose.msra.mxu0 %v1391
        %4054 = vmatpush.xpose.msra.mxu0 %v1359
        %4055 = vmatpush.xpose.msra.mxu0 %v1327
        %4056 = vmatpush.xpose.msra.mxu0 %v1295
        %4057 = vmatpush.xpose.msra.mxu0 %v1263
        %4058 = vmatmul.f32.gmra.mxu0 %v207
        %v4059 = vpop.f32.mrf.mxu0
        %v4060 = vadd.f32 %v4040, %v4059
        %4061 = vdwg.mxu0
        %4062 = vmatpush.xpose.msra.mxu0 %v1744
        %4063 = vmatpush.xpose.msra.mxu0 %v1712
        %4064 = vmatpush.xpose.msra.mxu0 %v1680
        %4065 = vmatpush.xpose.msra.mxu0 %v1648
        %4066 = vmatpush.xpose.msra.mxu0 %v1616
        %4067 = vmatpush.xpose.msra.mxu0 %v1584
        %4068 = vmatpush.xpose.msra.mxu0 %v1552
        %4069 = vmatpush.xpose.msra.mxu0 %v1520
        %4070 = vmatpush.xpose.msra.mxu0 %v1488
        %4071 = vmatpush.xpose.msra.mxu0 %v1456
        %4072 = vmatpush.xpose.msra.mxu0 %v1424
        %4073 = vmatpush.xpose.msra.mxu0 %v1392
        %4074 = vmatpush.xpose.msra.mxu0 %v1360
        %4075 = vmatpush.xpose.msra.mxu0 %v1328
        %4076 = vmatpush.xpose.msra.mxu0 %v1296
        %4077 = vmatpush.xpose.msra.mxu0 %v1264
        %4078 = vmatmul.f32.gmra.mxu0 %v208
        %v4079 = vpop.f32.mrf.mxu0
        %v4080 = vadd.f32 %v4060, %v4079
        %4081 = vdwg.mxu0
        %4082 = vmatpush.xpose.msra.mxu0 %v1745
        %4083 = vmatpush.xpose.msra.mxu0 %v1713
        %4084 = vmatpush.xpose.msra.mxu0 %v1681
        %4085 = vmatpush.xpose.msra.mxu0 %v1649
        %4086 = vmatpush.xpose.msra.mxu0 %v1617
        %4087 = vmatpush.xpose.msra.mxu0 %v1585
        %4088 = vmatpush.xpose.msra.mxu0 %v1553
        %4089 = vmatpush.xpose.msra.mxu0 %v1521
        %4090 = vmatpush.xpose.msra.mxu0 %v1489
        %4091 = vmatpush.xpose.msra.mxu0 %v1457
        %4092 = vmatpush.xpose.msra.mxu0 %v1425
        %4093 = vmatpush.xpose.msra.mxu0 %v1393
        %4094 = vmatpush.xpose.msra.mxu0 %v1361
        %4095 = vmatpush.xpose.msra.mxu0 %v1329
        %4096 = vmatpush.xpose.msra.mxu0 %v1297
        %4097 = vmatpush.xpose.msra.mxu0 %v1265
        %4098 = vmatmul.f32.gmra.mxu0 %v209
        %v4099 = vpop.f32.mrf.mxu0
        %v4100 = vadd.f32 %v4080, %v4099
        %4101 = vdwg.mxu0
        %4102 = vmatpush.xpose.msra.mxu0 %v1746
        %4103 = vmatpush.xpose.msra.mxu0 %v1714
        %4104 = vmatpush.xpose.msra.mxu0 %v1682
        %4105 = vmatpush.xpose.msra.mxu0 %v1650
        %4106 = vmatpush.xpose.msra.mxu0 %v1618
        %4107 = vmatpush.xpose.msra.mxu0 %v1586
        %4108 = vmatpush.xpose.msra.mxu0 %v1554
        %4109 = vmatpush.xpose.msra.mxu0 %v1522
        %4110 = vmatpush.xpose.msra.mxu0 %v1490
        %4111 = vmatpush.xpose.msra.mxu0 %v1458
        %4112 = vmatpush.xpose.msra.mxu0 %v1426
        %4113 = vmatpush.xpose.msra.mxu0 %v1394
        %4114 = vmatpush.xpose.msra.mxu0 %v1362
        %4115 = vmatpush.xpose.msra.mxu0 %v1330
        %4116 = vmatpush.xpose.msra.mxu0 %v1298
        %4117 = vmatpush.xpose.msra.mxu0 %v1266
        %4118 = vmatmul.f32.gmra.mxu0 %v210
        %v4119 = vpop.f32.mrf.mxu0
        %v4120 = vadd.f32 %v4100, %v4119
        %4121 = vdwg.mxu0
        %4122 = vmatpush.xpose.msra.mxu0 %v1747
        %4123 = vmatpush.xpose.msra.mxu0 %v1715
        %4124 = vmatpush.xpose.msra.mxu0 %v1683
        %4125 = vmatpush.xpose.msra.mxu0 %v1651
        %4126 = vmatpush.xpose.msra.mxu0 %v1619
        %4127 = vmatpush.xpose.msra.mxu0 %v1587
        %4128 = vmatpush.xpose.msra.mxu0 %v1555
        %4129 = vmatpush.xpose.msra.mxu0 %v1523
        %4130 = vmatpush.xpose.msra.mxu0 %v1491
        %4131 = vmatpush.xpose.msra.mxu0 %v1459
        %4132 = vmatpush.xpose.msra.mxu0 %v1427
        %4133 = vmatpush.xpose.msra.mxu0 %v1395
        %4134 = vmatpush.xpose.msra.mxu0 %v1363
        %4135 = vmatpush.xpose.msra.mxu0 %v1331
        %4136 = vmatpush.xpose.msra.mxu0 %v1299
        %4137 = vmatpush.xpose.msra.mxu0 %v1267
        %4138 = vmatmul.f32.gmra.mxu0 %v211
        %v4139 = vpop.f32.mrf.mxu0
        %v4140 = vadd.f32 %v4120, %v4139
        %4141 = vdwg.mxu0
        %4142 = vmatpush.xpose.msra.mxu0 %v1748
        %4143 = vmatpush.xpose.msra.mxu0 %v1716
        %4144 = vmatpush.xpose.msra.mxu0 %v1684
        %4145 = vmatpush.xpose.msra.mxu0 %v1652
        %4146 = vmatpush.xpose.msra.mxu0 %v1620
        %4147 = vmatpush.xpose.msra.mxu0 %v1588
        %4148 = vmatpush.xpose.msra.mxu0 %v1556
        %4149 = vmatpush.xpose.msra.mxu0 %v1524
        %4150 = vmatpush.xpose.msra.mxu0 %v1492
        %4151 = vmatpush.xpose.msra.mxu0 %v1460
        %4152 = vmatpush.xpose.msra.mxu0 %v1428
        %4153 = vmatpush.xpose.msra.mxu0 %v1396
        %4154 = vmatpush.xpose.msra.mxu0 %v1364
        %4155 = vmatpush.xpose.msra.mxu0 %v1332
        %4156 = vmatpush.xpose.msra.mxu0 %v1300
        %4157 = vmatpush.xpose.msra.mxu0 %v1268
        %4158 = vmatmul.f32.gmra.mxu0 %v212
        %v4159 = vpop.f32.mrf.mxu0
        %v4160 = vadd.f32 %v4140, %v4159
        %4161 = vdwg.mxu0
        %4162 = vmatpush.xpose.msra.mxu0 %v1749
        %4163 = vmatpush.xpose.msra.mxu0 %v1717
        %4164 = vmatpush.xpose.msra.mxu0 %v1685
        %4165 = vmatpush.xpose.msra.mxu0 %v1653
        %4166 = vmatpush.xpose.msra.mxu0 %v1621
        %4167 = vmatpush.xpose.msra.mxu0 %v1589
        %4168 = vmatpush.xpose.msra.mxu0 %v1557
        %4169 = vmatpush.xpose.msra.mxu0 %v1525
        %4170 = vmatpush.xpose.msra.mxu0 %v1493
        %4171 = vmatpush.xpose.msra.mxu0 %v1461
        %4172 = vmatpush.xpose.msra.mxu0 %v1429
        %4173 = vmatpush.xpose.msra.mxu0 %v1397
        %4174 = vmatpush.xpose.msra.mxu0 %v1365
        %4175 = vmatpush.xpose.msra.mxu0 %v1333
        %4176 = vmatpush.xpose.msra.mxu0 %v1301
        %4177 = vmatpush.xpose.msra.mxu0 %v1269
        %4178 = vmatmul.f32.gmra.mxu0 %v213
        %v4179 = vpop.f32.mrf.mxu0
        %v4180 = vadd.f32 %v4160, %v4179
        %4181 = vdwg.mxu0
        %4182 = vmatpush.xpose.msra.mxu0 %v2230
        %4183 = vmatpush.xpose.msra.mxu0 %v2198
        %4184 = vmatpush.xpose.msra.mxu0 %v2166
        %4185 = vmatpush.xpose.msra.mxu0 %v2134
        %4186 = vmatpush.xpose.msra.mxu0 %v2102
        %4187 = vmatpush.xpose.msra.mxu0 %v2070
        %4188 = vmatpush.xpose.msra.mxu0 %v2038
        %4189 = vmatpush.xpose.msra.mxu0 %v2006
        %4190 = vmatpush.xpose.msra.mxu0 %v1974
        %4191 = vmatpush.xpose.msra.mxu0 %v1942
        %4192 = vmatpush.xpose.msra.mxu0 %v1910
        %4193 = vmatpush.xpose.msra.mxu0 %v1878
        %4194 = vmatpush.xpose.msra.mxu0 %v1846
        %4195 = vmatpush.xpose.msra.mxu0 %v1814
        %4196 = vmatpush.xpose.msra.mxu0 %v1782
        %4197 = vmatpush.xpose.msra.mxu0 %v1750
        %4198 = vmatmul.f32.gmra.mxu0 %v182
        %v4199 = vpop.f32.mrf.mxu0
        %v4200 = vadd.f32 0.0, %v4199
        %4201 = vdwg.mxu0
        %4202 = vmatpush.xpose.msra.mxu0 %v2231
        %4203 = vmatpush.xpose.msra.mxu0 %v2199
        %4204 = vmatpush.xpose.msra.mxu0 %v2167
        %4205 = vmatpush.xpose.msra.mxu0 %v2135
        %4206 = vmatpush.xpose.msra.mxu0 %v2103
        %4207 = vmatpush.xpose.msra.mxu0 %v2071
        %4208 = vmatpush.xpose.msra.mxu0 %v2039
        %4209 = vmatpush.xpose.msra.mxu0 %v2007
        %4210 = vmatpush.xpose.msra.mxu0 %v1975
        %4211 = vmatpush.xpose.msra.mxu0 %v1943
        %4212 = vmatpush.xpose.msra.mxu0 %v1911
        %4213 = vmatpush.xpose.msra.mxu0 %v1879
        %4214 = vmatpush.xpose.msra.mxu0 %v1847
        %4215 = vmatpush.xpose.msra.mxu0 %v1815
        %4216 = vmatpush.xpose.msra.mxu0 %v1783
        %4217 = vmatpush.xpose.msra.mxu0 %v1751
        %4218 = vmatmul.f32.gmra.mxu0 %v183
        %v4219 = vpop.f32.mrf.mxu0
        %v4220 = vadd.f32 %v4200, %v4219
        %4221 = vdwg.mxu0
        %4222 = vmatpush.xpose.msra.mxu0 %v2232
        %4223 = vmatpush.xpose.msra.mxu0 %v2200
        %4224 = vmatpush.xpose.msra.mxu0 %v2168
        %4225 = vmatpush.xpose.msra.mxu0 %v2136
        %4226 = vmatpush.xpose.msra.mxu0 %v2104
        %4227 = vmatpush.xpose.msra.mxu0 %v2072
        %4228 = vmatpush.xpose.msra.mxu0 %v2040
        %4229 = vmatpush.xpose.msra.mxu0 %v2008
        %4230 = vmatpush.xpose.msra.mxu0 %v1976
        %4231 = vmatpush.xpose.msra.mxu0 %v1944
        %4232 = vmatpush.xpose.msra.mxu0 %v1912
        %4233 = vmatpush.xpose.msra.mxu0 %v1880
        %4234 = vmatpush.xpose.msra.mxu0 %v1848
        %4235 = vmatpush.xpose.msra.mxu0 %v1816
        %4236 = vmatpush.xpose.msra.mxu0 %v1784
        %4237 = vmatpush.xpose.msra.mxu0 %v1752
        %4238 = vmatmul.f32.gmra.mxu0 %v184
        %v4239 = vpop.f32.mrf.mxu0
        %v4240 = vadd.f32 %v4220, %v4239
        %4241 = vdwg.mxu0
        %4242 = vmatpush.xpose.msra.mxu0 %v2233
        %4243 = vmatpush.xpose.msra.mxu0 %v2201
        %4244 = vmatpush.xpose.msra.mxu0 %v2169
        %4245 = vmatpush.xpose.msra.mxu0 %v2137
        %4246 = vmatpush.xpose.msra.mxu0 %v2105
        %4247 = vmatpush.xpose.msra.mxu0 %v2073
        %4248 = vmatpush.xpose.msra.mxu0 %v2041
        %4249 = vmatpush.xpose.msra.mxu0 %v2009
        %4250 = vmatpush.xpose.msra.mxu0 %v1977
        %4251 = vmatpush.xpose.msra.mxu0 %v1945
        %4252 = vmatpush.xpose.msra.mxu0 %v1913
        %4253 = vmatpush.xpose.msra.mxu0 %v1881
        %4254 = vmatpush.xpose.msra.mxu0 %v1849
        %4255 = vmatpush.xpose.msra.mxu0 %v1817
        %4256 = vmatpush.xpose.msra.mxu0 %v1785
        %4257 = vmatpush.xpose.msra.mxu0 %v1753
        %4258 = vmatmul.f32.gmra.mxu0 %v185
        %v4259 = vpop.f32.mrf.mxu0
        %v4260 = vadd.f32 %v4240, %v4259
        %4261 = vdwg.mxu0
        %4262 = vmatpush.xpose.msra.mxu0 %v2234
        %4263 = vmatpush.xpose.msra.mxu0 %v2202
        %4264 = vmatpush.xpose.msra.mxu0 %v2170
        %4265 = vmatpush.xpose.msra.mxu0 %v2138
        %4266 = vmatpush.xpose.msra.mxu0 %v2106
        %4267 = vmatpush.xpose.msra.mxu0 %v2074
        %4268 = vmatpush.xpose.msra.mxu0 %v2042
        %4269 = vmatpush.xpose.msra.mxu0 %v2010
        %4270 = vmatpush.xpose.msra.mxu0 %v1978
        %4271 = vmatpush.xpose.msra.mxu0 %v1946
        %4272 = vmatpush.xpose.msra.mxu0 %v1914
        %4273 = vmatpush.xpose.msra.mxu0 %v1882
        %4274 = vmatpush.xpose.msra.mxu0 %v1850
        %4275 = vmatpush.xpose.msra.mxu0 %v1818
        %4276 = vmatpush.xpose.msra.mxu0 %v1786
        %4277 = vmatpush.xpose.msra.mxu0 %v1754
        %4278 = vmatmul.f32.gmra.mxu0 %v186
        %v4279 = vpop.f32.mrf.mxu0
        %v4280 = vadd.f32 %v4260, %v4279
        %4281 = vdwg.mxu0
        %4282 = vmatpush.xpose.msra.mxu0 %v2235
        %4283 = vmatpush.xpose.msra.mxu0 %v2203
        %4284 = vmatpush.xpose.msra.mxu0 %v2171
        %4285 = vmatpush.xpose.msra.mxu0 %v2139
        %4286 = vmatpush.xpose.msra.mxu0 %v2107
        %4287 = vmatpush.xpose.msra.mxu0 %v2075
        %4288 = vmatpush.xpose.msra.mxu0 %v2043
        %4289 = vmatpush.xpose.msra.mxu0 %v2011
        %4290 = vmatpush.xpose.msra.mxu0 %v1979
        %4291 = vmatpush.xpose.msra.mxu0 %v1947
        %4292 = vmatpush.xpose.msra.mxu0 %v1915
        %4293 = vmatpush.xpose.msra.mxu0 %v1883
        %4294 = vmatpush.xpose.msra.mxu0 %v1851
        %4295 = vmatpush.xpose.msra.mxu0 %v1819
        %4296 = vmatpush.xpose.msra.mxu0 %v1787
        %4297 = vmatpush.xpose.msra.mxu0 %v1755
        %4298 = vmatmul.f32.gmra.mxu0 %v187
        %v4299 = vpop.f32.mrf.mxu0
        %v4300 = vadd.f32 %v4280, %v4299
        %4301 = vdwg.mxu0
        %4302 = vmatpush.xpose.msra.mxu0 %v2236
        %4303 = vmatpush.xpose.msra.mxu0 %v2204
        %4304 = vmatpush.xpose.msra.mxu0 %v2172
        %4305 = vmatpush.xpose.msra.mxu0 %v2140
        %4306 = vmatpush.xpose.msra.mxu0 %v2108
        %4307 = vmatpush.xpose.msra.mxu0 %v2076
        %4308 = vmatpush.xpose.msra.mxu0 %v2044
        %4309 = vmatpush.xpose.msra.mxu0 %v2012
        %4310 = vmatpush.xpose.msra.mxu0 %v1980
        %4311 = vmatpush.xpose.msra.mxu0 %v1948
        %4312 = vmatpush.xpose.msra.mxu0 %v1916
        %4313 = vmatpush.xpose.msra.mxu0 %v1884
        %4314 = vmatpush.xpose.msra.mxu0 %v1852
        %4315 = vmatpush.xpose.msra.mxu0 %v1820
        %4316 = vmatpush.xpose.msra.mxu0 %v1788
        %4317 = vmatpush.xpose.msra.mxu0 %v1756
        %4318 = vmatmul.f32.gmra.mxu0 %v188
        %v4319 = vpop.f32.mrf.mxu0
        %v4320 = vadd.f32 %v4300, %v4319
        %4321 = vdwg.mxu0
        %4322 = vmatpush.xpose.msra.mxu0 %v2237
        %4323 = vmatpush.xpose.msra.mxu0 %v2205
        %4324 = vmatpush.xpose.msra.mxu0 %v2173
        %4325 = vmatpush.xpose.msra.mxu0 %v2141
        %4326 = vmatpush.xpose.msra.mxu0 %v2109
        %4327 = vmatpush.xpose.msra.mxu0 %v2077
        %4328 = vmatpush.xpose.msra.mxu0 %v2045
        %4329 = vmatpush.xpose.msra.mxu0 %v2013
        %4330 = vmatpush.xpose.msra.mxu0 %v1981
        %4331 = vmatpush.xpose.msra.mxu0 %v1949
        %4332 = vmatpush.xpose.msra.mxu0 %v1917
        %4333 = vmatpush.xpose.msra.mxu0 %v1885
        %4334 = vmatpush.xpose.msra.mxu0 %v1853
        %4335 = vmatpush.xpose.msra.mxu0 %v1821
        %4336 = vmatpush.xpose.msra.mxu0 %v1789
        %4337 = vmatpush.xpose.msra.mxu0 %v1757
        %4338 = vmatmul.f32.gmra.mxu0 %v189
        %v4339 = vpop.f32.mrf.mxu0
        %v4340 = vadd.f32 %v4320, %v4339
        %4341 = vdwg.mxu0
        %4342 = vmatpush.xpose.msra.mxu0 %v2238
        %4343 = vmatpush.xpose.msra.mxu0 %v2206
        %4344 = vmatpush.xpose.msra.mxu0 %v2174
        %4345 = vmatpush.xpose.msra.mxu0 %v2142
        %4346 = vmatpush.xpose.msra.mxu0 %v2110
        %4347 = vmatpush.xpose.msra.mxu0 %v2078
        %4348 = vmatpush.xpose.msra.mxu0 %v2046
        %4349 = vmatpush.xpose.msra.mxu0 %v2014
        %4350 = vmatpush.xpose.msra.mxu0 %v1982
        %4351 = vmatpush.xpose.msra.mxu0 %v1950
        %4352 = vmatpush.xpose.msra.mxu0 %v1918
        %4353 = vmatpush.xpose.msra.mxu0 %v1886
        %4354 = vmatpush.xpose.msra.mxu0 %v1854
        %4355 = vmatpush.xpose.msra.mxu0 %v1822
        %4356 = vmatpush.xpose.msra.mxu0 %v1790
        %4357 = vmatpush.xpose.msra.mxu0 %v1758
        %4358 = vmatmul.f32.gmra.mxu0 %v190
        %v4359 = vpop.f32.mrf.mxu0
        %v4360 = vadd.f32 %v4340, %v4359
        %4361 = vdwg.mxu0
        %4362 = vmatpush.xpose.msra.mxu0 %v2239
        %4363 = vmatpush.xpose.msra.mxu0 %v2207
        %4364 = vmatpush.xpose.msra.mxu0 %v2175
        %4365 = vmatpush.xpose.msra.mxu0 %v2143
        %4366 = vmatpush.xpose.msra.mxu0 %v2111
        %4367 = vmatpush.xpose.msra.mxu0 %v2079
        %4368 = vmatpush.xpose.msra.mxu0 %v2047
        %4369 = vmatpush.xpose.msra.mxu0 %v2015
        %4370 = vmatpush.xpose.msra.mxu0 %v1983
        %4371 = vmatpush.xpose.msra.mxu0 %v1951
        %4372 = vmatpush.xpose.msra.mxu0 %v1919
        %4373 = vmatpush.xpose.msra.mxu0 %v1887
        %4374 = vmatpush.xpose.msra.mxu0 %v1855
        %4375 = vmatpush.xpose.msra.mxu0 %v1823
        %4376 = vmatpush.xpose.msra.mxu0 %v1791
        %4377 = vmatpush.xpose.msra.mxu0 %v1759
        %4378 = vmatmul.f32.gmra.mxu0 %v191
        %v4379 = vpop.f32.mrf.mxu0
        %v4380 = vadd.f32 %v4360, %v4379
        %4381 = vdwg.mxu0
        %4382 = vmatpush.xpose.msra.mxu0 %v2240
        %4383 = vmatpush.xpose.msra.mxu0 %v2208
        %4384 = vmatpush.xpose.msra.mxu0 %v2176
        %4385 = vmatpush.xpose.msra.mxu0 %v2144
        %4386 = vmatpush.xpose.msra.mxu0 %v2112
        %4387 = vmatpush.xpose.msra.mxu0 %v2080
        %4388 = vmatpush.xpose.msra.mxu0 %v2048
        %4389 = vmatpush.xpose.msra.mxu0 %v2016
        %4390 = vmatpush.xpose.msra.mxu0 %v1984
        %4391 = vmatpush.xpose.msra.mxu0 %v1952
        %4392 = vmatpush.xpose.msra.mxu0 %v1920
        %4393 = vmatpush.xpose.msra.mxu0 %v1888
        %4394 = vmatpush.xpose.msra.mxu0 %v1856
        %4395 = vmatpush.xpose.msra.mxu0 %v1824
        %4396 = vmatpush.xpose.msra.mxu0 %v1792
        %4397 = vmatpush.xpose.msra.mxu0 %v1760
        %4398 = vmatmul.f32.gmra.mxu0 %v192
        %v4399 = vpop.f32.mrf.mxu0
        %v4400 = vadd.f32 %v4380, %v4399
        %4401 = vdwg.mxu0
        %4402 = vmatpush.xpose.msra.mxu0 %v2241
        %4403 = vmatpush.xpose.msra.mxu0 %v2209
        %4404 = vmatpush.xpose.msra.mxu0 %v2177
        %4405 = vmatpush.xpose.msra.mxu0 %v2145
        %4406 = vmatpush.xpose.msra.mxu0 %v2113
        %4407 = vmatpush.xpose.msra.mxu0 %v2081
        %4408 = vmatpush.xpose.msra.mxu0 %v2049
        %4409 = vmatpush.xpose.msra.mxu0 %v2017
        %4410 = vmatpush.xpose.msra.mxu0 %v1985
        %4411 = vmatpush.xpose.msra.mxu0 %v1953
        %4412 = vmatpush.xpose.msra.mxu0 %v1921
        %4413 = vmatpush.xpose.msra.mxu0 %v1889
        %4414 = vmatpush.xpose.msra.mxu0 %v1857
        %4415 = vmatpush.xpose.msra.mxu0 %v1825
        %4416 = vmatpush.xpose.msra.mxu0 %v1793
        %4417 = vmatpush.xpose.msra.mxu0 %v1761
        %4418 = vmatmul.f32.gmra.mxu0 %v193
        %v4419 = vpop.f32.mrf.mxu0
        %v4420 = vadd.f32 %v4400, %v4419
        %4421 = vdwg.mxu0
        %4422 = vmatpush.xpose.msra.mxu0 %v2242
        %4423 = vmatpush.xpose.msra.mxu0 %v2210
        %4424 = vmatpush.xpose.msra.mxu0 %v2178
        %4425 = vmatpush.xpose.msra.mxu0 %v2146
        %4426 = vmatpush.xpose.msra.mxu0 %v2114
        %4427 = vmatpush.xpose.msra.mxu0 %v2082
        %4428 = vmatpush.xpose.msra.mxu0 %v2050
        %4429 = vmatpush.xpose.msra.mxu0 %v2018
        %4430 = vmatpush.xpose.msra.mxu0 %v1986
        %4431 = vmatpush.xpose.msra.mxu0 %v1954
        %4432 = vmatpush.xpose.msra.mxu0 %v1922
        %4433 = vmatpush.xpose.msra.mxu0 %v1890
        %4434 = vmatpush.xpose.msra.mxu0 %v1858
        %4435 = vmatpush.xpose.msra.mxu0 %v1826
        %4436 = vmatpush.xpose.msra.mxu0 %v1794
        %4437 = vmatpush.xpose.msra.mxu0 %v1762
        %4438 = vmatmul.f32.gmra.mxu0 %v194
        %v4439 = vpop.f32.mrf.mxu0
        %v4440 = vadd.f32 %v4420, %v4439
        %4441 = vdwg.mxu0
        %4442 = vmatpush.xpose.msra.mxu0 %v2243
        %4443 = vmatpush.xpose.msra.mxu0 %v2211
        %4444 = vmatpush.xpose.msra.mxu0 %v2179
        %4445 = vmatpush.xpose.msra.mxu0 %v2147
        %4446 = vmatpush.xpose.msra.mxu0 %v2115
        %4447 = vmatpush.xpose.msra.mxu0 %v2083
        %4448 = vmatpush.xpose.msra.mxu0 %v2051
        %4449 = vmatpush.xpose.msra.mxu0 %v2019
        %4450 = vmatpush.xpose.msra.mxu0 %v1987
        %4451 = vmatpush.xpose.msra.mxu0 %v1955
        %4452 = vmatpush.xpose.msra.mxu0 %v1923
        %4453 = vmatpush.xpose.msra.mxu0 %v1891
        %4454 = vmatpush.xpose.msra.mxu0 %v1859
        %4455 = vmatpush.xpose.msra.mxu0 %v1827
        %4456 = vmatpush.xpose.msra.mxu0 %v1795
        %4457 = vmatpush.xpose.msra.mxu0 %v1763
        %4458 = vmatmul.f32.gmra.mxu0 %v195
        %v4459 = vpop.f32.mrf.mxu0
        %v4460 = vadd.f32 %v4440, %v4459
        %4461 = vdwg.mxu0
        %4462 = vmatpush.xpose.msra.mxu0 %v2244
        %4463 = vmatpush.xpose.msra.mxu0 %v2212
        %4464 = vmatpush.xpose.msra.mxu0 %v2180
        %4465 = vmatpush.xpose.msra.mxu0 %v2148
        %4466 = vmatpush.xpose.msra.mxu0 %v2116
        %4467 = vmatpush.xpose.msra.mxu0 %v2084
        %4468 = vmatpush.xpose.msra.mxu0 %v2052
        %4469 = vmatpush.xpose.msra.mxu0 %v2020
        %4470 = vmatpush.xpose.msra.mxu0 %v1988
        %4471 = vmatpush.xpose.msra.mxu0 %v1956
        %4472 = vmatpush.xpose.msra.mxu0 %v1924
        %4473 = vmatpush.xpose.msra.mxu0 %v1892
        %4474 = vmatpush.xpose.msra.mxu0 %v1860
        %4475 = vmatpush.xpose.msra.mxu0 %v1828
        %4476 = vmatpush.xpose.msra.mxu0 %v1796
        %4477 = vmatpush.xpose.msra.mxu0 %v1764
        %4478 = vmatmul.f32.gmra.mxu0 %v196
        %v4479 = vpop.f32.mrf.mxu0
        %v4480 = vadd.f32 %v4460, %v4479
        %4481 = vdwg.mxu0
        %4482 = vmatpush.xpose.msra.mxu0 %v2245
        %4483 = vmatpush.xpose.msra.mxu0 %v2213
        %4484 = vmatpush.xpose.msra.mxu0 %v2181
        %4485 = vmatpush.xpose.msra.mxu0 %v2149
        %4486 = vmatpush.xpose.msra.mxu0 %v2117
        %4487 = vmatpush.xpose.msra.mxu0 %v2085
        %4488 = vmatpush.xpose.msra.mxu0 %v2053
        %4489 = vmatpush.xpose.msra.mxu0 %v2021
        %4490 = vmatpush.xpose.msra.mxu0 %v1989
        %4491 = vmatpush.xpose.msra.mxu0 %v1957
        %4492 = vmatpush.xpose.msra.mxu0 %v1925
        %4493 = vmatpush.xpose.msra.mxu0 %v1893
        %4494 = vmatpush.xpose.msra.mxu0 %v1861
        %4495 = vmatpush.xpose.msra.mxu0 %v1829
        %4496 = vmatpush.xpose.msra.mxu0 %v1797
        %4497 = vmatpush.xpose.msra.mxu0 %v1765
        %4498 = vmatmul.f32.gmra.mxu0 %v197
        %v4499 = vpop.f32.mrf.mxu0
        %v4500 = vadd.f32 %v4480, %v4499
        %4501 = vdwg.mxu0
        %4502 = vmatpush.xpose.msra.mxu0 %v2246
        %4503 = vmatpush.xpose.msra.mxu0 %v2214
        %4504 = vmatpush.xpose.msra.mxu0 %v2182
        %4505 = vmatpush.xpose.msra.mxu0 %v2150
        %4506 = vmatpush.xpose.msra.mxu0 %v2118
        %4507 = vmatpush.xpose.msra.mxu0 %v2086
        %4508 = vmatpush.xpose.msra.mxu0 %v2054
        %4509 = vmatpush.xpose.msra.mxu0 %v2022
        %4510 = vmatpush.xpose.msra.mxu0 %v1990
        %4511 = vmatpush.xpose.msra.mxu0 %v1958
        %4512 = vmatpush.xpose.msra.mxu0 %v1926
        %4513 = vmatpush.xpose.msra.mxu0 %v1894
        %4514 = vmatpush.xpose.msra.mxu0 %v1862
        %4515 = vmatpush.xpose.msra.mxu0 %v1830
        %4516 = vmatpush.xpose.msra.mxu0 %v1798
        %4517 = vmatpush.xpose.msra.mxu0 %v1766
        %4518 = vmatmul.f32.gmra.mxu0 %v198
        %v4519 = vpop.f32.mrf.mxu0
        %v4520 = vadd.f32 %v4500, %v4519
        %4521 = vdwg.mxu0
        %4522 = vmatpush.xpose.msra.mxu0 %v2247
        %4523 = vmatpush.xpose.msra.mxu0 %v2215
        %4524 = vmatpush.xpose.msra.mxu0 %v2183
        %4525 = vmatpush.xpose.msra.mxu0 %v2151
        %4526 = vmatpush.xpose.msra.mxu0 %v2119
        %4527 = vmatpush.xpose.msra.mxu0 %v2087
        %4528 = vmatpush.xpose.msra.mxu0 %v2055
        %4529 = vmatpush.xpose.msra.mxu0 %v2023
        %4530 = vmatpush.xpose.msra.mxu0 %v1991
        %4531 = vmatpush.xpose.msra.mxu0 %v1959
        %4532 = vmatpush.xpose.msra.mxu0 %v1927
        %4533 = vmatpush.xpose.msra.mxu0 %v1895
        %4534 = vmatpush.xpose.msra.mxu0 %v1863
        %4535 = vmatpush.xpose.msra.mxu0 %v1831
        %4536 = vmatpush.xpose.msra.mxu0 %v1799
        %4537 = vmatpush.xpose.msra.mxu0 %v1767
        %4538 = vmatmul.f32.gmra.mxu0 %v199
        %v4539 = vpop.f32.mrf.mxu0
        %v4540 = vadd.f32 %v4520, %v4539
        %4541 = vdwg.mxu0
        %4542 = vmatpush.xpose.msra.mxu0 %v2248
        %4543 = vmatpush.xpose.msra.mxu0 %v2216
        %4544 = vmatpush.xpose.msra.mxu0 %v2184
        %4545 = vmatpush.xpose.msra.mxu0 %v2152
        %4546 = vmatpush.xpose.msra.mxu0 %v2120
        %4547 = vmatpush.xpose.msra.mxu0 %v2088
        %4548 = vmatpush.xpose.msra.mxu0 %v2056
        %4549 = vmatpush.xpose.msra.mxu0 %v2024
        %4550 = vmatpush.xpose.msra.mxu0 %v1992
        %4551 = vmatpush.xpose.msra.mxu0 %v1960
        %4552 = vmatpush.xpose.msra.mxu0 %v1928
        %4553 = vmatpush.xpose.msra.mxu0 %v1896
        %4554 = vmatpush.xpose.msra.mxu0 %v1864
        %4555 = vmatpush.xpose.msra.mxu0 %v1832
        %4556 = vmatpush.xpose.msra.mxu0 %v1800
        %4557 = vmatpush.xpose.msra.mxu0 %v1768
        %4558 = vmatmul.f32.gmra.mxu0 %v200
        %v4559 = vpop.f32.mrf.mxu0
        %v4560 = vadd.f32 %v4540, %v4559
        %4561 = vdwg.mxu0
        %4562 = vmatpush.xpose.msra.mxu0 %v2249
        %4563 = vmatpush.xpose.msra.mxu0 %v2217
        %4564 = vmatpush.xpose.msra.mxu0 %v2185
        %4565 = vmatpush.xpose.msra.mxu0 %v2153
        %4566 = vmatpush.xpose.msra.mxu0 %v2121
        %4567 = vmatpush.xpose.msra.mxu0 %v2089
        %4568 = vmatpush.xpose.msra.mxu0 %v2057
        %4569 = vmatpush.xpose.msra.mxu0 %v2025
        %4570 = vmatpush.xpose.msra.mxu0 %v1993
        %4571 = vmatpush.xpose.msra.mxu0 %v1961
        %4572 = vmatpush.xpose.msra.mxu0 %v1929
        %4573 = vmatpush.xpose.msra.mxu0 %v1897
        %4574 = vmatpush.xpose.msra.mxu0 %v1865
        %4575 = vmatpush.xpose.msra.mxu0 %v1833
        %4576 = vmatpush.xpose.msra.mxu0 %v1801
        %4577 = vmatpush.xpose.msra.mxu0 %v1769
        %4578 = vmatmul.f32.gmra.mxu0 %v201
        %v4579 = vpop.f32.mrf.mxu0
        %v4580 = vadd.f32 %v4560, %v4579
        %4581 = vdwg.mxu0
        %4582 = vmatpush.xpose.msra.mxu0 %v2250
        %4583 = vmatpush.xpose.msra.mxu0 %v2218
        %4584 = vmatpush.xpose.msra.mxu0 %v2186
        %4585 = vmatpush.xpose.msra.mxu0 %v2154
        %4586 = vmatpush.xpose.msra.mxu0 %v2122
        %4587 = vmatpush.xpose.msra.mxu0 %v2090
        %4588 = vmatpush.xpose.msra.mxu0 %v2058
        %4589 = vmatpush.xpose.msra.mxu0 %v2026
        %4590 = vmatpush.xpose.msra.mxu0 %v1994
        %4591 = vmatpush.xpose.msra.mxu0 %v1962
        %4592 = vmatpush.xpose.msra.mxu0 %v1930
        %4593 = vmatpush.xpose.msra.mxu0 %v1898
        %4594 = vmatpush.xpose.msra.mxu0 %v1866
        %4595 = vmatpush.xpose.msra.mxu0 %v1834
        %4596 = vmatpush.xpose.msra.mxu0 %v1802
        %4597 = vmatpush.xpose.msra.mxu0 %v1770
        %4598 = vmatmul.f32.gmra.mxu0 %v202
        %v4599 = vpop.f32.mrf.mxu0
        %v4600 = vadd.f32 %v4580, %v4599
        %4601 = vdwg.mxu0
        %4602 = vmatpush.xpose.msra.mxu0 %v2251
        %4603 = vmatpush.xpose.msra.mxu0 %v2219
        %4604 = vmatpush.xpose.msra.mxu0 %v2187
        %4605 = vmatpush.xpose.msra.mxu0 %v2155
        %4606 = vmatpush.xpose.msra.mxu0 %v2123
        %4607 = vmatpush.xpose.msra.mxu0 %v2091
        %4608 = vmatpush.xpose.msra.mxu0 %v2059
        %4609 = vmatpush.xpose.msra.mxu0 %v2027
        %4610 = vmatpush.xpose.msra.mxu0 %v1995
        %4611 = vmatpush.xpose.msra.mxu0 %v1963
        %4612 = vmatpush.xpose.msra.mxu0 %v1931
        %4613 = vmatpush.xpose.msra.mxu0 %v1899
        %4614 = vmatpush.xpose.msra.mxu0 %v1867
        %4615 = vmatpush.xpose.msra.mxu0 %v1835
        %4616 = vmatpush.xpose.msra.mxu0 %v1803
        %4617 = vmatpush.xpose.msra.mxu0 %v1771
        %4618 = vmatmul.f32.gmra.mxu0 %v203
        %v4619 = vpop.f32.mrf.mxu0
        %v4620 = vadd.f32 %v4600, %v4619
        %4621 = vdwg.mxu0
        %4622 = vmatpush.xpose.msra.mxu0 %v2252
        %4623 = vmatpush.xpose.msra.mxu0 %v2220
        %4624 = vmatpush.xpose.msra.mxu0 %v2188
        %4625 = vmatpush.xpose.msra.mxu0 %v2156
        %4626 = vmatpush.xpose.msra.mxu0 %v2124
        %4627 = vmatpush.xpose.msra.mxu0 %v2092
        %4628 = vmatpush.xpose.msra.mxu0 %v2060
        %4629 = vmatpush.xpose.msra.mxu0 %v2028
        %4630 = vmatpush.xpose.msra.mxu0 %v1996
        %4631 = vmatpush.xpose.msra.mxu0 %v1964
        %4632 = vmatpush.xpose.msra.mxu0 %v1932
        %4633 = vmatpush.xpose.msra.mxu0 %v1900
        %4634 = vmatpush.xpose.msra.mxu0 %v1868
        %4635 = vmatpush.xpose.msra.mxu0 %v1836
        %4636 = vmatpush.xpose.msra.mxu0 %v1804
        %4637 = vmatpush.xpose.msra.mxu0 %v1772
        %4638 = vmatmul.f32.gmra.mxu0 %v204
        %v4639 = vpop.f32.mrf.mxu0
        %v4640 = vadd.f32 %v4620, %v4639
        %4641 = vdwg.mxu0
        %4642 = vmatpush.xpose.msra.mxu0 %v2253
        %4643 = vmatpush.xpose.msra.mxu0 %v2221
        %4644 = vmatpush.xpose.msra.mxu0 %v2189
        %4645 = vmatpush.xpose.msra.mxu0 %v2157
        %4646 = vmatpush.xpose.msra.mxu0 %v2125
        %4647 = vmatpush.xpose.msra.mxu0 %v2093
        %4648 = vmatpush.xpose.msra.mxu0 %v2061
        %4649 = vmatpush.xpose.msra.mxu0 %v2029
        %4650 = vmatpush.xpose.msra.mxu0 %v1997
        %4651 = vmatpush.xpose.msra.mxu0 %v1965
        %4652 = vmatpush.xpose.msra.mxu0 %v1933
        %4653 = vmatpush.xpose.msra.mxu0 %v1901
        %4654 = vmatpush.xpose.msra.mxu0 %v1869
        %4655 = vmatpush.xpose.msra.mxu0 %v1837
        %4656 = vmatpush.xpose.msra.mxu0 %v1805
        %4657 = vmatpush.xpose.msra.mxu0 %v1773
        %4658 = vmatmul.f32.gmra.mxu0 %v205
        %v4659 = vpop.f32.mrf.mxu0
        %v4660 = vadd.f32 %v4640, %v4659
        %4661 = vdwg.mxu0
        %4662 = vmatpush.xpose.msra.mxu0 %v2254
        %4663 = vmatpush.xpose.msra.mxu0 %v2222
        %4664 = vmatpush.xpose.msra.mxu0 %v2190
        %4665 = vmatpush.xpose.msra.mxu0 %v2158
        %4666 = vmatpush.xpose.msra.mxu0 %v2126
        %4667 = vmatpush.xpose.msra.mxu0 %v2094
        %4668 = vmatpush.xpose.msra.mxu0 %v2062
        %4669 = vmatpush.xpose.msra.mxu0 %v2030
        %4670 = vmatpush.xpose.msra.mxu0 %v1998
        %4671 = vmatpush.xpose.msra.mxu0 %v1966
        %4672 = vmatpush.xpose.msra.mxu0 %v1934
        %4673 = vmatpush.xpose.msra.mxu0 %v1902
        %4674 = vmatpush.xpose.msra.mxu0 %v1870
        %4675 = vmatpush.xpose.msra.mxu0 %v1838
        %4676 = vmatpush.xpose.msra.mxu0 %v1806
        %4677 = vmatpush.xpose.msra.mxu0 %v1774
        %4678 = vmatmul.f32.gmra.mxu0 %v206
        %v4679 = vpop.f32.mrf.mxu0
        %v4680 = vadd.f32 %v4660, %v4679
        %4681 = vdwg.mxu0
        %4682 = vmatpush.xpose.msra.mxu0 %v2255
        %4683 = vmatpush.xpose.msra.mxu0 %v2223
        %4684 = vmatpush.xpose.msra.mxu0 %v2191
        %4685 = vmatpush.xpose.msra.mxu0 %v2159
        %4686 = vmatpush.xpose.msra.mxu0 %v2127
        %4687 = vmatpush.xpose.msra.mxu0 %v2095
        %4688 = vmatpush.xpose.msra.mxu0 %v2063
        %4689 = vmatpush.xpose.msra.mxu0 %v2031
        %4690 = vmatpush.xpose.msra.mxu0 %v1999
        %4691 = vmatpush.xpose.msra.mxu0 %v1967
        %4692 = vmatpush.xpose.msra.mxu0 %v1935
        %4693 = vmatpush.xpose.msra.mxu0 %v1903
        %4694 = vmatpush.xpose.msra.mxu0 %v1871
        %4695 = vmatpush.xpose.msra.mxu0 %v1839
        %4696 = vmatpush.xpose.msra.mxu0 %v1807
        %4697 = vmatpush.xpose.msra.mxu0 %v1775
        %4698 = vmatmul.f32.gmra.mxu0 %v207
        %v4699 = vpop.f32.mrf.mxu0
        %v4700 = vadd.f32 %v4680, %v4699
        %4701 = vdwg.mxu0
        %4702 = vmatpush.xpose.msra.mxu0 %v2256
        %4703 = vmatpush.xpose.msra.mxu0 %v2224
        %4704 = vmatpush.xpose.msra.mxu0 %v2192
        %4705 = vmatpush.xpose.msra.mxu0 %v2160
        %4706 = vmatpush.xpose.msra.mxu0 %v2128
        %4707 = vmatpush.xpose.msra.mxu0 %v2096
        %4708 = vmatpush.xpose.msra.mxu0 %v2064
        %4709 = vmatpush.xpose.msra.mxu0 %v2032
        %4710 = vmatpush.xpose.msra.mxu0 %v2000
        %4711 = vmatpush.xpose.msra.mxu0 %v1968
        %4712 = vmatpush.xpose.msra.mxu0 %v1936
        %4713 = vmatpush.xpose.msra.mxu0 %v1904
        %4714 = vmatpush.xpose.msra.mxu0 %v1872
        %4715 = vmatpush.xpose.msra.mxu0 %v1840
        %4716 = vmatpush.xpose.msra.mxu0 %v1808
        %4717 = vmatpush.xpose.msra.mxu0 %v1776
        %4718 = vmatmul.f32.gmra.mxu0 %v208
        %v4719 = vpop.f32.mrf.mxu0
        %v4720 = vadd.f32 %v4700, %v4719
        %4721 = vdwg.mxu0
        %4722 = vmatpush.xpose.msra.mxu0 %v2257
        %4723 = vmatpush.xpose.msra.mxu0 %v2225
        %4724 = vmatpush.xpose.msra.mxu0 %v2193
        %4725 = vmatpush.xpose.msra.mxu0 %v2161
        %4726 = vmatpush.xpose.msra.mxu0 %v2129
        %4727 = vmatpush.xpose.msra.mxu0 %v2097
        %4728 = vmatpush.xpose.msra.mxu0 %v2065
        %4729 = vmatpush.xpose.msra.mxu0 %v2033
        %4730 = vmatpush.xpose.msra.mxu0 %v2001
        %4731 = vmatpush.xpose.msra.mxu0 %v1969
        %4732 = vmatpush.xpose.msra.mxu0 %v1937
        %4733 = vmatpush.xpose.msra.mxu0 %v1905
        %4734 = vmatpush.xpose.msra.mxu0 %v1873
        %4735 = vmatpush.xpose.msra.mxu0 %v1841
        %4736 = vmatpush.xpose.msra.mxu0 %v1809
        %4737 = vmatpush.xpose.msra.mxu0 %v1777
        %4738 = vmatmul.f32.gmra.mxu0 %v209
        %v4739 = vpop.f32.mrf.mxu0
        %v4740 = vadd.f32 %v4720, %v4739
        %4741 = vdwg.mxu0
        %4742 = vmatpush.xpose.msra.mxu0 %v2258
        %4743 = vmatpush.xpose.msra.mxu0 %v2226
        %4744 = vmatpush.xpose.msra.mxu0 %v2194
        %4745 = vmatpush.xpose.msra.mxu0 %v2162
        %4746 = vmatpush.xpose.msra.mxu0 %v2130
        %4747 = vmatpush.xpose.msra.mxu0 %v2098
        %4748 = vmatpush.xpose.msra.mxu0 %v2066
        %4749 = vmatpush.xpose.msra.mxu0 %v2034
        %4750 = vmatpush.xpose.msra.mxu0 %v2002
        %4751 = vmatpush.xpose.msra.mxu0 %v1970
        %4752 = vmatpush.xpose.msra.mxu0 %v1938
        %4753 = vmatpush.xpose.msra.mxu0 %v1906
        %4754 = vmatpush.xpose.msra.mxu0 %v1874
        %4755 = vmatpush.xpose.msra.mxu0 %v1842
        %4756 = vmatpush.xpose.msra.mxu0 %v1810
        %4757 = vmatpush.xpose.msra.mxu0 %v1778
        %4758 = vmatmul.f32.gmra.mxu0 %v210
        %v4759 = vpop.f32.mrf.mxu0
        %v4760 = vadd.f32 %v4740, %v4759
        %4761 = vdwg.mxu0
        %4762 = vmatpush.xpose.msra.mxu0 %v2259
        %4763 = vmatpush.xpose.msra.mxu0 %v2227
        %4764 = vmatpush.xpose.msra.mxu0 %v2195
        %4765 = vmatpush.xpose.msra.mxu0 %v2163
        %4766 = vmatpush.xpose.msra.mxu0 %v2131
        %4767 = vmatpush.xpose.msra.mxu0 %v2099
        %4768 = vmatpush.xpose.msra.mxu0 %v2067
        %4769 = vmatpush.xpose.msra.mxu0 %v2035
        %4770 = vmatpush.xpose.msra.mxu0 %v2003
        %4771 = vmatpush.xpose.msra.mxu0 %v1971
        %4772 = vmatpush.xpose.msra.mxu0 %v1939
        %4773 = vmatpush.xpose.msra.mxu0 %v1907
        %4774 = vmatpush.xpose.msra.mxu0 %v1875
        %4775 = vmatpush.xpose.msra.mxu0 %v1843
        %4776 = vmatpush.xpose.msra.mxu0 %v1811
        %4777 = vmatpush.xpose.msra.mxu0 %v1779
        %4778 = vmatmul.f32.gmra.mxu0 %v211
        %v4779 = vpop.f32.mrf.mxu0
        %v4780 = vadd.f32 %v4760, %v4779
        %4781 = vdwg.mxu0
        %4782 = vmatpush.xpose.msra.mxu0 %v2260
        %4783 = vmatpush.xpose.msra.mxu0 %v2228
        %4784 = vmatpush.xpose.msra.mxu0 %v2196
        %4785 = vmatpush.xpose.msra.mxu0 %v2164
        %4786 = vmatpush.xpose.msra.mxu0 %v2132
        %4787 = vmatpush.xpose.msra.mxu0 %v2100
        %4788 = vmatpush.xpose.msra.mxu0 %v2068
        %4789 = vmatpush.xpose.msra.mxu0 %v2036
        %4790 = vmatpush.xpose.msra.mxu0 %v2004
        %4791 = vmatpush.xpose.msra.mxu0 %v1972
        %4792 = vmatpush.xpose.msra.mxu0 %v1940
        %4793 = vmatpush.xpose.msra.mxu0 %v1908
        %4794 = vmatpush.xpose.msra.mxu0 %v1876
        %4795 = vmatpush.xpose.msra.mxu0 %v1844
        %4796 = vmatpush.xpose.msra.mxu0 %v1812
        %4797 = vmatpush.xpose.msra.mxu0 %v1780
        %4798 = vmatmul.f32.gmra.mxu0 %v212
        %v4799 = vpop.f32.mrf.mxu0
        %v4800 = vadd.f32 %v4780, %v4799
        %4801 = vdwg.mxu0
        %4802 = vmatpush.xpose.msra.mxu0 %v2261
        %4803 = vmatpush.xpose.msra.mxu0 %v2229
        %4804 = vmatpush.xpose.msra.mxu0 %v2197
        %4805 = vmatpush.xpose.msra.mxu0 %v2165
        %4806 = vmatpush.xpose.msra.mxu0 %v2133
        %4807 = vmatpush.xpose.msra.mxu0 %v2101
        %4808 = vmatpush.xpose.msra.mxu0 %v2069
        %4809 = vmatpush.xpose.msra.mxu0 %v2037
        %4810 = vmatpush.xpose.msra.mxu0 %v2005
        %4811 = vmatpush.xpose.msra.mxu0 %v1973
        %4812 = vmatpush.xpose.msra.mxu0 %v1941
        %4813 = vmatpush.xpose.msra.mxu0 %v1909
        %4814 = vmatpush.xpose.msra.mxu0 %v1877
        %4815 = vmatpush.xpose.msra.mxu0 %v1845
        %4816 = vmatpush.xpose.msra.mxu0 %v1813
        %4817 = vmatpush.xpose.msra.mxu0 %v1781
        %4818 = vmatmul.f32.gmra.mxu0 %v213
        %v4819 = vpop.f32.mrf.mxu0
        %v4820 = vadd.f32 %v4800, %v4819
        %4821 = vdwg.mxu0
        %4822 = vst [vmem:[%s168] sm:$0xff] %v2900
        %4823 = vst [vmem:[%s168 + $0x8] sm:$0xff] %v3540
        %4824 = vst [vmem:[%s168 + $0x10] sm:$0xff] %v4180
        %4825 = vst [vmem:[%s168 + $0x18] sm:$0xff] %v4820
        %s4826 = sand.u32 %s90, 1
        %s4827 = scalar_lea.sflag [#allocation3], %s4826
        %s4828 = sand.u32 %s90, 1
        %s4829 = smul.addr %s4828, 32
        %s4830 = scalar_lea.vmem [#allocation2], %s4829
        // Predicated region
        $region29: #{my_module_forward.3} parent=27 // pred_check
          %p4831 = pneg %p100
        $region30: #{my_module_forward.3} parent=27 // pred_check_branch
          %4833 = sbr.rel (%p4831) target = $region32
        $region31: #{my_module_forward.3} parent=27 // pred_region
          %s4834 = smul.u32 4, %s21
          %4836 = vsyncadd %s4827, 0
          %s4837 = smul.addr %s20, 32
          %s4838 = sadd.s32 %s4834, %s4837
          %s4839 = smul.addr %s4838, 8
          %s4840 = scalar_lea.hbm %s2, %s4839
          %s4842 = sshll.u32 %s4830, 4
          %s4843 = int_to_ptr.vmem [resolvable:$true] %s4842
          %s4844 = sshll.u32 %s4840, 4
          %s4845 = int_to_ptr.hbm [resolvable:$true] %s4844
          %4847 = dma.vmem_to_hbm [thread:$0]  %s4843, 512, %s4845, %s4827
        $region32: #{my_module_forward.3} parent=27 // pred_fallthru
          _
      $region28: #{my_module_forward.3} parent=5 // pred_fallthru
        _
      %p4848 = scmp.le.s32.totalorder 2, %s11
      // Predicated region
      $region33: #{my_module_forward.3} parent=5 // pred_check
        %p4849 = pneg %p4848
      $region34: #{my_module_forward.3} parent=5 // pred_check_branch
        %4851 = sbr.rel (%p4849) target = $region36
      $region35: #{my_module_forward.3} parent=5 // pred_region
        %s4852 = ssub.s32 %s11, 2
        // Predicated region
        $region37: #{my_module_forward.3} parent=35 // pred_check
          %p4853 = pneg %p106
        $region38: #{my_module_forward.3} parent=35 // pred_check_branch
          %4855 = sbr.rel (%p4853) target = $region40
        $region39: #{my_module_forward.3} parent=35 // pred_region
          %s4856 = sand.u32 %s91, 1
          %s4857 = scalar_lea.sflag [#allocation3], %s4856
          %s4858 = sand.u32 %s91, 1
          %s4859 = smul.addr %s4858, 32
          %s4860 = scalar_lea.vmem [#allocation2], %s4859
          %4862 = dma.done %s4857, 512
        $region40: #{my_module_forward.3} parent=35 // pred_fallthru
          _
      $region36: #{my_module_forward.3} parent=5 // pred_fallthru
        _
    $region6: #{my_module_forward.3} parent=1 // loop_footer
      %s15 = sadd.s32 1, %s11
    $region7: #{my_module_forward.3} parent=1 // loop_footer_branch
      %10 = sbr.rel target = $region3
    $region8: #{my_module_forward.3} parent=1 // loop_exit
      _
    %4863 = vsyncpa [#allocation3], 1
    %s4864 = scalar_lea.sflag [#allocation3], 1
    %4865 = vsyncpa %s4864, 1

</llo_original>
